<compile_context>
chip_gen: v7x
topology: tpu7x:2x2x1
jax: 0.10.0
libtpu: 0.0.40
codegen_flags: <defaults>
</compile_context>

<pallas_src>
import functools
import math

import jax
import jax.numpy as jnp
from jax import lax
from jax.experimental import pallas as pl
from jax.experimental.pallas import tpu as pltpu


# ----------------------------- in-kernel helpers ------------------------------
def _erf(x):
    # Numerical-Recipes erfc approximation (|err| < 1.2e-7, i.e. float32-exact);
    # used because lax.erf has no guaranteed Mosaic lowering. One exp -> EUP slot.
    ax = jnp.abs(x)
    t = 1.0 / (1.0 + 0.5 * ax)
    poly = -1.26551223 + t * (1.00002368 + t * (0.37409196 + t * (0.09678418 + t * (
        -0.18628806 + t * (0.27886807 + t * (-1.13520398 + t * (1.48851587 + t * (
            -0.82215223 + t * 0.17087277))))))))
    erfc_pos = t * jnp.exp(-ax * ax + poly)
    erf_abs = 1.0 - erfc_pos
    return jnp.where(x >= 0.0, erf_abs, -erf_abs)


def _gelu_exact(x):
    # Matches torch.nn.GELU() default (erf-based).
    return 0.5 * x * (1.0 + _erf(x * 0.7071067811865476))


def _gelu_tanh(x):
    # tanh approximation; routes the transcendental to the EUP slot. ~1e-3 delta.
    c = 0.7978845608028654  # sqrt(2/pi)
    return 0.5 * x * (1.0 + jnp.tanh(c * (x + 0.044715 * x * x * x)))


# --------------------------------- kernel 1 -----------------------------------
def _dwconv_groupnorm_kernel(xpad_ref, w_ref, b_ref, h_ref, xcl_ref, *, K, H, W, pad):
    # xpad_ref: (H+K-1, W+K-1, C) zero-padded input, channels-last (lanes = C)
    # w_ref:    (K, K, C) depthwise weights; b_ref: (1, 1, C)
    # h_ref:    (H, W, C) normalized output (GroupNorm affine folded into w1/b1)
    # xcl_ref:  (H, W, C) raw-input copy (shortcut path for kernel 2)
    w = w_ref[...]
    xcl_ref[...] = xpad_ref[pad:pad + H, pad:pad + W, :]

    acc = jnp.zeros(h_ref.shape, jnp.float32)
    for dy in range(K):                 # static unroll; cross-correlation like Conv2d
        for dx in range(K):
            acc = acc + xpad_ref[dy:dy + H, dx:dx + W, :] * w[dy:dy + 1, dx:dx + 1, :]
    acc = acc + b_ref[...]

    # GroupNorm(num_groups=1): normalize over the full (H, W, C) sample, biased var,
    # eps=1e-5. NOTE: relies on the block being the whole sample (true with the
    # specs below). For large H*W*C a two-pass (stats, then normalize) tiling of this
    # kernel would be needed.
    n = acc.size
    mean = jnp.sum(acc) * (1.0 / n)
    cen = acc - mean
    var = jnp.sum(cen * cen) * (1.0 / n)
    h_ref[...] = cen * lax.rsqrt(var + 1e-5)


# --------------------------------- kernel 2 -----------------------------------
def _pointwise_mlp_kernel(h_ref, x_ref, w1_ref, b1_ref, w2_ref, b2_ref,
                          ws_ref, bs_ref, o_ref, *, use_tanh_gelu):
    # h/x: (TM, C) row tiles; w1: (C, dim); w2: (dim, Cout); ws: (C, Cout)
    gelu = _gelu_tanh if use_tanh_gelu else _gelu_exact
    a = jnp.dot(h_ref[...], w1_ref[...], preferred_element_type=jnp.float32) + b1_ref[...]
    a = gelu(a)
    res = jnp.dot(a, w2_ref[...], preferred_element_type=jnp.float32) + b2_ref[...]
    sc = jnp.dot(x_ref[...], ws_ref[...], preferred_element_type=jnp.float32) + bs_ref[...]
    o_ref[...] = res + sc


def _pointwise_mlp_identity_kernel(h_ref, x_ref, w1_ref, b1_ref, w2_ref, b2_ref,
                                   o_ref, *, use_tanh_gelu):
    # Identity shortcut (C == Cout): no shortcut matmul, just a residual add.
    gelu = _gelu_tanh if use_tanh_gelu else _gelu_exact
    a = jnp.dot(h_ref[...], w1_ref[...], preferred_element_type=jnp.float32) + b1_ref[...]
    a = gelu(a)
    res = jnp.dot(a, w2_ref[...], preferred_element_type=jnp.float32) + b2_ref[...]
    o_ref[...] = res + x_ref[...]


# ------------------------------- tile selection --------------------------------
def _pick_row_tile(R, C, dim, Cout, budget_bytes=8 << 20):
    """Largest row tile (multiple of 8, <= 256, dividing R) whose per-tile working set
    (double-buffered inputs/output + (TM, dim) intermediate, f32) fits a conservative
    VMEM activation budget — safe for the 16 MiB / 32 MiB default scoped limits on
    v5e/v6e and the 64 MiB physical VMEM on v7x without setting vmem_limit_bytes."""
    per_row = 4 * (2 * 2 * C + dim + 2 * Cout)
    cap = min(256, R, max(8, budget_bytes // max(per_row, 1)))
    tm = cap - (cap % 8)
    while tm >= 8:
        if R % tm == 0:
            return tm
        tm -= 8
    return R


# --------------------------------- wrapper ------------------------------------
def convnext_block(x, params, *, kernel_size=7, approximate_gelu=False):
    N, C, H, W = x.shape
    K = kernel_size
    assert K % 2 == 1, "only odd kernel_size supported ('same' padding is symmetric)"
    pad = (K - 1) // 2
    Hp, Wp = H + K - 1, W + K - 1
    HW = H * W

    dw_w = params["dw_w"]          # (C, K, K)
    dw_b = params["dw_b"]          # (C,)
    gamma = params["gn_gamma"]     # (C,)
    beta = params["gn_beta"]       # (C,)
    w1 = params["w1"]              # (dim, C)
    b1 = params["b1"]              # (dim,)
    w2 = params["w2"]              # (Cout, dim)
    b2 = params["b2"]              # (Cout,)
    dim = w1.shape[0]
    Cout = w2.shape[0]

    # NCHW -> channels-last + zero pad ('same'); XLA fuses this into one copy of x.
    xpad = jnp.pad(jnp.transpose(x, (0, 2, 3, 1)),
                   ((0, 0), (pad, pad), (pad, pad), (0, 0)))

    # --- kernel 1: depthwise conv + GroupNorm stats/normalize, channels-last ---
    h, xcl = pl.pallas_call(
        functools.partial(_dwconv_groupnorm_kernel, K=K, H=H, W=W, pad=pad),
        out_shape=(jax.ShapeDtypeStruct((N, H, W, C), jnp.float32),
                   jax.ShapeDtypeStruct((N, H, W, C), jnp.float32)),
        grid=(N,),
        in_specs=[
            pl.BlockSpec((None, Hp, Wp, C), lambda n: (n, 0, 0, 0)),
            pl.BlockSpec((K, K, C), lambda n: (0, 0, 0)),
            pl.BlockSpec((1, 1, C), lambda n: (0, 0, 0)),
        ],
        out_specs=[
            pl.BlockSpec((None, H, W, C), lambda n: (n, 0, 0, 0)),
            pl.BlockSpec((None, H, W, C), lambda n: (n, 0, 0, 0)),
        ],
        compiler_params=pltpu.CompilerParams(dimension_semantics=("parallel",)),
    )(xpad, jnp.transpose(dw_w, (1, 2, 0)), dw_b.reshape(1, 1, C))

    # Contiguous reshapes only (no data movement): channels-last rows for the MXU.
    R = N * HW
    h_rows = h.reshape(R, C)
    x_rows = xcl.reshape(R, C)

    # Fold the GroupNorm affine into the first 1x1 conv (exact linear-algebra fold).
    w1f = (w1 * gamma[None, :]).T            # (C, dim)
    b1f = (b1 + w1 @ beta).reshape(1, dim)   # (1, dim)

    TM = _pick_row_tile(R, C, dim, Cout)
    cparams = pltpu.CompilerParams(dimension_semantics=("parallel",))

    # --- kernel 2: 1x1 conv -> GELU -> 1x1 conv, shortcut, residual add ---
    if "ws" in params:                       # Conv2d 1x1 shortcut (C != Cout)
        out_rows = pl.pallas_call(
            functools.partial(_pointwise_mlp_kernel, use_tanh_gelu=approximate_gelu),
            out_shape=jax.ShapeDtypeStruct((R, Cout), jnp.float32),
            grid=(R // TM,),
            in_specs=[
                pl.BlockSpec((TM, C), lambda r: (r, 0)),
                pl.BlockSpec((TM, C), lambda r: (r, 0)),
                pl.BlockSpec((C, dim), lambda r: (0, 0)),
                pl.BlockSpec((1, dim), lambda r: (0, 0)),
                pl.BlockSpec((dim, Cout), lambda r: (0, 0)),
                pl.BlockSpec((1, Cout), lambda r: (0, 0)),
                pl.BlockSpec((C, Cout), lambda r: (0, 0)),
                pl.BlockSpec((1, Cout), lambda r: (0, 0)),
            ],
            out_specs=pl.BlockSpec((TM, Cout), lambda r: (r, 0)),
            compiler_params=cparams,
        )(h_rows, x_rows, w1f, b1f, w2.T, b2.reshape(1, Cout),
          params["ws"].T, params["bs"].reshape(1, Cout))
    else:                                    # nn.Identity shortcut (C == Cout)
        out_rows = pl.pallas_call(
            functools.partial(_pointwise_mlp_identity_kernel,
                              use_tanh_gelu=approximate_gelu),
            out_shape=jax.ShapeDtypeStruct((R, Cout), jnp.float32),
            grid=(R // TM,),
            in_specs=[
                pl.BlockSpec((TM, C), lambda r: (r, 0)),
                pl.BlockSpec((TM, C), lambda r: (r, 0)),
                pl.BlockSpec((C, dim), lambda r: (0, 0)),
                pl.BlockSpec((1, dim), lambda r: (0, 0)),
                pl.BlockSpec((dim, Cout), lambda r: (0, 0)),
                pl.BlockSpec((1, Cout), lambda r: (0, 0)),
            ],
            out_specs=pl.BlockSpec((TM, Cout), lambda r: (r, 0)),
            compiler_params=cparams,
        )(h_rows, x_rows, w1f, b1f, w2.T, b2.reshape(1, Cout))

    # Back to the external NCHW interface (single transpose at the boundary).
    return jnp.transpose(out_rows.reshape(N, H, W, Cout), (0, 3, 1, 2))


# ---------------------------- deterministic params ----------------------------
def init_params(key, input_channels, output_channels, kernel_size=7, expansion_factor=4):
    C, Cout, K = input_channels, output_channels, kernel_size
    dim = C * expansion_factor
    ks = jax.random.split(key, 8)

    def u(k, shape, fan_in):
        bound = 1.0 / math.sqrt(fan_in)
        return jax.random.uniform(k, shape, jnp.float32, -bound, bound)

    params = {
        "dw_w": u(ks[0], (C, K, K), K * K),     # depthwise conv (groups=C)
        "dw_b": u(ks[1], (C,), K * K),
        "gn_gamma": jnp.ones((C,), jnp.float32),
        "gn_beta": jnp.zeros((C,), jnp.float32),
        "w1": u(ks[2], (dim, C), C),            # Conv2d(C, dim, 1)
        "b1": u(ks[3], (dim,), C),
        "w2": u(ks[4], (Cout, dim), dim),       # Conv2d(dim, Cout, 1)
        "b2": u(ks[5], (Cout,), dim),
    }
    if C != Cout:                               # shortcut Conv2d(C, Cout, 1)
        params["ws"] = u(ks[6], (Cout, C), C)
        params["bs"] = u(ks[7], (Cout,), C)
    return params


# ------------------------------ pure-JAX reference ------------------------------
def _reference(x, params, kernel_size):
    N, C, H, W = x.shape
    K = kernel_size
    pad = (K - 1) // 2
    dw_w = params["dw_w"].reshape(C, 1, K, K)
    h = lax.conv_general_dilated(x, dw_w, (1, 1), [(pad, pad), (pad, pad)],
                                 feature_group_count=C,
                                 dimension_numbers=("NCHW", "OIHW", "NCHW"))
    h = h + params["dw_b"].reshape(1, C, 1, 1)
    mean = h.mean(axis=(1, 2, 3), keepdims=True)
    var = h.var(axis=(1, 2, 3), keepdims=True)
    h = (h - mean) / jnp.sqrt(var + 1e-5)
    h = h * params["gn_gamma"].reshape(1, C, 1, 1) + params["gn_beta"].reshape(1, C, 1, 1)
    a = jnp.einsum("nchw,dc->ndhw", h, params["w1"]) + params["b1"].reshape(1, -1, 1, 1)
    a = jax.nn.gelu(a, approximate=False)
    res = jnp.einsum("ndhw,od->nohw", a, params["w2"]) + params["b2"].reshape(1, -1, 1, 1)
    if "ws" in params:
        sc = jnp.einsum("nchw,oc->nohw", x, params["ws"]) + params["bs"].reshape(1, -1, 1, 1)
    else:
        sc = x
    return res + sc


if __name__ == "__main__":
    key = jax.random.PRNGKey(0)
    kx, kp, kp2 = jax.random.split(key, 3)

    N, C, H, W = 2, 4, 16, 16
    Cout = 8                                    # != C -> exercises the conv shortcut
    x = jax.random.normal(kx, (N, C, H, W), jnp.float32)

    # Conv-shortcut variant
    params = init_params(kp, C, Cout, kernel_size=7, expansion_factor=4)
    fn = jax.jit(functools.partial(convnext_block, kernel_size=7))
    out = fn(x, params)
    jax.block_until_ready(out)
    assert out.shape == (N, Cout, H, W) and out.dtype == jnp.float32
    ref = _reference(x, params, 7)
    assert jnp.allclose(out, ref, atol=2e-3, rtol=2e-3), \
        float(jnp.max(jnp.abs(out - ref)))

    # Identity-shortcut variant (C == Cout) -> skips the shortcut matmul entirely
    params_id = init_params(kp2, C, C, kernel_size=7, expansion_factor=4)
    out_id = jax.jit(functools.partial(convnext_block, kernel_size=7))(x, params_id)
    jax.block_until_ready(out_id)
    assert out_id.shape == (N, C, H, W)
    ref_id = _reference(x, params_id, 7)
    assert jnp.allclose(out_id, ref_id, atol=2e-3, rtol=2e-3), \
        float(jnp.max(jnp.abs(out_id - ref_id)))

    print("KERNEL_OK")
</pallas_src>

<mosaic_0001>
module attributes {stable_mosaic.version = 11 : i64} {
  func.func @_dwconv_groupnorm_kernel(%arg0: i32, %arg1: memref<1x22x22x4xf32, #tpu.memory_space<vmem>>, %arg2: memref<7x7x4xf32, #tpu.memory_space<vmem>>, %arg3: memref<1x1x4xf32, #tpu.memory_space<vmem>>, %arg4: memref<1x16x16x4xf32, #tpu.memory_space<vmem>>, %arg5: memref<1x16x16x4xf32, #tpu.memory_space<vmem>>) attributes {dimension_semantics = [#tpu.dimension_semantics<parallel>], iteration_bounds = array<i64: 2>, scalar_prefetch = 0 : i64, scratch_operands = 0 : i64, tpu.core_type = #tpu.core_type<tc>, window_params = [{transform_indices = @transform_0, window_bounds = array<i64: 1, 22, 22, 4>}, {pipeline_mode = #tpu.pipeline_mode<synchronous>, transform_indices = @transform_1, window_bounds = array<i64: 7, 7, 4>}, {pipeline_mode = #tpu.pipeline_mode<synchronous>, transform_indices = @transform_2, window_bounds = array<i64: 1, 1, 4>}, {transform_indices = @transform_3, window_bounds = array<i64: 1, 16, 16, 4>}, {transform_indices = @transform_4, window_bounds = array<i64: 1, 16, 16, 4>}]} {
    %c0 = arith.constant 0 : index
    %c0_0 = arith.constant 0 : index
    %c0_1 = arith.constant 0 : index
    %0 = vector.load %arg2[%c0, %c0_0, %c0_1] : memref<7x7x4xf32, #tpu.memory_space<vmem>>, vector<7x7x4xf32>
    %c0_2 = arith.constant 0 : index
    %c3 = arith.constant 3 : index
    %c3_3 = arith.constant 3 : index
    %c0_4 = arith.constant 0 : index
    %1 = vector.load %arg1[%c0_2, %c3, %c3_3, %c0_4] : memref<1x22x22x4xf32, #tpu.memory_space<vmem>>, vector<1x16x16x4xf32>
    %2 = vector.shape_cast %1 : vector<1x16x16x4xf32> to vector<16x16x4xf32>
    %c0_5 = arith.constant 0 : index
    %c0_6 = arith.constant 0 : index
    %c0_7 = arith.constant 0 : index
    %c0_8 = arith.constant 0 : index
    %3 = vector.load %arg5[%c0_5, %c0_6, %c0_7, %c0_8] : memref<1x16x16x4xf32, #tpu.memory_space<vmem>>, vector<1x16x16x4xf32>
    %4 = vector.shape_cast %3 : vector<1x16x16x4xf32> to vector<16x16x4xf32>
    %5 = vector.shape_cast %2 : vector<16x16x4xf32> to vector<1x16x16x4xf32>
    tpu.vector_store %arg5[%c0_5, %c0_6, %c0_7, %c0_8], %5 {strides = array<i32>} : memref<1x16x16x4xf32, #tpu.memory_space<vmem>>, vector<1x16x16x4xf32>,
    %cst = arith.constant 0.000000e+00 : f32
    %6 = vector.broadcast %cst : f32 to vector<16x16x4xf32>
    %c0_9 = arith.constant 0 : index
    %c0_10 = arith.constant 0 : index
    %c0_11 = arith.constant 0 : index
    %c0_12 = arith.constant 0 : index
    %7 = vector.load %arg1[%c0_9, %c0_10, %c0_11, %c0_12] : memref<1x22x22x4xf32, #tpu.memory_space<vmem>>, vector<1x16x16x4xf32>
    %8 = vector.shape_cast %7 : vector<1x16x16x4xf32> to vector<16x16x4xf32>
    %9 = vector.extract_strided_slice %0 {offsets = [0, 0, 0], sizes = [1, 1, 4], strides = [1, 1, 1]} : vector<7x7x4xf32> to vector<1x1x4xf32>
    %10 = vector.broadcast %9 : vector<1x1x4xf32> to vector<16x16x4xf32>
    %11 = arith.mulf %8, %10 : vector<16x16x4xf32>
    %12 = arith.addf %6, %11 : vector<16x16x4xf32>
    %c0_13 = arith.constant 0 : index
    %c0_14 = arith.constant 0 : index
    %c1 = arith.constant 1 : index
    %c0_15 = arith.constant 0 : index
    %13 = vector.load %arg1[%c0_13, %c0_14, %c1, %c0_15] : memref<1x22x22x4xf32, #tpu.memory_space<vmem>>, vector<1x16x16x4xf32>
    %14 = vector.shape_cast %13 : vector<1x16x16x4xf32> to vector<16x16x4xf32>
    %15 = vector.extract_strided_slice %0 {offsets = [0, 1, 0], sizes = [1, 1, 4], strides = [1, 1, 1]} : vector<7x7x4xf32> to vector<1x1x4xf32>
    %16 = vector.broadcast %15 : vector<1x1x4xf32> to vector<16x16x4xf32>
    %17 = arith.mulf %14, %16 : vector<16x16x4xf32>
    %18 = arith.addf %12, %17 : vector<16x16x4xf32>
    %c0_16 = arith.constant 0 : index
    %c0_17 = arith.constant 0 : index
    %c2 = arith.constant 2 : index
    %c0_18 = arith.constant 0 : index
    %19 = vector.load %arg1[%c0_16, %c0_17, %c2, %c0_18] : memref<1x22x22x4xf32, #tpu.memory_space<vmem>>, vector<1x16x16x4xf32>
    %20 = vector.shape_cast %19 : vector<1x16x16x4xf32> to vector<16x16x4xf32>
    %21 = vector.extract_strided_slice %0 {offsets = [0, 2, 0], sizes = [1, 1, 4], strides = [1, 1, 1]} : vector<7x7x4xf32> to vector<1x1x4xf32>
    %22 = vector.broadcast %21 : vector<1x1x4xf32> to vector<16x16x4xf32>
    %23 = arith.mulf %20, %22 : vector<16x16x4xf32>
    %24 = arith.addf %18, %23 : vector<16x16x4xf32>
    %c0_19 = arith.constant 0 : index
    %c0_20 = arith.constant 0 : index
    %c3_21 = arith.constant 3 : index
    %c0_22 = arith.constant 0 : index
    %25 = vector.load %arg1[%c0_19, %c0_20, %c3_21, %c0_22] : memref<1x22x22x4xf32, #tpu.memory_space<vmem>>, vector<1x16x16x4xf32>
    %26 = vector.shape_cast %25 : vector<1x16x16x4xf32> to vector<16x16x4xf32>
    %27 = vector.extract_strided_slice %0 {offsets = [0, 3, 0], sizes = [1, 1, 4], strides = [1, 1, 1]} : vector<7x7x4xf32> to vector<1x1x4xf32>
    %28 = vector.broadcast %27 : vector<1x1x4xf32> to vector<16x16x4xf32>
    %29 = arith.mulf %26, %28 : vector<16x16x4xf32>
    %30 = arith.addf %24, %29 : vector<16x16x4xf32>
    %c0_23 = arith.constant 0 : index
    %c0_24 = arith.constant 0 : index
    %c4 = arith.constant 4 : index
    %c0_25 = arith.constant 0 : index
    %31 = vector.load %arg1[%c0_23, %c0_24, %c4, %c0_25] : memref<1x22x22x4xf32, #tpu.memory_space<vmem>>, vector<1x16x16x4xf32>
    %32 = vector.shape_cast %31 : vector<1x16x16x4xf32> to vector<16x16x4xf32>
    %33 = vector.extract_strided_slice %0 {offsets = [0, 4, 0], sizes = [1, 1, 4], strides = [1, 1, 1]} : vector<7x7x4xf32> to vector<1x1x4xf32>
    %34 = vector.broadcast %33 : vector<1x1x4xf32> to vector<16x16x4xf32>
    %35 = arith.mulf %32, %34 : vector<16x16x4xf32>
    %36 = arith.addf %30, %35 : vector<16x16x4xf32>
    %c0_26 = arith.constant 0 : index
    %c0_27 = arith.constant 0 : index
    %c5 = arith.constant 5 : index
    %c0_28 = arith.constant 0 : index
    %37 = vector.load %arg1[%c0_26, %c0_27, %c5, %c0_28] : memref<1x22x22x4xf32, #tpu.memory_space<vmem>>, vector<1x16x16x4xf32>
    %38 = vector.shape_cast %37 : vector<1x16x16x4xf32> to vector<16x16x4xf32>
    %39 = vector.extract_strided_slice %0 {offsets = [0, 5, 0], sizes = [1, 1, 4], strides = [1, 1, 1]} : vector<7x7x4xf32> to vector<1x1x4xf32>
    %40 = vector.broadcast %39 : vector<1x1x4xf32> to vector<16x16x4xf32>
    %41 = arith.mulf %38, %40 : vector<16x16x4xf32>
    %42 = arith.addf %36, %41 : vector<16x16x4xf32>
    %c0_29 = arith.constant 0 : index
    %c0_30 = arith.constant 0 : index
    %c6 = arith.constant 6 : index
    %c0_31 = arith.constant 0 : index
    %43 = vector.load %arg1[%c0_29, %c0_30, %c6, %c0_31] : memref<1x22x22x4xf32, #tpu.memory_space<vmem>>, vector<1x16x16x4xf32>
    %44 = vector.shape_cast %43 : vector<1x16x16x4xf32> to vector<16x16x4xf32>
    %45 = vector.extract_strided_slice %0 {offsets = [0, 6, 0], sizes = [1, 1, 4], strides = [1, 1, 1]} : vector<7x7x4xf32> to vector<1x1x4xf32>
    %46 = vector.broadcast %45 : vector<1x1x4xf32> to vector<16x16x4xf32>
    %47 = arith.mulf %44, %46 : vector<16x16x4xf32>
    %48 = arith.addf %42, %47 : vector<16x16x4xf32>
    %c0_32 = arith.constant 0 : index
    %c1_33 = arith.constant 1 : index
    %c0_34 = arith.constant 0 : index
    %c0_35 = arith.constant 0 : index
    %49 = vector.load %arg1[%c0_32, %c1_33, %c0_34, %c0_35] : memref<1x22x22x4xf32, #tpu.memory_space<vmem>>, vector<1x16x16x4xf32>
    %50 = vector.shape_cast %49 : vector<1x16x16x4xf32> to vector<16x16x4xf32>
    %51 = vector.extract_strided_slice %0 {offsets = [1, 0, 0], sizes = [1, 1, 4], strides = [1, 1, 1]} : vector<7x7x4xf32> to vector<1x1x4xf32>
    %52 = vector.broadcast %51 : vector<1x1x4xf32> to vector<16x16x4xf32>
    %53 = arith.mulf %50, %52 : vector<16x16x4xf32>
    %54 = arith.addf %48, %53 : vector<16x16x4xf32>
    %c0_36 = arith.constant 0 : index
    %c1_37 = arith.constant 1 : index
    %c1_38 = arith.constant 1 : index
    %c0_39 = arith.constant 0 : index
    %55 = vector.load %arg1[%c0_36, %c1_37, %c1_38, %c0_39] : memref<1x22x22x4xf32, #tpu.memory_space<vmem>>, vector<1x16x16x4xf32>
    %56 = vector.shape_cast %55 : vector<1x16x16x4xf32> to vector<16x16x4xf32>
    %57 = vector.extract_strided_slice %0 {offsets = [1, 1, 0], sizes = [1, 1, 4], strides = [1, 1, 1]} : vector<7x7x4xf32> to vector<1x1x4xf32>
    %58 = vector.broadcast %57 : vector<1x1x4xf32> to vector<16x16x4xf32>
    %59 = arith.mulf %56, %58 : vector<16x16x4xf32>
    %60 = arith.addf %54, %59 : vector<16x16x4xf32>
    %c0_40 = arith.constant 0 : index
    %c1_41 = arith.constant 1 : index
    %c2_42 = arith.constant 2 : index
    %c0_43 = arith.constant 0 : index
    %61 = vector.load %arg1[%c0_40, %c1_41, %c2_42, %c0_43] : memref<1x22x22x4xf32, #tpu.memory_space<vmem>>, vector<1x16x16x4xf32>
    %62 = vector.shape_cast %61 : vector<1x16x16x4xf32> to vector<16x16x4xf32>
    %63 = vector.extract_strided_slice %0 {offsets = [1, 2, 0], sizes = [1, 1, 4], strides = [1, 1, 1]} : vector<7x7x4xf32> to vector<1x1x4xf32>
    %64 = vector.broadcast %63 : vector<1x1x4xf32> to vector<16x16x4xf32>
    %65 = arith.mulf %62, %64 : vector<16x16x4xf32>
    %66 = arith.addf %60, %65 : vector<16x16x4xf32>
    %c0_44 = arith.constant 0 : index
    %c1_45 = arith.constant 1 : index
    %c3_46 = arith.constant 3 : index
    %c0_47 = arith.constant 0 : index
    %67 = vector.load %arg1[%c0_44, %c1_45, %c3_46, %c0_47] : memref<1x22x22x4xf32, #tpu.memory_space<vmem>>, vector<1x16x16x4xf32>
    %68 = vector.shape_cast %67 : vector<1x16x16x4xf32> to vector<16x16x4xf32>
    %69 = vector.extract_strided_slice %0 {offsets = [1, 3, 0], sizes = [1, 1, 4], strides = [1, 1, 1]} : vector<7x7x4xf32> to vector<1x1x4xf32>
    %70 = vector.broadcast %69 : vector<1x1x4xf32> to vector<16x16x4xf32>
    %71 = arith.mulf %68, %70 : vector<16x16x4xf32>
    %72 = arith.addf %66, %71 : vector<16x16x4xf32>
    %c0_48 = arith.constant 0 : index
    %c1_49 = arith.constant 1 : index
    %c4_50 = arith.constant 4 : index
    %c0_51 = arith.constant 0 : index
    %73 = vector.load %arg1[%c0_48, %c1_49, %c4_50, %c0_51] : memref<1x22x22x4xf32, #tpu.memory_space<vmem>>, vector<1x16x16x4xf32>
    %74 = vector.shape_cast %73 : vector<1x16x16x4xf32> to vector<16x16x4xf32>
    %75 = vector.extract_strided_slice %0 {offsets = [1, 4, 0], sizes = [1, 1, 4], strides = [1, 1, 1]} : vector<7x7x4xf32> to vector<1x1x4xf32>
    %76 = vector.broadcast %75 : vector<1x1x4xf32> to vector<16x16x4xf32>
    %77 = arith.mulf %74, %76 : vector<16x16x4xf32>
    %78 = arith.addf %72, %77 : vector<16x16x4xf32>
    %c0_52 = arith.constant 0 : index
    %c1_53 = arith.constant 1 : index
    %c5_54 = arith.constant 5 : index
    %c0_55 = arith.constant 0 : index
    %79 = vector.load %arg1[%c0_52, %c1_53, %c5_54, %c0_55] : memref<1x22x22x4xf32, #tpu.memory_space<vmem>>, vector<1x16x16x4xf32>
    %80 = vector.shape_cast %79 : vector<1x16x16x4xf32> to vector<16x16x4xf32>
    %81 = vector.extract_strided_slice %0 {offsets = [1, 5, 0], sizes = [1, 1, 4], strides = [1, 1, 1]} : vector<7x7x4xf32> to vector<1x1x4xf32>
    %82 = vector.broadcast %81 : vector<1x1x4xf32> to vector<16x16x4xf32>
    %83 = arith.mulf %80, %82 : vector<16x16x4xf32>
    %84 = arith.addf %78, %83 : vector<16x16x4xf32>
    %c0_56 = arith.constant 0 : index
    %c1_57 = arith.constant 1 : index
    %c6_58 = arith.constant 6 : index
    %c0_59 = arith.constant 0 : index
    %85 = vector.load %arg1[%c0_56, %c1_57, %c6_58, %c0_59] : memref<1x22x22x4xf32, #tpu.memory_space<vmem>>, vector<1x16x16x4xf32>
    %86 = vector.shape_cast %85 : vector<1x16x16x4xf32> to vector<16x16x4xf32>
    %87 = vector.extract_strided_slice %0 {offsets = [1, 6, 0], sizes = [1, 1, 4], strides = [1, 1, 1]} : vector<7x7x4xf32> to vector<1x1x4xf32>
    %88 = vector.broadcast %87 : vector<1x1x4xf32> to vector<16x16x4xf32>
    %89 = arith.mulf %86, %88 : vector<16x16x4xf32>
    %90 = arith.addf %84, %89 : vector<16x16x4xf32>
    %c0_60 = arith.constant 0 : index
    %c2_61 = arith.constant 2 : index
    %c0_62 = arith.constant 0 : index
    %c0_63 = arith.constant 0 : index
    %91 = vector.load %arg1[%c0_60, %c2_61, %c0_62, %c0_63] : memref<1x22x22x4xf32, #tpu.memory_space<vmem>>, vector<1x16x16x4xf32>
    %92 = vector.shape_cast %91 : vector<1x16x16x4xf32> to vector<16x16x4xf32>
    %93 = vector.extract_strided_slice %0 {offsets = [2, 0, 0], sizes = [1, 1, 4], strides = [1, 1, 1]} : vector<7x7x4xf32> to vector<1x1x4xf32>
    %94 = vector.broadcast %93 : vector<1x1x4xf32> to vector<16x16x4xf32>
    %95 = arith.mulf %92, %94 : vector<16x16x4xf32>
    %96 = arith.addf %90, %95 : vector<16x16x4xf32>
    %c0_64 = arith.constant 0 : index
    %c2_65 = arith.constant 2 : index
    %c1_66 = arith.constant 1 : index
    %c0_67 = arith.constant 0 : index
    %97 = vector.load %arg1[%c0_64, %c2_65, %c1_66, %c0_67] : memref<1x22x22x4xf32, #tpu.memory_space<vmem>>, vector<1x16x16x4xf32>
    %98 = vector.shape_cast %97 : vector<1x16x16x4xf32> to vector<16x16x4xf32>
    %99 = vector.extract_strided_slice %0 {offsets = [2, 1, 0], sizes = [1, 1, 4], strides = [1, 1, 1]} : vector<7x7x4xf32> to vector<1x1x4xf32>
    %100 = vector.broadcast %99 : vector<1x1x4xf32> to vector<16x16x4xf32>
    %101 = arith.mulf %98, %100 : vector<16x16x4xf32>
    %102 = arith.addf %96, %101 : vector<16x16x4xf32>
    %c0_68 = arith.constant 0 : index
    %c2_69 = arith.constant 2 : index
    %c2_70 = arith.constant 2 : index
    %c0_71 = arith.constant 0 : index
    %103 = vector.load %arg1[%c0_68, %c2_69, %c2_70, %c0_71] : memref<1x22x22x4xf32, #tpu.memory_space<vmem>>, vector<1x16x16x4xf32>
    %104 = vector.shape_cast %103 : vector<1x16x16x4xf32> to vector<16x16x4xf32>
    %105 = vector.extract_strided_slice %0 {offsets = [2, 2, 0], sizes = [1, 1, 4], strides = [1, 1, 1]} : vector<7x7x4xf32> to vector<1x1x4xf32>
    %106 = vector.broadcast %105 : vector<1x1x4xf32> to vector<16x16x4xf32>
    %107 = arith.mulf %104, %106 : vector<16x16x4xf32>
    %108 = arith.addf %102, %107 : vector<16x16x4xf32>
    %c0_72 = arith.constant 0 : index
    %c2_73 = arith.constant 2 : index
    %c3_74 = arith.constant 3 : index
    %c0_75 = arith.constant 0 : index
    %109 = vector.load %arg1[%c0_72, %c2_73, %c3_74, %c0_75] : memref<1x22x22x4xf32, #tpu.memory_space<vmem>>, vector<1x16x16x4xf32>
    %110 = vector.shape_cast %109 : vector<1x16x16x4xf32> to vector<16x16x4xf32>
    %111 = vector.extract_strided_slice %0 {offsets = [2, 3, 0], sizes = [1, 1, 4], strides = [1, 1, 1]} : vector<7x7x4xf32> to vector<1x1x4xf32>
    %112 = vector.broadcast %111 : vector<1x1x4xf32> to vector<16x16x4xf32>
    %113 = arith.mulf %110, %112 : vector<16x16x4xf32>
    %114 = arith.addf %108, %113 : vector<16x16x4xf32>
    %c0_76 = arith.constant 0 : index
    %c2_77 = arith.constant 2 : index
    %c4_78 = arith.constant 4 : index
    %c0_79 = arith.constant 0 : index
    %115 = vector.load %arg1[%c0_76, %c2_77, %c4_78, %c0_79] : memref<1x22x22x4xf32, #tpu.memory_space<vmem>>, vector<1x16x16x4xf32>
    %116 = vector.shape_cast %115 : vector<1x16x16x4xf32> to vector<16x16x4xf32>
    %117 = vector.extract_strided_slice %0 {offsets = [2, 4, 0], sizes = [1, 1, 4], strides = [1, 1, 1]} : vector<7x7x4xf32> to vector<1x1x4xf32>
    %118 = vector.broadcast %117 : vector<1x1x4xf32> to vector<16x16x4xf32>
    %119 = arith.mulf %116, %118 : vector<16x16x4xf32>
    %120 = arith.addf %114, %119 : vector<16x16x4xf32>
    %c0_80 = arith.constant 0 : index
    %c2_81 = arith.constant 2 : index
    %c5_82 = arith.constant 5 : index
    %c0_83 = arith.constant 0 : index
    %121 = vector.load %arg1[%c0_80, %c2_81, %c5_82, %c0_83] : memref<1x22x22x4xf32, #tpu.memory_space<vmem>>, vector<1x16x16x4xf32>
    %122 = vector.shape_cast %121 : vector<1x16x16x4xf32> to vector<16x16x4xf32>
    %123 = vector.extract_strided_slice %0 {offsets = [2, 5, 0], sizes = [1, 1, 4], strides = [1, 1, 1]} : vector<7x7x4xf32> to vector<1x1x4xf32>
    %124 = vector.broadcast %123 : vector<1x1x4xf32> to vector<16x16x4xf32>
    %125 = arith.mulf %122, %124 : vector<16x16x4xf32>
    %126 = arith.addf %120, %125 : vector<16x16x4xf32>
    %c0_84 = arith.constant 0 : index
    %c2_85 = arith.constant 2 : index
    %c6_86 = arith.constant 6 : index
    %c0_87 = arith.constant 0 : index
    %127 = vector.load %arg1[%c0_84, %c2_85, %c6_86, %c0_87] : memref<1x22x22x4xf32, #tpu.memory_space<vmem>>, vector<1x16x16x4xf32>
    %128 = vector.shape_cast %127 : vector<1x16x16x4xf32> to vector<16x16x4xf32>
    %129 = vector.extract_strided_slice %0 {offsets = [2, 6, 0], sizes = [1, 1, 4], strides = [1, 1, 1]} : vector<7x7x4xf32> to vector<1x1x4xf32>
    %130 = vector.broadcast %129 : vector<1x1x4xf32> to vector<16x16x4xf32>
    %131 = arith.mulf %128, %130 : vector<16x16x4xf32>
    %132 = arith.addf %126, %131 : vector<16x16x4xf32>
    %c0_88 = arith.constant 0 : index
    %c3_89 = arith.constant 3 : index
    %c0_90 = arith.constant 0 : index
    %c0_91 = arith.constant 0 : index
    %133 = vector.load %arg1[%c0_88, %c3_89, %c0_90, %c0_91] : memref<1x22x22x4xf32, #tpu.memory_space<vmem>>, vector<1x16x16x4xf32>
    %134 = vector.shape_cast %133 : vector<1x16x16x4xf32> to vector<16x16x4xf32>
    %135 = vector.extract_strided_slice %0 {offsets = [3, 0, 0], sizes = [1, 1, 4], strides = [1, 1, 1]} : vector<7x7x4xf32> to vector<1x1x4xf32>
    %136 = vector.broadcast %135 : vector<1x1x4xf32> to vector<16x16x4xf32>
    %137 = arith.mulf %134, %136 : vector<16x16x4xf32>
    %138 = arith.addf %132, %137 : vector<16x16x4xf32>
    %c0_92 = arith.constant 0 : index
    %c3_93 = arith.constant 3 : index
    %c1_94 = arith.constant 1 : index
    %c0_95 = arith.constant 0 : index
    %139 = vector.load %arg1[%c0_92, %c3_93, %c1_94, %c0_95] : memref<1x22x22x4xf32, #tpu.memory_space<vmem>>, vector<1x16x16x4xf32>
    %140 = vector.shape_cast %139 : vector<1x16x16x4xf32> to vector<16x16x4xf32>
    %141 = vector.extract_strided_slice %0 {offsets = [3, 1, 0], sizes = [1, 1, 4], strides = [1, 1, 1]} : vector<7x7x4xf32> to vector<1x1x4xf32>
    %142 = vector.broadcast %141 : vector<1x1x4xf32> to vector<16x16x4xf32>
    %143 = arith.mulf %140, %142 : vector<16x16x4xf32>
    %144 = arith.addf %138, %143 : vector<16x16x4xf32>
    %c0_96 = arith.constant 0 : index
    %c3_97 = arith.constant 3 : index
    %c2_98 = arith.constant 2 : index
    %c0_99 = arith.constant 0 : index
    %145 = vector.load %arg1[%c0_96, %c3_97, %c2_98, %c0_99] : memref<1x22x22x4xf32, #tpu.memory_space<vmem>>, vector<1x16x16x4xf32>
    %146 = vector.shape_cast %145 : vector<1x16x16x4xf32> to vector<16x16x4xf32>
    %147 = vector.extract_strided_slice %0 {offsets = [3, 2, 0], sizes = [1, 1, 4], strides = [1, 1, 1]} : vector<7x7x4xf32> to vector<1x1x4xf32>
    %148 = vector.broadcast %147 : vector<1x1x4xf32> to vector<16x16x4xf32>
    %149 = arith.mulf %146, %148 : vector<16x16x4xf32>
    %150 = arith.addf %144, %149 : vector<16x16x4xf32>
    %c0_100 = arith.constant 0 : index
    %c3_101 = arith.constant 3 : index
    %c3_102 = arith.constant 3 : index
    %c0_103 = arith.constant 0 : index
    %151 = vector.load %arg1[%c0_100, %c3_101, %c3_102, %c0_103] : memref<1x22x22x4xf32, #tpu.memory_space<vmem>>, vector<1x16x16x4xf32>
    %152 = vector.shape_cast %151 : vector<1x16x16x4xf32> to vector<16x16x4xf32>
    %153 = vector.extract_strided_slice %0 {offsets = [3, 3, 0], sizes = [1, 1, 4], strides = [1, 1, 1]} : vector<7x7x4xf32> to vector<1x1x4xf32>
    %154 = vector.broadcast %153 : vector<1x1x4xf32> to vector<16x16x4xf32>
    %155 = arith.mulf %152, %154 : vector<16x16x4xf32>
    %156 = arith.addf %150, %155 : vector<16x16x4xf32>
    %c0_104 = arith.constant 0 : index
    %c3_105 = arith.constant 3 : index
    %c4_106 = arith.constant 4 : index
    %c0_107 = arith.constant 0 : index
    %157 = vector.load %arg1[%c0_104, %c3_105, %c4_106, %c0_107] : memref<1x22x22x4xf32, #tpu.memory_space<vmem>>, vector<1x16x16x4xf32>
    %158 = vector.shape_cast %157 : vector<1x16x16x4xf32> to vector<16x16x4xf32>
    %159 = vector.extract_strided_slice %0 {offsets = [3, 4, 0], sizes = [1, 1, 4], strides = [1, 1, 1]} : vector<7x7x4xf32> to vector<1x1x4xf32>
    %160 = vector.broadcast %159 : vector<1x1x4xf32> to vector<16x16x4xf32>
    %161 = arith.mulf %158, %160 : vector<16x16x4xf32>
    %162 = arith.addf %156, %161 : vector<16x16x4xf32>
    %c0_108 = arith.constant 0 : index
    %c3_109 = arith.constant 3 : index
    %c5_110 = arith.constant 5 : index
    %c0_111 = arith.constant 0 : index
    %163 = vector.load %arg1[%c0_108, %c3_109, %c5_110, %c0_111] : memref<1x22x22x4xf32, #tpu.memory_space<vmem>>, vector<1x16x16x4xf32>
    %164 = vector.shape_cast %163 : vector<1x16x16x4xf32> to vector<16x16x4xf32>
    %165 = vector.extract_strided_slice %0 {offsets = [3, 5, 0], sizes = [1, 1, 4], strides = [1, 1, 1]} : vector<7x7x4xf32> to vector<1x1x4xf32>
    %166 = vector.broadcast %165 : vector<1x1x4xf32> to vector<16x16x4xf32>
    %167 = arith.mulf %164, %166 : vector<16x16x4xf32>
    %168 = arith.addf %162, %167 : vector<16x16x4xf32>
    %c0_112 = arith.constant 0 : index
    %c3_113 = arith.constant 3 : index
    %c6_114 = arith.constant 6 : index
    %c0_115 = arith.constant 0 : index
    %169 = vector.load %arg1[%c0_112, %c3_113, %c6_114, %c0_115] : memref<1x22x22x4xf32, #tpu.memory_space<vmem>>, vector<1x16x16x4xf32>
    %170 = vector.shape_cast %169 : vector<1x16x16x4xf32> to vector<16x16x4xf32>
    %171 = vector.extract_strided_slice %0 {offsets = [3, 6, 0], sizes = [1, 1, 4], strides = [1, 1, 1]} : vector<7x7x4xf32> to vector<1x1x4xf32>
    %172 = vector.broadcast %171 : vector<1x1x4xf32> to vector<16x16x4xf32>
    %173 = arith.mulf %170, %172 : vector<16x16x4xf32>
    %174 = arith.addf %168, %173 : vector<16x16x4xf32>
    %c0_116 = arith.constant 0 : index
    %c4_117 = arith.constant 4 : index
    %c0_118 = arith.constant 0 : index
    %c0_119 = arith.constant 0 : index
    %175 = vector.load %arg1[%c0_116, %c4_117, %c0_118, %c0_119] : memref<1x22x22x4xf32, #tpu.memory_space<vmem>>, vector<1x16x16x4xf32>
    %176 = vector.shape_cast %175 : vector<1x16x16x4xf32> to vector<16x16x4xf32>
    %177 = vector.extract_strided_slice %0 {offsets = [4, 0, 0], sizes = [1, 1, 4], strides = [1, 1, 1]} : vector<7x7x4xf32> to vector<1x1x4xf32>
    %178 = vector.broadcast %177 : vector<1x1x4xf32> to vector<16x16x4xf32>
    %179 = arith.mulf %176, %178 : vector<16x16x4xf32>
    %180 = arith.addf %174, %179 : vector<16x16x4xf32>
    %c0_120 = arith.constant 0 : index
    %c4_121 = arith.constant 4 : index
    %c1_122 = arith.constant 1 : index
    %c0_123 = arith.constant 0 : index
    %181 = vector.load %arg1[%c0_120, %c4_121, %c1_122, %c0_123] : memref<1x22x22x4xf32, #tpu.memory_space<vmem>>, vector<1x16x16x4xf32>
    %182 = vector.shape_cast %181 : vector<1x16x16x4xf32> to vector<16x16x4xf32>
    %183 = vector.extract_strided_slice %0 {offsets = [4, 1, 0], sizes = [1, 1, 4], strides = [1, 1, 1]} : vector<7x7x4xf32> to vector<1x1x4xf32>
    %184 = vector.broadcast %183 : vector<1x1x4xf32> to vector<16x16x4xf32>
    %185 = arith.mulf %182, %184 : vector<16x16x4xf32>
    %186 = arith.addf %180, %185 : vector<16x16x4xf32>
    %c0_124 = arith.constant 0 : index
    %c4_125 = arith.constant 4 : index
    %c2_126 = arith.constant 2 : index
    %c0_127 = arith.constant 0 : index
    %187 = vector.load %arg1[%c0_124, %c4_125, %c2_126, %c0_127] : memref<1x22x22x4xf32, #tpu.memory_space<vmem>>, vector<1x16x16x4xf32>
    %188 = vector.shape_cast %187 : vector<1x16x16x4xf32> to vector<16x16x4xf32>
    %189 = vector.extract_strided_slice %0 {offsets = [4, 2, 0], sizes = [1, 1, 4], strides = [1, 1, 1]} : vector<7x7x4xf32> to vector<1x1x4xf32>
    %190 = vector.broadcast %189 : vector<1x1x4xf32> to vector<16x16x4xf32>
    %191 = arith.mulf %188, %190 : vector<16x16x4xf32>
    %192 = arith.addf %186, %191 : vector<16x16x4xf32>
    %c0_128 = arith.constant 0 : index
    %c4_129 = arith.constant 4 : index
    %c3_130 = arith.constant 3 : index
    %c0_131 = arith.constant 0 : index
    %193 = vector.load %arg1[%c0_128, %c4_129, %c3_130, %c0_131] : memref<1x22x22x4xf32, #tpu.memory_space<vmem>>, vector<1x16x16x4xf32>
    %194 = vector.shape_cast %193 : vector<1x16x16x4xf32> to vector<16x16x4xf32>
    %195 = vector.extract_strided_slice %0 {offsets = [4, 3, 0], sizes = [1, 1, 4], strides = [1, 1, 1]} : vector<7x7x4xf32> to vector<1x1x4xf32>
    %196 = vector.broadcast %195 : vector<1x1x4xf32> to vector<16x16x4xf32>
    %197 = arith.mulf %194, %196 : vector<16x16x4xf32>
    %198 = arith.addf %192, %197 : vector<16x16x4xf32>
    %c0_132 = arith.constant 0 : index
    %c4_133 = arith.constant 4 : index
    %c4_134 = arith.constant 4 : index
    %c0_135 = arith.constant 0 : index
    %199 = vector.load %arg1[%c0_132, %c4_133, %c4_134, %c0_135] : memref<1x22x22x4xf32, #tpu.memory_space<vmem>>, vector<1x16x16x4xf32>
    %200 = vector.shape_cast %199 : vector<1x16x16x4xf32> to vector<16x16x4xf32>
    %201 = vector.extract_strided_slice %0 {offsets = [4, 4, 0], sizes = [1, 1, 4], strides = [1, 1, 1]} : vector<7x7x4xf32> to vector<1x1x4xf32>
    %202 = vector.broadcast %201 : vector<1x1x4xf32> to vector<16x16x4xf32>
    %203 = arith.mulf %200, %202 : vector<16x16x4xf32>
    %204 = arith.addf %198, %203 : vector<16x16x4xf32>
    %c0_136 = arith.constant 0 : index
    %c4_137 = arith.constant 4 : index
    %c5_138 = arith.constant 5 : index
    %c0_139 = arith.constant 0 : index
    %205 = vector.load %arg1[%c0_136, %c4_137, %c5_138, %c0_139] : memref<1x22x22x4xf32, #tpu.memory_space<vmem>>, vector<1x16x16x4xf32>
    %206 = vector.shape_cast %205 : vector<1x16x16x4xf32> to vector<16x16x4xf32>
    %207 = vector.extract_strided_slice %0 {offsets = [4, 5, 0], sizes = [1, 1, 4], strides = [1, 1, 1]} : vector<7x7x4xf32> to vector<1x1x4xf32>
    %208 = vector.broadcast %207 : vector<1x1x4xf32> to vector<16x16x4xf32>
    %209 = arith.mulf %206, %208 : vector<16x16x4xf32>
    %210 = arith.addf %204, %209 : vector<16x16x4xf32>
    %c0_140 = arith.constant 0 : index
    %c4_141 = arith.constant 4 : index
    %c6_142 = arith.constant 6 : index
    %c0_143 = arith.constant 0 : index
    %211 = vector.load %arg1[%c0_140, %c4_141, %c6_142, %c0_143] : memref<1x22x22x4xf32, #tpu.memory_space<vmem>>, vector<1x16x16x4xf32>
    %212 = vector.shape_cast %211 : vector<1x16x16x4xf32> to vector<16x16x4xf32>
    %213 = vector.extract_strided_slice %0 {offsets = [4, 6, 0], sizes = [1, 1, 4], strides = [1, 1, 1]} : vector<7x7x4xf32> to vector<1x1x4xf32>
    %214 = vector.broadcast %213 : vector<1x1x4xf32> to vector<16x16x4xf32>
    %215 = arith.mulf %212, %214 : vector<16x16x4xf32>
    %216 = arith.addf %210, %215 : vector<16x16x4xf32>
    %c0_144 = arith.constant 0 : index
    %c5_145 = arith.constant 5 : index
    %c0_146 = arith.constant 0 : index
    %c0_147 = arith.constant 0 : index
    %217 = vector.load %arg1[%c0_144, %c5_145, %c0_146, %c0_147] : memref<1x22x22x4xf32, #tpu.memory_space<vmem>>, vector<1x16x16x4xf32>
    %218 = vector.shape_cast %217 : vector<1x16x16x4xf32> to vector<16x16x4xf32>
    %219 = vector.extract_strided_slice %0 {offsets = [5, 0, 0], sizes = [1, 1, 4], strides = [1, 1, 1]} : vector<7x7x4xf32> to vector<1x1x4xf32>
    %220 = vector.broadcast %219 : vector<1x1x4xf32> to vector<16x16x4xf32>
    %221 = arith.mulf %218, %220 : vector<16x16x4xf32>
    %222 = arith.addf %216, %221 : vector<16x16x4xf32>
    %c0_148 = arith.constant 0 : index
    %c5_149 = arith.constant 5 : index
    %c1_150 = arith.constant 1 : index
    %c0_151 = arith.constant 0 : index
    %223 = vector.load %arg1[%c0_148, %c5_149, %c1_150, %c0_151] : memref<1x22x22x4xf32, #tpu.memory_space<vmem>>, vector<1x16x16x4xf32>
    %224 = vector.shape_cast %223 : vector<1x16x16x4xf32> to vector<16x16x4xf32>
    %225 = vector.extract_strided_slice %0 {offsets = [5, 1, 0], sizes = [1, 1, 4], strides = [1, 1, 1]} : vector<7x7x4xf32> to vector<1x1x4xf32>
    %226 = vector.broadcast %225 : vector<1x1x4xf32> to vector<16x16x4xf32>
    %227 = arith.mulf %224, %226 : vector<16x16x4xf32>
    %228 = arith.addf %222, %227 : vector<16x16x4xf32>
    %c0_152 = arith.constant 0 : index
    %c5_153 = arith.constant 5 : index
    %c2_154 = arith.constant 2 : index
    %c0_155 = arith.constant 0 : index
    %229 = vector.load %arg1[%c0_152, %c5_153, %c2_154, %c0_155] : memref<1x22x22x4xf32, #tpu.memory_space<vmem>>, vector<1x16x16x4xf32>
    %230 = vector.shape_cast %229 : vector<1x16x16x4xf32> to vector<16x16x4xf32>
    %231 = vector.extract_strided_slice %0 {offsets = [5, 2, 0], sizes = [1, 1, 4], strides = [1, 1, 1]} : vector<7x7x4xf32> to vector<1x1x4xf32>
    %232 = vector.broadcast %231 : vector<1x1x4xf32> to vector<16x16x4xf32>
    %233 = arith.mulf %230, %232 : vector<16x16x4xf32>
    %234 = arith.addf %228, %233 : vector<16x16x4xf32>
    %c0_156 = arith.constant 0 : index
    %c5_157 = arith.constant 5 : index
    %c3_158 = arith.constant 3 : index
    %c0_159 = arith.constant 0 : index
    %235 = vector.load %arg1[%c0_156, %c5_157, %c3_158, %c0_159] : memref<1x22x22x4xf32, #tpu.memory_space<vmem>>, vector<1x16x16x4xf32>
    %236 = vector.shape_cast %235 : vector<1x16x16x4xf32> to vector<16x16x4xf32>
    %237 = vector.extract_strided_slice %0 {offsets = [5, 3, 0], sizes = [1, 1, 4], strides = [1, 1, 1]} : vector<7x7x4xf32> to vector<1x1x4xf32>
    %238 = vector.broadcast %237 : vector<1x1x4xf32> to vector<16x16x4xf32>
    %239 = arith.mulf %236, %238 : vector<16x16x4xf32>
    %240 = arith.addf %234, %239 : vector<16x16x4xf32>
    %c0_160 = arith.constant 0 : index
    %c5_161 = arith.constant 5 : index
    %c4_162 = arith.constant 4 : index
    %c0_163 = arith.constant 0 : index
    %241 = vector.load %arg1[%c0_160, %c5_161, %c4_162, %c0_163] : memref<1x22x22x4xf32, #tpu.memory_space<vmem>>, vector<1x16x16x4xf32>
    %242 = vector.shape_cast %241 : vector<1x16x16x4xf32> to vector<16x16x4xf32>
    %243 = vector.extract_strided_slice %0 {offsets = [5, 4, 0], sizes = [1, 1, 4], strides = [1, 1, 1]} : vector<7x7x4xf32> to vector<1x1x4xf32>
    %244 = vector.broadcast %243 : vector<1x1x4xf32> to vector<16x16x4xf32>
    %245 = arith.mulf %242, %244 : vector<16x16x4xf32>
    %246 = arith.addf %240, %245 : vector<16x16x4xf32>
    %c0_164 = arith.constant 0 : index
    %c5_165 = arith.constant 5 : index
    %c5_166 = arith.constant 5 : index
    %c0_167 = arith.constant 0 : index
    %247 = vector.load %arg1[%c0_164, %c5_165, %c5_166, %c0_167] : memref<1x22x22x4xf32, #tpu.memory_space<vmem>>, vector<1x16x16x4xf32>
    %248 = vector.shape_cast %247 : vector<1x16x16x4xf32> to vector<16x16x4xf32>
    %249 = vector.extract_strided_slice %0 {offsets = [5, 5, 0], sizes = [1, 1, 4], strides = [1, 1, 1]} : vector<7x7x4xf32> to vector<1x1x4xf32>
    %250 = vector.broadcast %249 : vector<1x1x4xf32> to vector<16x16x4xf32>
    %251 = arith.mulf %248, %250 : vector<16x16x4xf32>
    %252 = arith.addf %246, %251 : vector<16x16x4xf32>
    %c0_168 = arith.constant 0 : index
    %c5_169 = arith.constant 5 : index
    %c6_170 = arith.constant 6 : index
    %c0_171 = arith.constant 0 : index
    %253 = vector.load %arg1[%c0_168, %c5_169, %c6_170, %c0_171] : memref<1x22x22x4xf32, #tpu.memory_space<vmem>>, vector<1x16x16x4xf32>
    %254 = vector.shape_cast %253 : vector<1x16x16x4xf32> to vector<16x16x4xf32>
    %255 = vector.extract_strided_slice %0 {offsets = [5, 6, 0], sizes = [1, 1, 4], strides = [1, 1, 1]} : vector<7x7x4xf32> to vector<1x1x4xf32>
    %256 = vector.broadcast %255 : vector<1x1x4xf32> to vector<16x16x4xf32>
    %257 = arith.mulf %254, %256 : vector<16x16x4xf32>
    %258 = arith.addf %252, %257 : vector<16x16x4xf32>
    %c0_172 = arith.constant 0 : index
    %c6_173 = arith.constant 6 : index
    %c0_174 = arith.constant 0 : index
    %c0_175 = arith.constant 0 : index
    %259 = vector.load %arg1[%c0_172, %c6_173, %c0_174, %c0_175] : memref<1x22x22x4xf32, #tpu.memory_space<vmem>>, vector<1x16x16x4xf32>
    %260 = vector.shape_cast %259 : vector<1x16x16x4xf32> to vector<16x16x4xf32>
    %261 = vector.extract_strided_slice %0 {offsets = [6, 0, 0], sizes = [1, 1, 4], strides = [1, 1, 1]} : vector<7x7x4xf32> to vector<1x1x4xf32>
    %262 = vector.broadcast %261 : vector<1x1x4xf32> to vector<16x16x4xf32>
    %263 = arith.mulf %260, %262 : vector<16x16x4xf32>
    %264 = arith.addf %258, %263 : vector<16x16x4xf32>
    %c0_176 = arith.constant 0 : index
    %c6_177 = arith.constant 6 : index
    %c1_178 = arith.constant 1 : index
    %c0_179 = arith.constant 0 : index
    %265 = vector.load %arg1[%c0_176, %c6_177, %c1_178, %c0_179] : memref<1x22x22x4xf32, #tpu.memory_space<vmem>>, vector<1x16x16x4xf32>
    %266 = vector.shape_cast %265 : vector<1x16x16x4xf32> to vector<16x16x4xf32>
    %267 = vector.extract_strided_slice %0 {offsets = [6, 1, 0], sizes = [1, 1, 4], strides = [1, 1, 1]} : vector<7x7x4xf32> to vector<1x1x4xf32>
    %268 = vector.broadcast %267 : vector<1x1x4xf32> to vector<16x16x4xf32>
    %269 = arith.mulf %266, %268 : vector<16x16x4xf32>
    %270 = arith.addf %264, %269 : vector<16x16x4xf32>
    %c0_180 = arith.constant 0 : index
    %c6_181 = arith.constant 6 : index
    %c2_182 = arith.constant 2 : index
    %c0_183 = arith.constant 0 : index
    %271 = vector.load %arg1[%c0_180, %c6_181, %c2_182, %c0_183] : memref<1x22x22x4xf32, #tpu.memory_space<vmem>>, vector<1x16x16x4xf32>
    %272 = vector.shape_cast %271 : vector<1x16x16x4xf32> to vector<16x16x4xf32>
    %273 = vector.extract_strided_slice %0 {offsets = [6, 2, 0], sizes = [1, 1, 4], strides = [1, 1, 1]} : vector<7x7x4xf32> to vector<1x1x4xf32>
    %274 = vector.broadcast %273 : vector<1x1x4xf32> to vector<16x16x4xf32>
    %275 = arith.mulf %272, %274 : vector<16x16x4xf32>
    %276 = arith.addf %270, %275 : vector<16x16x4xf32>
    %c0_184 = arith.constant 0 : index
    %c6_185 = arith.constant 6 : index
    %c3_186 = arith.constant 3 : index
    %c0_187 = arith.constant 0 : index
    %277 = vector.load %arg1[%c0_184, %c6_185, %c3_186, %c0_187] : memref<1x22x22x4xf32, #tpu.memory_space<vmem>>, vector<1x16x16x4xf32>
    %278 = vector.shape_cast %277 : vector<1x16x16x4xf32> to vector<16x16x4xf32>
    %279 = vector.extract_strided_slice %0 {offsets = [6, 3, 0], sizes = [1, 1, 4], strides = [1, 1, 1]} : vector<7x7x4xf32> to vector<1x1x4xf32>
    %280 = vector.broadcast %279 : vector<1x1x4xf32> to vector<16x16x4xf32>
    %281 = arith.mulf %278, %280 : vector<16x16x4xf32>
    %282 = arith.addf %276, %281 : vector<16x16x4xf32>
    %c0_188 = arith.constant 0 : index
    %c6_189 = arith.constant 6 : index
    %c4_190 = arith.constant 4 : index
    %c0_191 = arith.constant 0 : index
    %283 = vector.load %arg1[%c0_188, %c6_189, %c4_190, %c0_191] : memref<1x22x22x4xf32, #tpu.memory_space<vmem>>, vector<1x16x16x4xf32>
    %284 = vector.shape_cast %283 : vector<1x16x16x4xf32> to vector<16x16x4xf32>
    %285 = vector.extract_strided_slice %0 {offsets = [6, 4, 0], sizes = [1, 1, 4], strides = [1, 1, 1]} : vector<7x7x4xf32> to vector<1x1x4xf32>
    %286 = vector.broadcast %285 : vector<1x1x4xf32> to vector<16x16x4xf32>
    %287 = arith.mulf %284, %286 : vector<16x16x4xf32>
    %288 = arith.addf %282, %287 : vector<16x16x4xf32>
    %c0_192 = arith.constant 0 : index
    %c6_193 = arith.constant 6 : index
    %c5_194 = arith.constant 5 : index
    %c0_195 = arith.constant 0 : index
    %289 = vector.load %arg1[%c0_192, %c6_193, %c5_194, %c0_195] : memref<1x22x22x4xf32, #tpu.memory_space<vmem>>, vector<1x16x16x4xf32>
    %290 = vector.shape_cast %289 : vector<1x16x16x4xf32> to vector<16x16x4xf32>
    %291 = vector.extract_strided_slice %0 {offsets = [6, 5, 0], sizes = [1, 1, 4], strides = [1, 1, 1]} : vector<7x7x4xf32> to vector<1x1x4xf32>
    %292 = vector.broadcast %291 : vector<1x1x4xf32> to vector<16x16x4xf32>
    %293 = arith.mulf %290, %292 : vector<16x16x4xf32>
    %294 = arith.addf %288, %293 : vector<16x16x4xf32>
    %c0_196 = arith.constant 0 : index
    %c6_197 = arith.constant 6 : index
    %c6_198 = arith.constant 6 : index
    %c0_199 = arith.constant 0 : index
    %295 = vector.load %arg1[%c0_196, %c6_197, %c6_198, %c0_199] : memref<1x22x22x4xf32, #tpu.memory_space<vmem>>, vector<1x16x16x4xf32>
    %296 = vector.shape_cast %295 : vector<1x16x16x4xf32> to vector<16x16x4xf32>
    %297 = vector.extract_strided_slice %0 {offsets = [6, 6, 0], sizes = [1, 1, 4], strides = [1, 1, 1]} : vector<7x7x4xf32> to vector<1x1x4xf32>
    %298 = vector.broadcast %297 : vector<1x1x4xf32> to vector<16x16x4xf32>
    %299 = arith.mulf %296, %298 : vector<16x16x4xf32>
    %300 = arith.addf %294, %299 : vector<16x16x4xf32>
    %c0_200 = arith.constant 0 : index
    %c0_201 = arith.constant 0 : index
    %c0_202 = arith.constant 0 : index
    %301 = vector.load %arg3[%c0_200, %c0_201, %c0_202] : memref<1x1x4xf32, #tpu.memory_space<vmem>>, vector<1x1x4xf32>
    %302 = vector.broadcast %301 : vector<1x1x4xf32> to vector<16x16x4xf32>
    %303 = arith.addf %300, %302 : vector<16x16x4xf32>
    %304 = vector.shape_cast %303 : vector<16x16x4xf32> to vector<1x16x16x4xf32>
    %cst_203 = arith.constant dense<0.000000e+00> : vector<1xf32>
    %305 = vector.multi_reduction <add>, %304, %cst_203 [1, 2, 3] : vector<1x16x16x4xf32> to vector<1xf32>
    %306 = vector.shape_cast %305 : vector<1xf32> to vector<1x1x1x1xf32>
    %307 = vector.extract %306[0, 0, 0, 0] : f32 from vector<1x1x1x1xf32>
    %cst_204 = arith.constant 9.765625E-4 : f32
    %308 = arith.mulf %307, %cst_204 : f32
    %309 = vector.broadcast %308 : f32 to vector<16x16x4xf32>
    %310 = arith.subf %303, %309 : vector<16x16x4xf32>
    %311 = arith.mulf %310, %310 : vector<16x16x4xf32>
    %312 = vector.shape_cast %311 : vector<16x16x4xf32> to vector<1x16x16x4xf32>
    %cst_205 = arith.constant dense<0.000000e+00> : vector<1xf32>
    %313 = vector.multi_reduction <add>, %312, %cst_205 [1, 2, 3] : vector<1x16x16x4xf32> to vector<1xf32>
    %314 = vector.shape_cast %313 : vector<1xf32> to vector<1x1x1x1xf32>
    %315 = vector.extract %314[0, 0, 0, 0] : f32 from vector<1x1x1x1xf32>
    %cst_206 = arith.constant 9.765625E-4 : f32
    %316 = arith.mulf %315, %cst_206 : f32
    %cst_207 = arith.constant 9.99999974E-6 : f32
    %317 = arith.addf %316, %cst_207 : f32
    %318 = math.rsqrt %317 : f32
    %319 = vector.broadcast %318 : f32 to vector<16x16x4xf32>
    %320 = arith.mulf %310, %319 : vector<16x16x4xf32>
    %c0_208 = arith.constant 0 : index
    %c0_209 = arith.constant 0 : index
    %c0_210 = arith.constant 0 : index
    %c0_211 = arith.constant 0 : index
    %321 = vector.load %arg4[%c0_208, %c0_209, %c0_210, %c0_211] : memref<1x16x16x4xf32, #tpu.memory_space<vmem>>, vector<1x16x16x4xf32>
    %322 = vector.shape_cast %321 : vector<1x16x16x4xf32> to vector<16x16x4xf32>
    %323 = vector.shape_cast %320 : vector<16x16x4xf32> to vector<1x16x16x4xf32>
    tpu.vector_store %arg4[%c0_208, %c0_209, %c0_210, %c0_211], %323 {strides = array<i32>} : memref<1x16x16x4xf32, #tpu.memory_space<vmem>>, vector<1x16x16x4xf32>,
    return
  }
  func.func @transform_0(%arg0: i32) -> (i32, i32, i32, i32) {
    %c0_i32 = arith.constant 0 : i32
    %c0_i32_0 = arith.constant 0 : i32
    %c0_i32_1 = arith.constant 0 : i32
    %c0_i32_2 = arith.constant 0 : i32
    return %arg0, %c0_i32, %c0_i32_0, %c0_i32_1 : i32, i32, i32, i32
  }
  func.func @transform_1(%arg0: i32) -> (i32, i32, i32) {
    %c0_i32 = arith.constant 0 : i32
    %c0_i32_0 = arith.constant 0 : i32
    %c0_i32_1 = arith.constant 0 : i32
    %c0_i32_2 = arith.constant 0 : i32
    return %c0_i32, %c0_i32_0, %c0_i32_1 : i32, i32, i32
  }
  func.func @transform_2(%arg0: i32) -> (i32, i32, i32) {
    %c0_i32 = arith.constant 0 : i32
    %c0_i32_0 = arith.constant 0 : i32
    %c0_i32_1 = arith.constant 0 : i32
    %c0_i32_2 = arith.constant 0 : i32
    return %c0_i32, %c0_i32_0, %c0_i32_1 : i32, i32, i32
  }
  func.func @transform_3(%arg0: i32) -> (i32, i32, i32, i32) {
    %c0_i32 = arith.constant 0 : i32
    %c0_i32_0 = arith.constant 0 : i32
    %c0_i32_1 = arith.constant 0 : i32
    %c0_i32_2 = arith.constant 0 : i32
    return %arg0, %c0_i32, %c0_i32_0, %c0_i32_1 : i32, i32, i32, i32
  }
  func.func @transform_4(%arg0: i32) -> (i32, i32, i32, i32) {
    %c0_i32 = arith.constant 0 : i32
    %c0_i32_0 = arith.constant 0 : i32
    %c0_i32_1 = arith.constant 0 : i32
    %c0_i32_2 = arith.constant 0 : i32
    return %arg0, %c0_i32, %c0_i32_0, %c0_i32_1 : i32, i32, i32, i32
  }
}

module attributes {stable_mosaic.version = 11 : i64} {
  func.func @_pointwise_mlp_kernel(%arg0: i32, %arg1: memref<256x4xf32, #tpu.memory_space<vmem>>, %arg2: memref<256x4xf32, #tpu.memory_space<vmem>>, %arg3: memref<4x16xf32, #tpu.memory_space<vmem>>, %arg4: memref<1x16xf32, #tpu.memory_space<vmem>>, %arg5: memref<16x8xf32, #tpu.memory_space<vmem>>, %arg6: memref<1x8xf32, #tpu.memory_space<vmem>>, %arg7: memref<4x8xf32, #tpu.memory_space<vmem>>, %arg8: memref<1x8xf32, #tpu.memory_space<vmem>>, %arg9: memref<256x8xf32, #tpu.memory_space<vmem>>) attributes {dimension_semantics = [#tpu.dimension_semantics<parallel>], iteration_bounds = array<i64: 2>, scalar_prefetch = 0 : i64, scratch_operands = 0 : i64, tpu.core_type = #tpu.core_type<tc>, window_params = [{transform_indices = @transform_0, window_bounds = array<i64: 256, 4>}, {transform_indices = @transform_1, window_bounds = array<i64: 256, 4>}, {pipeline_mode = #tpu.pipeline_mode<synchronous>, transform_indices = @transform_2, window_bounds = array<i64: 4, 16>}, {pipeline_mode = #tpu.pipeline_mode<synchronous>, transform_indices = @transform_3, window_bounds = array<i64: 1, 16>}, {pipeline_mode = #tpu.pipeline_mode<synchronous>, transform_indices = @transform_4, window_bounds = array<i64: 16, 8>}, {pipeline_mode = #tpu.pipeline_mode<synchronous>, transform_indices = @transform_5, window_bounds = array<i64: 1, 8>}, {pipeline_mode = #tpu.pipeline_mode<synchronous>, transform_indices = @transform_6, window_bounds = array<i64: 4, 8>}, {pipeline_mode = #tpu.pipeline_mode<synchronous>, transform_indices = @transform_7, window_bounds = array<i64: 1, 8>}, {transform_indices = @transform_8, window_bounds = array<i64: 256, 8>}]} {
    %c0 = arith.constant 0 : index
    %c0_0 = arith.constant 0 : index
    %0 = vector.load %arg1[%c0, %c0_0] : memref<256x4xf32, #tpu.memory_space<vmem>>, vector<256x4xf32>
    %c0_1 = arith.constant 0 : index
    %c0_2 = arith.constant 0 : index
    %1 = vector.load %arg3[%c0_1, %c0_2] : memref<4x16xf32, #tpu.memory_space<vmem>>, vector<4x16xf32>
    %cst = arith.constant dense<0.000000e+00> : vector<256x16xf32>
    %2 = tpu.matmul %0, %1, %cst {dimension_numbers = #tpu.dot_dimension_numbers<[1], [0], [0], [1], [0, 0, 1, 1], [], []>} : vector<256x4xf32>, vector<4x16xf32>, vector<256x16xf32> -> vector<256x16xf32>
    %c0_3 = arith.constant 0 : index
    %c0_4 = arith.constant 0 : index
    %3 = vector.load %arg4[%c0_3, %c0_4] : memref<1x16xf32, #tpu.memory_space<vmem>>, vector<1x16xf32>
    %4 = vector.broadcast %3 : vector<1x16xf32> to vector<256x16xf32>
    %5 = arith.addf %2, %4 : vector<256x16xf32>
    %cst_5 = arith.constant 5.000000e-01 : f32
    %6 = vector.broadcast %cst_5 : f32 to vector<256x16xf32>
    %7 = arith.mulf %6, %5 : vector<256x16xf32>
    %cst_6 = arith.constant 0.707106769 : f32
    %8 = vector.broadcast %cst_6 : f32 to vector<256x16xf32>
    %9 = arith.mulf %5, %8 : vector<256x16xf32>
    %10 = math.absf %9 : vector<256x16xf32>
    %cst_7 = arith.constant 5.000000e-01 : f32
    %11 = vector.broadcast %cst_7 : f32 to vector<256x16xf32>
    %12 = arith.mulf %11, %10 : vector<256x16xf32>
    %cst_8 = arith.constant 1.000000e+00 : f32
    %13 = vector.broadcast %cst_8 : f32 to vector<256x16xf32>
    %14 = arith.addf %13, %12 : vector<256x16xf32>
    %cst_9 = arith.constant 1.000000e+00 : f32
    %15 = vector.broadcast %cst_9 : f32 to vector<256x16xf32>
    %16 = arith.divf %15, %14 : vector<256x16xf32>
    %cst_10 = arith.constant 0.170872763 : f32
    %17 = vector.broadcast %cst_10 : f32 to vector<256x16xf32>
    %18 = arith.mulf %16, %17 : vector<256x16xf32>
    %cst_11 = arith.constant -0.822152256 : f32
    %19 = vector.broadcast %cst_11 : f32 to vector<256x16xf32>
    %20 = arith.addf %19, %18 : vector<256x16xf32>
    %21 = arith.mulf %16, %20 : vector<256x16xf32>
    %cst_12 = arith.constant 1.48851585 : f32
    %22 = vector.broadcast %cst_12 : f32 to vector<256x16xf32>
    %23 = arith.addf %22, %21 : vector<256x16xf32>
    %24 = arith.mulf %16, %23 : vector<256x16xf32>
    %cst_13 = arith.constant -1.13520396 : f32
    %25 = vector.broadcast %cst_13 : f32 to vector<256x16xf32>
    %26 = arith.addf %25, %24 : vector<256x16xf32>
    %27 = arith.mulf %16, %26 : vector<256x16xf32>
    %cst_14 = arith.constant 0.278868079 : f32
    %28 = vector.broadcast %cst_14 : f32 to vector<256x16xf32>
    %29 = arith.addf %28, %27 : vector<256x16xf32>
    %30 = arith.mulf %16, %29 : vector<256x16xf32>
    %cst_15 = arith.constant -0.186288059 : f32
    %31 = vector.broadcast %cst_15 : f32 to vector<256x16xf32>
    %32 = arith.addf %31, %30 : vector<256x16xf32>
    %33 = arith.mulf %16, %32 : vector<256x16xf32>
    %cst_16 = arith.constant 0.0967841818 : f32
    %34 = vector.broadcast %cst_16 : f32 to vector<256x16xf32>
    %35 = arith.addf %34, %33 : vector<256x16xf32>
    %36 = arith.mulf %16, %35 : vector<256x16xf32>
    %cst_17 = arith.constant 0.374091953 : f32
    %37 = vector.broadcast %cst_17 : f32 to vector<256x16xf32>
    %38 = arith.addf %37, %36 : vector<256x16xf32>
    %39 = arith.mulf %16, %38 : vector<256x16xf32>
    %cst_18 = arith.constant 1.00002372 : f32
    %40 = vector.broadcast %cst_18 : f32 to vector<256x16xf32>
    %41 = arith.addf %40, %39 : vector<256x16xf32>
    %42 = arith.mulf %16, %41 : vector<256x16xf32>
    %cst_19 = arith.constant -1.26551223 : f32
    %43 = vector.broadcast %cst_19 : f32 to vector<256x16xf32>
    %44 = arith.addf %43, %42 : vector<256x16xf32>
    %cst_20 = arith.constant 0.000000e+00 : f32
    %45 = vector.broadcast %cst_20 : f32 to vector<256x16xf32>
    %46 = arith.subf %45, %10 : vector<256x16xf32>
    %47 = arith.mulf %46, %10 : vector<256x16xf32>
    %48 = arith.addf %47, %44 : vector<256x16xf32>
    %49 = math.exp %48 : vector<256x16xf32>
    %50 = arith.mulf %16, %49 : vector<256x16xf32>
    %cst_21 = arith.constant 1.000000e+00 : f32
    %51 = vector.broadcast %cst_21 : f32 to vector<256x16xf32>
    %52 = arith.subf %51, %50 : vector<256x16xf32>
    %cst_22 = arith.constant 0.000000e+00 : f32
    %53 = vector.broadcast %cst_22 : f32 to vector<256x16xf32>
    %54 = arith.cmpf oge, %9, %53 : vector<256x16xf32>
    %cst_23 = arith.constant 0.000000e+00 : f32
    %55 = vector.broadcast %cst_23 : f32 to vector<256x16xf32>
    %56 = arith.subf %55, %52 : vector<256x16xf32>
    %57 = arith.select %54, %52, %56 : vector<256x16xi1>, vector<256x16xf32>
    %cst_24 = arith.constant 1.000000e+00 : f32
    %58 = vector.broadcast %cst_24 : f32 to vector<256x16xf32>
    %59 = arith.addf %58, %57 : vector<256x16xf32>
    %60 = arith.mulf %7, %59 : vector<256x16xf32>
    %c0_25 = arith.constant 0 : index
    %c0_26 = arith.constant 0 : index
    %61 = vector.load %arg5[%c0_25, %c0_26] : memref<16x8xf32, #tpu.memory_space<vmem>>, vector<16x8xf32>
    %cst_27 = arith.constant dense<0.000000e+00> : vector<256x8xf32>
    %62 = tpu.matmul %60, %61, %cst_27 {dimension_numbers = #tpu.dot_dimension_numbers<[1], [0], [0], [1], [0, 0, 1, 1], [], []>} : vector<256x16xf32>, vector<16x8xf32>, vector<256x8xf32> -> vector<256x8xf32>
    %c0_28 = arith.constant 0 : index
    %c0_29 = arith.constant 0 : index
    %63 = vector.load %arg6[%c0_28, %c0_29] : memref<1x8xf32, #tpu.memory_space<vmem>>, vector<1x8xf32>
    %64 = vector.broadcast %63 : vector<1x8xf32> to vector<256x8xf32>
    %65 = arith.addf %62, %64 : vector<256x8xf32>
    %c0_30 = arith.constant 0 : index
    %c0_31 = arith.constant 0 : index
    %66 = vector.load %arg2[%c0_30, %c0_31] : memref<256x4xf32, #tpu.memory_space<vmem>>, vector<256x4xf32>
    %c0_32 = arith.constant 0 : index
    %c0_33 = arith.constant 0 : index
    %67 = vector.load %arg7[%c0_32, %c0_33] : memref<4x8xf32, #tpu.memory_space<vmem>>, vector<4x8xf32>
    %cst_34 = arith.constant dense<0.000000e+00> : vector<256x8xf32>
    %68 = tpu.matmul %66, %67, %cst_34 {dimension_numbers = #tpu.dot_dimension_numbers<[1], [0], [0], [1], [0, 0, 1, 1], [], []>} : vector<256x4xf32>, vector<4x8xf32>, vector<256x8xf32> -> vector<256x8xf32>
    %c0_35 = arith.constant 0 : index
    %c0_36 = arith.constant 0 : index
    %69 = vector.load %arg8[%c0_35, %c0_36] : memref<1x8xf32, #tpu.memory_space<vmem>>, vector<1x8xf32>
    %70 = vector.broadcast %69 : vector<1x8xf32> to vector<256x8xf32>
    %71 = arith.addf %68, %70 : vector<256x8xf32>
    %72 = arith.addf %65, %71 : vector<256x8xf32>
    %c0_37 = arith.constant 0 : index
    %c0_38 = arith.constant 0 : index
    %73 = vector.load %arg9[%c0_37, %c0_38] : memref<256x8xf32, #tpu.memory_space<vmem>>, vector<256x8xf32>
    tpu.vector_store %arg9[%c0_37, %c0_38], %72 {strides = array<i32>} : memref<256x8xf32, #tpu.memory_space<vmem>>, vector<256x8xf32>,
    return
  }
  func.func @transform_0(%arg0: i32) -> (i32, i32) {
    %c0_i32 = arith.constant 0 : i32
    %c0_i32_0 = arith.constant 0 : i32
    return %arg0, %c0_i32 : i32, i32
  }
  func.func @transform_1(%arg0: i32) -> (i32, i32) {
    %c0_i32 = arith.constant 0 : i32
    %c0_i32_0 = arith.constant 0 : i32
    return %arg0, %c0_i32 : i32, i32
  }
  func.func @transform_2(%arg0: i32) -> (i32, i32) {
    %c0_i32 = arith.constant 0 : i32
    %c0_i32_0 = arith.constant 0 : i32
    %c0_i32_1 = arith.constant 0 : i32
    return %c0_i32, %c0_i32_0 : i32, i32
  }
  func.func @transform_3(%arg0: i32) -> (i32, i32) {
    %c0_i32 = arith.constant 0 : i32
    %c0_i32_0 = arith.constant 0 : i32
    %c0_i32_1 = arith.constant 0 : i32
    return %c0_i32, %c0_i32_0 : i32, i32
  }
  func.func @transform_4(%arg0: i32) -> (i32, i32) {
    %c0_i32 = arith.constant 0 : i32
    %c0_i32_0 = arith.constant 0 : i32
    %c0_i32_1 = arith.constant 0 : i32
    return %c0_i32, %c0_i32_0 : i32, i32
  }
  func.func @transform_5(%arg0: i32) -> (i32, i32) {
    %c0_i32 = arith.constant 0 : i32
    %c0_i32_0 = arith.constant 0 : i32
    %c0_i32_1 = arith.constant 0 : i32
    return %c0_i32, %c0_i32_0 : i32, i32
  }
  func.func @transform_6(%arg0: i32) -> (i32, i32) {
    %c0_i32 = arith.constant 0 : i32
    %c0_i32_0 = arith.constant 0 : i32
    %c0_i32_1 = arith.constant 0 : i32
    return %c0_i32, %c0_i32_0 : i32, i32
  }
  func.func @transform_7(%arg0: i32) -> (i32, i32) {
    %c0_i32 = arith.constant 0 : i32
    %c0_i32_0 = arith.constant 0 : i32
    %c0_i32_1 = arith.constant 0 : i32
    return %c0_i32, %c0_i32_0 : i32, i32
  }
  func.func @transform_8(%arg0: i32) -> (i32, i32) {
    %c0_i32 = arith.constant 0 : i32
    %c0_i32_0 = arith.constant 0 : i32
    return %arg0, %c0_i32 : i32, i32
  }
}

</mosaic_0001>

<llo_original>
// kernel: convnext_block.3
$region0: #{convnext_block.3}
  #allocation0 [shape = 'u32[]', space=smem, size = 0x4, offset = 0x4, fixed_abs, tag = 'smem constant byte address 0x4 - core index']
  #allocation1 [shape = 'u32[144,128]{1,0:T(1,128)}', space=vmem, size = 0x12000, scoped, tag = 'internal scratch']
  %s0 = inlined_call_operand.vmem [shape: f32[512,4], index: 0, kind: input, shape index: {}]
  %s1 = inlined_call_operand.vmem [shape: f32[512,4], index: 1, kind: input, shape index: {}]
  %s2 = inlined_call_operand.vmem [shape: f32[4,16], index: 2, kind: input, shape index: {}]
  %s3 = inlined_call_operand.vmem [shape: f32[1,16], index: 3, kind: input, shape index: {}]
  %s4 = inlined_call_operand.vmem [shape: f32[16,8], index: 4, kind: input, shape index: {}]
  %s5 = inlined_call_operand.vmem [shape: f32[1,8], index: 5, kind: input, shape index: {}]
  %s6 = inlined_call_operand.vmem [shape: f32[4,8], index: 6, kind: input, shape index: {}]
  %s7 = inlined_call_operand.vmem [shape: f32[1,8], index: 7, kind: input, shape index: {}]
  %s8 = inlined_call_operand.vmem [shape: f32[512,8], index: 8, kind: output, shape index: {}]
  %s9 = sld [smem:[#allocation0]]
  $region65: #{convnext_block.3} parent=0
    _
  %s11 = ssub.s32 1, %s9
  %s12 = scalar_select 0, %s11, %s9
  loop: start=0, step=1, limit=4
  $region2: #{convnext_block.3} parent=0 // loop_pre_header
    _
  $region3: #{convnext_block.3} parent=0 // loop_header
    %s14 = sphi 0, %s18
    %p15 = scmp.ge.s32.totalorder %s14, 4
    %s24 = sphi 0, %s26
    %s27 = sphi 0, %s24
    %s28 = sphi 0, %s27
    %s44 = sphi 0, %s28
    %s50 = sphi 0, %s52
    %s53 = sphi 0, %s50
    %s54 = sphi 0, %s53
    %s70 = sphi 0, %s54
    %s74 = sphi 0, %s74
    %s76 = sphi 0, %s74
    %s77 = sphi 0, %s76
    %s91 = sphi 0, %s77
    %s95 = sphi 0, %s95
    %s97 = sphi 0, %s95
    %s98 = sphi 0, %s97
    %s112 = sphi 0, %s98
    %s116 = sphi 0, %s116
    %s118 = sphi 0, %s116
    %s119 = sphi 0, %s118
    %s133 = sphi 0, %s119
    %s137 = sphi 0, %s137
    %s139 = sphi 0, %s137
    %s140 = sphi 0, %s139
    %s154 = sphi 0, %s140
    %s158 = sphi 0, %s158
    %s160 = sphi 0, %s158
    %s161 = sphi 0, %s160
    %s175 = sphi 0, %s161
    %s179 = sphi 0, %s179
    %s181 = sphi 0, %s179
    %s182 = sphi 0, %s181
    %s196 = sphi 0, %s182
    %s202 = sphi 0, %s204
    %s205 = sphi 0, %s202
    %s206 = sphi 0, %s205
    %s222 = sphi 0, %s206
  $region4: #{convnext_block.3} parent=0 // loop_header_branch
    %17 = sbr.rel (%p15) target = $region8
  $region5: #{convnext_block.3} parent=0 // loop_body
    %s19 = ssub.s32 %s14, 1
    %s20 = ssub.s32 %s14, 2
    %s21 = sadd.s32 %s14, 1
    %s22 = ssub.s32 %s14, %s21
    %p23 = scmp.eq.s32.totalorder %s22, 0
    %s25 = sadd.s32 %s24, 1
    %s26 = scalar_select %p23, %s24, %s25
    %p29 = pneg %p23
    %p30 = scmp.eq.s32.totalorder %s14, 1
    %p31 = por %p29, %p30
    %p32 = scmp.ne.s32.totalorder %s24, %s27
    %p33 = scmp.eq.s32.totalorder %s14, 0
    %p34 = por %p32, %p33
    %p35 = scmp.ne.s32.totalorder %s24, %s27
    %p36 = scmp.eq.s32.totalorder %s19, 1
    %p37 = por %p35, %p36
    %p38 = scmp.ne.s32.totalorder %s27, %s28
    %p39 = scmp.eq.s32.totalorder %s19, 0
    %p40 = por %p38, %p39
    %p41 = scmp.ne.s32.totalorder %s27, %s28
    %p42 = scmp.eq.s32.totalorder %s20, 1
    %p43 = por %p41, %p42
    %p45 = scmp.ne.s32.totalorder %s28, %s44
    %p46 = scmp.eq.s32.totalorder %s20, 0
    %p47 = por %p45, %p46
    %s48 = ssub.s32 %s14, %s21
    %p49 = scmp.eq.s32.totalorder %s48, 0
    %s51 = sadd.s32 %s50, 1
    %s52 = scalar_select %p49, %s50, %s51
    %p55 = pneg %p49
    %p56 = scmp.eq.s32.totalorder %s14, 1
    %p57 = por %p55, %p56
    %p58 = scmp.ne.s32.totalorder %s50, %s53
    %p59 = scmp.eq.s32.totalorder %s14, 0
    %p60 = por %p58, %p59
    %p61 = scmp.ne.s32.totalorder %s50, %s53
    %p62 = scmp.eq.s32.totalorder %s19, 1
    %p63 = por %p61, %p62
    %p64 = scmp.ne.s32.totalorder %s53, %s54
    %p65 = scmp.eq.s32.totalorder %s19, 0
    %p66 = por %p64, %p65
    %p67 = scmp.ne.s32.totalorder %s53, %s54
    %p68 = scmp.eq.s32.totalorder %s20, 1
    %p69 = por %p67, %p68
    %p71 = scmp.ne.s32.totalorder %s54, %s70
    %p72 = scmp.eq.s32.totalorder %s20, 0
    %p73 = por %p71, %p72
    %s75 = sadd.s32 %s74, 1
    %p78 = scmp.eq.s32.totalorder %s14, 1
    %p79 = scmp.ne.s32.totalorder %s74, %s76
    %p80 = scmp.eq.s32.totalorder %s14, 0
    %p81 = por %p79, %p80
    %p82 = scmp.ne.s32.totalorder %s74, %s76
    %p83 = scmp.eq.s32.totalorder %s19, 1
    %p84 = por %p82, %p83
    %p85 = scmp.ne.s32.totalorder %s76, %s77
    %p86 = scmp.eq.s32.totalorder %s19, 0
    %p87 = por %p85, %p86
    %p88 = scmp.ne.s32.totalorder %s76, %s77
    %p89 = scmp.eq.s32.totalorder %s20, 1
    %p90 = por %p88, %p89
    %p92 = scmp.ne.s32.totalorder %s77, %s91
    %p93 = scmp.eq.s32.totalorder %s20, 0
    %p94 = por %p92, %p93
    %s96 = sadd.s32 %s95, 1
    %p99 = scmp.eq.s32.totalorder %s14, 1
    %p100 = scmp.ne.s32.totalorder %s95, %s97
    %p101 = scmp.eq.s32.totalorder %s14, 0
    %p102 = por %p100, %p101
    %p103 = scmp.ne.s32.totalorder %s95, %s97
    %p104 = scmp.eq.s32.totalorder %s19, 1
    %p105 = por %p103, %p104
    %p106 = scmp.ne.s32.totalorder %s97, %s98
    %p107 = scmp.eq.s32.totalorder %s19, 0
    %p108 = por %p106, %p107
    %p109 = scmp.ne.s32.totalorder %s97, %s98
    %p110 = scmp.eq.s32.totalorder %s20, 1
    %p111 = por %p109, %p110
    %p113 = scmp.ne.s32.totalorder %s98, %s112
    %p114 = scmp.eq.s32.totalorder %s20, 0
    %p115 = por %p113, %p114
    %s117 = sadd.s32 %s116, 1
    %p120 = scmp.eq.s32.totalorder %s14, 1
    %p121 = scmp.ne.s32.totalorder %s116, %s118
    %p122 = scmp.eq.s32.totalorder %s14, 0
    %p123 = por %p121, %p122
    %p124 = scmp.ne.s32.totalorder %s116, %s118
    %p125 = scmp.eq.s32.totalorder %s19, 1
    %p126 = por %p124, %p125
    %p127 = scmp.ne.s32.totalorder %s118, %s119
    %p128 = scmp.eq.s32.totalorder %s19, 0
    %p129 = por %p127, %p128
    %p130 = scmp.ne.s32.totalorder %s118, %s119
    %p131 = scmp.eq.s32.totalorder %s20, 1
    %p132 = por %p130, %p131
    %p134 = scmp.ne.s32.totalorder %s119, %s133
    %p135 = scmp.eq.s32.totalorder %s20, 0
    %p136 = por %p134, %p135
    %s138 = sadd.s32 %s137, 1
    %p141 = scmp.eq.s32.totalorder %s14, 1
    %p142 = scmp.ne.s32.totalorder %s137, %s139
    %p143 = scmp.eq.s32.totalorder %s14, 0
    %p144 = por %p142, %p143
    %p145 = scmp.ne.s32.totalorder %s137, %s139
    %p146 = scmp.eq.s32.totalorder %s19, 1
    %p147 = por %p145, %p146
    %p148 = scmp.ne.s32.totalorder %s139, %s140
    %p149 = scmp.eq.s32.totalorder %s19, 0
    %p150 = por %p148, %p149
    %p151 = scmp.ne.s32.totalorder %s139, %s140
    %p152 = scmp.eq.s32.totalorder %s20, 1
    %p153 = por %p151, %p152
    %p155 = scmp.ne.s32.totalorder %s140, %s154
    %p156 = scmp.eq.s32.totalorder %s20, 0
    %p157 = por %p155, %p156
    %s159 = sadd.s32 %s158, 1
    %p162 = scmp.eq.s32.totalorder %s14, 1
    %p163 = scmp.ne.s32.totalorder %s158, %s160
    %p164 = scmp.eq.s32.totalorder %s14, 0
    %p165 = por %p163, %p164
    %p166 = scmp.ne.s32.totalorder %s158, %s160
    %p167 = scmp.eq.s32.totalorder %s19, 1
    %p168 = por %p166, %p167
    %p169 = scmp.ne.s32.totalorder %s160, %s161
    %p170 = scmp.eq.s32.totalorder %s19, 0
    %p171 = por %p169, %p170
    %p172 = scmp.ne.s32.totalorder %s160, %s161
    %p173 = scmp.eq.s32.totalorder %s20, 1
    %p174 = por %p172, %p173
    %p176 = scmp.ne.s32.totalorder %s161, %s175
    %p177 = scmp.eq.s32.totalorder %s20, 0
    %p178 = por %p176, %p177
    %s180 = sadd.s32 %s179, 1
    %p183 = scmp.eq.s32.totalorder %s14, 1
    %p184 = scmp.ne.s32.totalorder %s179, %s181
    %p185 = scmp.eq.s32.totalorder %s14, 0
    %p186 = por %p184, %p185
    %p187 = scmp.ne.s32.totalorder %s179, %s181
    %p188 = scmp.eq.s32.totalorder %s19, 1
    %p189 = por %p187, %p188
    %p190 = scmp.ne.s32.totalorder %s181, %s182
    %p191 = scmp.eq.s32.totalorder %s19, 0
    %p192 = por %p190, %p191
    %p193 = scmp.ne.s32.totalorder %s181, %s182
    %p194 = scmp.eq.s32.totalorder %s20, 1
    %p195 = por %p193, %p194
    %p197 = scmp.ne.s32.totalorder %s182, %s196
    %p198 = scmp.eq.s32.totalorder %s20, 0
    %p199 = por %p197, %p198
    %s200 = ssub.s32 %s14, %s21
    %p201 = scmp.eq.s32.totalorder %s200, 0
    %s203 = sadd.s32 %s202, 1
    %s204 = scalar_select %p201, %s202, %s203
    %p207 = pneg %p201
    %p208 = scmp.eq.s32.totalorder %s14, 1
    %p209 = por %p207, %p208
    %p210 = scmp.ne.s32.totalorder %s202, %s205
    %p211 = scmp.eq.s32.totalorder %s14, 0
    %p212 = por %p210, %p211
    %p213 = scmp.ne.s32.totalorder %s202, %s205
    %p214 = scmp.eq.s32.totalorder %s19, 1
    %p215 = por %p213, %p214
    %p216 = scmp.ne.s32.totalorder %s205, %s206
    %p217 = scmp.eq.s32.totalorder %s19, 0
    %p218 = por %p216, %p217
    %p219 = scmp.ne.s32.totalorder %s205, %s206
    %p220 = scmp.eq.s32.totalorder %s20, 1
    %p221 = por %p219, %p220
    %p223 = scmp.ne.s32.totalorder %s206, %s222
    %p224 = scmp.eq.s32.totalorder %s20, 0
    %p225 = por %p223, %p224
    %p226 = scmp.le.s32.totalorder 1, %s14
    %p227 = scmp.lt.s32.totalorder %s14, 3
    %p228 = pnand %p226, %p227
    %p229 = pneg %p228
    // Predicated region
    $region9: #{convnext_block.3} parent=5 // pred_check
      _
    $region10: #{convnext_block.3} parent=5 // pred_check_branch
      %231 = sbr.rel (%p228) target = $region12
    $region11: #{convnext_block.3} parent=5 // pred_region
      %s232 = ssub.s32 %s14, 1
      // Predicated region
      $region13: #{convnext_block.3} parent=11 // pred_check
        %p233 = pneg %p87
      $region14: #{convnext_block.3} parent=11 // pred_check_branch
        %235 = sbr.rel (%p233) target = $region16
      $region15: #{convnext_block.3} parent=11 // pred_region
        _
      $region16: #{convnext_block.3} parent=11 // pred_fallthru
        _
      // Predicated region
      $region17: #{convnext_block.3} parent=11 // pred_check
        %p236 = pneg %p108
      $region18: #{convnext_block.3} parent=11 // pred_check_branch
        %238 = sbr.rel (%p236) target = $region20
      $region19: #{convnext_block.3} parent=11 // pred_region
        _
      $region20: #{convnext_block.3} parent=11 // pred_fallthru
        _
      // Predicated region
      $region21: #{convnext_block.3} parent=11 // pred_check
        %p239 = pneg %p129
      $region22: #{convnext_block.3} parent=11 // pred_check_branch
        %241 = sbr.rel (%p239) target = $region24
      $region23: #{convnext_block.3} parent=11 // pred_region
        _
      $region24: #{convnext_block.3} parent=11 // pred_fallthru
        _
      // Predicated region
      $region25: #{convnext_block.3} parent=11 // pred_check
        %p242 = pneg %p150
      $region26: #{convnext_block.3} parent=11 // pred_check_branch
        %244 = sbr.rel (%p242) target = $region28
      $region27: #{convnext_block.3} parent=11 // pred_region
        _
      $region28: #{convnext_block.3} parent=11 // pred_fallthru
        _
      // Predicated region
      $region29: #{convnext_block.3} parent=11 // pred_check
        %p245 = pneg %p171
      $region30: #{convnext_block.3} parent=11 // pred_check_branch
        %247 = sbr.rel (%p245) target = $region32
      $region31: #{convnext_block.3} parent=11 // pred_region
        _
      $region32: #{convnext_block.3} parent=11 // pred_fallthru
        _
      // Predicated region
      $region33: #{convnext_block.3} parent=11 // pred_check
        %p248 = pneg %p192
      $region34: #{convnext_block.3} parent=11 // pred_check_branch
        %250 = sbr.rel (%p248) target = $region36
      $region35: #{convnext_block.3} parent=11 // pred_region
        _
      $region36: #{convnext_block.3} parent=11 // pred_fallthru
        _
    $region12: #{convnext_block.3} parent=5 // pred_fallthru
      _
    %p251 = scmp.lt.s32.totalorder %s14, 2
    // Predicated region
    $region37: #{convnext_block.3} parent=5 // pred_check
      %p252 = pneg %p251
    $region38: #{convnext_block.3} parent=5 // pred_check_branch
      %254 = sbr.rel (%p252) target = $region40
    $region39: #{convnext_block.3} parent=5 // pred_region
      // Predicated region
      $region41: #{convnext_block.3} parent=39 // pred_check
        %p255 = pneg %p34
      $region42: #{convnext_block.3} parent=39 // pred_check_branch
        %257 = sbr.rel (%p255) target = $region44
      $region43: #{convnext_block.3} parent=39 // pred_region
        %s258 = smul.u32 32, %s14
        %p259 = scmp.lt.s32.totalorder %s258, 63
        %s260 = scalar_select %p259, %s258, 63
        %s261 = smul.addr %s260, 8
        %s262 = scalar_lea.vmem %s0, %s261
        %s263 = smul.u32 32, %s14
      $region44: #{convnext_block.3} parent=39 // pred_fallthru
        _
      // Predicated region
      $region45: #{convnext_block.3} parent=39 // pred_check
        %p264 = pneg %p60
      $region46: #{convnext_block.3} parent=39 // pred_check_branch
        %266 = sbr.rel (%p264) target = $region48
      $region47: #{convnext_block.3} parent=39 // pred_region
        %s267 = smul.u32 32, %s14
        %p268 = scmp.lt.s32.totalorder %s267, 63
        %s269 = scalar_select %p268, %s267, 63
        %s270 = smul.addr %s269, 8
        %s271 = scalar_lea.vmem %s1, %s270
        %s272 = smul.u32 32, %s14
      $region48: #{convnext_block.3} parent=39 // pred_fallthru
        _
    $region40: #{convnext_block.3} parent=5 // pred_fallthru
      _
    %p273 = scmp.le.s32.totalorder 1, %s14
    %p274 = scmp.lt.s32.totalorder %s14, 3
    %p275 = pnand %p273, %p274
    %p276 = pneg %p275
    // Predicated region
    $region49: #{convnext_block.3} parent=5 // pred_check
      _
    $region50: #{convnext_block.3} parent=5 // pred_check_branch
      %278 = sbr.rel (%p275) target = $region52
    $region51: #{convnext_block.3} parent=5 // pred_region
      %s279 = ssub.s32 %s14, 1
      %s280 = smul.u32 32, %s19
      %p281 = scmp.lt.s32.totalorder %s280, 63
      %s282 = scalar_select %p281, %s280, 63
      %s283 = smul.addr %s282, 8
      %s284 = scalar_lea.vmem %s0, %s283
      %p285 = pneg %p40
      %p286 = pneg %p37
      %s287 = smul.u32 32, %s19
      %p288 = scmp.lt.s32.totalorder %s287, 63
      %s289 = scalar_select %p288, %s287, 63
      %s290 = smul.addr %s289, 8
      %s291 = scalar_lea.vmem %s1, %s290
      %p292 = pneg %p66
      %p293 = pneg %p63
      %p294 = pneg %p87
      %p295 = pneg %p84
      %p296 = pneg %p108
      %p297 = pneg %p105
      %p298 = pneg %p129
      %p299 = pneg %p126
      %p300 = pneg %p150
      %p301 = pneg %p147
      %p302 = pneg %p171
      %p303 = pneg %p168
      %p304 = pneg %p192
      %p305 = pneg %p189
      %p306 = pneg %p218
      %p307 = pneg %p215
      %s308 = smul.u32 32, %s19
      %p309 = scmp.lt.s32.totalorder %s308, 63
      %s310 = scalar_select %p309, %s308, 63
      %s311 = smul.addr %s310, 8
      %s312 = scalar_lea.vmem %s8, %s311
      %s313 = smul.u32 32, %s19
      %p314 = scmp.lt.s32.totalorder %s313, 63
      %s315 = scalar_select %p314, %s313, 63
      %s316 = smul.addr %s315, 8
      %s317 = scalar_lea.vmem %s0, %s316
      %s318 = smul.u32 32, %s19
      %s319 = smul.u32 32, %s19
      %p320 = scmp.lt.s32.totalorder %s319, 63
      %s321 = scalar_select %p320, %s319, 63
      %s322 = smul.addr %s321, 8
      %s323 = scalar_lea.vmem %s1, %s322
      %s324 = smul.u32 32, %s19
      %s325 = smul.u32 32, %s19
      %p326 = scmp.lt.s32.totalorder %s325, 63
      %s327 = scalar_select %p326, %s325, 63
      %s328 = smul.addr %s327, 8
      %s329 = scalar_lea.vmem %s8, %s328
      %s330 = smul.u32 32, %s19
      %v331 = vld [vmem:[%s317] sm:$0xff]
      %v332 = vld [vmem:[%s317 + $0x8] sm:$0xff]
      %v333 = vld [vmem:[%s317 + $0x10] sm:$0xff]
      %v334 = vld [vmem:[%s317 + $0x18] sm:$0xff]
      %v335 = vld [vmem:[%s317 + $0x20] sm:$0xff]
      %v336 = vld [vmem:[%s317 + $0x28] sm:$0xff]
      %v337 = vld [vmem:[%s317 + $0x30] sm:$0xff]
      %v338 = vld [vmem:[%s317 + $0x38] sm:$0xff]
      %v339 = vld [vmem:[%s317 + $0x40] sm:$0xff]
      %v340 = vld [vmem:[%s317 + $0x48] sm:$0xff]
      %v341 = vld [vmem:[%s317 + $0x50] sm:$0xff]
      %v342 = vld [vmem:[%s317 + $0x58] sm:$0xff]
      %v343 = vld [vmem:[%s317 + $0x60] sm:$0xff]
      %v344 = vld [vmem:[%s317 + $0x68] sm:$0xff]
      %v345 = vld [vmem:[%s317 + $0x70] sm:$0xff]
      %v346 = vld [vmem:[%s317 + $0x78] sm:$0xff]
      %v347 = vld [vmem:[%s317 + $0x80] sm:$0xff]
      %v348 = vld [vmem:[%s317 + $0x88] sm:$0xff]
      %v349 = vld [vmem:[%s317 + $0x90] sm:$0xff]
      %v350 = vld [vmem:[%s317 + $0x98] sm:$0xff]
      %v351 = vld [vmem:[%s317 + $0xa0] sm:$0xff]
      %v352 = vld [vmem:[%s317 + $0xa8] sm:$0xff]
      %v353 = vld [vmem:[%s317 + $0xb0] sm:$0xff]
      %v354 = vld [vmem:[%s317 + $0xb8] sm:$0xff]
      %v355 = vld [vmem:[%s317 + $0xc0] sm:$0xff]
      %v356 = vld [vmem:[%s317 + $0xc8] sm:$0xff]
      %v357 = vld [vmem:[%s317 + $0xd0] sm:$0xff]
      %v358 = vld [vmem:[%s317 + $0xd8] sm:$0xff]
      %v359 = vld [vmem:[%s317 + $0xe0] sm:$0xff]
      %v360 = vld [vmem:[%s317 + $0xe8] sm:$0xff]
      %v361 = vld [vmem:[%s317 + $0xf0] sm:$0xff]
      %v362 = vld [vmem:[%s317 + $0xf8] sm:$0xff]
      %v363 = vld [vmem:[%s2] sm:$0xf]
      %v364 = vld [vmem:[%s3] sm:$0x1]
      %v366 = vlaneseq
      %v367 = vshrl.u32 %v366, 7
      %v368 = vsub.s32 0, %v367
      %v369 = vrot.slane %v364, %v368
      %vm371 = vcmask 31744
      %v373 = vsel %vm371, %v331, 0
      %v376 = vsel %vm371, %v332, 0
      %v379 = vsel %vm371, %v333, 0
      %v382 = vsel %vm371, %v334, 0
      %v385 = vsel %vm371, %v335, 0
      %v388 = vsel %vm371, %v336, 0
      %v391 = vsel %vm371, %v337, 0
      %v394 = vsel %vm371, %v338, 0
      %v397 = vsel %vm371, %v339, 0
      %v400 = vsel %vm371, %v340, 0
      %v403 = vsel %vm371, %v341, 0
      %v406 = vsel %vm371, %v342, 0
      %v409 = vsel %vm371, %v343, 0
      %v412 = vsel %vm371, %v344, 0
      %v415 = vsel %vm371, %v345, 0
      %v418 = vsel %vm371, %v346, 0
      %v421 = vsel %vm371, %v347, 0
      %v424 = vsel %vm371, %v348, 0
      %v427 = vsel %vm371, %v349, 0
      %v430 = vsel %vm371, %v350, 0
      %v433 = vsel %vm371, %v351, 0
      %v436 = vsel %vm371, %v352, 0
      %v439 = vsel %vm371, %v353, 0
      %v442 = vsel %vm371, %v354, 0
      %v445 = vsel %vm371, %v355, 0
      %v448 = vsel %vm371, %v356, 0
      %v451 = vsel %vm371, %v357, 0
      %v454 = vsel %vm371, %v358, 0
      %v457 = vsel %vm371, %v359, 0
      %v460 = vsel %vm371, %v360, 0
      %v463 = vsel %vm371, %v361, 0
      %v466 = vsel %vm371, %v362, 0
      %vm468 = vcmask 1043456
      %v470 = vsel %vm468, %v363, 0
      %472 = vmatprep.subr.mxu0 0.0
      %473 = vmatpush1.msra.mxu0 %v470
      %474 = vmatprep.subr.mxu0 0.0
      %475 = vmatpush1.msra.mxu0 0.0
      %476 = vmatprep.subr.mxu0 0.0
      %477 = vmatpush1.msra.mxu0 0.0
      %478 = vmatprep.subr.mxu0 0.0
      %479 = vmatpush1.msra.mxu0 0.0
      %480 = vmatprep.subr.mxu0 0.0
      %481 = vmatpush1.msra.mxu0 0.0
      %482 = vmatprep.subr.mxu0 0.0
      %483 = vmatpush1.msra.mxu0 0.0
      %484 = vmatprep.subr.mxu0 0.0
      %485 = vmatpush1.msra.mxu0 0.0
      %486 = vmatprep.subr.mxu0 0.0
      %487 = vmatpush1.msra.mxu0 0.0
      %488 = vmatprep.subr.mxu0 0.0
      %489 = vmatpush1.msra.mxu0 0.0
      %490 = vmatprep.subr.mxu0 0.0
      %491 = vmatpush1.msra.mxu0 0.0
      %492 = vmatprep.subr.mxu0 0.0
      %493 = vmatpush1.msra.mxu0 0.0
      %494 = vmatprep.subr.mxu0 0.0
      %495 = vmatpush1.msra.mxu0 0.0
      %496 = vmatprep.subr.mxu0 0.0
      %497 = vmatpush1.msra.mxu0 0.0
      %498 = vmatprep.subr.mxu0 0.0
      %499 = vmatpush1.msra.mxu0 0.0
      %500 = vmatprep.subr.mxu0 0.0
      %501 = vmatpush1.msra.mxu0 0.0
      %502 = vmatprep.subr.mxu0 0.0
      %503 = vmatpush1.msra.mxu0 0.0
      %504 = vmatprep.subr.mxu0 0.0
      %505 = vmatpush1.msra.mxu0 0.0
      %506 = vmatprep.subr.mxu0 0.0
      %507 = vmatpush1.msra.mxu0 0.0
      %508 = vmatprep.subr.mxu0 0.0
      %509 = vmatpush1.msra.mxu0 0.0
      %510 = vmatprep.subr.mxu0 0.0
      %511 = vmatpush1.msra.mxu0 0.0
      %512 = vmatprep.subr.mxu0 0.0
      %513 = vmatpush1.msra.mxu0 0.0
      %514 = vmatprep.subr.mxu0 0.0
      %515 = vmatpush1.msra.mxu0 0.0
      %516 = vmatprep.subr.mxu0 0.0
      %517 = vmatpush1.msra.mxu0 0.0
      %518 = vmatprep.subr.mxu0 0.0
      %519 = vmatpush1.msra.mxu0 0.0
      %520 = vmatprep.subr.mxu0 0.0
      %521 = vmatpush1.msra.mxu0 0.0
      %522 = vmatprep.subr.mxu0 0.0
      %523 = vmatpush1.msra.mxu0 0.0
      %524 = vmatprep.subr.mxu0 0.0
      %525 = vmatpush1.msra.mxu0 0.0
      %526 = vmatprep.subr.mxu0 0.0
      %527 = vmatpush1.msra.mxu0 0.0
      %528 = vmatprep.subr.mxu0 0.0
      %529 = vmatpush1.msra.mxu0 0.0
      %530 = vmatprep.subr.mxu0 0.0
      %531 = vmatpush1.msra.mxu0 0.0
      %532 = vmatprep.subr.mxu0 0.0
      %533 = vmatpush1.msra.mxu0 0.0
      %534 = vmatprep.subr.mxu0 0.0
      %535 = vmatpush1.msra.mxu0 0.0
      %536 = vmatprep.mubr.f32.mxu0 0.0
      %537 = vmatmul.mubr.f32.gmra.mrb[0].mxu0 %v373
      %v538 = vpop.f32.mrb[0].mxu0
      %v539 = vadd.f32 %v369, %v538
      %v540 = vpop.f32.mrb[0].mxu0
      %541 = vmatprep.mubr.f32.mxu0 0.0
      %542 = vmatmul.mubr.f32.gmra.mrb[0].mxu0 %v376
      %v543 = vpop.f32.mrb[0].mxu0
      %v544 = vadd.f32 %v369, %v543
      %v545 = vpop.f32.mrb[0].mxu0
      %546 = vmatprep.mubr.f32.mxu0 0.0
      %547 = vmatmul.mubr.f32.gmra.mrb[0].mxu0 %v379
      %v548 = vpop.f32.mrb[0].mxu0
      %v549 = vadd.f32 %v369, %v548
      %v550 = vpop.f32.mrb[0].mxu0
      %551 = vmatprep.mubr.f32.mxu0 0.0
      %552 = vmatmul.mubr.f32.gmra.mrb[0].mxu0 %v382
      %v553 = vpop.f32.mrb[0].mxu0
      %v554 = vadd.f32 %v369, %v553
      %v555 = vpop.f32.mrb[0].mxu0
      %556 = vmatprep.mubr.f32.mxu0 0.0
      %557 = vmatmul.mubr.f32.gmra.mrb[0].mxu0 %v385
      %v558 = vpop.f32.mrb[0].mxu0
      %v559 = vadd.f32 %v369, %v558
      %v560 = vpop.f32.mrb[0].mxu0
      %561 = vmatprep.mubr.f32.mxu0 0.0
      %562 = vmatmul.mubr.f32.gmra.mrb[0].mxu0 %v388
      %v563 = vpop.f32.mrb[0].mxu0
      %v564 = vadd.f32 %v369, %v563
      %v565 = vpop.f32.mrb[0].mxu0
      %566 = vmatprep.mubr.f32.mxu0 0.0
      %567 = vmatmul.mubr.f32.gmra.mrb[0].mxu0 %v391
      %v568 = vpop.f32.mrb[0].mxu0
      %v569 = vadd.f32 %v369, %v568
      %v570 = vpop.f32.mrb[0].mxu0
      %571 = vmatprep.mubr.f32.mxu0 0.0
      %572 = vmatmul.mubr.f32.gmra.mrb[0].mxu0 %v394
      %v573 = vpop.f32.mrb[0].mxu0
      %v574 = vadd.f32 %v369, %v573
      %v575 = vpop.f32.mrb[0].mxu0
      %576 = vmatprep.mubr.f32.mxu0 0.0
      %577 = vmatmul.mubr.f32.gmra.mrb[0].mxu0 %v397
      %v578 = vpop.f32.mrb[0].mxu0
      %v579 = vadd.f32 %v369, %v578
      %v580 = vpop.f32.mrb[0].mxu0
      %581 = vmatprep.mubr.f32.mxu0 0.0
      %582 = vmatmul.mubr.f32.gmra.mrb[0].mxu0 %v400
      %v583 = vpop.f32.mrb[0].mxu0
      %v584 = vadd.f32 %v369, %v583
      %v585 = vpop.f32.mrb[0].mxu0
      %586 = vmatprep.mubr.f32.mxu0 0.0
      %587 = vmatmul.mubr.f32.gmra.mrb[0].mxu0 %v403
      %v588 = vpop.f32.mrb[0].mxu0
      %v589 = vadd.f32 %v369, %v588
      %v590 = vpop.f32.mrb[0].mxu0
      %591 = vmatprep.mubr.f32.mxu0 0.0
      %592 = vmatmul.mubr.f32.gmra.mrb[0].mxu0 %v406
      %v593 = vpop.f32.mrb[0].mxu0
      %v594 = vadd.f32 %v369, %v593
      %v595 = vpop.f32.mrb[0].mxu0
      %596 = vmatprep.mubr.f32.mxu0 0.0
      %597 = vmatmul.mubr.f32.gmra.mrb[0].mxu0 %v409
      %v598 = vpop.f32.mrb[0].mxu0
      %v599 = vadd.f32 %v369, %v598
      %v600 = vpop.f32.mrb[0].mxu0
      %601 = vmatprep.mubr.f32.mxu0 0.0
      %602 = vmatmul.mubr.f32.gmra.mrb[0].mxu0 %v412
      %v603 = vpop.f32.mrb[0].mxu0
      %v604 = vadd.f32 %v369, %v603
      %v605 = vpop.f32.mrb[0].mxu0
      %606 = vmatprep.mubr.f32.mxu0 0.0
      %607 = vmatmul.mubr.f32.gmra.mrb[0].mxu0 %v415
      %v608 = vpop.f32.mrb[0].mxu0
      %v609 = vadd.f32 %v369, %v608
      %v610 = vpop.f32.mrb[0].mxu0
      %611 = vmatprep.mubr.f32.mxu0 0.0
      %612 = vmatmul.mubr.f32.gmra.mrb[0].mxu0 %v418
      %v613 = vpop.f32.mrb[0].mxu0
      %v614 = vadd.f32 %v369, %v613
      %v615 = vpop.f32.mrb[0].mxu0
      %616 = vmatprep.mubr.f32.mxu0 0.0
      %617 = vmatmul.mubr.f32.gmra.mrb[0].mxu0 %v421
      %v618 = vpop.f32.mrb[0].mxu0
      %v619 = vadd.f32 %v369, %v618
      %v620 = vpop.f32.mrb[0].mxu0
      %621 = vmatprep.mubr.f32.mxu0 0.0
      %622 = vmatmul.mubr.f32.gmra.mrb[0].mxu0 %v424
      %v623 = vpop.f32.mrb[0].mxu0
      %v624 = vadd.f32 %v369, %v623
      %v625 = vpop.f32.mrb[0].mxu0
      %626 = vmatprep.mubr.f32.mxu0 0.0
      %627 = vmatmul.mubr.f32.gmra.mrb[0].mxu0 %v427
      %v628 = vpop.f32.mrb[0].mxu0
      %v629 = vadd.f32 %v369, %v628
      %v630 = vpop.f32.mrb[0].mxu0
      %631 = vmatprep.mubr.f32.mxu0 0.0
      %632 = vmatmul.mubr.f32.gmra.mrb[0].mxu0 %v430
      %v633 = vpop.f32.mrb[0].mxu0
      %v634 = vadd.f32 %v369, %v633
      %v635 = vpop.f32.mrb[0].mxu0
      %636 = vmatprep.mubr.f32.mxu0 0.0
      %637 = vmatmul.mubr.f32.gmra.mrb[0].mxu0 %v433
      %v638 = vpop.f32.mrb[0].mxu0
      %v639 = vadd.f32 %v369, %v638
      %v640 = vpop.f32.mrb[0].mxu0
      %641 = vmatprep.mubr.f32.mxu0 0.0
      %642 = vmatmul.mubr.f32.gmra.mrb[0].mxu0 %v436
      %v643 = vpop.f32.mrb[0].mxu0
      %v644 = vadd.f32 %v369, %v643
      %v645 = vpop.f32.mrb[0].mxu0
      %646 = vmatprep.mubr.f32.mxu0 0.0
      %647 = vmatmul.mubr.f32.gmra.mrb[0].mxu0 %v439
      %v648 = vpop.f32.mrb[0].mxu0
      %v649 = vadd.f32 %v369, %v648
      %v650 = vpop.f32.mrb[0].mxu0
      %651 = vmatprep.mubr.f32.mxu0 0.0
      %652 = vmatmul.mubr.f32.gmra.mrb[0].mxu0 %v442
      %v653 = vpop.f32.mrb[0].mxu0
      %v654 = vadd.f32 %v369, %v653
      %v655 = vpop.f32.mrb[0].mxu0
      %656 = vmatprep.mubr.f32.mxu0 0.0
      %657 = vmatmul.mubr.f32.gmra.mrb[0].mxu0 %v445
      %v658 = vpop.f32.mrb[0].mxu0
      %v659 = vadd.f32 %v369, %v658
      %v660 = vpop.f32.mrb[0].mxu0
      %661 = vmatprep.mubr.f32.mxu0 0.0
      %662 = vmatmul.mubr.f32.gmra.mrb[0].mxu0 %v448
      %v663 = vpop.f32.mrb[0].mxu0
      %v664 = vadd.f32 %v369, %v663
      %v665 = vpop.f32.mrb[0].mxu0
      %666 = vmatprep.mubr.f32.mxu0 0.0
      %667 = vmatmul.mubr.f32.gmra.mrb[0].mxu0 %v451
      %v668 = vpop.f32.mrb[0].mxu0
      %v669 = vadd.f32 %v369, %v668
      %v670 = vpop.f32.mrb[0].mxu0
      %671 = vmatprep.mubr.f32.mxu0 0.0
      %672 = vmatmul.mubr.f32.gmra.mrb[0].mxu0 %v454
      %v673 = vpop.f32.mrb[0].mxu0
      %v674 = vadd.f32 %v369, %v673
      %v675 = vpop.f32.mrb[0].mxu0
      %676 = vmatprep.mubr.f32.mxu0 0.0
      %677 = vmatmul.mubr.f32.gmra.mrb[0].mxu0 %v457
      %v678 = vpop.f32.mrb[0].mxu0
      %v679 = vadd.f32 %v369, %v678
      %v680 = vpop.f32.mrb[0].mxu0
      %681 = vmatprep.mubr.f32.mxu0 0.0
      %682 = vmatmul.mubr.f32.gmra.mrb[0].mxu0 %v460
      %v683 = vpop.f32.mrb[0].mxu0
      %v684 = vadd.f32 %v369, %v683
      %v685 = vpop.f32.mrb[0].mxu0
      %686 = vmatprep.mubr.f32.mxu0 0.0
      %687 = vmatmul.mubr.f32.gmra.mrb[0].mxu0 %v463
      %v688 = vpop.f32.mrb[0].mxu0
      %v689 = vadd.f32 %v369, %v688
      %v690 = vpop.f32.mrb[0].mxu0
      %691 = vmatprep.mubr.f32.mxu0 0.0
      %692 = vmatmul.mubr.f32.gmra.mrb[0].mxu0 %v466
      %v693 = vpop.f32.mrb[0].mxu0
      %v694 = vadd.f32 %v369, %v693
      %v695 = vpop.f32.mrb[0].mxu0
      %696 = vdwg.mxu0
      %v697 = vmul.f32 %v539, 0.5
      %v698 = vmul.f32 %v544, 0.5
      %v699 = vmul.f32 %v549, 0.5
      %v700 = vmul.f32 %v554, 0.5
      %v701 = vmul.f32 %v559, 0.5
      %v702 = vmul.f32 %v564, 0.5
      %v703 = vmul.f32 %v569, 0.5
      %v704 = vmul.f32 %v574, 0.5
      %v705 = vmul.f32 %v579, 0.5
      %v706 = vmul.f32 %v584, 0.5
      %v707 = vmul.f32 %v589, 0.5
      %v708 = vmul.f32 %v594, 0.5
      %v709 = vmul.f32 %v599, 0.5
      %v710 = vmul.f32 %v604, 0.5
      %v711 = vmul.f32 %v609, 0.5
      %v712 = vmul.f32 %v614, 0.5
      %v713 = vmul.f32 %v619, 0.5
      %v714 = vmul.f32 %v624, 0.5
      %v715 = vmul.f32 %v629, 0.5
      %v716 = vmul.f32 %v634, 0.5
      %v717 = vmul.f32 %v639, 0.5
      %v718 = vmul.f32 %v644, 0.5
      %v719 = vmul.f32 %v649, 0.5
      %v720 = vmul.f32 %v654, 0.5
      %v721 = vmul.f32 %v659, 0.5
      %v722 = vmul.f32 %v664, 0.5
      %v723 = vmul.f32 %v669, 0.5
      %v724 = vmul.f32 %v674, 0.5
      %v725 = vmul.f32 %v679, 0.5
      %v726 = vmul.f32 %v684, 0.5
      %v727 = vmul.f32 %v689, 0.5
      %v728 = vmul.f32 %v694, 0.5
      %v729 = vmul.f32 %v539, 0.70710677
      %v730 = vmul.f32 %v544, 0.70710677
      %v731 = vmul.f32 %v549, 0.70710677
      %v732 = vmul.f32 %v554, 0.70710677
      %v733 = vmul.f32 %v559, 0.70710677
      %v734 = vmul.f32 %v564, 0.70710677
      %v735 = vmul.f32 %v569, 0.70710677
      %v736 = vmul.f32 %v574, 0.70710677
      %v737 = vmul.f32 %v579, 0.70710677
      %v738 = vmul.f32 %v584, 0.70710677
      %v739 = vmul.f32 %v589, 0.70710677
      %v740 = vmul.f32 %v594, 0.70710677
      %v741 = vmul.f32 %v599, 0.70710677
      %v742 = vmul.f32 %v604, 0.70710677
      %v743 = vmul.f32 %v609, 0.70710677
      %v744 = vmul.f32 %v614, 0.70710677
      %v745 = vmul.f32 %v619, 0.70710677
      %v746 = vmul.f32 %v624, 0.70710677
      %v747 = vmul.f32 %v629, 0.70710677
      %v748 = vmul.f32 %v634, 0.70710677
      %v749 = vmul.f32 %v639, 0.70710677
      %v750 = vmul.f32 %v644, 0.70710677
      %v751 = vmul.f32 %v649, 0.70710677
      %v752 = vmul.f32 %v654, 0.70710677
      %v753 = vmul.f32 %v659, 0.70710677
      %v754 = vmul.f32 %v664, 0.70710677
      %v755 = vmul.f32 %v669, 0.70710677
      %v756 = vmul.f32 %v674, 0.70710677
      %v757 = vmul.f32 %v679, 0.70710677
      %v758 = vmul.f32 %v684, 0.70710677
      %v759 = vmul.f32 %v689, 0.70710677
      %v760 = vmul.f32 %v694, 0.70710677
      %v761 = vand.u32 2147483647, %v729
      %v762 = vand.u32 2147483647, %v730
      %v763 = vand.u32 2147483647, %v731
      %v764 = vand.u32 2147483647, %v732
      %v765 = vand.u32 2147483647, %v733
      %v766 = vand.u32 2147483647, %v734
      %v767 = vand.u32 2147483647, %v735
      %v768 = vand.u32 2147483647, %v736
      %v769 = vand.u32 2147483647, %v737
      %v770 = vand.u32 2147483647, %v738
      %v771 = vand.u32 2147483647, %v739
      %v772 = vand.u32 2147483647, %v740
      %v773 = vand.u32 2147483647, %v741
      %v774 = vand.u32 2147483647, %v742
      %v775 = vand.u32 2147483647, %v743
      %v776 = vand.u32 2147483647, %v744
      %v777 = vand.u32 2147483647, %v745
      %v778 = vand.u32 2147483647, %v746
      %v779 = vand.u32 2147483647, %v747
      %v780 = vand.u32 2147483647, %v748
      %v781 = vand.u32 2147483647, %v749
      %v782 = vand.u32 2147483647, %v750
      %v783 = vand.u32 2147483647, %v751
      %v784 = vand.u32 2147483647, %v752
      %v785 = vand.u32 2147483647, %v753
      %v786 = vand.u32 2147483647, %v754
      %v787 = vand.u32 2147483647, %v755
      %v788 = vand.u32 2147483647, %v756
      %v789 = vand.u32 2147483647, %v757
      %v790 = vand.u32 2147483647, %v758
      %v791 = vand.u32 2147483647, %v759
      %v792 = vand.u32 2147483647, %v760
      %v793 = vmul.f32 %v761, 0.5
      %v794 = vmul.f32 %v762, 0.5
      %v795 = vmul.f32 %v763, 0.5
      %v796 = vmul.f32 %v764, 0.5
      %v797 = vmul.f32 %v765, 0.5
      %v798 = vmul.f32 %v766, 0.5
      %v799 = vmul.f32 %v767, 0.5
      %v800 = vmul.f32 %v768, 0.5
      %v801 = vmul.f32 %v769, 0.5
      %v802 = vmul.f32 %v770, 0.5
      %v803 = vmul.f32 %v771, 0.5
      %v804 = vmul.f32 %v772, 0.5
      %v805 = vmul.f32 %v773, 0.5
      %v806 = vmul.f32 %v774, 0.5
      %v807 = vmul.f32 %v775, 0.5
      %v808 = vmul.f32 %v776, 0.5
      %v809 = vmul.f32 %v777, 0.5
      %v810 = vmul.f32 %v778, 0.5
      %v811 = vmul.f32 %v779, 0.5
      %v812 = vmul.f32 %v780, 0.5
      %v813 = vmul.f32 %v781, 0.5
      %v814 = vmul.f32 %v782, 0.5
      %v815 = vmul.f32 %v783, 0.5
      %v816 = vmul.f32 %v784, 0.5
      %v817 = vmul.f32 %v785, 0.5
      %v818 = vmul.f32 %v786, 0.5
      %v819 = vmul.f32 %v787, 0.5
      %v820 = vmul.f32 %v788, 0.5
      %v821 = vmul.f32 %v789, 0.5
      %v822 = vmul.f32 %v790, 0.5
      %v823 = vmul.f32 %v791, 0.5
      %v824 = vmul.f32 %v792, 0.5
      %v825 = vadd.f32 %v793, 1.0
      %v826 = vadd.f32 %v794, 1.0
      %v827 = vadd.f32 %v795, 1.0
      %v828 = vadd.f32 %v796, 1.0
      %v829 = vadd.f32 %v797, 1.0
      %v830 = vadd.f32 %v798, 1.0
      %v831 = vadd.f32 %v799, 1.0
      %v832 = vadd.f32 %v800, 1.0
      %v833 = vadd.f32 %v801, 1.0
      %v834 = vadd.f32 %v802, 1.0
      %v835 = vadd.f32 %v803, 1.0
      %v836 = vadd.f32 %v804, 1.0
      %v837 = vadd.f32 %v805, 1.0
      %v838 = vadd.f32 %v806, 1.0
      %v839 = vadd.f32 %v807, 1.0
      %v840 = vadd.f32 %v808, 1.0
      %v841 = vadd.f32 %v809, 1.0
      %v842 = vadd.f32 %v810, 1.0
      %v843 = vadd.f32 %v811, 1.0
      %v844 = vadd.f32 %v812, 1.0
      %v845 = vadd.f32 %v813, 1.0
      %v846 = vadd.f32 %v814, 1.0
      %v847 = vadd.f32 %v815, 1.0
      %v848 = vadd.f32 %v816, 1.0
      %v849 = vadd.f32 %v817, 1.0
      %v850 = vadd.f32 %v818, 1.0
      %v851 = vadd.f32 %v819, 1.0
      %v852 = vadd.f32 %v820, 1.0
      %v853 = vadd.f32 %v821, 1.0
      %v854 = vadd.f32 %v822, 1.0
      %v855 = vadd.f32 %v823, 1.0
      %v856 = vadd.f32 %v824, 1.0
      %v857 = vrcp.pop %v825
      %v858 = vmul.f32 1.0, %v857
      %v859 = vrcp.pop %v826
      %v860 = vmul.f32 1.0, %v859
      %v861 = vrcp.pop %v827
      %v862 = vmul.f32 1.0, %v861
      %v863 = vrcp.pop %v828
      %v864 = vmul.f32 1.0, %v863
      %v865 = vrcp.pop %v829
      %v866 = vmul.f32 1.0, %v865
      %v867 = vrcp.pop %v830
      %v868 = vmul.f32 1.0, %v867
      %v869 = vrcp.pop %v831
      %v870 = vmul.f32 1.0, %v869
      %v871 = vrcp.pop %v832
      %v872 = vmul.f32 1.0, %v871
      %v873 = vrcp.pop %v833
      %v874 = vmul.f32 1.0, %v873
      %v875 = vrcp.pop %v834
      %v876 = vmul.f32 1.0, %v875
      %v877 = vrcp.pop %v835
      %v878 = vmul.f32 1.0, %v877
      %v879 = vrcp.pop %v836
      %v880 = vmul.f32 1.0, %v879
      %v881 = vrcp.pop %v837
      %v882 = vmul.f32 1.0, %v881
      %v883 = vrcp.pop %v838
      %v884 = vmul.f32 1.0, %v883
      %v885 = vrcp.pop %v839
      %v886 = vmul.f32 1.0, %v885
      %v887 = vrcp.pop %v840
      %v888 = vmul.f32 1.0, %v887
      %v889 = vrcp.pop %v841
      %v890 = vmul.f32 1.0, %v889
      %v891 = vrcp.pop %v842
      %v892 = vmul.f32 1.0, %v891
      %v893 = vrcp.pop %v843
      %v894 = vmul.f32 1.0, %v893
      %v895 = vrcp.pop %v844
      %v896 = vmul.f32 1.0, %v895
      %v897 = vrcp.pop %v845
      %v898 = vmul.f32 1.0, %v897
      %v899 = vrcp.pop %v846
      %v900 = vmul.f32 1.0, %v899
      %v901 = vrcp.pop %v847
      %v902 = vmul.f32 1.0, %v901
      %v903 = vrcp.pop %v848
      %v904 = vmul.f32 1.0, %v903
      %v905 = vrcp.pop %v849
      %v906 = vmul.f32 1.0, %v905
      %v907 = vrcp.pop %v850
      %v908 = vmul.f32 1.0, %v907
      %v909 = vrcp.pop %v851
      %v910 = vmul.f32 1.0, %v909
      %v911 = vrcp.pop %v852
      %v912 = vmul.f32 1.0, %v911
      %v913 = vrcp.pop %v853
      %v914 = vmul.f32 1.0, %v913
      %v915 = vrcp.pop %v854
      %v916 = vmul.f32 1.0, %v915
      %v917 = vrcp.pop %v855
      %v918 = vmul.f32 1.0, %v917
      %v919 = vrcp.pop %v856
      %v920 = vmul.f32 1.0, %v919
      %v921 = vmul.f32 %v858, 0.17087276
      %v922 = vmul.f32 %v860, 0.17087276
      %v923 = vmul.f32 %v862, 0.17087276
      %v924 = vmul.f32 %v864, 0.17087276
      %v925 = vmul.f32 %v866, 0.17087276
      %v926 = vmul.f32 %v868, 0.17087276
      %v927 = vmul.f32 %v870, 0.17087276
      %v928 = vmul.f32 %v872, 0.17087276
      %v929 = vmul.f32 %v874, 0.17087276
      %v930 = vmul.f32 %v876, 0.17087276
      %v931 = vmul.f32 %v878, 0.17087276
      %v932 = vmul.f32 %v880, 0.17087276
      %v933 = vmul.f32 %v882, 0.17087276
      %v934 = vmul.f32 %v884, 0.17087276
      %v935 = vmul.f32 %v886, 0.17087276
      %v936 = vmul.f32 %v888, 0.17087276
      %v937 = vmul.f32 %v890, 0.17087276
      %v938 = vmul.f32 %v892, 0.17087276
      %v939 = vmul.f32 %v894, 0.17087276
      %v940 = vmul.f32 %v896, 0.17087276
      %v941 = vmul.f32 %v898, 0.17087276
      %v942 = vmul.f32 %v900, 0.17087276
      %v943 = vmul.f32 %v902, 0.17087276
      %v944 = vmul.f32 %v904, 0.17087276
      %v945 = vmul.f32 %v906, 0.17087276
      %v946 = vmul.f32 %v908, 0.17087276
      %v947 = vmul.f32 %v910, 0.17087276
      %v948 = vmul.f32 %v912, 0.17087276
      %v949 = vmul.f32 %v914, 0.17087276
      %v950 = vmul.f32 %v916, 0.17087276
      %v951 = vmul.f32 %v918, 0.17087276
      %v952 = vmul.f32 %v920, 0.17087276
      %v953 = vadd.f32 %v921, -0.82215226
      %v954 = vadd.f32 %v922, -0.82215226
      %v955 = vadd.f32 %v923, -0.82215226
      %v956 = vadd.f32 %v924, -0.82215226
      %v957 = vadd.f32 %v925, -0.82215226
      %v958 = vadd.f32 %v926, -0.82215226
      %v959 = vadd.f32 %v927, -0.82215226
      %v960 = vadd.f32 %v928, -0.82215226
      %v961 = vadd.f32 %v929, -0.82215226
      %v962 = vadd.f32 %v930, -0.82215226
      %v963 = vadd.f32 %v931, -0.82215226
      %v964 = vadd.f32 %v932, -0.82215226
      %v965 = vadd.f32 %v933, -0.82215226
      %v966 = vadd.f32 %v934, -0.82215226
      %v967 = vadd.f32 %v935, -0.82215226
      %v968 = vadd.f32 %v936, -0.82215226
      %v969 = vadd.f32 %v937, -0.82215226
      %v970 = vadd.f32 %v938, -0.82215226
      %v971 = vadd.f32 %v939, -0.82215226
      %v972 = vadd.f32 %v940, -0.82215226
      %v973 = vadd.f32 %v941, -0.82215226
      %v974 = vadd.f32 %v942, -0.82215226
      %v975 = vadd.f32 %v943, -0.82215226
      %v976 = vadd.f32 %v944, -0.82215226
      %v977 = vadd.f32 %v945, -0.82215226
      %v978 = vadd.f32 %v946, -0.82215226
      %v979 = vadd.f32 %v947, -0.82215226
      %v980 = vadd.f32 %v948, -0.82215226
      %v981 = vadd.f32 %v949, -0.82215226
      %v982 = vadd.f32 %v950, -0.82215226
      %v983 = vadd.f32 %v951, -0.82215226
      %v984 = vadd.f32 %v952, -0.82215226
      %v985 = vmul.f32 %v858, %v953
      %v986 = vmul.f32 %v860, %v954
      %v987 = vmul.f32 %v862, %v955
      %v988 = vmul.f32 %v864, %v956
      %v989 = vmul.f32 %v866, %v957
      %v990 = vmul.f32 %v868, %v958
      %v991 = vmul.f32 %v870, %v959
      %v992 = vmul.f32 %v872, %v960
      %v993 = vmul.f32 %v874, %v961
      %v994 = vmul.f32 %v876, %v962
      %v995 = vmul.f32 %v878, %v963
      %v996 = vmul.f32 %v880, %v964
      %v997 = vmul.f32 %v882, %v965
      %v998 = vmul.f32 %v884, %v966
      %v999 = vmul.f32 %v886, %v967
      %v1000 = vmul.f32 %v888, %v968
      %v1001 = vmul.f32 %v890, %v969
      %v1002 = vmul.f32 %v892, %v970
      %v1003 = vmul.f32 %v894, %v971
      %v1004 = vmul.f32 %v896, %v972
      %v1005 = vmul.f32 %v898, %v973
      %v1006 = vmul.f32 %v900, %v974
      %v1007 = vmul.f32 %v902, %v975
      %v1008 = vmul.f32 %v904, %v976
      %v1009 = vmul.f32 %v906, %v977
      %v1010 = vmul.f32 %v908, %v978
      %v1011 = vmul.f32 %v910, %v979
      %v1012 = vmul.f32 %v912, %v980
      %v1013 = vmul.f32 %v914, %v981
      %v1014 = vmul.f32 %v916, %v982
      %v1015 = vmul.f32 %v918, %v983
      %v1016 = vmul.f32 %v920, %v984
      %v1017 = vadd.f32 %v985, 1.4885159
      %v1018 = vadd.f32 %v986, 1.4885159
      %v1019 = vadd.f32 %v987, 1.4885159
      %v1020 = vadd.f32 %v988, 1.4885159
      %v1021 = vadd.f32 %v989, 1.4885159
      %v1022 = vadd.f32 %v990, 1.4885159
      %v1023 = vadd.f32 %v991, 1.4885159
      %v1024 = vadd.f32 %v992, 1.4885159
      %v1025 = vadd.f32 %v993, 1.4885159
      %v1026 = vadd.f32 %v994, 1.4885159
      %v1027 = vadd.f32 %v995, 1.4885159
      %v1028 = vadd.f32 %v996, 1.4885159
      %v1029 = vadd.f32 %v997, 1.4885159
      %v1030 = vadd.f32 %v998, 1.4885159
      %v1031 = vadd.f32 %v999, 1.4885159
      %v1032 = vadd.f32 %v1000, 1.4885159
      %v1033 = vadd.f32 %v1001, 1.4885159
      %v1034 = vadd.f32 %v1002, 1.4885159
      %v1035 = vadd.f32 %v1003, 1.4885159
      %v1036 = vadd.f32 %v1004, 1.4885159
      %v1037 = vadd.f32 %v1005, 1.4885159
      %v1038 = vadd.f32 %v1006, 1.4885159
      %v1039 = vadd.f32 %v1007, 1.4885159
      %v1040 = vadd.f32 %v1008, 1.4885159
      %v1041 = vadd.f32 %v1009, 1.4885159
      %v1042 = vadd.f32 %v1010, 1.4885159
      %v1043 = vadd.f32 %v1011, 1.4885159
      %v1044 = vadd.f32 %v1012, 1.4885159
      %v1045 = vadd.f32 %v1013, 1.4885159
      %v1046 = vadd.f32 %v1014, 1.4885159
      %v1047 = vadd.f32 %v1015, 1.4885159
      %v1048 = vadd.f32 %v1016, 1.4885159
      %v1049 = vmul.f32 %v858, %v1017
      %v1050 = vmul.f32 %v860, %v1018
      %v1051 = vmul.f32 %v862, %v1019
      %v1052 = vmul.f32 %v864, %v1020
      %v1053 = vmul.f32 %v866, %v1021
      %v1054 = vmul.f32 %v868, %v1022
      %v1055 = vmul.f32 %v870, %v1023
      %v1056 = vmul.f32 %v872, %v1024
      %v1057 = vmul.f32 %v874, %v1025
      %v1058 = vmul.f32 %v876, %v1026
      %v1059 = vmul.f32 %v878, %v1027
      %v1060 = vmul.f32 %v880, %v1028
      %v1061 = vmul.f32 %v882, %v1029
      %v1062 = vmul.f32 %v884, %v1030
      %v1063 = vmul.f32 %v886, %v1031
      %v1064 = vmul.f32 %v888, %v1032
      %v1065 = vmul.f32 %v890, %v1033
      %v1066 = vmul.f32 %v892, %v1034
      %v1067 = vmul.f32 %v894, %v1035
      %v1068 = vmul.f32 %v896, %v1036
      %v1069 = vmul.f32 %v898, %v1037
      %v1070 = vmul.f32 %v900, %v1038
      %v1071 = vmul.f32 %v902, %v1039
      %v1072 = vmul.f32 %v904, %v1040
      %v1073 = vmul.f32 %v906, %v1041
      %v1074 = vmul.f32 %v908, %v1042
      %v1075 = vmul.f32 %v910, %v1043
      %v1076 = vmul.f32 %v912, %v1044
      %v1077 = vmul.f32 %v914, %v1045
      %v1078 = vmul.f32 %v916, %v1046
      %v1079 = vmul.f32 %v918, %v1047
      %v1080 = vmul.f32 %v920, %v1048
      %v1081 = vadd.f32 %v1049, -1.135204
      %v1082 = vadd.f32 %v1050, -1.135204
      %v1083 = vadd.f32 %v1051, -1.135204
      %v1084 = vadd.f32 %v1052, -1.135204
      %v1085 = vadd.f32 %v1053, -1.135204
      %v1086 = vadd.f32 %v1054, -1.135204
      %v1087 = vadd.f32 %v1055, -1.135204
      %v1088 = vadd.f32 %v1056, -1.135204
      %v1089 = vadd.f32 %v1057, -1.135204
      %v1090 = vadd.f32 %v1058, -1.135204
      %v1091 = vadd.f32 %v1059, -1.135204
      %v1092 = vadd.f32 %v1060, -1.135204
      %v1093 = vadd.f32 %v1061, -1.135204
      %v1094 = vadd.f32 %v1062, -1.135204
      %v1095 = vadd.f32 %v1063, -1.135204
      %v1096 = vadd.f32 %v1064, -1.135204
      %v1097 = vadd.f32 %v1065, -1.135204
      %v1098 = vadd.f32 %v1066, -1.135204
      %v1099 = vadd.f32 %v1067, -1.135204
      %v1100 = vadd.f32 %v1068, -1.135204
      %v1101 = vadd.f32 %v1069, -1.135204
      %v1102 = vadd.f32 %v1070, -1.135204
      %v1103 = vadd.f32 %v1071, -1.135204
      %v1104 = vadd.f32 %v1072, -1.135204
      %v1105 = vadd.f32 %v1073, -1.135204
      %v1106 = vadd.f32 %v1074, -1.135204
      %v1107 = vadd.f32 %v1075, -1.135204
      %v1108 = vadd.f32 %v1076, -1.135204
      %v1109 = vadd.f32 %v1077, -1.135204
      %v1110 = vadd.f32 %v1078, -1.135204
      %v1111 = vadd.f32 %v1079, -1.135204
      %v1112 = vadd.f32 %v1080, -1.135204
      %v1113 = vmul.f32 %v858, %v1081
      %v1114 = vmul.f32 %v860, %v1082
      %v1115 = vmul.f32 %v862, %v1083
      %v1116 = vmul.f32 %v864, %v1084
      %v1117 = vmul.f32 %v866, %v1085
      %v1118 = vmul.f32 %v868, %v1086
      %v1119 = vmul.f32 %v870, %v1087
      %v1120 = vmul.f32 %v872, %v1088
      %v1121 = vmul.f32 %v874, %v1089
      %v1122 = vmul.f32 %v876, %v1090
      %v1123 = vmul.f32 %v878, %v1091
      %v1124 = vmul.f32 %v880, %v1092
      %v1125 = vmul.f32 %v882, %v1093
      %v1126 = vmul.f32 %v884, %v1094
      %v1127 = vmul.f32 %v886, %v1095
      %v1128 = vmul.f32 %v888, %v1096
      %v1129 = vmul.f32 %v890, %v1097
      %v1130 = vmul.f32 %v892, %v1098
      %v1131 = vmul.f32 %v894, %v1099
      %v1132 = vmul.f32 %v896, %v1100
      %v1133 = vmul.f32 %v898, %v1101
      %v1134 = vmul.f32 %v900, %v1102
      %v1135 = vmul.f32 %v902, %v1103
      %v1136 = vmul.f32 %v904, %v1104
      %v1137 = vmul.f32 %v906, %v1105
      %v1138 = vmul.f32 %v908, %v1106
      %v1139 = vmul.f32 %v910, %v1107
      %v1140 = vmul.f32 %v912, %v1108
      %v1141 = vmul.f32 %v914, %v1109
      %v1142 = vmul.f32 %v916, %v1110
      %v1143 = vmul.f32 %v918, %v1111
      %v1144 = vmul.f32 %v920, %v1112
      %v1145 = vadd.f32 %v1113, 0.27886808
      %v1146 = vadd.f32 %v1114, 0.27886808
      %v1147 = vadd.f32 %v1115, 0.27886808
      %v1148 = vadd.f32 %v1116, 0.27886808
      %v1149 = vadd.f32 %v1117, 0.27886808
      %v1150 = vadd.f32 %v1118, 0.27886808
      %v1151 = vadd.f32 %v1119, 0.27886808
      %v1152 = vadd.f32 %v1120, 0.27886808
      %v1153 = vadd.f32 %v1121, 0.27886808
      %v1154 = vadd.f32 %v1122, 0.27886808
      %v1155 = vadd.f32 %v1123, 0.27886808
      %v1156 = vadd.f32 %v1124, 0.27886808
      %v1157 = vadd.f32 %v1125, 0.27886808
      %v1158 = vadd.f32 %v1126, 0.27886808
      %v1159 = vadd.f32 %v1127, 0.27886808
      %v1160 = vadd.f32 %v1128, 0.27886808
      %v1161 = vadd.f32 %v1129, 0.27886808
      %v1162 = vadd.f32 %v1130, 0.27886808
      %v1163 = vadd.f32 %v1131, 0.27886808
      %v1164 = vadd.f32 %v1132, 0.27886808
      %v1165 = vadd.f32 %v1133, 0.27886808
      %v1166 = vadd.f32 %v1134, 0.27886808
      %v1167 = vadd.f32 %v1135, 0.27886808
      %v1168 = vadd.f32 %v1136, 0.27886808
      %v1169 = vadd.f32 %v1137, 0.27886808
      %v1170 = vadd.f32 %v1138, 0.27886808
      %v1171 = vadd.f32 %v1139, 0.27886808
      %v1172 = vadd.f32 %v1140, 0.27886808
      %v1173 = vadd.f32 %v1141, 0.27886808
      %v1174 = vadd.f32 %v1142, 0.27886808
      %v1175 = vadd.f32 %v1143, 0.27886808
      %v1176 = vadd.f32 %v1144, 0.27886808
      %v1177 = vmul.f32 %v858, %v1145
      %v1178 = vmul.f32 %v860, %v1146
      %v1179 = vmul.f32 %v862, %v1147
      %v1180 = vmul.f32 %v864, %v1148
      %v1181 = vmul.f32 %v866, %v1149
      %v1182 = vmul.f32 %v868, %v1150
      %v1183 = vmul.f32 %v870, %v1151
      %v1184 = vmul.f32 %v872, %v1152
      %v1185 = vmul.f32 %v874, %v1153
      %v1186 = vmul.f32 %v876, %v1154
      %v1187 = vmul.f32 %v878, %v1155
      %v1188 = vmul.f32 %v880, %v1156
      %v1189 = vmul.f32 %v882, %v1157
      %v1190 = vmul.f32 %v884, %v1158
      %v1191 = vmul.f32 %v886, %v1159
      %v1192 = vmul.f32 %v888, %v1160
      %v1193 = vmul.f32 %v890, %v1161
      %v1194 = vmul.f32 %v892, %v1162
      %v1195 = vmul.f32 %v894, %v1163
      %v1196 = vmul.f32 %v896, %v1164
      %v1197 = vmul.f32 %v898, %v1165
      %v1198 = vmul.f32 %v900, %v1166
      %v1199 = vmul.f32 %v902, %v1167
      %v1200 = vmul.f32 %v904, %v1168
      %v1201 = vmul.f32 %v906, %v1169
      %v1202 = vmul.f32 %v908, %v1170
      %v1203 = vmul.f32 %v910, %v1171
      %v1204 = vmul.f32 %v912, %v1172
      %v1205 = vmul.f32 %v914, %v1173
      %v1206 = vmul.f32 %v916, %v1174
      %v1207 = vmul.f32 %v918, %v1175
      %v1208 = vmul.f32 %v920, %v1176
      %v1209 = vadd.f32 %v1177, -0.18628806
      %v1210 = vadd.f32 %v1178, -0.18628806
      %v1211 = vadd.f32 %v1179, -0.18628806
      %v1212 = vadd.f32 %v1180, -0.18628806
      %v1213 = vadd.f32 %v1181, -0.18628806
      %v1214 = vadd.f32 %v1182, -0.18628806
      %v1215 = vadd.f32 %v1183, -0.18628806
      %v1216 = vadd.f32 %v1184, -0.18628806
      %v1217 = vadd.f32 %v1185, -0.18628806
      %v1218 = vadd.f32 %v1186, -0.18628806
      %v1219 = vadd.f32 %v1187, -0.18628806
      %v1220 = vadd.f32 %v1188, -0.18628806
      %v1221 = vadd.f32 %v1189, -0.18628806
      %v1222 = vadd.f32 %v1190, -0.18628806
      %v1223 = vadd.f32 %v1191, -0.18628806
      %v1224 = vadd.f32 %v1192, -0.18628806
      %v1225 = vadd.f32 %v1193, -0.18628806
      %v1226 = vadd.f32 %v1194, -0.18628806
      %v1227 = vadd.f32 %v1195, -0.18628806
      %v1228 = vadd.f32 %v1196, -0.18628806
      %v1229 = vadd.f32 %v1197, -0.18628806
      %v1230 = vadd.f32 %v1198, -0.18628806
      %v1231 = vadd.f32 %v1199, -0.18628806
      %v1232 = vadd.f32 %v1200, -0.18628806
      %v1233 = vadd.f32 %v1201, -0.18628806
      %v1234 = vadd.f32 %v1202, -0.18628806
      %v1235 = vadd.f32 %v1203, -0.18628806
      %v1236 = vadd.f32 %v1204, -0.18628806
      %v1237 = vadd.f32 %v1205, -0.18628806
      %v1238 = vadd.f32 %v1206, -0.18628806
      %v1239 = vadd.f32 %v1207, -0.18628806
      %v1240 = vadd.f32 %v1208, -0.18628806
      %v1241 = vmul.f32 %v858, %v1209
      %v1242 = vmul.f32 %v860, %v1210
      %v1243 = vmul.f32 %v862, %v1211
      %v1244 = vmul.f32 %v864, %v1212
      %v1245 = vmul.f32 %v866, %v1213
      %v1246 = vmul.f32 %v868, %v1214
      %v1247 = vmul.f32 %v870, %v1215
      %v1248 = vmul.f32 %v872, %v1216
      %v1249 = vmul.f32 %v874, %v1217
      %v1250 = vmul.f32 %v876, %v1218
      %v1251 = vmul.f32 %v878, %v1219
      %v1252 = vmul.f32 %v880, %v1220
      %v1253 = vmul.f32 %v882, %v1221
      %v1254 = vmul.f32 %v884, %v1222
      %v1255 = vmul.f32 %v886, %v1223
      %v1256 = vmul.f32 %v888, %v1224
      %v1257 = vmul.f32 %v890, %v1225
      %v1258 = vmul.f32 %v892, %v1226
      %v1259 = vmul.f32 %v894, %v1227
      %v1260 = vmul.f32 %v896, %v1228
      %v1261 = vmul.f32 %v898, %v1229
      %v1262 = vmul.f32 %v900, %v1230
      %v1263 = vmul.f32 %v902, %v1231
      %v1264 = vmul.f32 %v904, %v1232
      %v1265 = vmul.f32 %v906, %v1233
      %v1266 = vmul.f32 %v908, %v1234
      %v1267 = vmul.f32 %v910, %v1235
      %v1268 = vmul.f32 %v912, %v1236
      %v1269 = vmul.f32 %v914, %v1237
      %v1270 = vmul.f32 %v916, %v1238
      %v1271 = vmul.f32 %v918, %v1239
      %v1272 = vmul.f32 %v920, %v1240
      %v1273 = vadd.f32 %v1241, 0.09678418
      %v1274 = vadd.f32 %v1242, 0.09678418
      %v1275 = vadd.f32 %v1243, 0.09678418
      %v1276 = vadd.f32 %v1244, 0.09678418
      %v1277 = vadd.f32 %v1245, 0.09678418
      %v1278 = vadd.f32 %v1246, 0.09678418
      %v1279 = vadd.f32 %v1247, 0.09678418
      %v1280 = vadd.f32 %v1248, 0.09678418
      %v1281 = vadd.f32 %v1249, 0.09678418
      %v1282 = vadd.f32 %v1250, 0.09678418
      %v1283 = vadd.f32 %v1251, 0.09678418
      %v1284 = vadd.f32 %v1252, 0.09678418
      %v1285 = vadd.f32 %v1253, 0.09678418
      %v1286 = vadd.f32 %v1254, 0.09678418
      %v1287 = vadd.f32 %v1255, 0.09678418
      %v1288 = vadd.f32 %v1256, 0.09678418
      %v1289 = vadd.f32 %v1257, 0.09678418
      %v1290 = vadd.f32 %v1258, 0.09678418
      %v1291 = vadd.f32 %v1259, 0.09678418
      %v1292 = vadd.f32 %v1260, 0.09678418
      %v1293 = vadd.f32 %v1261, 0.09678418
      %v1294 = vadd.f32 %v1262, 0.09678418
      %v1295 = vadd.f32 %v1263, 0.09678418
      %v1296 = vadd.f32 %v1264, 0.09678418
      %v1297 = vadd.f32 %v1265, 0.09678418
      %v1298 = vadd.f32 %v1266, 0.09678418
      %v1299 = vadd.f32 %v1267, 0.09678418
      %v1300 = vadd.f32 %v1268, 0.09678418
      %v1301 = vadd.f32 %v1269, 0.09678418
      %v1302 = vadd.f32 %v1270, 0.09678418
      %v1303 = vadd.f32 %v1271, 0.09678418
      %v1304 = vadd.f32 %v1272, 0.09678418
      %v1305 = vmul.f32 %v858, %v1273
      %v1306 = vmul.f32 %v860, %v1274
      %v1307 = vmul.f32 %v862, %v1275
      %v1308 = vmul.f32 %v864, %v1276
      %v1309 = vmul.f32 %v866, %v1277
      %v1310 = vmul.f32 %v868, %v1278
      %v1311 = vmul.f32 %v870, %v1279
      %v1312 = vmul.f32 %v872, %v1280
      %v1313 = vmul.f32 %v874, %v1281
      %v1314 = vmul.f32 %v876, %v1282
      %v1315 = vmul.f32 %v878, %v1283
      %v1316 = vmul.f32 %v880, %v1284
      %v1317 = vmul.f32 %v882, %v1285
      %v1318 = vmul.f32 %v884, %v1286
      %v1319 = vmul.f32 %v886, %v1287
      %v1320 = vmul.f32 %v888, %v1288
      %v1321 = vmul.f32 %v890, %v1289
      %v1322 = vmul.f32 %v892, %v1290
      %v1323 = vmul.f32 %v894, %v1291
      %v1324 = vmul.f32 %v896, %v1292
      %v1325 = vmul.f32 %v898, %v1293
      %v1326 = vmul.f32 %v900, %v1294
      %v1327 = vmul.f32 %v902, %v1295
      %v1328 = vmul.f32 %v904, %v1296
      %v1329 = vmul.f32 %v906, %v1297
      %v1330 = vmul.f32 %v908, %v1298
      %v1331 = vmul.f32 %v910, %v1299
      %v1332 = vmul.f32 %v912, %v1300
      %v1333 = vmul.f32 %v914, %v1301
      %v1334 = vmul.f32 %v916, %v1302
      %v1335 = vmul.f32 %v918, %v1303
      %v1336 = vmul.f32 %v920, %v1304
      %v1337 = vadd.f32 %v1305, 0.37409195
      %v1338 = vadd.f32 %v1306, 0.37409195
      %v1339 = vadd.f32 %v1307, 0.37409195
      %v1340 = vadd.f32 %v1308, 0.37409195
      %v1341 = vadd.f32 %v1309, 0.37409195
      %v1342 = vadd.f32 %v1310, 0.37409195
      %v1343 = vadd.f32 %v1311, 0.37409195
      %v1344 = vadd.f32 %v1312, 0.37409195
      %v1345 = vadd.f32 %v1313, 0.37409195
      %v1346 = vadd.f32 %v1314, 0.37409195
      %v1347 = vadd.f32 %v1315, 0.37409195
      %v1348 = vadd.f32 %v1316, 0.37409195
      %v1349 = vadd.f32 %v1317, 0.37409195
      %v1350 = vadd.f32 %v1318, 0.37409195
      %v1351 = vadd.f32 %v1319, 0.37409195
      %v1352 = vadd.f32 %v1320, 0.37409195
      %v1353 = vadd.f32 %v1321, 0.37409195
      %v1354 = vadd.f32 %v1322, 0.37409195
      %v1355 = vadd.f32 %v1323, 0.37409195
      %v1356 = vadd.f32 %v1324, 0.37409195
      %v1357 = vadd.f32 %v1325, 0.37409195
      %v1358 = vadd.f32 %v1326, 0.37409195
      %v1359 = vadd.f32 %v1327, 0.37409195
      %v1360 = vadd.f32 %v1328, 0.37409195
      %v1361 = vadd.f32 %v1329, 0.37409195
      %v1362 = vadd.f32 %v1330, 0.37409195
      %v1363 = vadd.f32 %v1331, 0.37409195
      %v1364 = vadd.f32 %v1332, 0.37409195
      %v1365 = vadd.f32 %v1333, 0.37409195
      %v1366 = vadd.f32 %v1334, 0.37409195
      %v1367 = vadd.f32 %v1335, 0.37409195
      %v1368 = vadd.f32 %v1336, 0.37409195
      %v1369 = vmul.f32 %v858, %v1337
      %v1370 = vmul.f32 %v860, %v1338
      %v1371 = vmul.f32 %v862, %v1339
      %v1372 = vmul.f32 %v864, %v1340
      %v1373 = vmul.f32 %v866, %v1341
      %v1374 = vmul.f32 %v868, %v1342
      %v1375 = vmul.f32 %v870, %v1343
      %v1376 = vmul.f32 %v872, %v1344
      %v1377 = vmul.f32 %v874, %v1345
      %v1378 = vmul.f32 %v876, %v1346
      %v1379 = vmul.f32 %v878, %v1347
      %v1380 = vmul.f32 %v880, %v1348
      %v1381 = vmul.f32 %v882, %v1349
      %v1382 = vmul.f32 %v884, %v1350
      %v1383 = vmul.f32 %v886, %v1351
      %v1384 = vmul.f32 %v888, %v1352
      %v1385 = vmul.f32 %v890, %v1353
      %v1386 = vmul.f32 %v892, %v1354
      %v1387 = vmul.f32 %v894, %v1355
      %v1388 = vmul.f32 %v896, %v1356
      %v1389 = vmul.f32 %v898, %v1357
      %v1390 = vmul.f32 %v900, %v1358
      %v1391 = vmul.f32 %v902, %v1359
      %v1392 = vmul.f32 %v904, %v1360
      %v1393 = vmul.f32 %v906, %v1361
      %v1394 = vmul.f32 %v908, %v1362
      %v1395 = vmul.f32 %v910, %v1363
      %v1396 = vmul.f32 %v912, %v1364
      %v1397 = vmul.f32 %v914, %v1365
      %v1398 = vmul.f32 %v916, %v1366
      %v1399 = vmul.f32 %v918, %v1367
      %v1400 = vmul.f32 %v920, %v1368
      %v1401 = vadd.f32 %v1369, 1.0000237
      %v1402 = vadd.f32 %v1370, 1.0000237
      %v1403 = vadd.f32 %v1371, 1.0000237
      %v1404 = vadd.f32 %v1372, 1.0000237
      %v1405 = vadd.f32 %v1373, 1.0000237
      %v1406 = vadd.f32 %v1374, 1.0000237
      %v1407 = vadd.f32 %v1375, 1.0000237
      %v1408 = vadd.f32 %v1376, 1.0000237
      %v1409 = vadd.f32 %v1377, 1.0000237
      %v1410 = vadd.f32 %v1378, 1.0000237
      %v1411 = vadd.f32 %v1379, 1.0000237
      %v1412 = vadd.f32 %v1380, 1.0000237
      %v1413 = vadd.f32 %v1381, 1.0000237
      %v1414 = vadd.f32 %v1382, 1.0000237
      %v1415 = vadd.f32 %v1383, 1.0000237
      %v1416 = vadd.f32 %v1384, 1.0000237
      %v1417 = vadd.f32 %v1385, 1.0000237
      %v1418 = vadd.f32 %v1386, 1.0000237
      %v1419 = vadd.f32 %v1387, 1.0000237
      %v1420 = vadd.f32 %v1388, 1.0000237
      %v1421 = vadd.f32 %v1389, 1.0000237
      %v1422 = vadd.f32 %v1390, 1.0000237
      %v1423 = vadd.f32 %v1391, 1.0000237
      %v1424 = vadd.f32 %v1392, 1.0000237
      %v1425 = vadd.f32 %v1393, 1.0000237
      %v1426 = vadd.f32 %v1394, 1.0000237
      %v1427 = vadd.f32 %v1395, 1.0000237
      %v1428 = vadd.f32 %v1396, 1.0000237
      %v1429 = vadd.f32 %v1397, 1.0000237
      %v1430 = vadd.f32 %v1398, 1.0000237
      %v1431 = vadd.f32 %v1399, 1.0000237
      %v1432 = vadd.f32 %v1400, 1.0000237
      %v1433 = vmul.f32 %v858, %v1401
      %v1434 = vmul.f32 %v860, %v1402
      %v1435 = vmul.f32 %v862, %v1403
      %v1436 = vmul.f32 %v864, %v1404
      %v1437 = vmul.f32 %v866, %v1405
      %v1438 = vmul.f32 %v868, %v1406
      %v1439 = vmul.f32 %v870, %v1407
      %v1440 = vmul.f32 %v872, %v1408
      %v1441 = vmul.f32 %v874, %v1409
      %v1442 = vmul.f32 %v876, %v1410
      %v1443 = vmul.f32 %v878, %v1411
      %v1444 = vmul.f32 %v880, %v1412
      %v1445 = vmul.f32 %v882, %v1413
      %v1446 = vmul.f32 %v884, %v1414
      %v1447 = vmul.f32 %v886, %v1415
      %v1448 = vmul.f32 %v888, %v1416
      %v1449 = vmul.f32 %v890, %v1417
      %v1450 = vmul.f32 %v892, %v1418
      %v1451 = vmul.f32 %v894, %v1419
      %v1452 = vmul.f32 %v896, %v1420
      %v1453 = vmul.f32 %v898, %v1421
      %v1454 = vmul.f32 %v900, %v1422
      %v1455 = vmul.f32 %v902, %v1423
      %v1456 = vmul.f32 %v904, %v1424
      %v1457 = vmul.f32 %v906, %v1425
      %v1458 = vmul.f32 %v908, %v1426
      %v1459 = vmul.f32 %v910, %v1427
      %v1460 = vmul.f32 %v912, %v1428
      %v1461 = vmul.f32 %v914, %v1429
      %v1462 = vmul.f32 %v916, %v1430
      %v1463 = vmul.f32 %v918, %v1431
      %v1464 = vmul.f32 %v920, %v1432
      %v1465 = vadd.f32 %v1433, -1.2655122
      %v1466 = vadd.f32 %v1434, -1.2655122
      %v1467 = vadd.f32 %v1435, -1.2655122
      %v1468 = vadd.f32 %v1436, -1.2655122
      %v1469 = vadd.f32 %v1437, -1.2655122
      %v1470 = vadd.f32 %v1438, -1.2655122
      %v1471 = vadd.f32 %v1439, -1.2655122
      %v1472 = vadd.f32 %v1440, -1.2655122
      %v1473 = vadd.f32 %v1441, -1.2655122
      %v1474 = vadd.f32 %v1442, -1.2655122
      %v1475 = vadd.f32 %v1443, -1.2655122
      %v1476 = vadd.f32 %v1444, -1.2655122
      %v1477 = vadd.f32 %v1445, -1.2655122
      %v1478 = vadd.f32 %v1446, -1.2655122
      %v1479 = vadd.f32 %v1447, -1.2655122
      %v1480 = vadd.f32 %v1448, -1.2655122
      %v1481 = vadd.f32 %v1449, -1.2655122
      %v1482 = vadd.f32 %v1450, -1.2655122
      %v1483 = vadd.f32 %v1451, -1.2655122
      %v1484 = vadd.f32 %v1452, -1.2655122
      %v1485 = vadd.f32 %v1453, -1.2655122
      %v1486 = vadd.f32 %v1454, -1.2655122
      %v1487 = vadd.f32 %v1455, -1.2655122
      %v1488 = vadd.f32 %v1456, -1.2655122
      %v1489 = vadd.f32 %v1457, -1.2655122
      %v1490 = vadd.f32 %v1458, -1.2655122
      %v1491 = vadd.f32 %v1459, -1.2655122
      %v1492 = vadd.f32 %v1460, -1.2655122
      %v1493 = vadd.f32 %v1461, -1.2655122
      %v1494 = vadd.f32 %v1462, -1.2655122
      %v1495 = vadd.f32 %v1463, -1.2655122
      %v1496 = vadd.f32 %v1464, -1.2655122
      %v1497 = vsub.f32 0.0, %v761
      %v1498 = vsub.f32 0.0, %v762
      %v1499 = vsub.f32 0.0, %v763
      %v1500 = vsub.f32 0.0, %v764
      %v1501 = vsub.f32 0.0, %v765
      %v1502 = vsub.f32 0.0, %v766
      %v1503 = vsub.f32 0.0, %v767
      %v1504 = vsub.f32 0.0, %v768
      %v1505 = vsub.f32 0.0, %v769
      %v1506 = vsub.f32 0.0, %v770
      %v1507 = vsub.f32 0.0, %v771
      %v1508 = vsub.f32 0.0, %v772
      %v1509 = vsub.f32 0.0, %v773
      %v1510 = vsub.f32 0.0, %v774
      %v1511 = vsub.f32 0.0, %v775
      %v1512 = vsub.f32 0.0, %v776
      %v1513 = vsub.f32 0.0, %v777
      %v1514 = vsub.f32 0.0, %v778
      %v1515 = vsub.f32 0.0, %v779
      %v1516 = vsub.f32 0.0, %v780
      %v1517 = vsub.f32 0.0, %v781
      %v1518 = vsub.f32 0.0, %v782
      %v1519 = vsub.f32 0.0, %v783
      %v1520 = vsub.f32 0.0, %v784
      %v1521 = vsub.f32 0.0, %v785
      %v1522 = vsub.f32 0.0, %v786
      %v1523 = vsub.f32 0.0, %v787
      %v1524 = vsub.f32 0.0, %v788
      %v1525 = vsub.f32 0.0, %v789
      %v1526 = vsub.f32 0.0, %v790
      %v1527 = vsub.f32 0.0, %v791
      %v1528 = vsub.f32 0.0, %v792
      %v1529 = vmul.f32 %v1497, %v761
      %v1530 = vmul.f32 %v1498, %v762
      %v1531 = vmul.f32 %v1499, %v763
      %v1532 = vmul.f32 %v1500, %v764
      %v1533 = vmul.f32 %v1501, %v765
      %v1534 = vmul.f32 %v1502, %v766
      %v1535 = vmul.f32 %v1503, %v767
      %v1536 = vmul.f32 %v1504, %v768
      %v1537 = vmul.f32 %v1505, %v769
      %v1538 = vmul.f32 %v1506, %v770
      %v1539 = vmul.f32 %v1507, %v771
      %v1540 = vmul.f32 %v1508, %v772
      %v1541 = vmul.f32 %v1509, %v773
      %v1542 = vmul.f32 %v1510, %v774
      %v1543 = vmul.f32 %v1511, %v775
      %v1544 = vmul.f32 %v1512, %v776
      %v1545 = vmul.f32 %v1513, %v777
      %v1546 = vmul.f32 %v1514, %v778
      %v1547 = vmul.f32 %v1515, %v779
      %v1548 = vmul.f32 %v1516, %v780
      %v1549 = vmul.f32 %v1517, %v781
      %v1550 = vmul.f32 %v1518, %v782
      %v1551 = vmul.f32 %v1519, %v783
      %v1552 = vmul.f32 %v1520, %v784
      %v1553 = vmul.f32 %v1521, %v785
      %v1554 = vmul.f32 %v1522, %v786
      %v1555 = vmul.f32 %v1523, %v787
      %v1556 = vmul.f32 %v1524, %v788
      %v1557 = vmul.f32 %v1525, %v789
      %v1558 = vmul.f32 %v1526, %v790
      %v1559 = vmul.f32 %v1527, %v791
      %v1560 = vmul.f32 %v1528, %v792
      %v1561 = vadd.f32 %v1529, %v1465
      %v1562 = vadd.f32 %v1530, %v1466
      %v1563 = vadd.f32 %v1531, %v1467
      %v1564 = vadd.f32 %v1532, %v1468
      %v1565 = vadd.f32 %v1533, %v1469
      %v1566 = vadd.f32 %v1534, %v1470
      %v1567 = vadd.f32 %v1535, %v1471
      %v1568 = vadd.f32 %v1536, %v1472
      %v1569 = vadd.f32 %v1537, %v1473
      %v1570 = vadd.f32 %v1538, %v1474
      %v1571 = vadd.f32 %v1539, %v1475
      %v1572 = vadd.f32 %v1540, %v1476
      %v1573 = vadd.f32 %v1541, %v1477
      %v1574 = vadd.f32 %v1542, %v1478
      %v1575 = vadd.f32 %v1543, %v1479
      %v1576 = vadd.f32 %v1544, %v1480
      %v1577 = vadd.f32 %v1545, %v1481
      %v1578 = vadd.f32 %v1546, %v1482
      %v1579 = vadd.f32 %v1547, %v1483
      %v1580 = vadd.f32 %v1548, %v1484
      %v1581 = vadd.f32 %v1549, %v1485
      %v1582 = vadd.f32 %v1550, %v1486
      %v1583 = vadd.f32 %v1551, %v1487
      %v1584 = vadd.f32 %v1552, %v1488
      %v1585 = vadd.f32 %v1553, %v1489
      %v1586 = vadd.f32 %v1554, %v1490
      %v1587 = vadd.f32 %v1555, %v1491
      %v1588 = vadd.f32 %v1556, %v1492
      %v1589 = vadd.f32 %v1557, %v1493
      %v1590 = vadd.f32 %v1558, %v1494
      %v1591 = vadd.f32 %v1559, %v1495
      %v1592 = vadd.f32 %v1560, %v1496
      %v1593 = vmul.f32 %v1561, 1.442695
      %v1594 = vpow.pop %v1593
      %v1595 = vmul.f32 %v1562, 1.442695
      %v1596 = vpow.pop %v1595
      %v1597 = vmul.f32 %v1563, 1.442695
      %v1598 = vpow.pop %v1597
      %v1599 = vmul.f32 %v1564, 1.442695
      %v1600 = vpow.pop %v1599
      %v1601 = vmul.f32 %v1565, 1.442695
      %v1602 = vpow.pop %v1601
      %v1603 = vmul.f32 %v1566, 1.442695
      %v1604 = vpow.pop %v1603
      %v1605 = vmul.f32 %v1567, 1.442695
      %v1606 = vpow.pop %v1605
      %v1607 = vmul.f32 %v1568, 1.442695
      %v1608 = vpow.pop %v1607
      %v1609 = vmul.f32 %v1569, 1.442695
      %v1610 = vpow.pop %v1609
      %v1611 = vmul.f32 %v1570, 1.442695
      %v1612 = vpow.pop %v1611
      %v1613 = vmul.f32 %v1571, 1.442695
      %v1614 = vpow.pop %v1613
      %v1615 = vmul.f32 %v1572, 1.442695
      %v1616 = vpow.pop %v1615
      %v1617 = vmul.f32 %v1573, 1.442695
      %v1618 = vpow.pop %v1617
      %v1619 = vmul.f32 %v1574, 1.442695
      %v1620 = vpow.pop %v1619
      %v1621 = vmul.f32 %v1575, 1.442695
      %v1622 = vpow.pop %v1621
      %v1623 = vmul.f32 %v1576, 1.442695
      %v1624 = vpow.pop %v1623
      %v1625 = vmul.f32 %v1577, 1.442695
      %v1626 = vpow.pop %v1625
      %v1627 = vmul.f32 %v1578, 1.442695
      %v1628 = vpow.pop %v1627
      %v1629 = vmul.f32 %v1579, 1.442695
      %v1630 = vpow.pop %v1629
      %v1631 = vmul.f32 %v1580, 1.442695
      %v1632 = vpow.pop %v1631
      %v1633 = vmul.f32 %v1581, 1.442695
      %v1634 = vpow.pop %v1633
      %v1635 = vmul.f32 %v1582, 1.442695
      %v1636 = vpow.pop %v1635
      %v1637 = vmul.f32 %v1583, 1.442695
      %v1638 = vpow.pop %v1637
      %v1639 = vmul.f32 %v1584, 1.442695
      %v1640 = vpow.pop %v1639
      %v1641 = vmul.f32 %v1585, 1.442695
      %v1642 = vpow.pop %v1641
      %v1643 = vmul.f32 %v1586, 1.442695
      %v1644 = vpow.pop %v1643
      %v1645 = vmul.f32 %v1587, 1.442695
      %v1646 = vpow.pop %v1645
      %v1647 = vmul.f32 %v1588, 1.442695
      %v1648 = vpow.pop %v1647
      %v1649 = vmul.f32 %v1589, 1.442695
      %v1650 = vpow.pop %v1649
      %v1651 = vmul.f32 %v1590, 1.442695
      %v1652 = vpow.pop %v1651
      %v1653 = vmul.f32 %v1591, 1.442695
      %v1654 = vpow.pop %v1653
      %v1655 = vmul.f32 %v1592, 1.442695
      %v1656 = vpow.pop %v1655
      %v1657 = vmul.f32 %v858, %v1594
      %v1658 = vmul.f32 %v860, %v1596
      %v1659 = vmul.f32 %v862, %v1598
      %v1660 = vmul.f32 %v864, %v1600
      %v1661 = vmul.f32 %v866, %v1602
      %v1662 = vmul.f32 %v868, %v1604
      %v1663 = vmul.f32 %v870, %v1606
      %v1664 = vmul.f32 %v872, %v1608
      %v1665 = vmul.f32 %v874, %v1610
      %v1666 = vmul.f32 %v876, %v1612
      %v1667 = vmul.f32 %v878, %v1614
      %v1668 = vmul.f32 %v880, %v1616
      %v1669 = vmul.f32 %v882, %v1618
      %v1670 = vmul.f32 %v884, %v1620
      %v1671 = vmul.f32 %v886, %v1622
      %v1672 = vmul.f32 %v888, %v1624
      %v1673 = vmul.f32 %v890, %v1626
      %v1674 = vmul.f32 %v892, %v1628
      %v1675 = vmul.f32 %v894, %v1630
      %v1676 = vmul.f32 %v896, %v1632
      %v1677 = vmul.f32 %v898, %v1634
      %v1678 = vmul.f32 %v900, %v1636
      %v1679 = vmul.f32 %v902, %v1638
      %v1680 = vmul.f32 %v904, %v1640
      %v1681 = vmul.f32 %v906, %v1642
      %v1682 = vmul.f32 %v908, %v1644
      %v1683 = vmul.f32 %v910, %v1646
      %v1684 = vmul.f32 %v912, %v1648
      %v1685 = vmul.f32 %v914, %v1650
      %v1686 = vmul.f32 %v916, %v1652
      %v1687 = vmul.f32 %v918, %v1654
      %v1688 = vmul.f32 %v920, %v1656
      %v1689 = vsub.f32 1.0, %v1657
      %v1690 = vsub.f32 1.0, %v1658
      %v1691 = vsub.f32 1.0, %v1659
      %v1692 = vsub.f32 1.0, %v1660
      %v1693 = vsub.f32 1.0, %v1661
      %v1694 = vsub.f32 1.0, %v1662
      %v1695 = vsub.f32 1.0, %v1663
      %v1696 = vsub.f32 1.0, %v1664
      %v1697 = vsub.f32 1.0, %v1665
      %v1698 = vsub.f32 1.0, %v1666
      %v1699 = vsub.f32 1.0, %v1667
      %v1700 = vsub.f32 1.0, %v1668
      %v1701 = vsub.f32 1.0, %v1669
      %v1702 = vsub.f32 1.0, %v1670
      %v1703 = vsub.f32 1.0, %v1671
      %v1704 = vsub.f32 1.0, %v1672
      %v1705 = vsub.f32 1.0, %v1673
      %v1706 = vsub.f32 1.0, %v1674
      %v1707 = vsub.f32 1.0, %v1675
      %v1708 = vsub.f32 1.0, %v1676
      %v1709 = vsub.f32 1.0, %v1677
      %v1710 = vsub.f32 1.0, %v1678
      %v1711 = vsub.f32 1.0, %v1679
      %v1712 = vsub.f32 1.0, %v1680
      %v1713 = vsub.f32 1.0, %v1681
      %v1714 = vsub.f32 1.0, %v1682
      %v1715 = vsub.f32 1.0, %v1683
      %v1716 = vsub.f32 1.0, %v1684
      %v1717 = vsub.f32 1.0, %v1685
      %v1718 = vsub.f32 1.0, %v1686
      %v1719 = vsub.f32 1.0, %v1687
      %v1720 = vsub.f32 1.0, %v1688
      %vm1721 = vcmp.ge.f32.partialorder %v729, 0.0
      %vm1722 = vcmp.ge.f32.partialorder %v730, 0.0
      %vm1723 = vcmp.ge.f32.partialorder %v731, 0.0
      %vm1724 = vcmp.ge.f32.partialorder %v732, 0.0
      %vm1725 = vcmp.ge.f32.partialorder %v733, 0.0
      %vm1726 = vcmp.ge.f32.partialorder %v734, 0.0
      %vm1727 = vcmp.ge.f32.partialorder %v735, 0.0
      %vm1728 = vcmp.ge.f32.partialorder %v736, 0.0
      %vm1729 = vcmp.ge.f32.partialorder %v737, 0.0
      %vm1730 = vcmp.ge.f32.partialorder %v738, 0.0
      %vm1731 = vcmp.ge.f32.partialorder %v739, 0.0
      %vm1732 = vcmp.ge.f32.partialorder %v740, 0.0
      %vm1733 = vcmp.ge.f32.partialorder %v741, 0.0
      %vm1734 = vcmp.ge.f32.partialorder %v742, 0.0
      %vm1735 = vcmp.ge.f32.partialorder %v743, 0.0
      %vm1736 = vcmp.ge.f32.partialorder %v744, 0.0
      %vm1737 = vcmp.ge.f32.partialorder %v745, 0.0
      %vm1738 = vcmp.ge.f32.partialorder %v746, 0.0
      %vm1739 = vcmp.ge.f32.partialorder %v747, 0.0
      %vm1740 = vcmp.ge.f32.partialorder %v748, 0.0
      %vm1741 = vcmp.ge.f32.partialorder %v749, 0.0
      %vm1742 = vcmp.ge.f32.partialorder %v750, 0.0
      %vm1743 = vcmp.ge.f32.partialorder %v751, 0.0
      %vm1744 = vcmp.ge.f32.partialorder %v752, 0.0
      %vm1745 = vcmp.ge.f32.partialorder %v753, 0.0
      %vm1746 = vcmp.ge.f32.partialorder %v754, 0.0
      %vm1747 = vcmp.ge.f32.partialorder %v755, 0.0
      %vm1748 = vcmp.ge.f32.partialorder %v756, 0.0
      %vm1749 = vcmp.ge.f32.partialorder %v757, 0.0
      %vm1750 = vcmp.ge.f32.partialorder %v758, 0.0
      %vm1751 = vcmp.ge.f32.partialorder %v759, 0.0
      %vm1752 = vcmp.ge.f32.partialorder %v760, 0.0
      %v1753 = vsub.f32 0.0, %v1689
      %v1754 = vsub.f32 0.0, %v1690
      %v1755 = vsub.f32 0.0, %v1691
      %v1756 = vsub.f32 0.0, %v1692
      %v1757 = vsub.f32 0.0, %v1693
      %v1758 = vsub.f32 0.0, %v1694
      %v1759 = vsub.f32 0.0, %v1695
      %v1760 = vsub.f32 0.0, %v1696
      %v1761 = vsub.f32 0.0, %v1697
      %v1762 = vsub.f32 0.0, %v1698
      %v1763 = vsub.f32 0.0, %v1699
      %v1764 = vsub.f32 0.0, %v1700
      %v1765 = vsub.f32 0.0, %v1701
      %v1766 = vsub.f32 0.0, %v1702
      %v1767 = vsub.f32 0.0, %v1703
      %v1768 = vsub.f32 0.0, %v1704
      %v1769 = vsub.f32 0.0, %v1705
      %v1770 = vsub.f32 0.0, %v1706
      %v1771 = vsub.f32 0.0, %v1707
      %v1772 = vsub.f32 0.0, %v1708
      %v1773 = vsub.f32 0.0, %v1709
      %v1774 = vsub.f32 0.0, %v1710
      %v1775 = vsub.f32 0.0, %v1711
      %v1776 = vsub.f32 0.0, %v1712
      %v1777 = vsub.f32 0.0, %v1713
      %v1778 = vsub.f32 0.0, %v1714
      %v1779 = vsub.f32 0.0, %v1715
      %v1780 = vsub.f32 0.0, %v1716
      %v1781 = vsub.f32 0.0, %v1717
      %v1782 = vsub.f32 0.0, %v1718
      %v1783 = vsub.f32 0.0, %v1719
      %v1784 = vsub.f32 0.0, %v1720
      %v1785 = vsel %vm1721, %v1689, %v1753
      %v1786 = vsel %vm1722, %v1690, %v1754
      %v1787 = vsel %vm1723, %v1691, %v1755
      %v1788 = vsel %vm1724, %v1692, %v1756
      %v1789 = vsel %vm1725, %v1693, %v1757
      %v1790 = vsel %vm1726, %v1694, %v1758
      %v1791 = vsel %vm1727, %v1695, %v1759
      %v1792 = vsel %vm1728, %v1696, %v1760
      %v1793 = vsel %vm1729, %v1697, %v1761
      %v1794 = vsel %vm1730, %v1698, %v1762
      %v1795 = vsel %vm1731, %v1699, %v1763
      %v1796 = vsel %vm1732, %v1700, %v1764
      %v1797 = vsel %vm1733, %v1701, %v1765
      %v1798 = vsel %vm1734, %v1702, %v1766
      %v1799 = vsel %vm1735, %v1703, %v1767
      %v1800 = vsel %vm1736, %v1704, %v1768
      %v1801 = vsel %vm1737, %v1705, %v1769
      %v1802 = vsel %vm1738, %v1706, %v1770
      %v1803 = vsel %vm1739, %v1707, %v1771
      %v1804 = vsel %vm1740, %v1708, %v1772
      %v1805 = vsel %vm1741, %v1709, %v1773
      %v1806 = vsel %vm1742, %v1710, %v1774
      %v1807 = vsel %vm1743, %v1711, %v1775
      %v1808 = vsel %vm1744, %v1712, %v1776
      %v1809 = vsel %vm1745, %v1713, %v1777
      %v1810 = vsel %vm1746, %v1714, %v1778
      %v1811 = vsel %vm1747, %v1715, %v1779
      %v1812 = vsel %vm1748, %v1716, %v1780
      %v1813 = vsel %vm1749, %v1717, %v1781
      %v1814 = vsel %vm1750, %v1718, %v1782
      %v1815 = vsel %vm1751, %v1719, %v1783
      %v1816 = vsel %vm1752, %v1720, %v1784
      %v1817 = vadd.f32 %v1785, 1.0
      %v1818 = vadd.f32 %v1786, 1.0
      %v1819 = vadd.f32 %v1787, 1.0
      %v1820 = vadd.f32 %v1788, 1.0
      %v1821 = vadd.f32 %v1789, 1.0
      %v1822 = vadd.f32 %v1790, 1.0
      %v1823 = vadd.f32 %v1791, 1.0
      %v1824 = vadd.f32 %v1792, 1.0
      %v1825 = vadd.f32 %v1793, 1.0
      %v1826 = vadd.f32 %v1794, 1.0
      %v1827 = vadd.f32 %v1795, 1.0
      %v1828 = vadd.f32 %v1796, 1.0
      %v1829 = vadd.f32 %v1797, 1.0
      %v1830 = vadd.f32 %v1798, 1.0
      %v1831 = vadd.f32 %v1799, 1.0
      %v1832 = vadd.f32 %v1800, 1.0
      %v1833 = vadd.f32 %v1801, 1.0
      %v1834 = vadd.f32 %v1802, 1.0
      %v1835 = vadd.f32 %v1803, 1.0
      %v1836 = vadd.f32 %v1804, 1.0
      %v1837 = vadd.f32 %v1805, 1.0
      %v1838 = vadd.f32 %v1806, 1.0
      %v1839 = vadd.f32 %v1807, 1.0
      %v1840 = vadd.f32 %v1808, 1.0
      %v1841 = vadd.f32 %v1809, 1.0
      %v1842 = vadd.f32 %v1810, 1.0
      %v1843 = vadd.f32 %v1811, 1.0
      %v1844 = vadd.f32 %v1812, 1.0
      %v1845 = vadd.f32 %v1813, 1.0
      %v1846 = vadd.f32 %v1814, 1.0
      %v1847 = vadd.f32 %v1815, 1.0
      %v1848 = vadd.f32 %v1816, 1.0
      %v1849 = vmul.f32 %v697, %v1817
      %v1850 = vmul.f32 %v698, %v1818
      %v1851 = vmul.f32 %v699, %v1819
      %v1852 = vmul.f32 %v700, %v1820
      %v1853 = vmul.f32 %v701, %v1821
      %v1854 = vmul.f32 %v702, %v1822
      %v1855 = vmul.f32 %v703, %v1823
      %v1856 = vmul.f32 %v704, %v1824
      %v1857 = vmul.f32 %v705, %v1825
      %v1858 = vmul.f32 %v706, %v1826
      %v1859 = vmul.f32 %v707, %v1827
      %v1860 = vmul.f32 %v708, %v1828
      %v1861 = vmul.f32 %v709, %v1829
      %v1862 = vmul.f32 %v710, %v1830
      %v1863 = vmul.f32 %v711, %v1831
      %v1864 = vmul.f32 %v712, %v1832
      %v1865 = vmul.f32 %v713, %v1833
      %v1866 = vmul.f32 %v714, %v1834
      %v1867 = vmul.f32 %v715, %v1835
      %v1868 = vmul.f32 %v716, %v1836
      %v1869 = vmul.f32 %v717, %v1837
      %v1870 = vmul.f32 %v718, %v1838
      %v1871 = vmul.f32 %v719, %v1839
      %v1872 = vmul.f32 %v720, %v1840
      %v1873 = vmul.f32 %v721, %v1841
      %v1874 = vmul.f32 %v722, %v1842
      %v1875 = vmul.f32 %v723, %v1843
      %v1876 = vmul.f32 %v724, %v1844
      %v1877 = vmul.f32 %v725, %v1845
      %v1878 = vmul.f32 %v726, %v1846
      %v1879 = vmul.f32 %v727, %v1847
      %v1880 = vmul.f32 %v728, %v1848
      %v1881 = vld [vmem:[%s4] sm:$0xff]
      %v1882 = vld [vmem:[%s4 + $0x8] sm:$0xff]
      %v1883 = vld [vmem:[%s5] sm:$0x1]
      %v1885 = vlaneseq
      %v1886 = vshrl.u32 %v1885, 7
      %v1887 = vsub.s32 0, %v1886
      %v1888 = vrot.slane %v1883, %v1887
      %vm1890 = vcmask 130048
      %v1892 = vsel %vm1890, %v1849, 0
      %v1895 = vsel %vm1890, %v1850, 0
      %v1898 = vsel %vm1890, %v1851, 0
      %v1901 = vsel %vm1890, %v1852, 0
      %v1904 = vsel %vm1890, %v1853, 0
      %v1907 = vsel %vm1890, %v1854, 0
      %v1910 = vsel %vm1890, %v1855, 0
      %v1913 = vsel %vm1890, %v1856, 0
      %v1916 = vsel %vm1890, %v1857, 0
      %v1919 = vsel %vm1890, %v1858, 0
      %v1922 = vsel %vm1890, %v1859, 0
      %v1925 = vsel %vm1890, %v1860, 0
      %v1928 = vsel %vm1890, %v1861, 0
      %v1931 = vsel %vm1890, %v1862, 0
      %v1934 = vsel %vm1890, %v1863, 0
      %v1937 = vsel %vm1890, %v1864, 0
      %v1940 = vsel %vm1890, %v1865, 0
      %v1943 = vsel %vm1890, %v1866, 0
      %v1946 = vsel %vm1890, %v1867, 0
      %v1949 = vsel %vm1890, %v1868, 0
      %v1952 = vsel %vm1890, %v1869, 0
      %v1955 = vsel %vm1890, %v1870, 0
      %v1958 = vsel %vm1890, %v1871, 0
      %v1961 = vsel %vm1890, %v1872, 0
      %v1964 = vsel %vm1890, %v1873, 0
      %v1967 = vsel %vm1890, %v1874, 0
      %v1970 = vsel %vm1890, %v1875, 0
      %v1973 = vsel %vm1890, %v1876, 0
      %v1976 = vsel %vm1890, %v1877, 0
      %v1979 = vsel %vm1890, %v1878, 0
      %v1982 = vsel %vm1890, %v1879, 0
      %v1985 = vsel %vm1890, %v1880, 0
      %1987 = vmatprep.subr.mxu0 0.0
      %1988 = vmatpush1.msra.mxu0 %v1881
      %1989 = vmatprep.subr.mxu0 0.0
      %1990 = vmatpush1.msra.mxu0 %v1882
      %1991 = vmatprep.subr.mxu0 0.0
      %1992 = vmatpush1.msra.mxu0 0.0
      %1993 = vmatprep.subr.mxu0 0.0
      %1994 = vmatpush1.msra.mxu0 0.0
      %1995 = vmatprep.subr.mxu0 0.0
      %1996 = vmatpush1.msra.mxu0 0.0
      %1997 = vmatprep.subr.mxu0 0.0
      %1998 = vmatpush1.msra.mxu0 0.0
      %1999 = vmatprep.subr.mxu0 0.0
      %2000 = vmatpush1.msra.mxu0 0.0
      %2001 = vmatprep.subr.mxu0 0.0
      %2002 = vmatpush1.msra.mxu0 0.0
      %2003 = vmatprep.subr.mxu0 0.0
      %2004 = vmatpush1.msra.mxu0 0.0
      %2005 = vmatprep.subr.mxu0 0.0
      %2006 = vmatpush1.msra.mxu0 0.0
      %2007 = vmatprep.subr.mxu0 0.0
      %2008 = vmatpush1.msra.mxu0 0.0
      %2009 = vmatprep.subr.mxu0 0.0
      %2010 = vmatpush1.msra.mxu0 0.0
      %2011 = vmatprep.subr.mxu0 0.0
      %2012 = vmatpush1.msra.mxu0 0.0
      %2013 = vmatprep.subr.mxu0 0.0
      %2014 = vmatpush1.msra.mxu0 0.0
      %2015 = vmatprep.subr.mxu0 0.0
      %2016 = vmatpush1.msra.mxu0 0.0
      %2017 = vmatprep.subr.mxu0 0.0
      %2018 = vmatpush1.msra.mxu0 0.0
      %2019 = vmatprep.subr.mxu0 0.0
      %2020 = vmatpush1.msra.mxu0 0.0
      %2021 = vmatprep.subr.mxu0 0.0
      %2022 = vmatpush1.msra.mxu0 0.0
      %2023 = vmatprep.subr.mxu0 0.0
      %2024 = vmatpush1.msra.mxu0 0.0
      %2025 = vmatprep.subr.mxu0 0.0
      %2026 = vmatpush1.msra.mxu0 0.0
      %2027 = vmatprep.subr.mxu0 0.0
      %2028 = vmatpush1.msra.mxu0 0.0
      %2029 = vmatprep.subr.mxu0 0.0
      %2030 = vmatpush1.msra.mxu0 0.0
      %2031 = vmatprep.subr.mxu0 0.0
      %2032 = vmatpush1.msra.mxu0 0.0
      %2033 = vmatprep.subr.mxu0 0.0
      %2034 = vmatpush1.msra.mxu0 0.0
      %2035 = vmatprep.subr.mxu0 0.0
      %2036 = vmatpush1.msra.mxu0 0.0
      %2037 = vmatprep.subr.mxu0 0.0
      %2038 = vmatpush1.msra.mxu0 0.0
      %2039 = vmatprep.subr.mxu0 0.0
      %2040 = vmatpush1.msra.mxu0 0.0
      %2041 = vmatprep.subr.mxu0 0.0
      %2042 = vmatpush1.msra.mxu0 0.0
      %2043 = vmatprep.subr.mxu0 0.0
      %2044 = vmatpush1.msra.mxu0 0.0
      %2045 = vmatprep.subr.mxu0 0.0
      %2046 = vmatpush1.msra.mxu0 0.0
      %2047 = vmatprep.subr.mxu0 0.0
      %2048 = vmatpush1.msra.mxu0 0.0
      %2049 = vmatprep.subr.mxu0 0.0
      %2050 = vmatpush1.msra.mxu0 0.0
      %2051 = vmatprep.mubr.f32.mxu0 0.0
      %2052 = vmatmul.mubr.f32.gmra.mrb[0].mxu0 %v1892
      %v2053 = vpop.f32.mrb[0].mxu0
      %v2054 = vadd.f32 %v1888, %v2053
      %v2055 = vpop.f32.mrb[0].mxu0
      %2056 = vmatprep.mubr.f32.mxu0 0.0
      %2057 = vmatmul.mubr.f32.gmra.mrb[0].mxu0 %v1895
      %v2058 = vpop.f32.mrb[0].mxu0
      %v2059 = vadd.f32 %v1888, %v2058
      %v2060 = vpop.f32.mrb[0].mxu0
      %2061 = vmatprep.mubr.f32.mxu0 0.0
      %2062 = vmatmul.mubr.f32.gmra.mrb[0].mxu0 %v1898
      %v2063 = vpop.f32.mrb[0].mxu0
      %v2064 = vadd.f32 %v1888, %v2063
      %v2065 = vpop.f32.mrb[0].mxu0
      %2066 = vmatprep.mubr.f32.mxu0 0.0
      %2067 = vmatmul.mubr.f32.gmra.mrb[0].mxu0 %v1901
      %v2068 = vpop.f32.mrb[0].mxu0
      %v2069 = vadd.f32 %v1888, %v2068
      %v2070 = vpop.f32.mrb[0].mxu0
      %2071 = vmatprep.mubr.f32.mxu0 0.0
      %2072 = vmatmul.mubr.f32.gmra.mrb[0].mxu0 %v1904
      %v2073 = vpop.f32.mrb[0].mxu0
      %v2074 = vadd.f32 %v1888, %v2073
      %v2075 = vpop.f32.mrb[0].mxu0
      %2076 = vmatprep.mubr.f32.mxu0 0.0
      %2077 = vmatmul.mubr.f32.gmra.mrb[0].mxu0 %v1907
      %v2078 = vpop.f32.mrb[0].mxu0
      %v2079 = vadd.f32 %v1888, %v2078
      %v2080 = vpop.f32.mrb[0].mxu0
      %2081 = vmatprep.mubr.f32.mxu0 0.0
      %2082 = vmatmul.mubr.f32.gmra.mrb[0].mxu0 %v1910
      %v2083 = vpop.f32.mrb[0].mxu0
      %v2084 = vadd.f32 %v1888, %v2083
      %v2085 = vpop.f32.mrb[0].mxu0
      %2086 = vmatprep.mubr.f32.mxu0 0.0
      %2087 = vmatmul.mubr.f32.gmra.mrb[0].mxu0 %v1913
      %v2088 = vpop.f32.mrb[0].mxu0
      %v2089 = vadd.f32 %v1888, %v2088
      %v2090 = vpop.f32.mrb[0].mxu0
      %2091 = vmatprep.mubr.f32.mxu0 0.0
      %2092 = vmatmul.mubr.f32.gmra.mrb[0].mxu0 %v1916
      %v2093 = vpop.f32.mrb[0].mxu0
      %v2094 = vadd.f32 %v1888, %v2093
      %v2095 = vpop.f32.mrb[0].mxu0
      %2096 = vmatprep.mubr.f32.mxu0 0.0
      %2097 = vmatmul.mubr.f32.gmra.mrb[0].mxu0 %v1919
      %v2098 = vpop.f32.mrb[0].mxu0
      %v2099 = vadd.f32 %v1888, %v2098
      %v2100 = vpop.f32.mrb[0].mxu0
      %2101 = vmatprep.mubr.f32.mxu0 0.0
      %2102 = vmatmul.mubr.f32.gmra.mrb[0].mxu0 %v1922
      %v2103 = vpop.f32.mrb[0].mxu0
      %v2104 = vadd.f32 %v1888, %v2103
      %v2105 = vpop.f32.mrb[0].mxu0
      %2106 = vmatprep.mubr.f32.mxu0 0.0
      %2107 = vmatmul.mubr.f32.gmra.mrb[0].mxu0 %v1925
      %v2108 = vpop.f32.mrb[0].mxu0
      %v2109 = vadd.f32 %v1888, %v2108
      %v2110 = vpop.f32.mrb[0].mxu0
      %2111 = vmatprep.mubr.f32.mxu0 0.0
      %2112 = vmatmul.mubr.f32.gmra.mrb[0].mxu0 %v1928
      %v2113 = vpop.f32.mrb[0].mxu0
      %v2114 = vadd.f32 %v1888, %v2113
      %v2115 = vpop.f32.mrb[0].mxu0
      %2116 = vmatprep.mubr.f32.mxu0 0.0
      %2117 = vmatmul.mubr.f32.gmra.mrb[0].mxu0 %v1931
      %v2118 = vpop.f32.mrb[0].mxu0
      %v2119 = vadd.f32 %v1888, %v2118
      %v2120 = vpop.f32.mrb[0].mxu0
      %2121 = vmatprep.mubr.f32.mxu0 0.0
      %2122 = vmatmul.mubr.f32.gmra.mrb[0].mxu0 %v1934
      %v2123 = vpop.f32.mrb[0].mxu0
      %v2124 = vadd.f32 %v1888, %v2123
      %v2125 = vpop.f32.mrb[0].mxu0
      %2126 = vmatprep.mubr.f32.mxu0 0.0
      %2127 = vmatmul.mubr.f32.gmra.mrb[0].mxu0 %v1937
      %v2128 = vpop.f32.mrb[0].mxu0
      %v2129 = vadd.f32 %v1888, %v2128
      %v2130 = vpop.f32.mrb[0].mxu0
      %2131 = vmatprep.mubr.f32.mxu0 0.0
      %2132 = vmatmul.mubr.f32.gmra.mrb[0].mxu0 %v1940
      %v2133 = vpop.f32.mrb[0].mxu0
      %v2134 = vadd.f32 %v1888, %v2133
      %v2135 = vpop.f32.mrb[0].mxu0
      %2136 = vmatprep.mubr.f32.mxu0 0.0
      %2137 = vmatmul.mubr.f32.gmra.mrb[0].mxu0 %v1943
      %v2138 = vpop.f32.mrb[0].mxu0
      %v2139 = vadd.f32 %v1888, %v2138
      %v2140 = vpop.f32.mrb[0].mxu0
      %2141 = vmatprep.mubr.f32.mxu0 0.0
      %2142 = vmatmul.mubr.f32.gmra.mrb[0].mxu0 %v1946
      %v2143 = vpop.f32.mrb[0].mxu0
      %v2144 = vadd.f32 %v1888, %v2143
      %v2145 = vpop.f32.mrb[0].mxu0
      %2146 = vmatprep.mubr.f32.mxu0 0.0
      %2147 = vmatmul.mubr.f32.gmra.mrb[0].mxu0 %v1949
      %v2148 = vpop.f32.mrb[0].mxu0
      %v2149 = vadd.f32 %v1888, %v2148
      %v2150 = vpop.f32.mrb[0].mxu0
      %2151 = vmatprep.mubr.f32.mxu0 0.0
      %2152 = vmatmul.mubr.f32.gmra.mrb[0].mxu0 %v1952
      %v2153 = vpop.f32.mrb[0].mxu0
      %v2154 = vadd.f32 %v1888, %v2153
      %v2155 = vpop.f32.mrb[0].mxu0
      %2156 = vmatprep.mubr.f32.mxu0 0.0
      %2157 = vmatmul.mubr.f32.gmra.mrb[0].mxu0 %v1955
      %v2158 = vpop.f32.mrb[0].mxu0
      %v2159 = vadd.f32 %v1888, %v2158
      %v2160 = vpop.f32.mrb[0].mxu0
      %2161 = vmatprep.mubr.f32.mxu0 0.0
      %2162 = vmatmul.mubr.f32.gmra.mrb[0].mxu0 %v1958
      %v2163 = vpop.f32.mrb[0].mxu0
      %v2164 = vadd.f32 %v1888, %v2163
      %v2165 = vpop.f32.mrb[0].mxu0
      %2166 = vmatprep.mubr.f32.mxu0 0.0
      %2167 = vmatmul.mubr.f32.gmra.mrb[0].mxu0 %v1961
      %v2168 = vpop.f32.mrb[0].mxu0
      %v2169 = vadd.f32 %v1888, %v2168
      %v2170 = vpop.f32.mrb[0].mxu0
      %2171 = vmatprep.mubr.f32.mxu0 0.0
      %2172 = vmatmul.mubr.f32.gmra.mrb[0].mxu0 %v1964
      %v2173 = vpop.f32.mrb[0].mxu0
      %v2174 = vadd.f32 %v1888, %v2173
      %v2175 = vpop.f32.mrb[0].mxu0
      %2176 = vmatprep.mubr.f32.mxu0 0.0
      %2177 = vmatmul.mubr.f32.gmra.mrb[0].mxu0 %v1967
      %v2178 = vpop.f32.mrb[0].mxu0
      %v2179 = vadd.f32 %v1888, %v2178
      %v2180 = vpop.f32.mrb[0].mxu0
      %2181 = vmatprep.mubr.f32.mxu0 0.0
      %2182 = vmatmul.mubr.f32.gmra.mrb[0].mxu0 %v1970
      %v2183 = vpop.f32.mrb[0].mxu0
      %v2184 = vadd.f32 %v1888, %v2183
      %v2185 = vpop.f32.mrb[0].mxu0
      %2186 = vmatprep.mubr.f32.mxu0 0.0
      %2187 = vmatmul.mubr.f32.gmra.mrb[0].mxu0 %v1973
      %v2188 = vpop.f32.mrb[0].mxu0
      %v2189 = vadd.f32 %v1888, %v2188
      %v2190 = vpop.f32.mrb[0].mxu0
      %2191 = vmatprep.mubr.f32.mxu0 0.0
      %2192 = vmatmul.mubr.f32.gmra.mrb[0].mxu0 %v1976
      %v2193 = vpop.f32.mrb[0].mxu0
      %v2194 = vadd.f32 %v1888, %v2193
      %v2195 = vpop.f32.mrb[0].mxu0
      %2196 = vmatprep.mubr.f32.mxu0 0.0
      %2197 = vmatmul.mubr.f32.gmra.mrb[0].mxu0 %v1979
      %v2198 = vpop.f32.mrb[0].mxu0
      %v2199 = vadd.f32 %v1888, %v2198
      %v2200 = vpop.f32.mrb[0].mxu0
      %2201 = vmatprep.mubr.f32.mxu0 0.0
      %2202 = vmatmul.mubr.f32.gmra.mrb[0].mxu0 %v1982
      %v2203 = vpop.f32.mrb[0].mxu0
      %v2204 = vadd.f32 %v1888, %v2203
      %v2205 = vpop.f32.mrb[0].mxu0
      %2206 = vmatprep.mubr.f32.mxu0 0.0
      %2207 = vmatmul.mubr.f32.gmra.mrb[0].mxu0 %v1985
      %v2208 = vpop.f32.mrb[0].mxu0
      %v2209 = vadd.f32 %v1888, %v2208
      %v2210 = vpop.f32.mrb[0].mxu0
      %2211 = vdwg.mxu0
      %v2212 = vld [vmem:[%s323] sm:$0xff]
      %v2213 = vld [vmem:[%s323 + $0x8] sm:$0xff]
      %v2214 = vld [vmem:[%s323 + $0x10] sm:$0xff]
      %v2215 = vld [vmem:[%s323 + $0x18] sm:$0xff]
      %v2216 = vld [vmem:[%s323 + $0x20] sm:$0xff]
      %v2217 = vld [vmem:[%s323 + $0x28] sm:$0xff]
      %v2218 = vld [vmem:[%s323 + $0x30] sm:$0xff]
      %v2219 = vld [vmem:[%s323 + $0x38] sm:$0xff]
      %v2220 = vld [vmem:[%s323 + $0x40] sm:$0xff]
      %v2221 = vld [vmem:[%s323 + $0x48] sm:$0xff]
      %v2222 = vld [vmem:[%s323 + $0x50] sm:$0xff]
      %v2223 = vld [vmem:[%s323 + $0x58] sm:$0xff]
      %v2224 = vld [vmem:[%s323 + $0x60] sm:$0xff]
      %v2225 = vld [vmem:[%s323 + $0x68] sm:$0xff]
      %v2226 = vld [vmem:[%s323 + $0x70] sm:$0xff]
      %v2227 = vld [vmem:[%s323 + $0x78] sm:$0xff]
      %v2228 = vld [vmem:[%s323 + $0x80] sm:$0xff]
      %v2229 = vld [vmem:[%s323 + $0x88] sm:$0xff]
      %v2230 = vld [vmem:[%s323 + $0x90] sm:$0xff]
      %v2231 = vld [vmem:[%s323 + $0x98] sm:$0xff]
      %v2232 = vld [vmem:[%s323 + $0xa0] sm:$0xff]
      %v2233 = vld [vmem:[%s323 + $0xa8] sm:$0xff]
      %v2234 = vld [vmem:[%s323 + $0xb0] sm:$0xff]
      %v2235 = vld [vmem:[%s323 + $0xb8] sm:$0xff]
      %v2236 = vld [vmem:[%s323 + $0xc0] sm:$0xff]
      %v2237 = vld [vmem:[%s323 + $0xc8] sm:$0xff]
      %v2238 = vld [vmem:[%s323 + $0xd0] sm:$0xff]
      %v2239 = vld [vmem:[%s323 + $0xd8] sm:$0xff]
      %v2240 = vld [vmem:[%s323 + $0xe0] sm:$0xff]
      %v2241 = vld [vmem:[%s323 + $0xe8] sm:$0xff]
      %v2242 = vld [vmem:[%s323 + $0xf0] sm:$0xff]
      %v2243 = vld [vmem:[%s323 + $0xf8] sm:$0xff]
      %v2244 = vld [vmem:[%s6] sm:$0xf]
      %v2245 = vld [vmem:[%s7] sm:$0x1]
      %v2247 = vlaneseq
      %v2248 = vshrl.u32 %v2247, 7
      %v2249 = vsub.s32 0, %v2248
      %v2250 = vrot.slane %v2245, %v2249
      %v2253 = vsel %vm371, %v2212, 0
      %v2256 = vsel %vm371, %v2213, 0
      %v2259 = vsel %vm371, %v2214, 0
      %v2262 = vsel %vm371, %v2215, 0
      %v2265 = vsel %vm371, %v2216, 0
      %v2268 = vsel %vm371, %v2217, 0
      %v2271 = vsel %vm371, %v2218, 0
      %v2274 = vsel %vm371, %v2219, 0
      %v2277 = vsel %vm371, %v2220, 0
      %v2280 = vsel %vm371, %v2221, 0
      %v2283 = vsel %vm371, %v2222, 0
      %v2286 = vsel %vm371, %v2223, 0
      %v2289 = vsel %vm371, %v2224, 0
      %v2292 = vsel %vm371, %v2225, 0
      %v2295 = vsel %vm371, %v2226, 0
      %v2298 = vsel %vm371, %v2227, 0
      %v2301 = vsel %vm371, %v2228, 0
      %v2304 = vsel %vm371, %v2229, 0
      %v2307 = vsel %vm371, %v2230, 0
      %v2310 = vsel %vm371, %v2231, 0
      %v2313 = vsel %vm371, %v2232, 0
      %v2316 = vsel %vm371, %v2233, 0
      %v2319 = vsel %vm371, %v2234, 0
      %v2322 = vsel %vm371, %v2235, 0
      %v2325 = vsel %vm371, %v2236, 0
      %v2328 = vsel %vm371, %v2237, 0
      %v2331 = vsel %vm371, %v2238, 0
      %v2334 = vsel %vm371, %v2239, 0
      %v2337 = vsel %vm371, %v2240, 0
      %v2340 = vsel %vm371, %v2241, 0
      %v2343 = vsel %vm371, %v2242, 0
      %v2346 = vsel %vm371, %v2243, 0
      %v2349 = vsel %vm468, %v2244, 0
      %2351 = vmatprep.subr.mxu0 0.0
      %2352 = vmatpush1.msra.mxu0 %v2349
      %2353 = vmatprep.subr.mxu0 0.0
      %2354 = vmatpush1.msra.mxu0 0.0
      %2355 = vmatprep.subr.mxu0 0.0
      %2356 = vmatpush1.msra.mxu0 0.0
      %2357 = vmatprep.subr.mxu0 0.0
      %2358 = vmatpush1.msra.mxu0 0.0
      %2359 = vmatprep.subr.mxu0 0.0
      %2360 = vmatpush1.msra.mxu0 0.0
      %2361 = vmatprep.subr.mxu0 0.0
      %2362 = vmatpush1.msra.mxu0 0.0
      %2363 = vmatprep.subr.mxu0 0.0
      %2364 = vmatpush1.msra.mxu0 0.0
      %2365 = vmatprep.subr.mxu0 0.0
      %2366 = vmatpush1.msra.mxu0 0.0
      %2367 = vmatprep.subr.mxu0 0.0
      %2368 = vmatpush1.msra.mxu0 0.0
      %2369 = vmatprep.subr.mxu0 0.0
      %2370 = vmatpush1.msra.mxu0 0.0
      %2371 = vmatprep.subr.mxu0 0.0
      %2372 = vmatpush1.msra.mxu0 0.0
      %2373 = vmatprep.subr.mxu0 0.0
      %2374 = vmatpush1.msra.mxu0 0.0
      %2375 = vmatprep.subr.mxu0 0.0
      %2376 = vmatpush1.msra.mxu0 0.0
      %2377 = vmatprep.subr.mxu0 0.0
      %2378 = vmatpush1.msra.mxu0 0.0
      %2379 = vmatprep.subr.mxu0 0.0
      %2380 = vmatpush1.msra.mxu0 0.0
      %2381 = vmatprep.subr.mxu0 0.0
      %2382 = vmatpush1.msra.mxu0 0.0
      %2383 = vmatprep.subr.mxu0 0.0
      %2384 = vmatpush1.msra.mxu0 0.0
      %2385 = vmatprep.subr.mxu0 0.0
      %2386 = vmatpush1.msra.mxu0 0.0
      %2387 = vmatprep.subr.mxu0 0.0
      %2388 = vmatpush1.msra.mxu0 0.0
      %2389 = vmatprep.subr.mxu0 0.0
      %2390 = vmatpush1.msra.mxu0 0.0
      %2391 = vmatprep.subr.mxu0 0.0
      %2392 = vmatpush1.msra.mxu0 0.0
      %2393 = vmatprep.subr.mxu0 0.0
      %2394 = vmatpush1.msra.mxu0 0.0
      %2395 = vmatprep.subr.mxu0 0.0
      %2396 = vmatpush1.msra.mxu0 0.0
      %2397 = vmatprep.subr.mxu0 0.0
      %2398 = vmatpush1.msra.mxu0 0.0
      %2399 = vmatprep.subr.mxu0 0.0
      %2400 = vmatpush1.msra.mxu0 0.0
      %2401 = vmatprep.subr.mxu0 0.0
      %2402 = vmatpush1.msra.mxu0 0.0
      %2403 = vmatprep.subr.mxu0 0.0
      %2404 = vmatpush1.msra.mxu0 0.0
      %2405 = vmatprep.subr.mxu0 0.0
      %2406 = vmatpush1.msra.mxu0 0.0
      %2407 = vmatprep.subr.mxu0 0.0
      %2408 = vmatpush1.msra.mxu0 0.0
      %2409 = vmatprep.subr.mxu0 0.0
      %2410 = vmatpush1.msra.mxu0 0.0
      %2411 = vmatprep.subr.mxu0 0.0
      %2412 = vmatpush1.msra.mxu0 0.0
      %2413 = vmatprep.subr.mxu0 0.0
      %2414 = vmatpush1.msra.mxu0 0.0
      %2415 = vmatprep.mubr.f32.mxu0 0.0
      %2416 = vmatmul.mubr.f32.gmra.mrb[0].mxu0 %v2253
      %v2417 = vpop.f32.mrb[0].mxu0
      %v2418 = vadd.f32 %v2250, %v2417
      %v2419 = vpop.f32.mrb[0].mxu0
      %2420 = vmatprep.mubr.f32.mxu0 0.0
      %2421 = vmatmul.mubr.f32.gmra.mrb[0].mxu0 %v2256
      %v2422 = vpop.f32.mrb[0].mxu0
      %v2423 = vadd.f32 %v2250, %v2422
      %v2424 = vpop.f32.mrb[0].mxu0
      %2425 = vmatprep.mubr.f32.mxu0 0.0
      %2426 = vmatmul.mubr.f32.gmra.mrb[0].mxu0 %v2259
      %v2427 = vpop.f32.mrb[0].mxu0
      %v2428 = vadd.f32 %v2250, %v2427
      %v2429 = vpop.f32.mrb[0].mxu0
      %2430 = vmatprep.mubr.f32.mxu0 0.0
      %2431 = vmatmul.mubr.f32.gmra.mrb[0].mxu0 %v2262
      %v2432 = vpop.f32.mrb[0].mxu0
      %v2433 = vadd.f32 %v2250, %v2432
      %v2434 = vpop.f32.mrb[0].mxu0
      %2435 = vmatprep.mubr.f32.mxu0 0.0
      %2436 = vmatmul.mubr.f32.gmra.mrb[0].mxu0 %v2265
      %v2437 = vpop.f32.mrb[0].mxu0
      %v2438 = vadd.f32 %v2250, %v2437
      %v2439 = vpop.f32.mrb[0].mxu0
      %2440 = vmatprep.mubr.f32.mxu0 0.0
      %2441 = vmatmul.mubr.f32.gmra.mrb[0].mxu0 %v2268
      %v2442 = vpop.f32.mrb[0].mxu0
      %v2443 = vadd.f32 %v2250, %v2442
      %v2444 = vpop.f32.mrb[0].mxu0
      %2445 = vmatprep.mubr.f32.mxu0 0.0
      %2446 = vmatmul.mubr.f32.gmra.mrb[0].mxu0 %v2271
      %v2447 = vpop.f32.mrb[0].mxu0
      %v2448 = vadd.f32 %v2250, %v2447
      %v2449 = vpop.f32.mrb[0].mxu0
      %2450 = vmatprep.mubr.f32.mxu0 0.0
      %2451 = vmatmul.mubr.f32.gmra.mrb[0].mxu0 %v2274
      %v2452 = vpop.f32.mrb[0].mxu0
      %v2453 = vadd.f32 %v2250, %v2452
      %v2454 = vpop.f32.mrb[0].mxu0
      %2455 = vmatprep.mubr.f32.mxu0 0.0
      %2456 = vmatmul.mubr.f32.gmra.mrb[0].mxu0 %v2277
      %v2457 = vpop.f32.mrb[0].mxu0
      %v2458 = vadd.f32 %v2250, %v2457
      %v2459 = vpop.f32.mrb[0].mxu0
      %2460 = vmatprep.mubr.f32.mxu0 0.0
      %2461 = vmatmul.mubr.f32.gmra.mrb[0].mxu0 %v2280
      %v2462 = vpop.f32.mrb[0].mxu0
      %v2463 = vadd.f32 %v2250, %v2462
      %v2464 = vpop.f32.mrb[0].mxu0
      %2465 = vmatprep.mubr.f32.mxu0 0.0
      %2466 = vmatmul.mubr.f32.gmra.mrb[0].mxu0 %v2283
      %v2467 = vpop.f32.mrb[0].mxu0
      %v2468 = vadd.f32 %v2250, %v2467
      %v2469 = vpop.f32.mrb[0].mxu0
      %2470 = vmatprep.mubr.f32.mxu0 0.0
      %2471 = vmatmul.mubr.f32.gmra.mrb[0].mxu0 %v2286
      %v2472 = vpop.f32.mrb[0].mxu0
      %v2473 = vadd.f32 %v2250, %v2472
      %v2474 = vpop.f32.mrb[0].mxu0
      %2475 = vmatprep.mubr.f32.mxu0 0.0
      %2476 = vmatmul.mubr.f32.gmra.mrb[0].mxu0 %v2289
      %v2477 = vpop.f32.mrb[0].mxu0
      %v2478 = vadd.f32 %v2250, %v2477
      %v2479 = vpop.f32.mrb[0].mxu0
      %2480 = vmatprep.mubr.f32.mxu0 0.0
      %2481 = vmatmul.mubr.f32.gmra.mrb[0].mxu0 %v2292
      %v2482 = vpop.f32.mrb[0].mxu0
      %v2483 = vadd.f32 %v2250, %v2482
      %v2484 = vpop.f32.mrb[0].mxu0
      %2485 = vmatprep.mubr.f32.mxu0 0.0
      %2486 = vmatmul.mubr.f32.gmra.mrb[0].mxu0 %v2295
      %v2487 = vpop.f32.mrb[0].mxu0
      %v2488 = vadd.f32 %v2250, %v2487
      %v2489 = vpop.f32.mrb[0].mxu0
      %2490 = vmatprep.mubr.f32.mxu0 0.0
      %2491 = vmatmul.mubr.f32.gmra.mrb[0].mxu0 %v2298
      %v2492 = vpop.f32.mrb[0].mxu0
      %v2493 = vadd.f32 %v2250, %v2492
      %v2494 = vpop.f32.mrb[0].mxu0
      %2495 = vmatprep.mubr.f32.mxu0 0.0
      %2496 = vmatmul.mubr.f32.gmra.mrb[0].mxu0 %v2301
      %v2497 = vpop.f32.mrb[0].mxu0
      %v2498 = vadd.f32 %v2250, %v2497
      %v2499 = vpop.f32.mrb[0].mxu0
      %2500 = vmatprep.mubr.f32.mxu0 0.0
      %2501 = vmatmul.mubr.f32.gmra.mrb[0].mxu0 %v2304
      %v2502 = vpop.f32.mrb[0].mxu0
      %v2503 = vadd.f32 %v2250, %v2502
      %v2504 = vpop.f32.mrb[0].mxu0
      %2505 = vmatprep.mubr.f32.mxu0 0.0
      %2506 = vmatmul.mubr.f32.gmra.mrb[0].mxu0 %v2307
      %v2507 = vpop.f32.mrb[0].mxu0
      %v2508 = vadd.f32 %v2250, %v2507
      %v2509 = vpop.f32.mrb[0].mxu0
      %2510 = vmatprep.mubr.f32.mxu0 0.0
      %2511 = vmatmul.mubr.f32.gmra.mrb[0].mxu0 %v2310
      %v2512 = vpop.f32.mrb[0].mxu0
      %v2513 = vadd.f32 %v2250, %v2512
      %v2514 = vpop.f32.mrb[0].mxu0
      %2515 = vmatprep.mubr.f32.mxu0 0.0
      %2516 = vmatmul.mubr.f32.gmra.mrb[0].mxu0 %v2313
      %v2517 = vpop.f32.mrb[0].mxu0
      %v2518 = vadd.f32 %v2250, %v2517
      %v2519 = vpop.f32.mrb[0].mxu0
      %2520 = vmatprep.mubr.f32.mxu0 0.0
      %2521 = vmatmul.mubr.f32.gmra.mrb[0].mxu0 %v2316
      %v2522 = vpop.f32.mrb[0].mxu0
      %v2523 = vadd.f32 %v2250, %v2522
      %v2524 = vpop.f32.mrb[0].mxu0
      %2525 = vmatprep.mubr.f32.mxu0 0.0
      %2526 = vmatmul.mubr.f32.gmra.mrb[0].mxu0 %v2319
      %v2527 = vpop.f32.mrb[0].mxu0
      %v2528 = vadd.f32 %v2250, %v2527
      %v2529 = vpop.f32.mrb[0].mxu0
      %2530 = vmatprep.mubr.f32.mxu0 0.0
      %2531 = vmatmul.mubr.f32.gmra.mrb[0].mxu0 %v2322
      %v2532 = vpop.f32.mrb[0].mxu0
      %v2533 = vadd.f32 %v2250, %v2532
      %v2534 = vpop.f32.mrb[0].mxu0
      %2535 = vmatprep.mubr.f32.mxu0 0.0
      %2536 = vmatmul.mubr.f32.gmra.mrb[0].mxu0 %v2325
      %v2537 = vpop.f32.mrb[0].mxu0
      %v2538 = vadd.f32 %v2250, %v2537
      %v2539 = vpop.f32.mrb[0].mxu0
      %2540 = vmatprep.mubr.f32.mxu0 0.0
      %2541 = vmatmul.mubr.f32.gmra.mrb[0].mxu0 %v2328
      %v2542 = vpop.f32.mrb[0].mxu0
      %v2543 = vadd.f32 %v2250, %v2542
      %v2544 = vpop.f32.mrb[0].mxu0
      %2545 = vmatprep.mubr.f32.mxu0 0.0
      %2546 = vmatmul.mubr.f32.gmra.mrb[0].mxu0 %v2331
      %v2547 = vpop.f32.mrb[0].mxu0
      %v2548 = vadd.f32 %v2250, %v2547
      %v2549 = vpop.f32.mrb[0].mxu0
      %2550 = vmatprep.mubr.f32.mxu0 0.0
      %2551 = vmatmul.mubr.f32.gmra.mrb[0].mxu0 %v2334
      %v2552 = vpop.f32.mrb[0].mxu0
      %v2553 = vadd.f32 %v2250, %v2552
      %v2554 = vpop.f32.mrb[0].mxu0
      %2555 = vmatprep.mubr.f32.mxu0 0.0
      %2556 = vmatmul.mubr.f32.gmra.mrb[0].mxu0 %v2337
      %v2557 = vpop.f32.mrb[0].mxu0
      %v2558 = vadd.f32 %v2250, %v2557
      %v2559 = vpop.f32.mrb[0].mxu0
      %2560 = vmatprep.mubr.f32.mxu0 0.0
      %2561 = vmatmul.mubr.f32.gmra.mrb[0].mxu0 %v2340
      %v2562 = vpop.f32.mrb[0].mxu0
      %v2563 = vadd.f32 %v2250, %v2562
      %v2564 = vpop.f32.mrb[0].mxu0
      %2565 = vmatprep.mubr.f32.mxu0 0.0
      %2566 = vmatmul.mubr.f32.gmra.mrb[0].mxu0 %v2343
      %v2567 = vpop.f32.mrb[0].mxu0
      %v2568 = vadd.f32 %v2250, %v2567
      %v2569 = vpop.f32.mrb[0].mxu0
      %2570 = vmatprep.mubr.f32.mxu0 0.0
      %2571 = vmatmul.mubr.f32.gmra.mrb[0].mxu0 %v2346
      %v2572 = vpop.f32.mrb[0].mxu0
      %v2573 = vadd.f32 %v2250, %v2572
      %v2574 = vpop.f32.mrb[0].mxu0
      %2575 = vdwg.mxu0
      %v2576 = vadd.f32 %v2054, %v2418
      %v2577 = vadd.f32 %v2059, %v2423
      %v2578 = vadd.f32 %v2064, %v2428
      %v2579 = vadd.f32 %v2069, %v2433
      %v2580 = vadd.f32 %v2074, %v2438
      %v2581 = vadd.f32 %v2079, %v2443
      %v2582 = vadd.f32 %v2084, %v2448
      %v2583 = vadd.f32 %v2089, %v2453
      %v2584 = vadd.f32 %v2094, %v2458
      %v2585 = vadd.f32 %v2099, %v2463
      %v2586 = vadd.f32 %v2104, %v2468
      %v2587 = vadd.f32 %v2109, %v2473
      %v2588 = vadd.f32 %v2114, %v2478
      %v2589 = vadd.f32 %v2119, %v2483
      %v2590 = vadd.f32 %v2124, %v2488
      %v2591 = vadd.f32 %v2129, %v2493
      %v2592 = vadd.f32 %v2134, %v2498
      %v2593 = vadd.f32 %v2139, %v2503
      %v2594 = vadd.f32 %v2144, %v2508
      %v2595 = vadd.f32 %v2149, %v2513
      %v2596 = vadd.f32 %v2154, %v2518
      %v2597 = vadd.f32 %v2159, %v2523
      %v2598 = vadd.f32 %v2164, %v2528
      %v2599 = vadd.f32 %v2169, %v2533
      %v2600 = vadd.f32 %v2174, %v2538
      %v2601 = vadd.f32 %v2179, %v2543
      %v2602 = vadd.f32 %v2184, %v2548
      %v2603 = vadd.f32 %v2189, %v2553
      %v2604 = vadd.f32 %v2194, %v2558
      %v2605 = vadd.f32 %v2199, %v2563
      %v2606 = vadd.f32 %v2204, %v2568
      %v2607 = vadd.f32 %v2209, %v2573
      %vm2608 = vcmask 64512
      %2609 = vst.msk [vmem:[%s329] sm:$0xff] %vm2608, %v2576
      %2610 = vst.msk [vmem:[%s329 + $0x8] sm:$0xff] %vm2608, %v2577
      %2611 = vst.msk [vmem:[%s329 + $0x10] sm:$0xff] %vm2608, %v2578
      %2612 = vst.msk [vmem:[%s329 + $0x18] sm:$0xff] %vm2608, %v2579
      %2613 = vst.msk [vmem:[%s329 + $0x20] sm:$0xff] %vm2608, %v2580
      %2614 = vst.msk [vmem:[%s329 + $0x28] sm:$0xff] %vm2608, %v2581
      %2615 = vst.msk [vmem:[%s329 + $0x30] sm:$0xff] %vm2608, %v2582
      %2616 = vst.msk [vmem:[%s329 + $0x38] sm:$0xff] %vm2608, %v2583
      %2617 = vst.msk [vmem:[%s329 + $0x40] sm:$0xff] %vm2608, %v2584
      %2618 = vst.msk [vmem:[%s329 + $0x48] sm:$0xff] %vm2608, %v2585
      %2619 = vst.msk [vmem:[%s329 + $0x50] sm:$0xff] %vm2608, %v2586
      %2620 = vst.msk [vmem:[%s329 + $0x58] sm:$0xff] %vm2608, %v2587
      %2621 = vst.msk [vmem:[%s329 + $0x60] sm:$0xff] %vm2608, %v2588
      %2622 = vst.msk [vmem:[%s329 + $0x68] sm:$0xff] %vm2608, %v2589
      %2623 = vst.msk [vmem:[%s329 + $0x70] sm:$0xff] %vm2608, %v2590
      %2624 = vst.msk [vmem:[%s329 + $0x78] sm:$0xff] %vm2608, %v2591
      %2625 = vst.msk [vmem:[%s329 + $0x80] sm:$0xff] %vm2608, %v2592
      %2626 = vst.msk [vmem:[%s329 + $0x88] sm:$0xff] %vm2608, %v2593
      %2627 = vst.msk [vmem:[%s329 + $0x90] sm:$0xff] %vm2608, %v2594
      %2628 = vst.msk [vmem:[%s329 + $0x98] sm:$0xff] %vm2608, %v2595
      %2629 = vst.msk [vmem:[%s329 + $0xa0] sm:$0xff] %vm2608, %v2596
      %2630 = vst.msk [vmem:[%s329 + $0xa8] sm:$0xff] %vm2608, %v2597
      %2631 = vst.msk [vmem:[%s329 + $0xb0] sm:$0xff] %vm2608, %v2598
      %2632 = vst.msk [vmem:[%s329 + $0xb8] sm:$0xff] %vm2608, %v2599
      %2633 = vst.msk [vmem:[%s329 + $0xc0] sm:$0xff] %vm2608, %v2600
      %2634 = vst.msk [vmem:[%s329 + $0xc8] sm:$0xff] %vm2608, %v2601
      %2635 = vst.msk [vmem:[%s329 + $0xd0] sm:$0xff] %vm2608, %v2602
      %2636 = vst.msk [vmem:[%s329 + $0xd8] sm:$0xff] %vm2608, %v2603
      %2637 = vst.msk [vmem:[%s329 + $0xe0] sm:$0xff] %vm2608, %v2604
      %2638 = vst.msk [vmem:[%s329 + $0xe8] sm:$0xff] %vm2608, %v2605
      %2639 = vst.msk [vmem:[%s329 + $0xf0] sm:$0xff] %vm2608, %v2606
      %2640 = vst.msk [vmem:[%s329 + $0xf8] sm:$0xff] %vm2608, %v2607
      %s2641 = smul.u32 32, %s19
      %p2642 = scmp.lt.s32.totalorder %s2641, 63
      %s2643 = scalar_select %p2642, %s2641, 63
      %s2644 = smul.addr %s2643, 8
      %s2645 = scalar_lea.vmem %s8, %s2644
      // Predicated region
      $region53: #{convnext_block.3} parent=51 // pred_check
        %p2646 = pneg %p215
      $region54: #{convnext_block.3} parent=51 // pred_check_branch
        %2648 = sbr.rel (%p2646) target = $region56
      $region55: #{convnext_block.3} parent=51 // pred_region
        %s2649 = smul.u32 32, %s19
      $region56: #{convnext_block.3} parent=51 // pred_fallthru
        _
    $region52: #{convnext_block.3} parent=5 // pred_fallthru
      _
    %p2650 = scmp.le.s32.totalorder 2, %s14
    // Predicated region
    $region57: #{convnext_block.3} parent=5 // pred_check
      %p2651 = pneg %p2650
    $region58: #{convnext_block.3} parent=5 // pred_check_branch
      %2653 = sbr.rel (%p2651) target = $region60
    $region59: #{convnext_block.3} parent=5 // pred_region
      %s2654 = ssub.s32 %s14, 2
      // Predicated region
      $region61: #{convnext_block.3} parent=59 // pred_check
        %p2655 = pneg %p221
      $region62: #{convnext_block.3} parent=59 // pred_check_branch
        %2657 = sbr.rel (%p2655) target = $region64
      $region63: #{convnext_block.3} parent=59 // pred_region
        %s2658 = smul.u32 32, %s20
        %p2659 = scmp.lt.s32.totalorder %s2658, 63
        %s2660 = scalar_select %p2659, %s2658, 63
        %s2661 = smul.addr %s2660, 8
        %s2662 = scalar_lea.vmem %s8, %s2661
      $region64: #{convnext_block.3} parent=59 // pred_fallthru
        _
    $region60: #{convnext_block.3} parent=5 // pred_fallthru
      _
  $region6: #{convnext_block.3} parent=0 // loop_footer
    %s18 = sadd.s32 1, %s14
  $region7: #{convnext_block.3} parent=0 // loop_footer_branch
    %13 = sbr.rel target = $region3
  $region8: #{convnext_block.3} parent=0 // loop_exit
    _

// kernel: convnext_block.2
$region0: #{convnext_block.2}
  #allocation0 [shape = 'u32[]', space=smem, size = 0x4, offset = 0x4, fixed_abs, tag = 'smem constant byte address 0x4 - core index']
  #allocation1 [shape = 'u32[144,128]{1,0:T(1,128)}', space=vmem, size = 0x12000, scoped, tag = 'internal scratch']
  %s0 = inlined_call_operand.vmem [shape: f32[2,22,22,4], index: 0, kind: input, shape index: {}]
  %s1 = inlined_call_operand.vmem [shape: f32[7,7,4], index: 1, kind: input, shape index: {}]
  %s2 = inlined_call_operand.vmem [shape: f32[1,1,4], index: 2, kind: input, shape index: {}]
  %s3 = inlined_call_operand.vmem [shape: f32[2,16,16,4], index: 3, kind: output, shape index: {0}]
  %s4 = inlined_call_operand.vmem [shape: f32[2,16,16,4], index: 4, kind: output, shape index: {1}]
  %5 = xla_tuple %s3, %s4
  %s6 = sld [smem:[#allocation0]]
  $region53: #{convnext_block.2} parent=0
    _
  %s8 = ssub.s32 1, %s6
  %s9 = scalar_select 0, %s8, %s6
  loop: start=0, step=1, limit=4
  $region2: #{convnext_block.2} parent=0 // loop_pre_header
    _
  $region3: #{convnext_block.2} parent=0 // loop_header
    %s11 = sphi 0, %s15
    %p12 = scmp.ge.s32.totalorder %s11, 4
    %s21 = sphi 0, %s23
    %s24 = sphi 0, %s21
    %s25 = sphi 0, %s24
    %s41 = sphi 0, %s25
    %s45 = sphi 0, %s45
    %s47 = sphi 0, %s45
    %s48 = sphi 0, %s47
    %s62 = sphi 0, %s48
    %s66 = sphi 0, %s66
    %s68 = sphi 0, %s66
    %s69 = sphi 0, %s68
    %s83 = sphi 0, %s69
    %s89 = sphi 0, %s91
    %s92 = sphi 0, %s89
    %s93 = sphi 0, %s92
    %s109 = sphi 0, %s93
    %s115 = sphi 0, %s117
    %s118 = sphi 0, %s115
    %s119 = sphi 0, %s118
    %s135 = sphi 0, %s119
  $region4: #{convnext_block.2} parent=0 // loop_header_branch
    %14 = sbr.rel (%p12) target = $region8
  $region5: #{convnext_block.2} parent=0 // loop_body
    %s16 = ssub.s32 %s11, 1
    %s17 = ssub.s32 %s11, 2
    %s18 = sadd.s32 %s11, 1
    %s19 = ssub.s32 %s11, %s18
    %p20 = scmp.eq.s32.totalorder %s19, 0
    %s22 = sadd.s32 %s21, 1
    %s23 = scalar_select %p20, %s21, %s22
    %p26 = pneg %p20
    %p27 = scmp.eq.s32.totalorder %s11, 1
    %p28 = por %p26, %p27
    %p29 = scmp.ne.s32.totalorder %s21, %s24
    %p30 = scmp.eq.s32.totalorder %s11, 0
    %p31 = por %p29, %p30
    %p32 = scmp.ne.s32.totalorder %s21, %s24
    %p33 = scmp.eq.s32.totalorder %s16, 1
    %p34 = por %p32, %p33
    %p35 = scmp.ne.s32.totalorder %s24, %s25
    %p36 = scmp.eq.s32.totalorder %s16, 0
    %p37 = por %p35, %p36
    %p38 = scmp.ne.s32.totalorder %s24, %s25
    %p39 = scmp.eq.s32.totalorder %s17, 1
    %p40 = por %p38, %p39
    %p42 = scmp.ne.s32.totalorder %s25, %s41
    %p43 = scmp.eq.s32.totalorder %s17, 0
    %p44 = por %p42, %p43
    %s46 = sadd.s32 %s45, 1
    %p49 = scmp.eq.s32.totalorder %s11, 1
    %p50 = scmp.ne.s32.totalorder %s45, %s47
    %p51 = scmp.eq.s32.totalorder %s11, 0
    %p52 = por %p50, %p51
    %p53 = scmp.ne.s32.totalorder %s45, %s47
    %p54 = scmp.eq.s32.totalorder %s16, 1
    %p55 = por %p53, %p54
    %p56 = scmp.ne.s32.totalorder %s47, %s48
    %p57 = scmp.eq.s32.totalorder %s16, 0
    %p58 = por %p56, %p57
    %p59 = scmp.ne.s32.totalorder %s47, %s48
    %p60 = scmp.eq.s32.totalorder %s17, 1
    %p61 = por %p59, %p60
    %p63 = scmp.ne.s32.totalorder %s48, %s62
    %p64 = scmp.eq.s32.totalorder %s17, 0
    %p65 = por %p63, %p64
    %s67 = sadd.s32 %s66, 1
    %p70 = scmp.eq.s32.totalorder %s11, 1
    %p71 = scmp.ne.s32.totalorder %s66, %s68
    %p72 = scmp.eq.s32.totalorder %s11, 0
    %p73 = por %p71, %p72
    %p74 = scmp.ne.s32.totalorder %s66, %s68
    %p75 = scmp.eq.s32.totalorder %s16, 1
    %p76 = por %p74, %p75
    %p77 = scmp.ne.s32.totalorder %s68, %s69
    %p78 = scmp.eq.s32.totalorder %s16, 0
    %p79 = por %p77, %p78
    %p80 = scmp.ne.s32.totalorder %s68, %s69
    %p81 = scmp.eq.s32.totalorder %s17, 1
    %p82 = por %p80, %p81
    %p84 = scmp.ne.s32.totalorder %s69, %s83
    %p85 = scmp.eq.s32.totalorder %s17, 0
    %p86 = por %p84, %p85
    %s87 = ssub.s32 %s11, %s18
    %p88 = scmp.eq.s32.totalorder %s87, 0
    %s90 = sadd.s32 %s89, 1
    %s91 = scalar_select %p88, %s89, %s90
    %p94 = pneg %p88
    %p95 = scmp.eq.s32.totalorder %s11, 1
    %p96 = por %p94, %p95
    %p97 = scmp.ne.s32.totalorder %s89, %s92
    %p98 = scmp.eq.s32.totalorder %s11, 0
    %p99 = por %p97, %p98
    %p100 = scmp.ne.s32.totalorder %s89, %s92
    %p101 = scmp.eq.s32.totalorder %s16, 1
    %p102 = por %p100, %p101
    %p103 = scmp.ne.s32.totalorder %s92, %s93
    %p104 = scmp.eq.s32.totalorder %s16, 0
    %p105 = por %p103, %p104
    %p106 = scmp.ne.s32.totalorder %s92, %s93
    %p107 = scmp.eq.s32.totalorder %s17, 1
    %p108 = por %p106, %p107
    %p110 = scmp.ne.s32.totalorder %s93, %s109
    %p111 = scmp.eq.s32.totalorder %s17, 0
    %p112 = por %p110, %p111
    %s113 = ssub.s32 %s11, %s18
    %p114 = scmp.eq.s32.totalorder %s113, 0
    %s116 = sadd.s32 %s115, 1
    %s117 = scalar_select %p114, %s115, %s116
    %p120 = pneg %p114
    %p121 = scmp.eq.s32.totalorder %s11, 1
    %p122 = por %p120, %p121
    %p123 = scmp.ne.s32.totalorder %s115, %s118
    %p124 = scmp.eq.s32.totalorder %s11, 0
    %p125 = por %p123, %p124
    %p126 = scmp.ne.s32.totalorder %s115, %s118
    %p127 = scmp.eq.s32.totalorder %s16, 1
    %p128 = por %p126, %p127
    %p129 = scmp.ne.s32.totalorder %s118, %s119
    %p130 = scmp.eq.s32.totalorder %s16, 0
    %p131 = por %p129, %p130
    %p132 = scmp.ne.s32.totalorder %s118, %s119
    %p133 = scmp.eq.s32.totalorder %s17, 1
    %p134 = por %p132, %p133
    %p136 = scmp.ne.s32.totalorder %s119, %s135
    %p137 = scmp.eq.s32.totalorder %s17, 0
    %p138 = por %p136, %p137
    %p139 = scmp.le.s32.totalorder 1, %s11
    %p140 = scmp.lt.s32.totalorder %s11, 3
    %p141 = pnand %p139, %p140
    %p142 = pneg %p141
    // Predicated region
    $region9: #{convnext_block.2} parent=5 // pred_check
      _
    $region10: #{convnext_block.2} parent=5 // pred_check_branch
      %144 = sbr.rel (%p141) target = $region12
    $region11: #{convnext_block.2} parent=5 // pred_region
      %s145 = ssub.s32 %s11, 1
      // Predicated region
      $region13: #{convnext_block.2} parent=11 // pred_check
        %p146 = pneg %p58
      $region14: #{convnext_block.2} parent=11 // pred_check_branch
        %148 = sbr.rel (%p146) target = $region16
      $region15: #{convnext_block.2} parent=11 // pred_region
        _
      $region16: #{convnext_block.2} parent=11 // pred_fallthru
        _
      // Predicated region
      $region17: #{convnext_block.2} parent=11 // pred_check
        %p149 = pneg %p79
      $region18: #{convnext_block.2} parent=11 // pred_check_branch
        %151 = sbr.rel (%p149) target = $region20
      $region19: #{convnext_block.2} parent=11 // pred_region
        _
      $region20: #{convnext_block.2} parent=11 // pred_fallthru
        _
    $region12: #{convnext_block.2} parent=5 // pred_fallthru
      _
    %p152 = scmp.lt.s32.totalorder %s11, 2
    // Predicated region
    $region21: #{convnext_block.2} parent=5 // pred_check
      %p153 = pneg %p152
    $region22: #{convnext_block.2} parent=5 // pred_check_branch
      %155 = sbr.rel (%p153) target = $region24
    $region23: #{convnext_block.2} parent=5 // pred_region
      // Predicated region
      $region25: #{convnext_block.2} parent=23 // pred_check
        %p156 = pneg %p31
      $region26: #{convnext_block.2} parent=23 // pred_check_branch
        %158 = sbr.rel (%p156) target = $region28
      $region27: #{convnext_block.2} parent=23 // pred_region
        %p159 = scmp.lt.s32.totalorder %s11, 1
        %s160 = scalar_select %p159, %s11, 1
        %s161 = smul.addr %s160, 66
        %s162 = smul.addr %s161, 8
        %s163 = scalar_lea.vmem %s0, %s162
      $region28: #{convnext_block.2} parent=23 // pred_fallthru
        _
    $region24: #{convnext_block.2} parent=5 // pred_fallthru
      _
    %p164 = scmp.le.s32.totalorder 1, %s11
    %p165 = scmp.lt.s32.totalorder %s11, 3
    %p166 = pnand %p164, %p165
    %p167 = pneg %p166
    // Predicated region
    $region29: #{convnext_block.2} parent=5 // pred_check
      _
    $region30: #{convnext_block.2} parent=5 // pred_check_branch
      %169 = sbr.rel (%p166) target = $region32
    $region31: #{convnext_block.2} parent=5 // pred_region
      %s170 = ssub.s32 %s11, 1
      %p171 = scmp.lt.s32.totalorder %s16, 1
      %s172 = scalar_select %p171, %s16, 1
      %s173 = smul.addr %s172, 66
      %s174 = smul.addr %s173, 8
      %s175 = scalar_lea.vmem %s0, %s174
      %p176 = pneg %p37
      %p177 = pneg %p34
      %p178 = pneg %p58
      %p179 = pneg %p55
      %p180 = pneg %p79
      %p181 = pneg %p76
      %p182 = pneg %p105
      %p183 = pneg %p102
      %p184 = scmp.lt.s32.totalorder %s16, 1
      %s185 = scalar_select %p184, %s16, 1
      %s186 = smul.addr %s185, 32
      %s187 = smul.addr %s186, 8
      %s188 = scalar_lea.vmem %s3, %s187
      %p189 = pneg %p131
      %p190 = pneg %p128
      %p191 = scmp.lt.s32.totalorder %s16, 1
      %s192 = scalar_select %p191, %s16, 1
      %s193 = smul.addr %s192, 32
      %s194 = smul.addr %s193, 8
      %s195 = scalar_lea.vmem %s4, %s194
      %p196 = scmp.lt.s32.totalorder %s16, 1
      %s197 = scalar_select %p196, %s16, 1
      %s198 = smul.addr %s197, 66
      %s199 = smul.addr %s198, 8
      %s200 = scalar_lea.vmem %s0, %s199
      %p201 = scmp.lt.s32.totalorder %s16, 1
      %s202 = scalar_select %p201, %s16, 1
      %s203 = smul.addr %s202, 32
      %s204 = smul.addr %s203, 8
      %s205 = scalar_lea.vmem %s3, %s204
      %p206 = scmp.lt.s32.totalorder %s16, 1
      %s207 = scalar_select %p206, %s16, 1
      %s208 = smul.addr %s207, 32
      %s209 = smul.addr %s208, 8
      %s210 = scalar_lea.vmem %s4, %s209
      %v211 = vld [vmem:[%s1] sm:$0x7f]
      %v212 = vld [vmem:[%s1 + $0x8] sm:$0x7f]
      %v213 = vld [vmem:[%s1 + $0x10] sm:$0x7f]
      %v214 = vld [vmem:[%s1 + $0x18] sm:$0x7f]
      %v215 = vld [vmem:[%s1 + $0x20] sm:$0x7f]
      %v216 = vld [vmem:[%s1 + $0x28] sm:$0x7f]
      %v217 = vld [vmem:[%s1 + $0x30] sm:$0x7f]
      %s218 = scalar_lea.vmem %s200, 72
      %v219 = vld [vmem:[%s218 + $0x3] sm:$0xff]
      %v220 = vld [vmem:[%s218 + $0xb] sm:$0xff]
      %v221 = vld [vmem:[%s218 + $0x1b] sm:$0xff]
      %v222 = vld [vmem:[%s218 + $0x23] sm:$0xff]
      %v223 = vld [vmem:[%s218 + $0x33] sm:$0xff]
      %v224 = vld [vmem:[%s218 + $0x3b] sm:$0xff]
      %v225 = vld [vmem:[%s218 + $0x4b] sm:$0xff]
      %v226 = vld [vmem:[%s218 + $0x53] sm:$0xff]
      %v227 = vld [vmem:[%s218 + $0x63] sm:$0xff]
      %v228 = vld [vmem:[%s218 + $0x6b] sm:$0xff]
      %v229 = vld [vmem:[%s218 + $0x7b] sm:$0xff]
      %v230 = vld [vmem:[%s218 + $0x83] sm:$0xff]
      %v231 = vld [vmem:[%s218 + $0x93] sm:$0xff]
      %v232 = vld [vmem:[%s218 + $0x9b] sm:$0xff]
      %v233 = vld [vmem:[%s218 + $0xab] sm:$0xff]
      %v234 = vld [vmem:[%s218 + $0xb3] sm:$0xff]
      %v235 = vld [vmem:[%s218 + $0xc3] sm:$0xff]
      %v236 = vld [vmem:[%s218 + $0xcb] sm:$0xff]
      %v237 = vld [vmem:[%s218 + $0xdb] sm:$0xff]
      %v238 = vld [vmem:[%s218 + $0xe3] sm:$0xff]
      %v239 = vld [vmem:[%s218 + $0xf3] sm:$0xff]
      %v240 = vld [vmem:[%s218 + $0xfb] sm:$0xff]
      %v241 = vld [vmem:[%s218 + $0x10b] sm:$0xff]
      %v242 = vld [vmem:[%s218 + $0x113] sm:$0xff]
      %v243 = vld [vmem:[%s218 + $0x123] sm:$0xff]
      %v244 = vld [vmem:[%s218 + $0x12b] sm:$0xff]
      %v245 = vld [vmem:[%s218 + $0x13b] sm:$0xff]
      %v246 = vld [vmem:[%s218 + $0x143] sm:$0xff]
      %v247 = vld [vmem:[%s218 + $0x153] sm:$0xff]
      %v248 = vld [vmem:[%s218 + $0x15b] sm:$0xff]
      %v249 = vld [vmem:[%s218 + $0x16b] sm:$0xff]
      %v250 = vld [vmem:[%s218 + $0x173] sm:$0xff]
      %vm251 = vcmask 31744
      %252 = vst.msk [vmem:[%s210] sm:$0xff] %vm251, %v219
      %253 = vst.msk [vmem:[%s210 + $0x8] sm:$0xff] %vm251, %v220
      %254 = vst.msk [vmem:[%s210 + $0x10] sm:$0xff] %vm251, %v221
      %255 = vst.msk [vmem:[%s210 + $0x18] sm:$0xff] %vm251, %v222
      %256 = vst.msk [vmem:[%s210 + $0x20] sm:$0xff] %vm251, %v223
      %257 = vst.msk [vmem:[%s210 + $0x28] sm:$0xff] %vm251, %v224
      %258 = vst.msk [vmem:[%s210 + $0x30] sm:$0xff] %vm251, %v225
      %259 = vst.msk [vmem:[%s210 + $0x38] sm:$0xff] %vm251, %v226
      %260 = vst.msk [vmem:[%s210 + $0x40] sm:$0xff] %vm251, %v227
      %261 = vst.msk [vmem:[%s210 + $0x48] sm:$0xff] %vm251, %v228
      %262 = vst.msk [vmem:[%s210 + $0x50] sm:$0xff] %vm251, %v229
      %263 = vst.msk [vmem:[%s210 + $0x58] sm:$0xff] %vm251, %v230
      %264 = vst.msk [vmem:[%s210 + $0x60] sm:$0xff] %vm251, %v231
      %265 = vst.msk [vmem:[%s210 + $0x68] sm:$0xff] %vm251, %v232
      %266 = vst.msk [vmem:[%s210 + $0x70] sm:$0xff] %vm251, %v233
      %267 = vst.msk [vmem:[%s210 + $0x78] sm:$0xff] %vm251, %v234
      %268 = vst.msk [vmem:[%s210 + $0x80] sm:$0xff] %vm251, %v235
      %269 = vst.msk [vmem:[%s210 + $0x88] sm:$0xff] %vm251, %v236
      %270 = vst.msk [vmem:[%s210 + $0x90] sm:$0xff] %vm251, %v237
      %271 = vst.msk [vmem:[%s210 + $0x98] sm:$0xff] %vm251, %v238
      %272 = vst.msk [vmem:[%s210 + $0xa0] sm:$0xff] %vm251, %v239
      %273 = vst.msk [vmem:[%s210 + $0xa8] sm:$0xff] %vm251, %v240
      %274 = vst.msk [vmem:[%s210 + $0xb0] sm:$0xff] %vm251, %v241
      %275 = vst.msk [vmem:[%s210 + $0xb8] sm:$0xff] %vm251, %v242
      %276 = vst.msk [vmem:[%s210 + $0xc0] sm:$0xff] %vm251, %v243
      %277 = vst.msk [vmem:[%s210 + $0xc8] sm:$0xff] %vm251, %v244
      %278 = vst.msk [vmem:[%s210 + $0xd0] sm:$0xff] %vm251, %v245
      %279 = vst.msk [vmem:[%s210 + $0xd8] sm:$0xff] %vm251, %v246
      %280 = vst.msk [vmem:[%s210 + $0xe0] sm:$0xff] %vm251, %v247
      %281 = vst.msk [vmem:[%s210 + $0xe8] sm:$0xff] %vm251, %v248
      %282 = vst.msk [vmem:[%s210 + $0xf0] sm:$0xff] %vm251, %v249
      %283 = vst.msk [vmem:[%s210 + $0xf8] sm:$0xff] %vm251, %v250
      %v284 = vld [vmem:[%s200] sm:$0xff]
      %v285 = vld [vmem:[%s200 + $0x8] sm:$0xff]
      %v286 = vld [vmem:[%s200 + $0x18] sm:$0xff]
      %v287 = vld [vmem:[%s200 + $0x20] sm:$0xff]
      %v288 = vld [vmem:[%s200 + $0x30] sm:$0xff]
      %v289 = vld [vmem:[%s200 + $0x38] sm:$0xff]
      %v290 = vld [vmem:[%s200 + $0x48] sm:$0xff]
      %v291 = vld [vmem:[%s200 + $0x50] sm:$0xff]
      %v292 = vld [vmem:[%s200 + $0x60] sm:$0xff]
      %v293 = vld [vmem:[%s200 + $0x68] sm:$0xff]
      %v294 = vld [vmem:[%s200 + $0x78] sm:$0xff]
      %v295 = vld [vmem:[%s200 + $0x80] sm:$0xff]
      %v296 = vld [vmem:[%s200 + $0x90] sm:$0xff]
      %v297 = vld [vmem:[%s200 + $0x98] sm:$0xff]
      %v298 = vld [vmem:[%s200 + $0xa8] sm:$0xff]
      %v299 = vld [vmem:[%s200 + $0xb0] sm:$0xff]
      %v300 = vld [vmem:[%s200 + $0xc0] sm:$0xff]
      %v301 = vld [vmem:[%s200 + $0xc8] sm:$0xff]
      %v302 = vld [vmem:[%s200 + $0xd8] sm:$0xff]
      %v303 = vld [vmem:[%s200 + $0xe0] sm:$0xff]
      %v304 = vld [vmem:[%s200 + $0xf0] sm:$0xff]
      %v305 = vld [vmem:[%s200 + $0xf8] sm:$0xff]
      %v306 = vld [vmem:[%s200 + $0x108] sm:$0xff]
      %v307 = vld [vmem:[%s200 + $0x110] sm:$0xff]
      %v308 = vld [vmem:[%s200 + $0x120] sm:$0xff]
      %v309 = vld [vmem:[%s200 + $0x128] sm:$0xff]
      %v310 = vld [vmem:[%s200 + $0x138] sm:$0xff]
      %v311 = vld [vmem:[%s200 + $0x140] sm:$0xff]
      %v312 = vld [vmem:[%s200 + $0x150] sm:$0xff]
      %v313 = vld [vmem:[%s200 + $0x158] sm:$0xff]
      %v314 = vld [vmem:[%s200 + $0x168] sm:$0xff]
      %v315 = vld [vmem:[%s200 + $0x170] sm:$0xff]
      %v316 = vlaneseq
      %v317 = vshrl.u32 %v316, 7
      %v318 = vsub.s32 0, %v317
      %v319 = vrot.slane %v211, %v318
      %v320 = vmul.f32 %v284, %v319
      %v321 = vmul.f32 %v285, %v319
      %v322 = vmul.f32 %v286, %v319
      %v323 = vmul.f32 %v287, %v319
      %v324 = vmul.f32 %v288, %v319
      %v325 = vmul.f32 %v289, %v319
      %v326 = vmul.f32 %v290, %v319
      %v327 = vmul.f32 %v291, %v319
      %v328 = vmul.f32 %v292, %v319
      %v329 = vmul.f32 %v293, %v319
      %v330 = vmul.f32 %v294, %v319
      %v331 = vmul.f32 %v295, %v319
      %v332 = vmul.f32 %v296, %v319
      %v333 = vmul.f32 %v297, %v319
      %v334 = vmul.f32 %v298, %v319
      %v335 = vmul.f32 %v299, %v319
      %v336 = vmul.f32 %v300, %v319
      %v337 = vmul.f32 %v301, %v319
      %v338 = vmul.f32 %v302, %v319
      %v339 = vmul.f32 %v303, %v319
      %v340 = vmul.f32 %v304, %v319
      %v341 = vmul.f32 %v305, %v319
      %v342 = vmul.f32 %v306, %v319
      %v343 = vmul.f32 %v307, %v319
      %v344 = vmul.f32 %v308, %v319
      %v345 = vmul.f32 %v309, %v319
      %v346 = vmul.f32 %v310, %v319
      %v347 = vmul.f32 %v311, %v319
      %v348 = vmul.f32 %v312, %v319
      %v349 = vmul.f32 %v313, %v319
      %v350 = vmul.f32 %v314, %v319
      %v351 = vmul.f32 %v315, %v319
      %v352 = vadd.f32 %v320, 0.0
      %v353 = vadd.f32 %v321, 0.0
      %v354 = vadd.f32 %v322, 0.0
      %v355 = vadd.f32 %v323, 0.0
      %v356 = vadd.f32 %v324, 0.0
      %v357 = vadd.f32 %v325, 0.0
      %v358 = vadd.f32 %v326, 0.0
      %v359 = vadd.f32 %v327, 0.0
      %v360 = vadd.f32 %v328, 0.0
      %v361 = vadd.f32 %v329, 0.0
      %v362 = vadd.f32 %v330, 0.0
      %v363 = vadd.f32 %v331, 0.0
      %v364 = vadd.f32 %v332, 0.0
      %v365 = vadd.f32 %v333, 0.0
      %v366 = vadd.f32 %v334, 0.0
      %v367 = vadd.f32 %v335, 0.0
      %v368 = vadd.f32 %v336, 0.0
      %v369 = vadd.f32 %v337, 0.0
      %v370 = vadd.f32 %v338, 0.0
      %v371 = vadd.f32 %v339, 0.0
      %v372 = vadd.f32 %v340, 0.0
      %v373 = vadd.f32 %v341, 0.0
      %v374 = vadd.f32 %v342, 0.0
      %v375 = vadd.f32 %v343, 0.0
      %v376 = vadd.f32 %v344, 0.0
      %v377 = vadd.f32 %v345, 0.0
      %v378 = vadd.f32 %v346, 0.0
      %v379 = vadd.f32 %v347, 0.0
      %v380 = vadd.f32 %v348, 0.0
      %v381 = vadd.f32 %v349, 0.0
      %v382 = vadd.f32 %v350, 0.0
      %v383 = vadd.f32 %v351, 0.0
      %v384 = vld [vmem:[%s200 + $0x1] sm:$0xff]
      %v385 = vld [vmem:[%s200 + $0x9] sm:$0xff]
      %v386 = vld [vmem:[%s200 + $0x19] sm:$0xff]
      %v387 = vld [vmem:[%s200 + $0x21] sm:$0xff]
      %v388 = vld [vmem:[%s200 + $0x31] sm:$0xff]
      %v389 = vld [vmem:[%s200 + $0x39] sm:$0xff]
      %v390 = vld [vmem:[%s200 + $0x49] sm:$0xff]
      %v391 = vld [vmem:[%s200 + $0x51] sm:$0xff]
      %v392 = vld [vmem:[%s200 + $0x61] sm:$0xff]
      %v393 = vld [vmem:[%s200 + $0x69] sm:$0xff]
      %v394 = vld [vmem:[%s200 + $0x79] sm:$0xff]
      %v395 = vld [vmem:[%s200 + $0x81] sm:$0xff]
      %v396 = vld [vmem:[%s200 + $0x91] sm:$0xff]
      %v397 = vld [vmem:[%s200 + $0x99] sm:$0xff]
      %v398 = vld [vmem:[%s200 + $0xa9] sm:$0xff]
      %v399 = vld [vmem:[%s200 + $0xb1] sm:$0xff]
      %v400 = vld [vmem:[%s200 + $0xc1] sm:$0xff]
      %v401 = vld [vmem:[%s200 + $0xc9] sm:$0xff]
      %v402 = vld [vmem:[%s200 + $0xd9] sm:$0xff]
      %v403 = vld [vmem:[%s200 + $0xe1] sm:$0xff]
      %v404 = vld [vmem:[%s200 + $0xf1] sm:$0xff]
      %v405 = vld [vmem:[%s200 + $0xf9] sm:$0xff]
      %v406 = vld [vmem:[%s200 + $0x109] sm:$0xff]
      %v407 = vld [vmem:[%s200 + $0x111] sm:$0xff]
      %v408 = vld [vmem:[%s200 + $0x121] sm:$0xff]
      %v409 = vld [vmem:[%s200 + $0x129] sm:$0xff]
      %v410 = vld [vmem:[%s200 + $0x139] sm:$0xff]
      %v411 = vld [vmem:[%s200 + $0x141] sm:$0xff]
      %v412 = vld [vmem:[%s200 + $0x151] sm:$0xff]
      %v413 = vld [vmem:[%s200 + $0x159] sm:$0xff]
      %v414 = vld [vmem:[%s200 + $0x169] sm:$0xff]
      %v415 = vld [vmem:[%s200 + $0x171] sm:$0xff]
      %v416 = vlaneseq
      %v417 = vshrl.u32 %v416, 7
      %v418 = vsub.s32 1, %v417
      %v419 = vrot.slane %v211, %v418
      %v420 = vmul.f32 %v384, %v419
      %v421 = vmul.f32 %v385, %v419
      %v422 = vmul.f32 %v386, %v419
      %v423 = vmul.f32 %v387, %v419
      %v424 = vmul.f32 %v388, %v419
      %v425 = vmul.f32 %v389, %v419
      %v426 = vmul.f32 %v390, %v419
      %v427 = vmul.f32 %v391, %v419
      %v428 = vmul.f32 %v392, %v419
      %v429 = vmul.f32 %v393, %v419
      %v430 = vmul.f32 %v394, %v419
      %v431 = vmul.f32 %v395, %v419
      %v432 = vmul.f32 %v396, %v419
      %v433 = vmul.f32 %v397, %v419
      %v434 = vmul.f32 %v398, %v419
      %v435 = vmul.f32 %v399, %v419
      %v436 = vmul.f32 %v400, %v419
      %v437 = vmul.f32 %v401, %v419
      %v438 = vmul.f32 %v402, %v419
      %v439 = vmul.f32 %v403, %v419
      %v440 = vmul.f32 %v404, %v419
      %v441 = vmul.f32 %v405, %v419
      %v442 = vmul.f32 %v406, %v419
      %v443 = vmul.f32 %v407, %v419
      %v444 = vmul.f32 %v408, %v419
      %v445 = vmul.f32 %v409, %v419
      %v446 = vmul.f32 %v410, %v419
      %v447 = vmul.f32 %v411, %v419
      %v448 = vmul.f32 %v412, %v419
      %v449 = vmul.f32 %v413, %v419
      %v450 = vmul.f32 %v414, %v419
      %v451 = vmul.f32 %v415, %v419
      %v452 = vadd.f32 %v352, %v420
      %v453 = vadd.f32 %v353, %v421
      %v454 = vadd.f32 %v354, %v422
      %v455 = vadd.f32 %v355, %v423
      %v456 = vadd.f32 %v356, %v424
      %v457 = vadd.f32 %v357, %v425
      %v458 = vadd.f32 %v358, %v426
      %v459 = vadd.f32 %v359, %v427
      %v460 = vadd.f32 %v360, %v428
      %v461 = vadd.f32 %v361, %v429
      %v462 = vadd.f32 %v362, %v430
      %v463 = vadd.f32 %v363, %v431
      %v464 = vadd.f32 %v364, %v432
      %v465 = vadd.f32 %v365, %v433
      %v466 = vadd.f32 %v366, %v434
      %v467 = vadd.f32 %v367, %v435
      %v468 = vadd.f32 %v368, %v436
      %v469 = vadd.f32 %v369, %v437
      %v470 = vadd.f32 %v370, %v438
      %v471 = vadd.f32 %v371, %v439
      %v472 = vadd.f32 %v372, %v440
      %v473 = vadd.f32 %v373, %v441
      %v474 = vadd.f32 %v374, %v442
      %v475 = vadd.f32 %v375, %v443
      %v476 = vadd.f32 %v376, %v444
      %v477 = vadd.f32 %v377, %v445
      %v478 = vadd.f32 %v378, %v446
      %v479 = vadd.f32 %v379, %v447
      %v480 = vadd.f32 %v380, %v448
      %v481 = vadd.f32 %v381, %v449
      %v482 = vadd.f32 %v382, %v450
      %v483 = vadd.f32 %v383, %v451
      %v484 = vld [vmem:[%s200 + $0x2] sm:$0xff]
      %v485 = vld [vmem:[%s200 + $0xa] sm:$0xff]
      %v486 = vld [vmem:[%s200 + $0x1a] sm:$0xff]
      %v487 = vld [vmem:[%s200 + $0x22] sm:$0xff]
      %v488 = vld [vmem:[%s200 + $0x32] sm:$0xff]
      %v489 = vld [vmem:[%s200 + $0x3a] sm:$0xff]
      %v490 = vld [vmem:[%s200 + $0x4a] sm:$0xff]
      %v491 = vld [vmem:[%s200 + $0x52] sm:$0xff]
      %v492 = vld [vmem:[%s200 + $0x62] sm:$0xff]
      %v493 = vld [vmem:[%s200 + $0x6a] sm:$0xff]
      %v494 = vld [vmem:[%s200 + $0x7a] sm:$0xff]
      %v495 = vld [vmem:[%s200 + $0x82] sm:$0xff]
      %v496 = vld [vmem:[%s200 + $0x92] sm:$0xff]
      %v497 = vld [vmem:[%s200 + $0x9a] sm:$0xff]
      %v498 = vld [vmem:[%s200 + $0xaa] sm:$0xff]
      %v499 = vld [vmem:[%s200 + $0xb2] sm:$0xff]
      %v500 = vld [vmem:[%s200 + $0xc2] sm:$0xff]
      %v501 = vld [vmem:[%s200 + $0xca] sm:$0xff]
      %v502 = vld [vmem:[%s200 + $0xda] sm:$0xff]
      %v503 = vld [vmem:[%s200 + $0xe2] sm:$0xff]
      %v504 = vld [vmem:[%s200 + $0xf2] sm:$0xff]
      %v505 = vld [vmem:[%s200 + $0xfa] sm:$0xff]
      %v506 = vld [vmem:[%s200 + $0x10a] sm:$0xff]
      %v507 = vld [vmem:[%s200 + $0x112] sm:$0xff]
      %v508 = vld [vmem:[%s200 + $0x122] sm:$0xff]
      %v509 = vld [vmem:[%s200 + $0x12a] sm:$0xff]
      %v510 = vld [vmem:[%s200 + $0x13a] sm:$0xff]
      %v511 = vld [vmem:[%s200 + $0x142] sm:$0xff]
      %v512 = vld [vmem:[%s200 + $0x152] sm:$0xff]
      %v513 = vld [vmem:[%s200 + $0x15a] sm:$0xff]
      %v514 = vld [vmem:[%s200 + $0x16a] sm:$0xff]
      %v515 = vld [vmem:[%s200 + $0x172] sm:$0xff]
      %v516 = vlaneseq
      %v517 = vshrl.u32 %v516, 7
      %v518 = vsub.s32 2, %v517
      %v519 = vrot.slane %v211, %v518
      %v520 = vmul.f32 %v484, %v519
      %v521 = vmul.f32 %v485, %v519
      %v522 = vmul.f32 %v486, %v519
      %v523 = vmul.f32 %v487, %v519
      %v524 = vmul.f32 %v488, %v519
      %v525 = vmul.f32 %v489, %v519
      %v526 = vmul.f32 %v490, %v519
      %v527 = vmul.f32 %v491, %v519
      %v528 = vmul.f32 %v492, %v519
      %v529 = vmul.f32 %v493, %v519
      %v530 = vmul.f32 %v494, %v519
      %v531 = vmul.f32 %v495, %v519
      %v532 = vmul.f32 %v496, %v519
      %v533 = vmul.f32 %v497, %v519
      %v534 = vmul.f32 %v498, %v519
      %v535 = vmul.f32 %v499, %v519
      %v536 = vmul.f32 %v500, %v519
      %v537 = vmul.f32 %v501, %v519
      %v538 = vmul.f32 %v502, %v519
      %v539 = vmul.f32 %v503, %v519
      %v540 = vmul.f32 %v504, %v519
      %v541 = vmul.f32 %v505, %v519
      %v542 = vmul.f32 %v506, %v519
      %v543 = vmul.f32 %v507, %v519
      %v544 = vmul.f32 %v508, %v519
      %v545 = vmul.f32 %v509, %v519
      %v546 = vmul.f32 %v510, %v519
      %v547 = vmul.f32 %v511, %v519
      %v548 = vmul.f32 %v512, %v519
      %v549 = vmul.f32 %v513, %v519
      %v550 = vmul.f32 %v514, %v519
      %v551 = vmul.f32 %v515, %v519
      %v552 = vadd.f32 %v452, %v520
      %v553 = vadd.f32 %v453, %v521
      %v554 = vadd.f32 %v454, %v522
      %v555 = vadd.f32 %v455, %v523
      %v556 = vadd.f32 %v456, %v524
      %v557 = vadd.f32 %v457, %v525
      %v558 = vadd.f32 %v458, %v526
      %v559 = vadd.f32 %v459, %v527
      %v560 = vadd.f32 %v460, %v528
      %v561 = vadd.f32 %v461, %v529
      %v562 = vadd.f32 %v462, %v530
      %v563 = vadd.f32 %v463, %v531
      %v564 = vadd.f32 %v464, %v532
      %v565 = vadd.f32 %v465, %v533
      %v566 = vadd.f32 %v466, %v534
      %v567 = vadd.f32 %v467, %v535
      %v568 = vadd.f32 %v468, %v536
      %v569 = vadd.f32 %v469, %v537
      %v570 = vadd.f32 %v470, %v538
      %v571 = vadd.f32 %v471, %v539
      %v572 = vadd.f32 %v472, %v540
      %v573 = vadd.f32 %v473, %v541
      %v574 = vadd.f32 %v474, %v542
      %v575 = vadd.f32 %v475, %v543
      %v576 = vadd.f32 %v476, %v544
      %v577 = vadd.f32 %v477, %v545
      %v578 = vadd.f32 %v478, %v546
      %v579 = vadd.f32 %v479, %v547
      %v580 = vadd.f32 %v480, %v548
      %v581 = vadd.f32 %v481, %v549
      %v582 = vadd.f32 %v482, %v550
      %v583 = vadd.f32 %v483, %v551
      %v584 = vld [vmem:[%s200 + $0x3] sm:$0xff]
      %v585 = vld [vmem:[%s200 + $0xb] sm:$0xff]
      %v586 = vld [vmem:[%s200 + $0x1b] sm:$0xff]
      %v587 = vld [vmem:[%s200 + $0x23] sm:$0xff]
      %v588 = vld [vmem:[%s200 + $0x33] sm:$0xff]
      %v589 = vld [vmem:[%s200 + $0x3b] sm:$0xff]
      %v590 = vld [vmem:[%s200 + $0x4b] sm:$0xff]
      %v591 = vld [vmem:[%s200 + $0x53] sm:$0xff]
      %v592 = vld [vmem:[%s200 + $0x63] sm:$0xff]
      %v593 = vld [vmem:[%s200 + $0x6b] sm:$0xff]
      %v594 = vld [vmem:[%s200 + $0x7b] sm:$0xff]
      %v595 = vld [vmem:[%s200 + $0x83] sm:$0xff]
      %v596 = vld [vmem:[%s200 + $0x93] sm:$0xff]
      %v597 = vld [vmem:[%s200 + $0x9b] sm:$0xff]
      %v598 = vld [vmem:[%s200 + $0xab] sm:$0xff]
      %v599 = vld [vmem:[%s200 + $0xb3] sm:$0xff]
      %v600 = vld [vmem:[%s200 + $0xc3] sm:$0xff]
      %v601 = vld [vmem:[%s200 + $0xcb] sm:$0xff]
      %v602 = vld [vmem:[%s200 + $0xdb] sm:$0xff]
      %v603 = vld [vmem:[%s200 + $0xe3] sm:$0xff]
      %v604 = vld [vmem:[%s200 + $0xf3] sm:$0xff]
      %v605 = vld [vmem:[%s200 + $0xfb] sm:$0xff]
      %v606 = vld [vmem:[%s200 + $0x10b] sm:$0xff]
      %v607 = vld [vmem:[%s200 + $0x113] sm:$0xff]
      %v608 = vld [vmem:[%s200 + $0x123] sm:$0xff]
      %v609 = vld [vmem:[%s200 + $0x12b] sm:$0xff]
      %v610 = vld [vmem:[%s200 + $0x13b] sm:$0xff]
      %v611 = vld [vmem:[%s200 + $0x143] sm:$0xff]
      %v612 = vld [vmem:[%s200 + $0x153] sm:$0xff]
      %v613 = vld [vmem:[%s200 + $0x15b] sm:$0xff]
      %v614 = vld [vmem:[%s200 + $0x16b] sm:$0xff]
      %v615 = vld [vmem:[%s200 + $0x173] sm:$0xff]
      %v616 = vlaneseq
      %v617 = vshrl.u32 %v616, 7
      %v618 = vsub.s32 3, %v617
      %v619 = vrot.slane %v211, %v618
      %v620 = vmul.f32 %v584, %v619
      %v621 = vmul.f32 %v585, %v619
      %v622 = vmul.f32 %v586, %v619
      %v623 = vmul.f32 %v587, %v619
      %v624 = vmul.f32 %v588, %v619
      %v625 = vmul.f32 %v589, %v619
      %v626 = vmul.f32 %v590, %v619
      %v627 = vmul.f32 %v591, %v619
      %v628 = vmul.f32 %v592, %v619
      %v629 = vmul.f32 %v593, %v619
      %v630 = vmul.f32 %v594, %v619
      %v631 = vmul.f32 %v595, %v619
      %v632 = vmul.f32 %v596, %v619
      %v633 = vmul.f32 %v597, %v619
      %v634 = vmul.f32 %v598, %v619
      %v635 = vmul.f32 %v599, %v619
      %v636 = vmul.f32 %v600, %v619
      %v637 = vmul.f32 %v601, %v619
      %v638 = vmul.f32 %v602, %v619
      %v639 = vmul.f32 %v603, %v619
      %v640 = vmul.f32 %v604, %v619
      %v641 = vmul.f32 %v605, %v619
      %v642 = vmul.f32 %v606, %v619
      %v643 = vmul.f32 %v607, %v619
      %v644 = vmul.f32 %v608, %v619
      %v645 = vmul.f32 %v609, %v619
      %v646 = vmul.f32 %v610, %v619
      %v647 = vmul.f32 %v611, %v619
      %v648 = vmul.f32 %v612, %v619
      %v649 = vmul.f32 %v613, %v619
      %v650 = vmul.f32 %v614, %v619
      %v651 = vmul.f32 %v615, %v619
      %v652 = vadd.f32 %v552, %v620
      %v653 = vadd.f32 %v553, %v621
      %v654 = vadd.f32 %v554, %v622
      %v655 = vadd.f32 %v555, %v623
      %v656 = vadd.f32 %v556, %v624
      %v657 = vadd.f32 %v557, %v625
      %v658 = vadd.f32 %v558, %v626
      %v659 = vadd.f32 %v559, %v627
      %v660 = vadd.f32 %v560, %v628
      %v661 = vadd.f32 %v561, %v629
      %v662 = vadd.f32 %v562, %v630
      %v663 = vadd.f32 %v563, %v631
      %v664 = vadd.f32 %v564, %v632
      %v665 = vadd.f32 %v565, %v633
      %v666 = vadd.f32 %v566, %v634
      %v667 = vadd.f32 %v567, %v635
      %v668 = vadd.f32 %v568, %v636
      %v669 = vadd.f32 %v569, %v637
      %v670 = vadd.f32 %v570, %v638
      %v671 = vadd.f32 %v571, %v639
      %v672 = vadd.f32 %v572, %v640
      %v673 = vadd.f32 %v573, %v641
      %v674 = vadd.f32 %v574, %v642
      %v675 = vadd.f32 %v575, %v643
      %v676 = vadd.f32 %v576, %v644
      %v677 = vadd.f32 %v577, %v645
      %v678 = vadd.f32 %v578, %v646
      %v679 = vadd.f32 %v579, %v647
      %v680 = vadd.f32 %v580, %v648
      %v681 = vadd.f32 %v581, %v649
      %v682 = vadd.f32 %v582, %v650
      %v683 = vadd.f32 %v583, %v651
      %v684 = vld [vmem:[%s200 + $0x4] sm:$0xff]
      %v685 = vld [vmem:[%s200 + $0xc] sm:$0xff]
      %v686 = vld [vmem:[%s200 + $0x1c] sm:$0xff]
      %v687 = vld [vmem:[%s200 + $0x24] sm:$0xff]
      %v688 = vld [vmem:[%s200 + $0x34] sm:$0xff]
      %v689 = vld [vmem:[%s200 + $0x3c] sm:$0xff]
      %v690 = vld [vmem:[%s200 + $0x4c] sm:$0xff]
      %v691 = vld [vmem:[%s200 + $0x54] sm:$0xff]
      %v692 = vld [vmem:[%s200 + $0x64] sm:$0xff]
      %v693 = vld [vmem:[%s200 + $0x6c] sm:$0xff]
      %v694 = vld [vmem:[%s200 + $0x7c] sm:$0xff]
      %v695 = vld [vmem:[%s200 + $0x84] sm:$0xff]
      %v696 = vld [vmem:[%s200 + $0x94] sm:$0xff]
      %v697 = vld [vmem:[%s200 + $0x9c] sm:$0xff]
      %v698 = vld [vmem:[%s200 + $0xac] sm:$0xff]
      %v699 = vld [vmem:[%s200 + $0xb4] sm:$0xff]
      %v700 = vld [vmem:[%s200 + $0xc4] sm:$0xff]
      %v701 = vld [vmem:[%s200 + $0xcc] sm:$0xff]
      %v702 = vld [vmem:[%s200 + $0xdc] sm:$0xff]
      %v703 = vld [vmem:[%s200 + $0xe4] sm:$0xff]
      %v704 = vld [vmem:[%s200 + $0xf4] sm:$0xff]
      %v705 = vld [vmem:[%s200 + $0xfc] sm:$0xff]
      %v706 = vld [vmem:[%s200 + $0x10c] sm:$0xff]
      %v707 = vld [vmem:[%s200 + $0x114] sm:$0xff]
      %v708 = vld [vmem:[%s200 + $0x124] sm:$0xff]
      %v709 = vld [vmem:[%s200 + $0x12c] sm:$0xff]
      %v710 = vld [vmem:[%s200 + $0x13c] sm:$0xff]
      %v711 = vld [vmem:[%s200 + $0x144] sm:$0xff]
      %v712 = vld [vmem:[%s200 + $0x154] sm:$0xff]
      %v713 = vld [vmem:[%s200 + $0x15c] sm:$0xff]
      %v714 = vld [vmem:[%s200 + $0x16c] sm:$0xff]
      %v715 = vld [vmem:[%s200 + $0x174] sm:$0xff]
      %v716 = vlaneseq
      %v717 = vshrl.u32 %v716, 7
      %v718 = vsub.s32 4, %v717
      %v719 = vrot.slane %v211, %v718
      %v720 = vmul.f32 %v684, %v719
      %v721 = vmul.f32 %v685, %v719
      %v722 = vmul.f32 %v686, %v719
      %v723 = vmul.f32 %v687, %v719
      %v724 = vmul.f32 %v688, %v719
      %v725 = vmul.f32 %v689, %v719
      %v726 = vmul.f32 %v690, %v719
      %v727 = vmul.f32 %v691, %v719
      %v728 = vmul.f32 %v692, %v719
      %v729 = vmul.f32 %v693, %v719
      %v730 = vmul.f32 %v694, %v719
      %v731 = vmul.f32 %v695, %v719
      %v732 = vmul.f32 %v696, %v719
      %v733 = vmul.f32 %v697, %v719
      %v734 = vmul.f32 %v698, %v719
      %v735 = vmul.f32 %v699, %v719
      %v736 = vmul.f32 %v700, %v719
      %v737 = vmul.f32 %v701, %v719
      %v738 = vmul.f32 %v702, %v719
      %v739 = vmul.f32 %v703, %v719
      %v740 = vmul.f32 %v704, %v719
      %v741 = vmul.f32 %v705, %v719
      %v742 = vmul.f32 %v706, %v719
      %v743 = vmul.f32 %v707, %v719
      %v744 = vmul.f32 %v708, %v719
      %v745 = vmul.f32 %v709, %v719
      %v746 = vmul.f32 %v710, %v719
      %v747 = vmul.f32 %v711, %v719
      %v748 = vmul.f32 %v712, %v719
      %v749 = vmul.f32 %v713, %v719
      %v750 = vmul.f32 %v714, %v719
      %v751 = vmul.f32 %v715, %v719
      %v752 = vadd.f32 %v652, %v720
      %v753 = vadd.f32 %v653, %v721
      %v754 = vadd.f32 %v654, %v722
      %v755 = vadd.f32 %v655, %v723
      %v756 = vadd.f32 %v656, %v724
      %v757 = vadd.f32 %v657, %v725
      %v758 = vadd.f32 %v658, %v726
      %v759 = vadd.f32 %v659, %v727
      %v760 = vadd.f32 %v660, %v728
      %v761 = vadd.f32 %v661, %v729
      %v762 = vadd.f32 %v662, %v730
      %v763 = vadd.f32 %v663, %v731
      %v764 = vadd.f32 %v664, %v732
      %v765 = vadd.f32 %v665, %v733
      %v766 = vadd.f32 %v666, %v734
      %v767 = vadd.f32 %v667, %v735
      %v768 = vadd.f32 %v668, %v736
      %v769 = vadd.f32 %v669, %v737
      %v770 = vadd.f32 %v670, %v738
      %v771 = vadd.f32 %v671, %v739
      %v772 = vadd.f32 %v672, %v740
      %v773 = vadd.f32 %v673, %v741
      %v774 = vadd.f32 %v674, %v742
      %v775 = vadd.f32 %v675, %v743
      %v776 = vadd.f32 %v676, %v744
      %v777 = vadd.f32 %v677, %v745
      %v778 = vadd.f32 %v678, %v746
      %v779 = vadd.f32 %v679, %v747
      %v780 = vadd.f32 %v680, %v748
      %v781 = vadd.f32 %v681, %v749
      %v782 = vadd.f32 %v682, %v750
      %v783 = vadd.f32 %v683, %v751
      %v784 = vld [vmem:[%s200 + $0x5] sm:$0xff]
      %v785 = vld [vmem:[%s200 + $0xd] sm:$0xff]
      %v786 = vld [vmem:[%s200 + $0x1d] sm:$0xff]
      %v787 = vld [vmem:[%s200 + $0x25] sm:$0xff]
      %v788 = vld [vmem:[%s200 + $0x35] sm:$0xff]
      %v789 = vld [vmem:[%s200 + $0x3d] sm:$0xff]
      %v790 = vld [vmem:[%s200 + $0x4d] sm:$0xff]
      %v791 = vld [vmem:[%s200 + $0x55] sm:$0xff]
      %v792 = vld [vmem:[%s200 + $0x65] sm:$0xff]
      %v793 = vld [vmem:[%s200 + $0x6d] sm:$0xff]
      %v794 = vld [vmem:[%s200 + $0x7d] sm:$0xff]
      %v795 = vld [vmem:[%s200 + $0x85] sm:$0xff]
      %v796 = vld [vmem:[%s200 + $0x95] sm:$0xff]
      %v797 = vld [vmem:[%s200 + $0x9d] sm:$0xff]
      %v798 = vld [vmem:[%s200 + $0xad] sm:$0xff]
      %v799 = vld [vmem:[%s200 + $0xb5] sm:$0xff]
      %v800 = vld [vmem:[%s200 + $0xc5] sm:$0xff]
      %v801 = vld [vmem:[%s200 + $0xcd] sm:$0xff]
      %v802 = vld [vmem:[%s200 + $0xdd] sm:$0xff]
      %v803 = vld [vmem:[%s200 + $0xe5] sm:$0xff]
      %v804 = vld [vmem:[%s200 + $0xf5] sm:$0xff]
      %v805 = vld [vmem:[%s200 + $0xfd] sm:$0xff]
      %v806 = vld [vmem:[%s200 + $0x10d] sm:$0xff]
      %v807 = vld [vmem:[%s200 + $0x115] sm:$0xff]
      %v808 = vld [vmem:[%s200 + $0x125] sm:$0xff]
      %v809 = vld [vmem:[%s200 + $0x12d] sm:$0xff]
      %v810 = vld [vmem:[%s200 + $0x13d] sm:$0xff]
      %v811 = vld [vmem:[%s200 + $0x145] sm:$0xff]
      %v812 = vld [vmem:[%s200 + $0x155] sm:$0xff]
      %v813 = vld [vmem:[%s200 + $0x15d] sm:$0xff]
      %v814 = vld [vmem:[%s200 + $0x16d] sm:$0xff]
      %v815 = vld [vmem:[%s200 + $0x175] sm:$0xff]
      %v816 = vlaneseq
      %v817 = vshrl.u32 %v816, 7
      %v818 = vsub.s32 5, %v817
      %v819 = vrot.slane %v211, %v818
      %v820 = vmul.f32 %v784, %v819
      %v821 = vmul.f32 %v785, %v819
      %v822 = vmul.f32 %v786, %v819
      %v823 = vmul.f32 %v787, %v819
      %v824 = vmul.f32 %v788, %v819
      %v825 = vmul.f32 %v789, %v819
      %v826 = vmul.f32 %v790, %v819
      %v827 = vmul.f32 %v791, %v819
      %v828 = vmul.f32 %v792, %v819
      %v829 = vmul.f32 %v793, %v819
      %v830 = vmul.f32 %v794, %v819
      %v831 = vmul.f32 %v795, %v819
      %v832 = vmul.f32 %v796, %v819
      %v833 = vmul.f32 %v797, %v819
      %v834 = vmul.f32 %v798, %v819
      %v835 = vmul.f32 %v799, %v819
      %v836 = vmul.f32 %v800, %v819
      %v837 = vmul.f32 %v801, %v819
      %v838 = vmul.f32 %v802, %v819
      %v839 = vmul.f32 %v803, %v819
      %v840 = vmul.f32 %v804, %v819
      %v841 = vmul.f32 %v805, %v819
      %v842 = vmul.f32 %v806, %v819
      %v843 = vmul.f32 %v807, %v819
      %v844 = vmul.f32 %v808, %v819
      %v845 = vmul.f32 %v809, %v819
      %v846 = vmul.f32 %v810, %v819
      %v847 = vmul.f32 %v811, %v819
      %v848 = vmul.f32 %v812, %v819
      %v849 = vmul.f32 %v813, %v819
      %v850 = vmul.f32 %v814, %v819
      %v851 = vmul.f32 %v815, %v819
      %v852 = vadd.f32 %v752, %v820
      %v853 = vadd.f32 %v753, %v821
      %v854 = vadd.f32 %v754, %v822
      %v855 = vadd.f32 %v755, %v823
      %v856 = vadd.f32 %v756, %v824
      %v857 = vadd.f32 %v757, %v825
      %v858 = vadd.f32 %v758, %v826
      %v859 = vadd.f32 %v759, %v827
      %v860 = vadd.f32 %v760, %v828
      %v861 = vadd.f32 %v761, %v829
      %v862 = vadd.f32 %v762, %v830
      %v863 = vadd.f32 %v763, %v831
      %v864 = vadd.f32 %v764, %v832
      %v865 = vadd.f32 %v765, %v833
      %v866 = vadd.f32 %v766, %v834
      %v867 = vadd.f32 %v767, %v835
      %v868 = vadd.f32 %v768, %v836
      %v869 = vadd.f32 %v769, %v837
      %v870 = vadd.f32 %v770, %v838
      %v871 = vadd.f32 %v771, %v839
      %v872 = vadd.f32 %v772, %v840
      %v873 = vadd.f32 %v773, %v841
      %v874 = vadd.f32 %v774, %v842
      %v875 = vadd.f32 %v775, %v843
      %v876 = vadd.f32 %v776, %v844
      %v877 = vadd.f32 %v777, %v845
      %v878 = vadd.f32 %v778, %v846
      %v879 = vadd.f32 %v779, %v847
      %v880 = vadd.f32 %v780, %v848
      %v881 = vadd.f32 %v781, %v849
      %v882 = vadd.f32 %v782, %v850
      %v883 = vadd.f32 %v783, %v851
      %v884 = vld [vmem:[%s200 + $0x6] sm:$0xff]
      %v885 = vld [vmem:[%s200 + $0xe] sm:$0xff]
      %v886 = vld [vmem:[%s200 + $0x1e] sm:$0xff]
      %v887 = vld [vmem:[%s200 + $0x26] sm:$0xff]
      %v888 = vld [vmem:[%s200 + $0x36] sm:$0xff]
      %v889 = vld [vmem:[%s200 + $0x3e] sm:$0xff]
      %v890 = vld [vmem:[%s200 + $0x4e] sm:$0xff]
      %v891 = vld [vmem:[%s200 + $0x56] sm:$0xff]
      %v892 = vld [vmem:[%s200 + $0x66] sm:$0xff]
      %v893 = vld [vmem:[%s200 + $0x6e] sm:$0xff]
      %v894 = vld [vmem:[%s200 + $0x7e] sm:$0xff]
      %v895 = vld [vmem:[%s200 + $0x86] sm:$0xff]
      %v896 = vld [vmem:[%s200 + $0x96] sm:$0xff]
      %v897 = vld [vmem:[%s200 + $0x9e] sm:$0xff]
      %v898 = vld [vmem:[%s200 + $0xae] sm:$0xff]
      %v899 = vld [vmem:[%s200 + $0xb6] sm:$0xff]
      %v900 = vld [vmem:[%s200 + $0xc6] sm:$0xff]
      %v901 = vld [vmem:[%s200 + $0xce] sm:$0xff]
      %v902 = vld [vmem:[%s200 + $0xde] sm:$0xff]
      %v903 = vld [vmem:[%s200 + $0xe6] sm:$0xff]
      %v904 = vld [vmem:[%s200 + $0xf6] sm:$0xff]
      %v905 = vld [vmem:[%s200 + $0xfe] sm:$0xff]
      %v906 = vld [vmem:[%s200 + $0x10e] sm:$0xff]
      %v907 = vld [vmem:[%s200 + $0x116] sm:$0xff]
      %v908 = vld [vmem:[%s200 + $0x126] sm:$0xff]
      %v909 = vld [vmem:[%s200 + $0x12e] sm:$0xff]
      %v910 = vld [vmem:[%s200 + $0x13e] sm:$0xff]
      %v911 = vld [vmem:[%s200 + $0x146] sm:$0xff]
      %v912 = vld [vmem:[%s200 + $0x156] sm:$0xff]
      %v913 = vld [vmem:[%s200 + $0x15e] sm:$0xff]
      %v914 = vld [vmem:[%s200 + $0x16e] sm:$0xff]
      %v915 = vld [vmem:[%s200 + $0x176] sm:$0xff]
      %v916 = vlaneseq
      %v917 = vshrl.u32 %v916, 7
      %v918 = vsub.s32 6, %v917
      %v919 = vrot.slane %v211, %v918
      %v920 = vmul.f32 %v884, %v919
      %v921 = vmul.f32 %v885, %v919
      %v922 = vmul.f32 %v886, %v919
      %v923 = vmul.f32 %v887, %v919
      %v924 = vmul.f32 %v888, %v919
      %v925 = vmul.f32 %v889, %v919
      %v926 = vmul.f32 %v890, %v919
      %v927 = vmul.f32 %v891, %v919
      %v928 = vmul.f32 %v892, %v919
      %v929 = vmul.f32 %v893, %v919
      %v930 = vmul.f32 %v894, %v919
      %v931 = vmul.f32 %v895, %v919
      %v932 = vmul.f32 %v896, %v919
      %v933 = vmul.f32 %v897, %v919
      %v934 = vmul.f32 %v898, %v919
      %v935 = vmul.f32 %v899, %v919
      %v936 = vmul.f32 %v900, %v919
      %v937 = vmul.f32 %v901, %v919
      %v938 = vmul.f32 %v902, %v919
      %v939 = vmul.f32 %v903, %v919
      %v940 = vmul.f32 %v904, %v919
      %v941 = vmul.f32 %v905, %v919
      %v942 = vmul.f32 %v906, %v919
      %v943 = vmul.f32 %v907, %v919
      %v944 = vmul.f32 %v908, %v919
      %v945 = vmul.f32 %v909, %v919
      %v946 = vmul.f32 %v910, %v919
      %v947 = vmul.f32 %v911, %v919
      %v948 = vmul.f32 %v912, %v919
      %v949 = vmul.f32 %v913, %v919
      %v950 = vmul.f32 %v914, %v919
      %v951 = vmul.f32 %v915, %v919
      %v952 = vadd.f32 %v852, %v920
      %v953 = vadd.f32 %v853, %v921
      %v954 = vadd.f32 %v854, %v922
      %v955 = vadd.f32 %v855, %v923
      %v956 = vadd.f32 %v856, %v924
      %v957 = vadd.f32 %v857, %v925
      %v958 = vadd.f32 %v858, %v926
      %v959 = vadd.f32 %v859, %v927
      %v960 = vadd.f32 %v860, %v928
      %v961 = vadd.f32 %v861, %v929
      %v962 = vadd.f32 %v862, %v930
      %v963 = vadd.f32 %v863, %v931
      %v964 = vadd.f32 %v864, %v932
      %v965 = vadd.f32 %v865, %v933
      %v966 = vadd.f32 %v866, %v934
      %v967 = vadd.f32 %v867, %v935
      %v968 = vadd.f32 %v868, %v936
      %v969 = vadd.f32 %v869, %v937
      %v970 = vadd.f32 %v870, %v938
      %v971 = vadd.f32 %v871, %v939
      %v972 = vadd.f32 %v872, %v940
      %v973 = vadd.f32 %v873, %v941
      %v974 = vadd.f32 %v874, %v942
      %v975 = vadd.f32 %v875, %v943
      %v976 = vadd.f32 %v876, %v944
      %v977 = vadd.f32 %v877, %v945
      %v978 = vadd.f32 %v878, %v946
      %v979 = vadd.f32 %v879, %v947
      %v980 = vadd.f32 %v880, %v948
      %v981 = vadd.f32 %v881, %v949
      %v982 = vadd.f32 %v882, %v950
      %v983 = vadd.f32 %v883, %v951
      %s984 = scalar_lea.vmem %s200, 24
      %v985 = vld [vmem:[%s984] sm:$0xff]
      %v986 = vld [vmem:[%s984 + $0x8] sm:$0xff]
      %v987 = vld [vmem:[%s984 + $0x18] sm:$0xff]
      %v988 = vld [vmem:[%s984 + $0x20] sm:$0xff]
      %v989 = vld [vmem:[%s984 + $0x30] sm:$0xff]
      %v990 = vld [vmem:[%s984 + $0x38] sm:$0xff]
      %v991 = vld [vmem:[%s984 + $0x48] sm:$0xff]
      %v992 = vld [vmem:[%s984 + $0x50] sm:$0xff]
      %v993 = vld [vmem:[%s984 + $0x60] sm:$0xff]
      %v994 = vld [vmem:[%s984 + $0x68] sm:$0xff]
      %v995 = vld [vmem:[%s984 + $0x78] sm:$0xff]
      %v996 = vld [vmem:[%s984 + $0x80] sm:$0xff]
      %v997 = vld [vmem:[%s984 + $0x90] sm:$0xff]
      %v998 = vld [vmem:[%s984 + $0x98] sm:$0xff]
      %v999 = vld [vmem:[%s984 + $0xa8] sm:$0xff]
      %v1000 = vld [vmem:[%s984 + $0xb0] sm:$0xff]
      %v1001 = vld [vmem:[%s984 + $0xc0] sm:$0xff]
      %v1002 = vld [vmem:[%s984 + $0xc8] sm:$0xff]
      %v1003 = vld [vmem:[%s984 + $0xd8] sm:$0xff]
      %v1004 = vld [vmem:[%s984 + $0xe0] sm:$0xff]
      %v1005 = vld [vmem:[%s984 + $0xf0] sm:$0xff]
      %v1006 = vld [vmem:[%s984 + $0xf8] sm:$0xff]
      %v1007 = vld [vmem:[%s984 + $0x108] sm:$0xff]
      %v1008 = vld [vmem:[%s984 + $0x110] sm:$0xff]
      %v1009 = vld [vmem:[%s984 + $0x120] sm:$0xff]
      %v1010 = vld [vmem:[%s984 + $0x128] sm:$0xff]
      %v1011 = vld [vmem:[%s984 + $0x138] sm:$0xff]
      %v1012 = vld [vmem:[%s984 + $0x140] sm:$0xff]
      %v1013 = vld [vmem:[%s984 + $0x150] sm:$0xff]
      %v1014 = vld [vmem:[%s984 + $0x158] sm:$0xff]
      %v1015 = vld [vmem:[%s984 + $0x168] sm:$0xff]
      %v1016 = vld [vmem:[%s984 + $0x170] sm:$0xff]
      %v1017 = vlaneseq
      %v1018 = vshrl.u32 %v1017, 7
      %v1019 = vsub.s32 0, %v1018
      %v1020 = vrot.slane %v212, %v1019
      %v1021 = vmul.f32 %v985, %v1020
      %v1022 = vmul.f32 %v986, %v1020
      %v1023 = vmul.f32 %v987, %v1020
      %v1024 = vmul.f32 %v988, %v1020
      %v1025 = vmul.f32 %v989, %v1020
      %v1026 = vmul.f32 %v990, %v1020
      %v1027 = vmul.f32 %v991, %v1020
      %v1028 = vmul.f32 %v992, %v1020
      %v1029 = vmul.f32 %v993, %v1020
      %v1030 = vmul.f32 %v994, %v1020
      %v1031 = vmul.f32 %v995, %v1020
      %v1032 = vmul.f32 %v996, %v1020
      %v1033 = vmul.f32 %v997, %v1020
      %v1034 = vmul.f32 %v998, %v1020
      %v1035 = vmul.f32 %v999, %v1020
      %v1036 = vmul.f32 %v1000, %v1020
      %v1037 = vmul.f32 %v1001, %v1020
      %v1038 = vmul.f32 %v1002, %v1020
      %v1039 = vmul.f32 %v1003, %v1020
      %v1040 = vmul.f32 %v1004, %v1020
      %v1041 = vmul.f32 %v1005, %v1020
      %v1042 = vmul.f32 %v1006, %v1020
      %v1043 = vmul.f32 %v1007, %v1020
      %v1044 = vmul.f32 %v1008, %v1020
      %v1045 = vmul.f32 %v1009, %v1020
      %v1046 = vmul.f32 %v1010, %v1020
      %v1047 = vmul.f32 %v1011, %v1020
      %v1048 = vmul.f32 %v1012, %v1020
      %v1049 = vmul.f32 %v1013, %v1020
      %v1050 = vmul.f32 %v1014, %v1020
      %v1051 = vmul.f32 %v1015, %v1020
      %v1052 = vmul.f32 %v1016, %v1020
      %v1053 = vadd.f32 %v952, %v1021
      %v1054 = vadd.f32 %v953, %v1022
      %v1055 = vadd.f32 %v954, %v1023
      %v1056 = vadd.f32 %v955, %v1024
      %v1057 = vadd.f32 %v956, %v1025
      %v1058 = vadd.f32 %v957, %v1026
      %v1059 = vadd.f32 %v958, %v1027
      %v1060 = vadd.f32 %v959, %v1028
      %v1061 = vadd.f32 %v960, %v1029
      %v1062 = vadd.f32 %v961, %v1030
      %v1063 = vadd.f32 %v962, %v1031
      %v1064 = vadd.f32 %v963, %v1032
      %v1065 = vadd.f32 %v964, %v1033
      %v1066 = vadd.f32 %v965, %v1034
      %v1067 = vadd.f32 %v966, %v1035
      %v1068 = vadd.f32 %v967, %v1036
      %v1069 = vadd.f32 %v968, %v1037
      %v1070 = vadd.f32 %v969, %v1038
      %v1071 = vadd.f32 %v970, %v1039
      %v1072 = vadd.f32 %v971, %v1040
      %v1073 = vadd.f32 %v972, %v1041
      %v1074 = vadd.f32 %v973, %v1042
      %v1075 = vadd.f32 %v974, %v1043
      %v1076 = vadd.f32 %v975, %v1044
      %v1077 = vadd.f32 %v976, %v1045
      %v1078 = vadd.f32 %v977, %v1046
      %v1079 = vadd.f32 %v978, %v1047
      %v1080 = vadd.f32 %v979, %v1048
      %v1081 = vadd.f32 %v980, %v1049
      %v1082 = vadd.f32 %v981, %v1050
      %v1083 = vadd.f32 %v982, %v1051
      %v1084 = vadd.f32 %v983, %v1052
      %v1085 = vld [vmem:[%s984 + $0x1] sm:$0xff]
      %v1086 = vld [vmem:[%s984 + $0x9] sm:$0xff]
      %v1087 = vld [vmem:[%s984 + $0x19] sm:$0xff]
      %v1088 = vld [vmem:[%s984 + $0x21] sm:$0xff]
      %v1089 = vld [vmem:[%s984 + $0x31] sm:$0xff]
      %v1090 = vld [vmem:[%s984 + $0x39] sm:$0xff]
      %v1091 = vld [vmem:[%s984 + $0x49] sm:$0xff]
      %v1092 = vld [vmem:[%s984 + $0x51] sm:$0xff]
      %v1093 = vld [vmem:[%s984 + $0x61] sm:$0xff]
      %v1094 = vld [vmem:[%s984 + $0x69] sm:$0xff]
      %v1095 = vld [vmem:[%s984 + $0x79] sm:$0xff]
      %v1096 = vld [vmem:[%s984 + $0x81] sm:$0xff]
      %v1097 = vld [vmem:[%s984 + $0x91] sm:$0xff]
      %v1098 = vld [vmem:[%s984 + $0x99] sm:$0xff]
      %v1099 = vld [vmem:[%s984 + $0xa9] sm:$0xff]
      %v1100 = vld [vmem:[%s984 + $0xb1] sm:$0xff]
      %v1101 = vld [vmem:[%s984 + $0xc1] sm:$0xff]
      %v1102 = vld [vmem:[%s984 + $0xc9] sm:$0xff]
      %v1103 = vld [vmem:[%s984 + $0xd9] sm:$0xff]
      %v1104 = vld [vmem:[%s984 + $0xe1] sm:$0xff]
      %v1105 = vld [vmem:[%s984 + $0xf1] sm:$0xff]
      %v1106 = vld [vmem:[%s984 + $0xf9] sm:$0xff]
      %v1107 = vld [vmem:[%s984 + $0x109] sm:$0xff]
      %v1108 = vld [vmem:[%s984 + $0x111] sm:$0xff]
      %v1109 = vld [vmem:[%s984 + $0x121] sm:$0xff]
      %v1110 = vld [vmem:[%s984 + $0x129] sm:$0xff]
      %v1111 = vld [vmem:[%s984 + $0x139] sm:$0xff]
      %v1112 = vld [vmem:[%s984 + $0x141] sm:$0xff]
      %v1113 = vld [vmem:[%s984 + $0x151] sm:$0xff]
      %v1114 = vld [vmem:[%s984 + $0x159] sm:$0xff]
      %v1115 = vld [vmem:[%s984 + $0x169] sm:$0xff]
      %v1116 = vld [vmem:[%s984 + $0x171] sm:$0xff]
      %v1117 = vlaneseq
      %v1118 = vshrl.u32 %v1117, 7
      %v1119 = vsub.s32 1, %v1118
      %v1120 = vrot.slane %v212, %v1119
      %v1121 = vmul.f32 %v1085, %v1120
      %v1122 = vmul.f32 %v1086, %v1120
      %v1123 = vmul.f32 %v1087, %v1120
      %v1124 = vmul.f32 %v1088, %v1120
      %v1125 = vmul.f32 %v1089, %v1120
      %v1126 = vmul.f32 %v1090, %v1120
      %v1127 = vmul.f32 %v1091, %v1120
      %v1128 = vmul.f32 %v1092, %v1120
      %v1129 = vmul.f32 %v1093, %v1120
      %v1130 = vmul.f32 %v1094, %v1120
      %v1131 = vmul.f32 %v1095, %v1120
      %v1132 = vmul.f32 %v1096, %v1120
      %v1133 = vmul.f32 %v1097, %v1120
      %v1134 = vmul.f32 %v1098, %v1120
      %v1135 = vmul.f32 %v1099, %v1120
      %v1136 = vmul.f32 %v1100, %v1120
      %v1137 = vmul.f32 %v1101, %v1120
      %v1138 = vmul.f32 %v1102, %v1120
      %v1139 = vmul.f32 %v1103, %v1120
      %v1140 = vmul.f32 %v1104, %v1120
      %v1141 = vmul.f32 %v1105, %v1120
      %v1142 = vmul.f32 %v1106, %v1120
      %v1143 = vmul.f32 %v1107, %v1120
      %v1144 = vmul.f32 %v1108, %v1120
      %v1145 = vmul.f32 %v1109, %v1120
      %v1146 = vmul.f32 %v1110, %v1120
      %v1147 = vmul.f32 %v1111, %v1120
      %v1148 = vmul.f32 %v1112, %v1120
      %v1149 = vmul.f32 %v1113, %v1120
      %v1150 = vmul.f32 %v1114, %v1120
      %v1151 = vmul.f32 %v1115, %v1120
      %v1152 = vmul.f32 %v1116, %v1120
      %v1153 = vadd.f32 %v1053, %v1121
      %v1154 = vadd.f32 %v1054, %v1122
      %v1155 = vadd.f32 %v1055, %v1123
      %v1156 = vadd.f32 %v1056, %v1124
      %v1157 = vadd.f32 %v1057, %v1125
      %v1158 = vadd.f32 %v1058, %v1126
      %v1159 = vadd.f32 %v1059, %v1127
      %v1160 = vadd.f32 %v1060, %v1128
      %v1161 = vadd.f32 %v1061, %v1129
      %v1162 = vadd.f32 %v1062, %v1130
      %v1163 = vadd.f32 %v1063, %v1131
      %v1164 = vadd.f32 %v1064, %v1132
      %v1165 = vadd.f32 %v1065, %v1133
      %v1166 = vadd.f32 %v1066, %v1134
      %v1167 = vadd.f32 %v1067, %v1135
      %v1168 = vadd.f32 %v1068, %v1136
      %v1169 = vadd.f32 %v1069, %v1137
      %v1170 = vadd.f32 %v1070, %v1138
      %v1171 = vadd.f32 %v1071, %v1139
      %v1172 = vadd.f32 %v1072, %v1140
      %v1173 = vadd.f32 %v1073, %v1141
      %v1174 = vadd.f32 %v1074, %v1142
      %v1175 = vadd.f32 %v1075, %v1143
      %v1176 = vadd.f32 %v1076, %v1144
      %v1177 = vadd.f32 %v1077, %v1145
      %v1178 = vadd.f32 %v1078, %v1146
      %v1179 = vadd.f32 %v1079, %v1147
      %v1180 = vadd.f32 %v1080, %v1148
      %v1181 = vadd.f32 %v1081, %v1149
      %v1182 = vadd.f32 %v1082, %v1150
      %v1183 = vadd.f32 %v1083, %v1151
      %v1184 = vadd.f32 %v1084, %v1152
      %v1185 = vld [vmem:[%s984 + $0x2] sm:$0xff]
      %v1186 = vld [vmem:[%s984 + $0xa] sm:$0xff]
      %v1187 = vld [vmem:[%s984 + $0x1a] sm:$0xff]
      %v1188 = vld [vmem:[%s984 + $0x22] sm:$0xff]
      %v1189 = vld [vmem:[%s984 + $0x32] sm:$0xff]
      %v1190 = vld [vmem:[%s984 + $0x3a] sm:$0xff]
      %v1191 = vld [vmem:[%s984 + $0x4a] sm:$0xff]
      %v1192 = vld [vmem:[%s984 + $0x52] sm:$0xff]
      %v1193 = vld [vmem:[%s984 + $0x62] sm:$0xff]
      %v1194 = vld [vmem:[%s984 + $0x6a] sm:$0xff]
      %v1195 = vld [vmem:[%s984 + $0x7a] sm:$0xff]
      %v1196 = vld [vmem:[%s984 + $0x82] sm:$0xff]
      %v1197 = vld [vmem:[%s984 + $0x92] sm:$0xff]
      %v1198 = vld [vmem:[%s984 + $0x9a] sm:$0xff]
      %v1199 = vld [vmem:[%s984 + $0xaa] sm:$0xff]
      %v1200 = vld [vmem:[%s984 + $0xb2] sm:$0xff]
      %v1201 = vld [vmem:[%s984 + $0xc2] sm:$0xff]
      %v1202 = vld [vmem:[%s984 + $0xca] sm:$0xff]
      %v1203 = vld [vmem:[%s984 + $0xda] sm:$0xff]
      %v1204 = vld [vmem:[%s984 + $0xe2] sm:$0xff]
      %v1205 = vld [vmem:[%s984 + $0xf2] sm:$0xff]
      %v1206 = vld [vmem:[%s984 + $0xfa] sm:$0xff]
      %v1207 = vld [vmem:[%s984 + $0x10a] sm:$0xff]
      %v1208 = vld [vmem:[%s984 + $0x112] sm:$0xff]
      %v1209 = vld [vmem:[%s984 + $0x122] sm:$0xff]
      %v1210 = vld [vmem:[%s984 + $0x12a] sm:$0xff]
      %v1211 = vld [vmem:[%s984 + $0x13a] sm:$0xff]
      %v1212 = vld [vmem:[%s984 + $0x142] sm:$0xff]
      %v1213 = vld [vmem:[%s984 + $0x152] sm:$0xff]
      %v1214 = vld [vmem:[%s984 + $0x15a] sm:$0xff]
      %v1215 = vld [vmem:[%s984 + $0x16a] sm:$0xff]
      %v1216 = vld [vmem:[%s984 + $0x172] sm:$0xff]
      %v1217 = vlaneseq
      %v1218 = vshrl.u32 %v1217, 7
      %v1219 = vsub.s32 2, %v1218
      %v1220 = vrot.slane %v212, %v1219
      %v1221 = vmul.f32 %v1185, %v1220
      %v1222 = vmul.f32 %v1186, %v1220
      %v1223 = vmul.f32 %v1187, %v1220
      %v1224 = vmul.f32 %v1188, %v1220
      %v1225 = vmul.f32 %v1189, %v1220
      %v1226 = vmul.f32 %v1190, %v1220
      %v1227 = vmul.f32 %v1191, %v1220
      %v1228 = vmul.f32 %v1192, %v1220
      %v1229 = vmul.f32 %v1193, %v1220
      %v1230 = vmul.f32 %v1194, %v1220
      %v1231 = vmul.f32 %v1195, %v1220
      %v1232 = vmul.f32 %v1196, %v1220
      %v1233 = vmul.f32 %v1197, %v1220
      %v1234 = vmul.f32 %v1198, %v1220
      %v1235 = vmul.f32 %v1199, %v1220
      %v1236 = vmul.f32 %v1200, %v1220
      %v1237 = vmul.f32 %v1201, %v1220
      %v1238 = vmul.f32 %v1202, %v1220
      %v1239 = vmul.f32 %v1203, %v1220
      %v1240 = vmul.f32 %v1204, %v1220
      %v1241 = vmul.f32 %v1205, %v1220
      %v1242 = vmul.f32 %v1206, %v1220
      %v1243 = vmul.f32 %v1207, %v1220
      %v1244 = vmul.f32 %v1208, %v1220
      %v1245 = vmul.f32 %v1209, %v1220
      %v1246 = vmul.f32 %v1210, %v1220
      %v1247 = vmul.f32 %v1211, %v1220
      %v1248 = vmul.f32 %v1212, %v1220
      %v1249 = vmul.f32 %v1213, %v1220
      %v1250 = vmul.f32 %v1214, %v1220
      %v1251 = vmul.f32 %v1215, %v1220
      %v1252 = vmul.f32 %v1216, %v1220
      %v1253 = vadd.f32 %v1153, %v1221
      %v1254 = vadd.f32 %v1154, %v1222
      %v1255 = vadd.f32 %v1155, %v1223
      %v1256 = vadd.f32 %v1156, %v1224
      %v1257 = vadd.f32 %v1157, %v1225
      %v1258 = vadd.f32 %v1158, %v1226
      %v1259 = vadd.f32 %v1159, %v1227
      %v1260 = vadd.f32 %v1160, %v1228
      %v1261 = vadd.f32 %v1161, %v1229
      %v1262 = vadd.f32 %v1162, %v1230
      %v1263 = vadd.f32 %v1163, %v1231
      %v1264 = vadd.f32 %v1164, %v1232
      %v1265 = vadd.f32 %v1165, %v1233
      %v1266 = vadd.f32 %v1166, %v1234
      %v1267 = vadd.f32 %v1167, %v1235
      %v1268 = vadd.f32 %v1168, %v1236
      %v1269 = vadd.f32 %v1169, %v1237
      %v1270 = vadd.f32 %v1170, %v1238
      %v1271 = vadd.f32 %v1171, %v1239
      %v1272 = vadd.f32 %v1172, %v1240
      %v1273 = vadd.f32 %v1173, %v1241
      %v1274 = vadd.f32 %v1174, %v1242
      %v1275 = vadd.f32 %v1175, %v1243
      %v1276 = vadd.f32 %v1176, %v1244
      %v1277 = vadd.f32 %v1177, %v1245
      %v1278 = vadd.f32 %v1178, %v1246
      %v1279 = vadd.f32 %v1179, %v1247
      %v1280 = vadd.f32 %v1180, %v1248
      %v1281 = vadd.f32 %v1181, %v1249
      %v1282 = vadd.f32 %v1182, %v1250
      %v1283 = vadd.f32 %v1183, %v1251
      %v1284 = vadd.f32 %v1184, %v1252
      %v1285 = vld [vmem:[%s984 + $0x3] sm:$0xff]
      %v1286 = vld [vmem:[%s984 + $0xb] sm:$0xff]
      %v1287 = vld [vmem:[%s984 + $0x1b] sm:$0xff]
      %v1288 = vld [vmem:[%s984 + $0x23] sm:$0xff]
      %v1289 = vld [vmem:[%s984 + $0x33] sm:$0xff]
      %v1290 = vld [vmem:[%s984 + $0x3b] sm:$0xff]
      %v1291 = vld [vmem:[%s984 + $0x4b] sm:$0xff]
      %v1292 = vld [vmem:[%s984 + $0x53] sm:$0xff]
      %v1293 = vld [vmem:[%s984 + $0x63] sm:$0xff]
      %v1294 = vld [vmem:[%s984 + $0x6b] sm:$0xff]
      %v1295 = vld [vmem:[%s984 + $0x7b] sm:$0xff]
      %v1296 = vld [vmem:[%s984 + $0x83] sm:$0xff]
      %v1297 = vld [vmem:[%s984 + $0x93] sm:$0xff]
      %v1298 = vld [vmem:[%s984 + $0x9b] sm:$0xff]
      %v1299 = vld [vmem:[%s984 + $0xab] sm:$0xff]
      %v1300 = vld [vmem:[%s984 + $0xb3] sm:$0xff]
      %v1301 = vld [vmem:[%s984 + $0xc3] sm:$0xff]
      %v1302 = vld [vmem:[%s984 + $0xcb] sm:$0xff]
      %v1303 = vld [vmem:[%s984 + $0xdb] sm:$0xff]
      %v1304 = vld [vmem:[%s984 + $0xe3] sm:$0xff]
      %v1305 = vld [vmem:[%s984 + $0xf3] sm:$0xff]
      %v1306 = vld [vmem:[%s984 + $0xfb] sm:$0xff]
      %v1307 = vld [vmem:[%s984 + $0x10b] sm:$0xff]
      %v1308 = vld [vmem:[%s984 + $0x113] sm:$0xff]
      %v1309 = vld [vmem:[%s984 + $0x123] sm:$0xff]
      %v1310 = vld [vmem:[%s984 + $0x12b] sm:$0xff]
      %v1311 = vld [vmem:[%s984 + $0x13b] sm:$0xff]
      %v1312 = vld [vmem:[%s984 + $0x143] sm:$0xff]
      %v1313 = vld [vmem:[%s984 + $0x153] sm:$0xff]
      %v1314 = vld [vmem:[%s984 + $0x15b] sm:$0xff]
      %v1315 = vld [vmem:[%s984 + $0x16b] sm:$0xff]
      %v1316 = vld [vmem:[%s984 + $0x173] sm:$0xff]
      %v1317 = vlaneseq
      %v1318 = vshrl.u32 %v1317, 7
      %v1319 = vsub.s32 3, %v1318
      %v1320 = vrot.slane %v212, %v1319
      %v1321 = vmul.f32 %v1285, %v1320
      %v1322 = vmul.f32 %v1286, %v1320
      %v1323 = vmul.f32 %v1287, %v1320
      %v1324 = vmul.f32 %v1288, %v1320
      %v1325 = vmul.f32 %v1289, %v1320
      %v1326 = vmul.f32 %v1290, %v1320
      %v1327 = vmul.f32 %v1291, %v1320
      %v1328 = vmul.f32 %v1292, %v1320
      %v1329 = vmul.f32 %v1293, %v1320
      %v1330 = vmul.f32 %v1294, %v1320
      %v1331 = vmul.f32 %v1295, %v1320
      %v1332 = vmul.f32 %v1296, %v1320
      %v1333 = vmul.f32 %v1297, %v1320
      %v1334 = vmul.f32 %v1298, %v1320
      %v1335 = vmul.f32 %v1299, %v1320
      %v1336 = vmul.f32 %v1300, %v1320
      %v1337 = vmul.f32 %v1301, %v1320
      %v1338 = vmul.f32 %v1302, %v1320
      %v1339 = vmul.f32 %v1303, %v1320
      %v1340 = vmul.f32 %v1304, %v1320
      %v1341 = vmul.f32 %v1305, %v1320
      %v1342 = vmul.f32 %v1306, %v1320
      %v1343 = vmul.f32 %v1307, %v1320
      %v1344 = vmul.f32 %v1308, %v1320
      %v1345 = vmul.f32 %v1309, %v1320
      %v1346 = vmul.f32 %v1310, %v1320
      %v1347 = vmul.f32 %v1311, %v1320
      %v1348 = vmul.f32 %v1312, %v1320
      %v1349 = vmul.f32 %v1313, %v1320
      %v1350 = vmul.f32 %v1314, %v1320
      %v1351 = vmul.f32 %v1315, %v1320
      %v1352 = vmul.f32 %v1316, %v1320
      %v1353 = vadd.f32 %v1253, %v1321
      %v1354 = vadd.f32 %v1254, %v1322
      %v1355 = vadd.f32 %v1255, %v1323
      %v1356 = vadd.f32 %v1256, %v1324
      %v1357 = vadd.f32 %v1257, %v1325
      %v1358 = vadd.f32 %v1258, %v1326
      %v1359 = vadd.f32 %v1259, %v1327
      %v1360 = vadd.f32 %v1260, %v1328
      %v1361 = vadd.f32 %v1261, %v1329
      %v1362 = vadd.f32 %v1262, %v1330
      %v1363 = vadd.f32 %v1263, %v1331
      %v1364 = vadd.f32 %v1264, %v1332
      %v1365 = vadd.f32 %v1265, %v1333
      %v1366 = vadd.f32 %v1266, %v1334
      %v1367 = vadd.f32 %v1267, %v1335
      %v1368 = vadd.f32 %v1268, %v1336
      %v1369 = vadd.f32 %v1269, %v1337
      %v1370 = vadd.f32 %v1270, %v1338
      %v1371 = vadd.f32 %v1271, %v1339
      %v1372 = vadd.f32 %v1272, %v1340
      %v1373 = vadd.f32 %v1273, %v1341
      %v1374 = vadd.f32 %v1274, %v1342
      %v1375 = vadd.f32 %v1275, %v1343
      %v1376 = vadd.f32 %v1276, %v1344
      %v1377 = vadd.f32 %v1277, %v1345
      %v1378 = vadd.f32 %v1278, %v1346
      %v1379 = vadd.f32 %v1279, %v1347
      %v1380 = vadd.f32 %v1280, %v1348
      %v1381 = vadd.f32 %v1281, %v1349
      %v1382 = vadd.f32 %v1282, %v1350
      %v1383 = vadd.f32 %v1283, %v1351
      %v1384 = vadd.f32 %v1284, %v1352
      %v1385 = vld [vmem:[%s984 + $0x4] sm:$0xff]
      %v1386 = vld [vmem:[%s984 + $0xc] sm:$0xff]
      %v1387 = vld [vmem:[%s984 + $0x1c] sm:$0xff]
      %v1388 = vld [vmem:[%s984 + $0x24] sm:$0xff]
      %v1389 = vld [vmem:[%s984 + $0x34] sm:$0xff]
      %v1390 = vld [vmem:[%s984 + $0x3c] sm:$0xff]
      %v1391 = vld [vmem:[%s984 + $0x4c] sm:$0xff]
      %v1392 = vld [vmem:[%s984 + $0x54] sm:$0xff]
      %v1393 = vld [vmem:[%s984 + $0x64] sm:$0xff]
      %v1394 = vld [vmem:[%s984 + $0x6c] sm:$0xff]
      %v1395 = vld [vmem:[%s984 + $0x7c] sm:$0xff]
      %v1396 = vld [vmem:[%s984 + $0x84] sm:$0xff]
      %v1397 = vld [vmem:[%s984 + $0x94] sm:$0xff]
      %v1398 = vld [vmem:[%s984 + $0x9c] sm:$0xff]
      %v1399 = vld [vmem:[%s984 + $0xac] sm:$0xff]
      %v1400 = vld [vmem:[%s984 + $0xb4] sm:$0xff]
      %v1401 = vld [vmem:[%s984 + $0xc4] sm:$0xff]
      %v1402 = vld [vmem:[%s984 + $0xcc] sm:$0xff]
      %v1403 = vld [vmem:[%s984 + $0xdc] sm:$0xff]
      %v1404 = vld [vmem:[%s984 + $0xe4] sm:$0xff]
      %v1405 = vld [vmem:[%s984 + $0xf4] sm:$0xff]
      %v1406 = vld [vmem:[%s984 + $0xfc] sm:$0xff]
      %v1407 = vld [vmem:[%s984 + $0x10c] sm:$0xff]
      %v1408 = vld [vmem:[%s984 + $0x114] sm:$0xff]
      %v1409 = vld [vmem:[%s984 + $0x124] sm:$0xff]
      %v1410 = vld [vmem:[%s984 + $0x12c] sm:$0xff]
      %v1411 = vld [vmem:[%s984 + $0x13c] sm:$0xff]
      %v1412 = vld [vmem:[%s984 + $0x144] sm:$0xff]
      %v1413 = vld [vmem:[%s984 + $0x154] sm:$0xff]
      %v1414 = vld [vmem:[%s984 + $0x15c] sm:$0xff]
      %v1415 = vld [vmem:[%s984 + $0x16c] sm:$0xff]
      %v1416 = vld [vmem:[%s984 + $0x174] sm:$0xff]
      %v1417 = vlaneseq
      %v1418 = vshrl.u32 %v1417, 7
      %v1419 = vsub.s32 4, %v1418
      %v1420 = vrot.slane %v212, %v1419
      %v1421 = vmul.f32 %v1385, %v1420
      %v1422 = vmul.f32 %v1386, %v1420
      %v1423 = vmul.f32 %v1387, %v1420
      %v1424 = vmul.f32 %v1388, %v1420
      %v1425 = vmul.f32 %v1389, %v1420
      %v1426 = vmul.f32 %v1390, %v1420
      %v1427 = vmul.f32 %v1391, %v1420
      %v1428 = vmul.f32 %v1392, %v1420
      %v1429 = vmul.f32 %v1393, %v1420
      %v1430 = vmul.f32 %v1394, %v1420
      %v1431 = vmul.f32 %v1395, %v1420
      %v1432 = vmul.f32 %v1396, %v1420
      %v1433 = vmul.f32 %v1397, %v1420
      %v1434 = vmul.f32 %v1398, %v1420
      %v1435 = vmul.f32 %v1399, %v1420
      %v1436 = vmul.f32 %v1400, %v1420
      %v1437 = vmul.f32 %v1401, %v1420
      %v1438 = vmul.f32 %v1402, %v1420
      %v1439 = vmul.f32 %v1403, %v1420
      %v1440 = vmul.f32 %v1404, %v1420
      %v1441 = vmul.f32 %v1405, %v1420
      %v1442 = vmul.f32 %v1406, %v1420
      %v1443 = vmul.f32 %v1407, %v1420
      %v1444 = vmul.f32 %v1408, %v1420
      %v1445 = vmul.f32 %v1409, %v1420
      %v1446 = vmul.f32 %v1410, %v1420
      %v1447 = vmul.f32 %v1411, %v1420
      %v1448 = vmul.f32 %v1412, %v1420
      %v1449 = vmul.f32 %v1413, %v1420
      %v1450 = vmul.f32 %v1414, %v1420
      %v1451 = vmul.f32 %v1415, %v1420
      %v1452 = vmul.f32 %v1416, %v1420
      %v1453 = vadd.f32 %v1353, %v1421
      %v1454 = vadd.f32 %v1354, %v1422
      %v1455 = vadd.f32 %v1355, %v1423
      %v1456 = vadd.f32 %v1356, %v1424
      %v1457 = vadd.f32 %v1357, %v1425
      %v1458 = vadd.f32 %v1358, %v1426
      %v1459 = vadd.f32 %v1359, %v1427
      %v1460 = vadd.f32 %v1360, %v1428
      %v1461 = vadd.f32 %v1361, %v1429
      %v1462 = vadd.f32 %v1362, %v1430
      %v1463 = vadd.f32 %v1363, %v1431
      %v1464 = vadd.f32 %v1364, %v1432
      %v1465 = vadd.f32 %v1365, %v1433
      %v1466 = vadd.f32 %v1366, %v1434
      %v1467 = vadd.f32 %v1367, %v1435
      %v1468 = vadd.f32 %v1368, %v1436
      %v1469 = vadd.f32 %v1369, %v1437
      %v1470 = vadd.f32 %v1370, %v1438
      %v1471 = vadd.f32 %v1371, %v1439
      %v1472 = vadd.f32 %v1372, %v1440
      %v1473 = vadd.f32 %v1373, %v1441
      %v1474 = vadd.f32 %v1374, %v1442
      %v1475 = vadd.f32 %v1375, %v1443
      %v1476 = vadd.f32 %v1376, %v1444
      %v1477 = vadd.f32 %v1377, %v1445
      %v1478 = vadd.f32 %v1378, %v1446
      %v1479 = vadd.f32 %v1379, %v1447
      %v1480 = vadd.f32 %v1380, %v1448
      %v1481 = vadd.f32 %v1381, %v1449
      %v1482 = vadd.f32 %v1382, %v1450
      %v1483 = vadd.f32 %v1383, %v1451
      %v1484 = vadd.f32 %v1384, %v1452
      %v1485 = vld [vmem:[%s984 + $0x5] sm:$0xff]
      %v1486 = vld [vmem:[%s984 + $0xd] sm:$0xff]
      %v1487 = vld [vmem:[%s984 + $0x1d] sm:$0xff]
      %v1488 = vld [vmem:[%s984 + $0x25] sm:$0xff]
      %v1489 = vld [vmem:[%s984 + $0x35] sm:$0xff]
      %v1490 = vld [vmem:[%s984 + $0x3d] sm:$0xff]
      %v1491 = vld [vmem:[%s984 + $0x4d] sm:$0xff]
      %v1492 = vld [vmem:[%s984 + $0x55] sm:$0xff]
      %v1493 = vld [vmem:[%s984 + $0x65] sm:$0xff]
      %v1494 = vld [vmem:[%s984 + $0x6d] sm:$0xff]
      %v1495 = vld [vmem:[%s984 + $0x7d] sm:$0xff]
      %v1496 = vld [vmem:[%s984 + $0x85] sm:$0xff]
      %v1497 = vld [vmem:[%s984 + $0x95] sm:$0xff]
      %v1498 = vld [vmem:[%s984 + $0x9d] sm:$0xff]
      %v1499 = vld [vmem:[%s984 + $0xad] sm:$0xff]
      %v1500 = vld [vmem:[%s984 + $0xb5] sm:$0xff]
      %v1501 = vld [vmem:[%s984 + $0xc5] sm:$0xff]
      %v1502 = vld [vmem:[%s984 + $0xcd] sm:$0xff]
      %v1503 = vld [vmem:[%s984 + $0xdd] sm:$0xff]
      %v1504 = vld [vmem:[%s984 + $0xe5] sm:$0xff]
      %v1505 = vld [vmem:[%s984 + $0xf5] sm:$0xff]
      %v1506 = vld [vmem:[%s984 + $0xfd] sm:$0xff]
      %v1507 = vld [vmem:[%s984 + $0x10d] sm:$0xff]
      %v1508 = vld [vmem:[%s984 + $0x115] sm:$0xff]
      %v1509 = vld [vmem:[%s984 + $0x125] sm:$0xff]
      %v1510 = vld [vmem:[%s984 + $0x12d] sm:$0xff]
      %v1511 = vld [vmem:[%s984 + $0x13d] sm:$0xff]
      %v1512 = vld [vmem:[%s984 + $0x145] sm:$0xff]
      %v1513 = vld [vmem:[%s984 + $0x155] sm:$0xff]
      %v1514 = vld [vmem:[%s984 + $0x15d] sm:$0xff]
      %v1515 = vld [vmem:[%s984 + $0x16d] sm:$0xff]
      %v1516 = vld [vmem:[%s984 + $0x175] sm:$0xff]
      %v1517 = vlaneseq
      %v1518 = vshrl.u32 %v1517, 7
      %v1519 = vsub.s32 5, %v1518
      %v1520 = vrot.slane %v212, %v1519
      %v1521 = vmul.f32 %v1485, %v1520
      %v1522 = vmul.f32 %v1486, %v1520
      %v1523 = vmul.f32 %v1487, %v1520
      %v1524 = vmul.f32 %v1488, %v1520
      %v1525 = vmul.f32 %v1489, %v1520
      %v1526 = vmul.f32 %v1490, %v1520
      %v1527 = vmul.f32 %v1491, %v1520
      %v1528 = vmul.f32 %v1492, %v1520
      %v1529 = vmul.f32 %v1493, %v1520
      %v1530 = vmul.f32 %v1494, %v1520
      %v1531 = vmul.f32 %v1495, %v1520
      %v1532 = vmul.f32 %v1496, %v1520
      %v1533 = vmul.f32 %v1497, %v1520
      %v1534 = vmul.f32 %v1498, %v1520
      %v1535 = vmul.f32 %v1499, %v1520
      %v1536 = vmul.f32 %v1500, %v1520
      %v1537 = vmul.f32 %v1501, %v1520
      %v1538 = vmul.f32 %v1502, %v1520
      %v1539 = vmul.f32 %v1503, %v1520
      %v1540 = vmul.f32 %v1504, %v1520
      %v1541 = vmul.f32 %v1505, %v1520
      %v1542 = vmul.f32 %v1506, %v1520
      %v1543 = vmul.f32 %v1507, %v1520
      %v1544 = vmul.f32 %v1508, %v1520
      %v1545 = vmul.f32 %v1509, %v1520
      %v1546 = vmul.f32 %v1510, %v1520
      %v1547 = vmul.f32 %v1511, %v1520
      %v1548 = vmul.f32 %v1512, %v1520
      %v1549 = vmul.f32 %v1513, %v1520
      %v1550 = vmul.f32 %v1514, %v1520
      %v1551 = vmul.f32 %v1515, %v1520
      %v1552 = vmul.f32 %v1516, %v1520
      %v1553 = vadd.f32 %v1453, %v1521
      %v1554 = vadd.f32 %v1454, %v1522
      %v1555 = vadd.f32 %v1455, %v1523
      %v1556 = vadd.f32 %v1456, %v1524
      %v1557 = vadd.f32 %v1457, %v1525
      %v1558 = vadd.f32 %v1458, %v1526
      %v1559 = vadd.f32 %v1459, %v1527
      %v1560 = vadd.f32 %v1460, %v1528
      %v1561 = vadd.f32 %v1461, %v1529
      %v1562 = vadd.f32 %v1462, %v1530
      %v1563 = vadd.f32 %v1463, %v1531
      %v1564 = vadd.f32 %v1464, %v1532
      %v1565 = vadd.f32 %v1465, %v1533
      %v1566 = vadd.f32 %v1466, %v1534
      %v1567 = vadd.f32 %v1467, %v1535
      %v1568 = vadd.f32 %v1468, %v1536
      %v1569 = vadd.f32 %v1469, %v1537
      %v1570 = vadd.f32 %v1470, %v1538
      %v1571 = vadd.f32 %v1471, %v1539
      %v1572 = vadd.f32 %v1472, %v1540
      %v1573 = vadd.f32 %v1473, %v1541
      %v1574 = vadd.f32 %v1474, %v1542
      %v1575 = vadd.f32 %v1475, %v1543
      %v1576 = vadd.f32 %v1476, %v1544
      %v1577 = vadd.f32 %v1477, %v1545
      %v1578 = vadd.f32 %v1478, %v1546
      %v1579 = vadd.f32 %v1479, %v1547
      %v1580 = vadd.f32 %v1480, %v1548
      %v1581 = vadd.f32 %v1481, %v1549
      %v1582 = vadd.f32 %v1482, %v1550
      %v1583 = vadd.f32 %v1483, %v1551
      %v1584 = vadd.f32 %v1484, %v1552
      %v1585 = vld [vmem:[%s984 + $0x6] sm:$0xff]
      %v1586 = vld [vmem:[%s984 + $0xe] sm:$0xff]
      %v1587 = vld [vmem:[%s984 + $0x1e] sm:$0xff]
      %v1588 = vld [vmem:[%s984 + $0x26] sm:$0xff]
      %v1589 = vld [vmem:[%s984 + $0x36] sm:$0xff]
      %v1590 = vld [vmem:[%s984 + $0x3e] sm:$0xff]
      %v1591 = vld [vmem:[%s984 + $0x4e] sm:$0xff]
      %v1592 = vld [vmem:[%s984 + $0x56] sm:$0xff]
      %v1593 = vld [vmem:[%s984 + $0x66] sm:$0xff]
      %v1594 = vld [vmem:[%s984 + $0x6e] sm:$0xff]
      %v1595 = vld [vmem:[%s984 + $0x7e] sm:$0xff]
      %v1596 = vld [vmem:[%s984 + $0x86] sm:$0xff]
      %v1597 = vld [vmem:[%s984 + $0x96] sm:$0xff]
      %v1598 = vld [vmem:[%s984 + $0x9e] sm:$0xff]
      %v1599 = vld [vmem:[%s984 + $0xae] sm:$0xff]
      %v1600 = vld [vmem:[%s984 + $0xb6] sm:$0xff]
      %v1601 = vld [vmem:[%s984 + $0xc6] sm:$0xff]
      %v1602 = vld [vmem:[%s984 + $0xce] sm:$0xff]
      %v1603 = vld [vmem:[%s984 + $0xde] sm:$0xff]
      %v1604 = vld [vmem:[%s984 + $0xe6] sm:$0xff]
      %v1605 = vld [vmem:[%s984 + $0xf6] sm:$0xff]
      %v1606 = vld [vmem:[%s984 + $0xfe] sm:$0xff]
      %v1607 = vld [vmem:[%s984 + $0x10e] sm:$0xff]
      %v1608 = vld [vmem:[%s984 + $0x116] sm:$0xff]
      %v1609 = vld [vmem:[%s984 + $0x126] sm:$0xff]
      %v1610 = vld [vmem:[%s984 + $0x12e] sm:$0xff]
      %v1611 = vld [vmem:[%s984 + $0x13e] sm:$0xff]
      %v1612 = vld [vmem:[%s984 + $0x146] sm:$0xff]
      %v1613 = vld [vmem:[%s984 + $0x156] sm:$0xff]
      %v1614 = vld [vmem:[%s984 + $0x15e] sm:$0xff]
      %v1615 = vld [vmem:[%s984 + $0x16e] sm:$0xff]
      %v1616 = vld [vmem:[%s984 + $0x176] sm:$0xff]
      %v1617 = vlaneseq
      %v1618 = vshrl.u32 %v1617, 7
      %v1619 = vsub.s32 6, %v1618
      %v1620 = vrot.slane %v212, %v1619
      %v1621 = vmul.f32 %v1585, %v1620
      %v1622 = vmul.f32 %v1586, %v1620
      %v1623 = vmul.f32 %v1587, %v1620
      %v1624 = vmul.f32 %v1588, %v1620
      %v1625 = vmul.f32 %v1589, %v1620
      %v1626 = vmul.f32 %v1590, %v1620
      %v1627 = vmul.f32 %v1591, %v1620
      %v1628 = vmul.f32 %v1592, %v1620
      %v1629 = vmul.f32 %v1593, %v1620
      %v1630 = vmul.f32 %v1594, %v1620
      %v1631 = vmul.f32 %v1595, %v1620
      %v1632 = vmul.f32 %v1596, %v1620
      %v1633 = vmul.f32 %v1597, %v1620
      %v1634 = vmul.f32 %v1598, %v1620
      %v1635 = vmul.f32 %v1599, %v1620
      %v1636 = vmul.f32 %v1600, %v1620
      %v1637 = vmul.f32 %v1601, %v1620
      %v1638 = vmul.f32 %v1602, %v1620
      %v1639 = vmul.f32 %v1603, %v1620
      %v1640 = vmul.f32 %v1604, %v1620
      %v1641 = vmul.f32 %v1605, %v1620
      %v1642 = vmul.f32 %v1606, %v1620
      %v1643 = vmul.f32 %v1607, %v1620
      %v1644 = vmul.f32 %v1608, %v1620
      %v1645 = vmul.f32 %v1609, %v1620
      %v1646 = vmul.f32 %v1610, %v1620
      %v1647 = vmul.f32 %v1611, %v1620
      %v1648 = vmul.f32 %v1612, %v1620
      %v1649 = vmul.f32 %v1613, %v1620
      %v1650 = vmul.f32 %v1614, %v1620
      %v1651 = vmul.f32 %v1615, %v1620
      %v1652 = vmul.f32 %v1616, %v1620
      %v1653 = vadd.f32 %v1553, %v1621
      %v1654 = vadd.f32 %v1554, %v1622
      %v1655 = vadd.f32 %v1555, %v1623
      %v1656 = vadd.f32 %v1556, %v1624
      %v1657 = vadd.f32 %v1557, %v1625
      %v1658 = vadd.f32 %v1558, %v1626
      %v1659 = vadd.f32 %v1559, %v1627
      %v1660 = vadd.f32 %v1560, %v1628
      %v1661 = vadd.f32 %v1561, %v1629
      %v1662 = vadd.f32 %v1562, %v1630
      %v1663 = vadd.f32 %v1563, %v1631
      %v1664 = vadd.f32 %v1564, %v1632
      %v1665 = vadd.f32 %v1565, %v1633
      %v1666 = vadd.f32 %v1566, %v1634
      %v1667 = vadd.f32 %v1567, %v1635
      %v1668 = vadd.f32 %v1568, %v1636
      %v1669 = vadd.f32 %v1569, %v1637
      %v1670 = vadd.f32 %v1570, %v1638
      %v1671 = vadd.f32 %v1571, %v1639
      %v1672 = vadd.f32 %v1572, %v1640
      %v1673 = vadd.f32 %v1573, %v1641
      %v1674 = vadd.f32 %v1574, %v1642
      %v1675 = vadd.f32 %v1575, %v1643
      %v1676 = vadd.f32 %v1576, %v1644
      %v1677 = vadd.f32 %v1577, %v1645
      %v1678 = vadd.f32 %v1578, %v1646
      %v1679 = vadd.f32 %v1579, %v1647
      %v1680 = vadd.f32 %v1580, %v1648
      %v1681 = vadd.f32 %v1581, %v1649
      %v1682 = vadd.f32 %v1582, %v1650
      %v1683 = vadd.f32 %v1583, %v1651
      %v1684 = vadd.f32 %v1584, %v1652
      %s1685 = scalar_lea.vmem %s200, 48
      %v1686 = vld [vmem:[%s1685] sm:$0xff]
      %v1687 = vld [vmem:[%s1685 + $0x8] sm:$0xff]
      %v1688 = vld [vmem:[%s1685 + $0x18] sm:$0xff]
      %v1689 = vld [vmem:[%s1685 + $0x20] sm:$0xff]
      %v1690 = vld [vmem:[%s1685 + $0x30] sm:$0xff]
      %v1691 = vld [vmem:[%s1685 + $0x38] sm:$0xff]
      %v1692 = vld [vmem:[%s1685 + $0x48] sm:$0xff]
      %v1693 = vld [vmem:[%s1685 + $0x50] sm:$0xff]
      %v1694 = vld [vmem:[%s1685 + $0x60] sm:$0xff]
      %v1695 = vld [vmem:[%s1685 + $0x68] sm:$0xff]
      %v1696 = vld [vmem:[%s1685 + $0x78] sm:$0xff]
      %v1697 = vld [vmem:[%s1685 + $0x80] sm:$0xff]
      %v1698 = vld [vmem:[%s1685 + $0x90] sm:$0xff]
      %v1699 = vld [vmem:[%s1685 + $0x98] sm:$0xff]
      %v1700 = vld [vmem:[%s1685 + $0xa8] sm:$0xff]
      %v1701 = vld [vmem:[%s1685 + $0xb0] sm:$0xff]
      %v1702 = vld [vmem:[%s1685 + $0xc0] sm:$0xff]
      %v1703 = vld [vmem:[%s1685 + $0xc8] sm:$0xff]
      %v1704 = vld [vmem:[%s1685 + $0xd8] sm:$0xff]
      %v1705 = vld [vmem:[%s1685 + $0xe0] sm:$0xff]
      %v1706 = vld [vmem:[%s1685 + $0xf0] sm:$0xff]
      %v1707 = vld [vmem:[%s1685 + $0xf8] sm:$0xff]
      %v1708 = vld [vmem:[%s1685 + $0x108] sm:$0xff]
      %v1709 = vld [vmem:[%s1685 + $0x110] sm:$0xff]
      %v1710 = vld [vmem:[%s1685 + $0x120] sm:$0xff]
      %v1711 = vld [vmem:[%s1685 + $0x128] sm:$0xff]
      %v1712 = vld [vmem:[%s1685 + $0x138] sm:$0xff]
      %v1713 = vld [vmem:[%s1685 + $0x140] sm:$0xff]
      %v1714 = vld [vmem:[%s1685 + $0x150] sm:$0xff]
      %v1715 = vld [vmem:[%s1685 + $0x158] sm:$0xff]
      %v1716 = vld [vmem:[%s1685 + $0x168] sm:$0xff]
      %v1717 = vld [vmem:[%s1685 + $0x170] sm:$0xff]
      %v1718 = vlaneseq
      %v1719 = vshrl.u32 %v1718, 7
      %v1720 = vsub.s32 0, %v1719
      %v1721 = vrot.slane %v213, %v1720
      %v1722 = vmul.f32 %v1686, %v1721
      %v1723 = vmul.f32 %v1687, %v1721
      %v1724 = vmul.f32 %v1688, %v1721
      %v1725 = vmul.f32 %v1689, %v1721
      %v1726 = vmul.f32 %v1690, %v1721
      %v1727 = vmul.f32 %v1691, %v1721
      %v1728 = vmul.f32 %v1692, %v1721
      %v1729 = vmul.f32 %v1693, %v1721
      %v1730 = vmul.f32 %v1694, %v1721
      %v1731 = vmul.f32 %v1695, %v1721
      %v1732 = vmul.f32 %v1696, %v1721
      %v1733 = vmul.f32 %v1697, %v1721
      %v1734 = vmul.f32 %v1698, %v1721
      %v1735 = vmul.f32 %v1699, %v1721
      %v1736 = vmul.f32 %v1700, %v1721
      %v1737 = vmul.f32 %v1701, %v1721
      %v1738 = vmul.f32 %v1702, %v1721
      %v1739 = vmul.f32 %v1703, %v1721
      %v1740 = vmul.f32 %v1704, %v1721
      %v1741 = vmul.f32 %v1705, %v1721
      %v1742 = vmul.f32 %v1706, %v1721
      %v1743 = vmul.f32 %v1707, %v1721
      %v1744 = vmul.f32 %v1708, %v1721
      %v1745 = vmul.f32 %v1709, %v1721
      %v1746 = vmul.f32 %v1710, %v1721
      %v1747 = vmul.f32 %v1711, %v1721
      %v1748 = vmul.f32 %v1712, %v1721
      %v1749 = vmul.f32 %v1713, %v1721
      %v1750 = vmul.f32 %v1714, %v1721
      %v1751 = vmul.f32 %v1715, %v1721
      %v1752 = vmul.f32 %v1716, %v1721
      %v1753 = vmul.f32 %v1717, %v1721
      %v1754 = vadd.f32 %v1653, %v1722
      %v1755 = vadd.f32 %v1654, %v1723
      %v1756 = vadd.f32 %v1655, %v1724
      %v1757 = vadd.f32 %v1656, %v1725
      %v1758 = vadd.f32 %v1657, %v1726
      %v1759 = vadd.f32 %v1658, %v1727
      %v1760 = vadd.f32 %v1659, %v1728
      %v1761 = vadd.f32 %v1660, %v1729
      %v1762 = vadd.f32 %v1661, %v1730
      %v1763 = vadd.f32 %v1662, %v1731
      %v1764 = vadd.f32 %v1663, %v1732
      %v1765 = vadd.f32 %v1664, %v1733
      %v1766 = vadd.f32 %v1665, %v1734
      %v1767 = vadd.f32 %v1666, %v1735
      %v1768 = vadd.f32 %v1667, %v1736
      %v1769 = vadd.f32 %v1668, %v1737
      %v1770 = vadd.f32 %v1669, %v1738
      %v1771 = vadd.f32 %v1670, %v1739
      %v1772 = vadd.f32 %v1671, %v1740
      %v1773 = vadd.f32 %v1672, %v1741
      %v1774 = vadd.f32 %v1673, %v1742
      %v1775 = vadd.f32 %v1674, %v1743
      %v1776 = vadd.f32 %v1675, %v1744
      %v1777 = vadd.f32 %v1676, %v1745
      %v1778 = vadd.f32 %v1677, %v1746
      %v1779 = vadd.f32 %v1678, %v1747
      %v1780 = vadd.f32 %v1679, %v1748
      %v1781 = vadd.f32 %v1680, %v1749
      %v1782 = vadd.f32 %v1681, %v1750
      %v1783 = vadd.f32 %v1682, %v1751
      %v1784 = vadd.f32 %v1683, %v1752
      %v1785 = vadd.f32 %v1684, %v1753
      %v1786 = vld [vmem:[%s1685 + $0x1] sm:$0xff]
      %v1787 = vld [vmem:[%s1685 + $0x9] sm:$0xff]
      %v1788 = vld [vmem:[%s1685 + $0x19] sm:$0xff]
      %v1789 = vld [vmem:[%s1685 + $0x21] sm:$0xff]
      %v1790 = vld [vmem:[%s1685 + $0x31] sm:$0xff]
      %v1791 = vld [vmem:[%s1685 + $0x39] sm:$0xff]
      %v1792 = vld [vmem:[%s1685 + $0x49] sm:$0xff]
      %v1793 = vld [vmem:[%s1685 + $0x51] sm:$0xff]
      %v1794 = vld [vmem:[%s1685 + $0x61] sm:$0xff]
      %v1795 = vld [vmem:[%s1685 + $0x69] sm:$0xff]
      %v1796 = vld [vmem:[%s1685 + $0x79] sm:$0xff]
      %v1797 = vld [vmem:[%s1685 + $0x81] sm:$0xff]
      %v1798 = vld [vmem:[%s1685 + $0x91] sm:$0xff]
      %v1799 = vld [vmem:[%s1685 + $0x99] sm:$0xff]
      %v1800 = vld [vmem:[%s1685 + $0xa9] sm:$0xff]
      %v1801 = vld [vmem:[%s1685 + $0xb1] sm:$0xff]
      %v1802 = vld [vmem:[%s1685 + $0xc1] sm:$0xff]
      %v1803 = vld [vmem:[%s1685 + $0xc9] sm:$0xff]
      %v1804 = vld [vmem:[%s1685 + $0xd9] sm:$0xff]
      %v1805 = vld [vmem:[%s1685 + $0xe1] sm:$0xff]
      %v1806 = vld [vmem:[%s1685 + $0xf1] sm:$0xff]
      %v1807 = vld [vmem:[%s1685 + $0xf9] sm:$0xff]
      %v1808 = vld [vmem:[%s1685 + $0x109] sm:$0xff]
      %v1809 = vld [vmem:[%s1685 + $0x111] sm:$0xff]
      %v1810 = vld [vmem:[%s1685 + $0x121] sm:$0xff]
      %v1811 = vld [vmem:[%s1685 + $0x129] sm:$0xff]
      %v1812 = vld [vmem:[%s1685 + $0x139] sm:$0xff]
      %v1813 = vld [vmem:[%s1685 + $0x141] sm:$0xff]
      %v1814 = vld [vmem:[%s1685 + $0x151] sm:$0xff]
      %v1815 = vld [vmem:[%s1685 + $0x159] sm:$0xff]
      %v1816 = vld [vmem:[%s1685 + $0x169] sm:$0xff]
      %v1817 = vld [vmem:[%s1685 + $0x171] sm:$0xff]
      %v1818 = vlaneseq
      %v1819 = vshrl.u32 %v1818, 7
      %v1820 = vsub.s32 1, %v1819
      %v1821 = vrot.slane %v213, %v1820
      %v1822 = vmul.f32 %v1786, %v1821
      %v1823 = vmul.f32 %v1787, %v1821
      %v1824 = vmul.f32 %v1788, %v1821
      %v1825 = vmul.f32 %v1789, %v1821
      %v1826 = vmul.f32 %v1790, %v1821
      %v1827 = vmul.f32 %v1791, %v1821
      %v1828 = vmul.f32 %v1792, %v1821
      %v1829 = vmul.f32 %v1793, %v1821
      %v1830 = vmul.f32 %v1794, %v1821
      %v1831 = vmul.f32 %v1795, %v1821
      %v1832 = vmul.f32 %v1796, %v1821
      %v1833 = vmul.f32 %v1797, %v1821
      %v1834 = vmul.f32 %v1798, %v1821
      %v1835 = vmul.f32 %v1799, %v1821
      %v1836 = vmul.f32 %v1800, %v1821
      %v1837 = vmul.f32 %v1801, %v1821
      %v1838 = vmul.f32 %v1802, %v1821
      %v1839 = vmul.f32 %v1803, %v1821
      %v1840 = vmul.f32 %v1804, %v1821
      %v1841 = vmul.f32 %v1805, %v1821
      %v1842 = vmul.f32 %v1806, %v1821
      %v1843 = vmul.f32 %v1807, %v1821
      %v1844 = vmul.f32 %v1808, %v1821
      %v1845 = vmul.f32 %v1809, %v1821
      %v1846 = vmul.f32 %v1810, %v1821
      %v1847 = vmul.f32 %v1811, %v1821
      %v1848 = vmul.f32 %v1812, %v1821
      %v1849 = vmul.f32 %v1813, %v1821
      %v1850 = vmul.f32 %v1814, %v1821
      %v1851 = vmul.f32 %v1815, %v1821
      %v1852 = vmul.f32 %v1816, %v1821
      %v1853 = vmul.f32 %v1817, %v1821
      %v1854 = vadd.f32 %v1754, %v1822
      %v1855 = vadd.f32 %v1755, %v1823
      %v1856 = vadd.f32 %v1756, %v1824
      %v1857 = vadd.f32 %v1757, %v1825
      %v1858 = vadd.f32 %v1758, %v1826
      %v1859 = vadd.f32 %v1759, %v1827
      %v1860 = vadd.f32 %v1760, %v1828
      %v1861 = vadd.f32 %v1761, %v1829
      %v1862 = vadd.f32 %v1762, %v1830
      %v1863 = vadd.f32 %v1763, %v1831
      %v1864 = vadd.f32 %v1764, %v1832
      %v1865 = vadd.f32 %v1765, %v1833
      %v1866 = vadd.f32 %v1766, %v1834
      %v1867 = vadd.f32 %v1767, %v1835
      %v1868 = vadd.f32 %v1768, %v1836
      %v1869 = vadd.f32 %v1769, %v1837
      %v1870 = vadd.f32 %v1770, %v1838
      %v1871 = vadd.f32 %v1771, %v1839
      %v1872 = vadd.f32 %v1772, %v1840
      %v1873 = vadd.f32 %v1773, %v1841
      %v1874 = vadd.f32 %v1774, %v1842
      %v1875 = vadd.f32 %v1775, %v1843
      %v1876 = vadd.f32 %v1776, %v1844
      %v1877 = vadd.f32 %v1777, %v1845
      %v1878 = vadd.f32 %v1778, %v1846
      %v1879 = vadd.f32 %v1779, %v1847
      %v1880 = vadd.f32 %v1780, %v1848
      %v1881 = vadd.f32 %v1781, %v1849
      %v1882 = vadd.f32 %v1782, %v1850
      %v1883 = vadd.f32 %v1783, %v1851
      %v1884 = vadd.f32 %v1784, %v1852
      %v1885 = vadd.f32 %v1785, %v1853
      %v1886 = vld [vmem:[%s1685 + $0x2] sm:$0xff]
      %v1887 = vld [vmem:[%s1685 + $0xa] sm:$0xff]
      %v1888 = vld [vmem:[%s1685 + $0x1a] sm:$0xff]
      %v1889 = vld [vmem:[%s1685 + $0x22] sm:$0xff]
      %v1890 = vld [vmem:[%s1685 + $0x32] sm:$0xff]
      %v1891 = vld [vmem:[%s1685 + $0x3a] sm:$0xff]
      %v1892 = vld [vmem:[%s1685 + $0x4a] sm:$0xff]
      %v1893 = vld [vmem:[%s1685 + $0x52] sm:$0xff]
      %v1894 = vld [vmem:[%s1685 + $0x62] sm:$0xff]
      %v1895 = vld [vmem:[%s1685 + $0x6a] sm:$0xff]
      %v1896 = vld [vmem:[%s1685 + $0x7a] sm:$0xff]
      %v1897 = vld [vmem:[%s1685 + $0x82] sm:$0xff]
      %v1898 = vld [vmem:[%s1685 + $0x92] sm:$0xff]
      %v1899 = vld [vmem:[%s1685 + $0x9a] sm:$0xff]
      %v1900 = vld [vmem:[%s1685 + $0xaa] sm:$0xff]
      %v1901 = vld [vmem:[%s1685 + $0xb2] sm:$0xff]
      %v1902 = vld [vmem:[%s1685 + $0xc2] sm:$0xff]
      %v1903 = vld [vmem:[%s1685 + $0xca] sm:$0xff]
      %v1904 = vld [vmem:[%s1685 + $0xda] sm:$0xff]
      %v1905 = vld [vmem:[%s1685 + $0xe2] sm:$0xff]
      %v1906 = vld [vmem:[%s1685 + $0xf2] sm:$0xff]
      %v1907 = vld [vmem:[%s1685 + $0xfa] sm:$0xff]
      %v1908 = vld [vmem:[%s1685 + $0x10a] sm:$0xff]
      %v1909 = vld [vmem:[%s1685 + $0x112] sm:$0xff]
      %v1910 = vld [vmem:[%s1685 + $0x122] sm:$0xff]
      %v1911 = vld [vmem:[%s1685 + $0x12a] sm:$0xff]
      %v1912 = vld [vmem:[%s1685 + $0x13a] sm:$0xff]
      %v1913 = vld [vmem:[%s1685 + $0x142] sm:$0xff]
      %v1914 = vld [vmem:[%s1685 + $0x152] sm:$0xff]
      %v1915 = vld [vmem:[%s1685 + $0x15a] sm:$0xff]
      %v1916 = vld [vmem:[%s1685 + $0x16a] sm:$0xff]
      %v1917 = vld [vmem:[%s1685 + $0x172] sm:$0xff]
      %v1918 = vlaneseq
      %v1919 = vshrl.u32 %v1918, 7
      %v1920 = vsub.s32 2, %v1919
      %v1921 = vrot.slane %v213, %v1920
      %v1922 = vmul.f32 %v1886, %v1921
      %v1923 = vmul.f32 %v1887, %v1921
      %v1924 = vmul.f32 %v1888, %v1921
      %v1925 = vmul.f32 %v1889, %v1921
      %v1926 = vmul.f32 %v1890, %v1921
      %v1927 = vmul.f32 %v1891, %v1921
      %v1928 = vmul.f32 %v1892, %v1921
      %v1929 = vmul.f32 %v1893, %v1921
      %v1930 = vmul.f32 %v1894, %v1921
      %v1931 = vmul.f32 %v1895, %v1921
      %v1932 = vmul.f32 %v1896, %v1921
      %v1933 = vmul.f32 %v1897, %v1921
      %v1934 = vmul.f32 %v1898, %v1921
      %v1935 = vmul.f32 %v1899, %v1921
      %v1936 = vmul.f32 %v1900, %v1921
      %v1937 = vmul.f32 %v1901, %v1921
      %v1938 = vmul.f32 %v1902, %v1921
      %v1939 = vmul.f32 %v1903, %v1921
      %v1940 = vmul.f32 %v1904, %v1921
      %v1941 = vmul.f32 %v1905, %v1921
      %v1942 = vmul.f32 %v1906, %v1921
      %v1943 = vmul.f32 %v1907, %v1921
      %v1944 = vmul.f32 %v1908, %v1921
      %v1945 = vmul.f32 %v1909, %v1921
      %v1946 = vmul.f32 %v1910, %v1921
      %v1947 = vmul.f32 %v1911, %v1921
      %v1948 = vmul.f32 %v1912, %v1921
      %v1949 = vmul.f32 %v1913, %v1921
      %v1950 = vmul.f32 %v1914, %v1921
      %v1951 = vmul.f32 %v1915, %v1921
      %v1952 = vmul.f32 %v1916, %v1921
      %v1953 = vmul.f32 %v1917, %v1921
      %v1954 = vadd.f32 %v1854, %v1922
      %v1955 = vadd.f32 %v1855, %v1923
      %v1956 = vadd.f32 %v1856, %v1924
      %v1957 = vadd.f32 %v1857, %v1925
      %v1958 = vadd.f32 %v1858, %v1926
      %v1959 = vadd.f32 %v1859, %v1927
      %v1960 = vadd.f32 %v1860, %v1928
      %v1961 = vadd.f32 %v1861, %v1929
      %v1962 = vadd.f32 %v1862, %v1930
      %v1963 = vadd.f32 %v1863, %v1931
      %v1964 = vadd.f32 %v1864, %v1932
      %v1965 = vadd.f32 %v1865, %v1933
      %v1966 = vadd.f32 %v1866, %v1934
      %v1967 = vadd.f32 %v1867, %v1935
      %v1968 = vadd.f32 %v1868, %v1936
      %v1969 = vadd.f32 %v1869, %v1937
      %v1970 = vadd.f32 %v1870, %v1938
      %v1971 = vadd.f32 %v1871, %v1939
      %v1972 = vadd.f32 %v1872, %v1940
      %v1973 = vadd.f32 %v1873, %v1941
      %v1974 = vadd.f32 %v1874, %v1942
      %v1975 = vadd.f32 %v1875, %v1943
      %v1976 = vadd.f32 %v1876, %v1944
      %v1977 = vadd.f32 %v1877, %v1945
      %v1978 = vadd.f32 %v1878, %v1946
      %v1979 = vadd.f32 %v1879, %v1947
      %v1980 = vadd.f32 %v1880, %v1948
      %v1981 = vadd.f32 %v1881, %v1949
      %v1982 = vadd.f32 %v1882, %v1950
      %v1983 = vadd.f32 %v1883, %v1951
      %v1984 = vadd.f32 %v1884, %v1952
      %v1985 = vadd.f32 %v1885, %v1953
      %v1986 = vld [vmem:[%s1685 + $0x3] sm:$0xff]
      %v1987 = vld [vmem:[%s1685 + $0xb] sm:$0xff]
      %v1988 = vld [vmem:[%s1685 + $0x1b] sm:$0xff]
      %v1989 = vld [vmem:[%s1685 + $0x23] sm:$0xff]
      %v1990 = vld [vmem:[%s1685 + $0x33] sm:$0xff]
      %v1991 = vld [vmem:[%s1685 + $0x3b] sm:$0xff]
      %v1992 = vld [vmem:[%s1685 + $0x4b] sm:$0xff]
      %v1993 = vld [vmem:[%s1685 + $0x53] sm:$0xff]
      %v1994 = vld [vmem:[%s1685 + $0x63] sm:$0xff]
      %v1995 = vld [vmem:[%s1685 + $0x6b] sm:$0xff]
      %v1996 = vld [vmem:[%s1685 + $0x7b] sm:$0xff]
      %v1997 = vld [vmem:[%s1685 + $0x83] sm:$0xff]
      %v1998 = vld [vmem:[%s1685 + $0x93] sm:$0xff]
      %v1999 = vld [vmem:[%s1685 + $0x9b] sm:$0xff]
      %v2000 = vld [vmem:[%s1685 + $0xab] sm:$0xff]
      %v2001 = vld [vmem:[%s1685 + $0xb3] sm:$0xff]
      %v2002 = vld [vmem:[%s1685 + $0xc3] sm:$0xff]
      %v2003 = vld [vmem:[%s1685 + $0xcb] sm:$0xff]
      %v2004 = vld [vmem:[%s1685 + $0xdb] sm:$0xff]
      %v2005 = vld [vmem:[%s1685 + $0xe3] sm:$0xff]
      %v2006 = vld [vmem:[%s1685 + $0xf3] sm:$0xff]
      %v2007 = vld [vmem:[%s1685 + $0xfb] sm:$0xff]
      %v2008 = vld [vmem:[%s1685 + $0x10b] sm:$0xff]
      %v2009 = vld [vmem:[%s1685 + $0x113] sm:$0xff]
      %v2010 = vld [vmem:[%s1685 + $0x123] sm:$0xff]
      %v2011 = vld [vmem:[%s1685 + $0x12b] sm:$0xff]
      %v2012 = vld [vmem:[%s1685 + $0x13b] sm:$0xff]
      %v2013 = vld [vmem:[%s1685 + $0x143] sm:$0xff]
      %v2014 = vld [vmem:[%s1685 + $0x153] sm:$0xff]
      %v2015 = vld [vmem:[%s1685 + $0x15b] sm:$0xff]
      %v2016 = vld [vmem:[%s1685 + $0x16b] sm:$0xff]
      %v2017 = vld [vmem:[%s1685 + $0x173] sm:$0xff]
      %v2018 = vlaneseq
      %v2019 = vshrl.u32 %v2018, 7
      %v2020 = vsub.s32 3, %v2019
      %v2021 = vrot.slane %v213, %v2020
      %v2022 = vmul.f32 %v1986, %v2021
      %v2023 = vmul.f32 %v1987, %v2021
      %v2024 = vmul.f32 %v1988, %v2021
      %v2025 = vmul.f32 %v1989, %v2021
      %v2026 = vmul.f32 %v1990, %v2021
      %v2027 = vmul.f32 %v1991, %v2021
      %v2028 = vmul.f32 %v1992, %v2021
      %v2029 = vmul.f32 %v1993, %v2021
      %v2030 = vmul.f32 %v1994, %v2021
      %v2031 = vmul.f32 %v1995, %v2021
      %v2032 = vmul.f32 %v1996, %v2021
      %v2033 = vmul.f32 %v1997, %v2021
      %v2034 = vmul.f32 %v1998, %v2021
      %v2035 = vmul.f32 %v1999, %v2021
      %v2036 = vmul.f32 %v2000, %v2021
      %v2037 = vmul.f32 %v2001, %v2021
      %v2038 = vmul.f32 %v2002, %v2021
      %v2039 = vmul.f32 %v2003, %v2021
      %v2040 = vmul.f32 %v2004, %v2021
      %v2041 = vmul.f32 %v2005, %v2021
      %v2042 = vmul.f32 %v2006, %v2021
      %v2043 = vmul.f32 %v2007, %v2021
      %v2044 = vmul.f32 %v2008, %v2021
      %v2045 = vmul.f32 %v2009, %v2021
      %v2046 = vmul.f32 %v2010, %v2021
      %v2047 = vmul.f32 %v2011, %v2021
      %v2048 = vmul.f32 %v2012, %v2021
      %v2049 = vmul.f32 %v2013, %v2021
      %v2050 = vmul.f32 %v2014, %v2021
      %v2051 = vmul.f32 %v2015, %v2021
      %v2052 = vmul.f32 %v2016, %v2021
      %v2053 = vmul.f32 %v2017, %v2021
      %v2054 = vadd.f32 %v1954, %v2022
      %v2055 = vadd.f32 %v1955, %v2023
      %v2056 = vadd.f32 %v1956, %v2024
      %v2057 = vadd.f32 %v1957, %v2025
      %v2058 = vadd.f32 %v1958, %v2026
      %v2059 = vadd.f32 %v1959, %v2027
      %v2060 = vadd.f32 %v1960, %v2028
      %v2061 = vadd.f32 %v1961, %v2029
      %v2062 = vadd.f32 %v1962, %v2030
      %v2063 = vadd.f32 %v1963, %v2031
      %v2064 = vadd.f32 %v1964, %v2032
      %v2065 = vadd.f32 %v1965, %v2033
      %v2066 = vadd.f32 %v1966, %v2034
      %v2067 = vadd.f32 %v1967, %v2035
      %v2068 = vadd.f32 %v1968, %v2036
      %v2069 = vadd.f32 %v1969, %v2037
      %v2070 = vadd.f32 %v1970, %v2038
      %v2071 = vadd.f32 %v1971, %v2039
      %v2072 = vadd.f32 %v1972, %v2040
      %v2073 = vadd.f32 %v1973, %v2041
      %v2074 = vadd.f32 %v1974, %v2042
      %v2075 = vadd.f32 %v1975, %v2043
      %v2076 = vadd.f32 %v1976, %v2044
      %v2077 = vadd.f32 %v1977, %v2045
      %v2078 = vadd.f32 %v1978, %v2046
      %v2079 = vadd.f32 %v1979, %v2047
      %v2080 = vadd.f32 %v1980, %v2048
      %v2081 = vadd.f32 %v1981, %v2049
      %v2082 = vadd.f32 %v1982, %v2050
      %v2083 = vadd.f32 %v1983, %v2051
      %v2084 = vadd.f32 %v1984, %v2052
      %v2085 = vadd.f32 %v1985, %v2053
      %v2086 = vld [vmem:[%s1685 + $0x4] sm:$0xff]
      %v2087 = vld [vmem:[%s1685 + $0xc] sm:$0xff]
      %v2088 = vld [vmem:[%s1685 + $0x1c] sm:$0xff]
      %v2089 = vld [vmem:[%s1685 + $0x24] sm:$0xff]
      %v2090 = vld [vmem:[%s1685 + $0x34] sm:$0xff]
      %v2091 = vld [vmem:[%s1685 + $0x3c] sm:$0xff]
      %v2092 = vld [vmem:[%s1685 + $0x4c] sm:$0xff]
      %v2093 = vld [vmem:[%s1685 + $0x54] sm:$0xff]
      %v2094 = vld [vmem:[%s1685 + $0x64] sm:$0xff]
      %v2095 = vld [vmem:[%s1685 + $0x6c] sm:$0xff]
      %v2096 = vld [vmem:[%s1685 + $0x7c] sm:$0xff]
      %v2097 = vld [vmem:[%s1685 + $0x84] sm:$0xff]
      %v2098 = vld [vmem:[%s1685 + $0x94] sm:$0xff]
      %v2099 = vld [vmem:[%s1685 + $0x9c] sm:$0xff]
      %v2100 = vld [vmem:[%s1685 + $0xac] sm:$0xff]
      %v2101 = vld [vmem:[%s1685 + $0xb4] sm:$0xff]
      %v2102 = vld [vmem:[%s1685 + $0xc4] sm:$0xff]
      %v2103 = vld [vmem:[%s1685 + $0xcc] sm:$0xff]
      %v2104 = vld [vmem:[%s1685 + $0xdc] sm:$0xff]
      %v2105 = vld [vmem:[%s1685 + $0xe4] sm:$0xff]
      %v2106 = vld [vmem:[%s1685 + $0xf4] sm:$0xff]
      %v2107 = vld [vmem:[%s1685 + $0xfc] sm:$0xff]
      %v2108 = vld [vmem:[%s1685 + $0x10c] sm:$0xff]
      %v2109 = vld [vmem:[%s1685 + $0x114] sm:$0xff]
      %v2110 = vld [vmem:[%s1685 + $0x124] sm:$0xff]
      %v2111 = vld [vmem:[%s1685 + $0x12c] sm:$0xff]
      %v2112 = vld [vmem:[%s1685 + $0x13c] sm:$0xff]
      %v2113 = vld [vmem:[%s1685 + $0x144] sm:$0xff]
      %v2114 = vld [vmem:[%s1685 + $0x154] sm:$0xff]
      %v2115 = vld [vmem:[%s1685 + $0x15c] sm:$0xff]
      %v2116 = vld [vmem:[%s1685 + $0x16c] sm:$0xff]
      %v2117 = vld [vmem:[%s1685 + $0x174] sm:$0xff]
      %v2118 = vlaneseq
      %v2119 = vshrl.u32 %v2118, 7
      %v2120 = vsub.s32 4, %v2119
      %v2121 = vrot.slane %v213, %v2120
      %v2122 = vmul.f32 %v2086, %v2121
      %v2123 = vmul.f32 %v2087, %v2121
      %v2124 = vmul.f32 %v2088, %v2121
      %v2125 = vmul.f32 %v2089, %v2121
      %v2126 = vmul.f32 %v2090, %v2121
      %v2127 = vmul.f32 %v2091, %v2121
      %v2128 = vmul.f32 %v2092, %v2121
      %v2129 = vmul.f32 %v2093, %v2121
      %v2130 = vmul.f32 %v2094, %v2121
      %v2131 = vmul.f32 %v2095, %v2121
      %v2132 = vmul.f32 %v2096, %v2121
      %v2133 = vmul.f32 %v2097, %v2121
      %v2134 = vmul.f32 %v2098, %v2121
      %v2135 = vmul.f32 %v2099, %v2121
      %v2136 = vmul.f32 %v2100, %v2121
      %v2137 = vmul.f32 %v2101, %v2121
      %v2138 = vmul.f32 %v2102, %v2121
      %v2139 = vmul.f32 %v2103, %v2121
      %v2140 = vmul.f32 %v2104, %v2121
      %v2141 = vmul.f32 %v2105, %v2121
      %v2142 = vmul.f32 %v2106, %v2121
      %v2143 = vmul.f32 %v2107, %v2121
      %v2144 = vmul.f32 %v2108, %v2121
      %v2145 = vmul.f32 %v2109, %v2121
      %v2146 = vmul.f32 %v2110, %v2121
      %v2147 = vmul.f32 %v2111, %v2121
      %v2148 = vmul.f32 %v2112, %v2121
      %v2149 = vmul.f32 %v2113, %v2121
      %v2150 = vmul.f32 %v2114, %v2121
      %v2151 = vmul.f32 %v2115, %v2121
      %v2152 = vmul.f32 %v2116, %v2121
      %v2153 = vmul.f32 %v2117, %v2121
      %v2154 = vadd.f32 %v2054, %v2122
      %v2155 = vadd.f32 %v2055, %v2123
      %v2156 = vadd.f32 %v2056, %v2124
      %v2157 = vadd.f32 %v2057, %v2125
      %v2158 = vadd.f32 %v2058, %v2126
      %v2159 = vadd.f32 %v2059, %v2127
      %v2160 = vadd.f32 %v2060, %v2128
      %v2161 = vadd.f32 %v2061, %v2129
      %v2162 = vadd.f32 %v2062, %v2130
      %v2163 = vadd.f32 %v2063, %v2131
      %v2164 = vadd.f32 %v2064, %v2132
      %v2165 = vadd.f32 %v2065, %v2133
      %v2166 = vadd.f32 %v2066, %v2134
      %v2167 = vadd.f32 %v2067, %v2135
      %v2168 = vadd.f32 %v2068, %v2136
      %v2169 = vadd.f32 %v2069, %v2137
      %v2170 = vadd.f32 %v2070, %v2138
      %v2171 = vadd.f32 %v2071, %v2139
      %v2172 = vadd.f32 %v2072, %v2140
      %v2173 = vadd.f32 %v2073, %v2141
      %v2174 = vadd.f32 %v2074, %v2142
      %v2175 = vadd.f32 %v2075, %v2143
      %v2176 = vadd.f32 %v2076, %v2144
      %v2177 = vadd.f32 %v2077, %v2145
      %v2178 = vadd.f32 %v2078, %v2146
      %v2179 = vadd.f32 %v2079, %v2147
      %v2180 = vadd.f32 %v2080, %v2148
      %v2181 = vadd.f32 %v2081, %v2149
      %v2182 = vadd.f32 %v2082, %v2150
      %v2183 = vadd.f32 %v2083, %v2151
      %v2184 = vadd.f32 %v2084, %v2152
      %v2185 = vadd.f32 %v2085, %v2153
      %v2186 = vld [vmem:[%s1685 + $0x5] sm:$0xff]
      %v2187 = vld [vmem:[%s1685 + $0xd] sm:$0xff]
      %v2188 = vld [vmem:[%s1685 + $0x1d] sm:$0xff]
      %v2189 = vld [vmem:[%s1685 + $0x25] sm:$0xff]
      %v2190 = vld [vmem:[%s1685 + $0x35] sm:$0xff]
      %v2191 = vld [vmem:[%s1685 + $0x3d] sm:$0xff]
      %v2192 = vld [vmem:[%s1685 + $0x4d] sm:$0xff]
      %v2193 = vld [vmem:[%s1685 + $0x55] sm:$0xff]
      %v2194 = vld [vmem:[%s1685 + $0x65] sm:$0xff]
      %v2195 = vld [vmem:[%s1685 + $0x6d] sm:$0xff]
      %v2196 = vld [vmem:[%s1685 + $0x7d] sm:$0xff]
      %v2197 = vld [vmem:[%s1685 + $0x85] sm:$0xff]
      %v2198 = vld [vmem:[%s1685 + $0x95] sm:$0xff]
      %v2199 = vld [vmem:[%s1685 + $0x9d] sm:$0xff]
      %v2200 = vld [vmem:[%s1685 + $0xad] sm:$0xff]
      %v2201 = vld [vmem:[%s1685 + $0xb5] sm:$0xff]
      %v2202 = vld [vmem:[%s1685 + $0xc5] sm:$0xff]
      %v2203 = vld [vmem:[%s1685 + $0xcd] sm:$0xff]
      %v2204 = vld [vmem:[%s1685 + $0xdd] sm:$0xff]
      %v2205 = vld [vmem:[%s1685 + $0xe5] sm:$0xff]
      %v2206 = vld [vmem:[%s1685 + $0xf5] sm:$0xff]
      %v2207 = vld [vmem:[%s1685 + $0xfd] sm:$0xff]
      %v2208 = vld [vmem:[%s1685 + $0x10d] sm:$0xff]
      %v2209 = vld [vmem:[%s1685 + $0x115] sm:$0xff]
      %v2210 = vld [vmem:[%s1685 + $0x125] sm:$0xff]
      %v2211 = vld [vmem:[%s1685 + $0x12d] sm:$0xff]
      %v2212 = vld [vmem:[%s1685 + $0x13d] sm:$0xff]
      %v2213 = vld [vmem:[%s1685 + $0x145] sm:$0xff]
      %v2214 = vld [vmem:[%s1685 + $0x155] sm:$0xff]
      %v2215 = vld [vmem:[%s1685 + $0x15d] sm:$0xff]
      %v2216 = vld [vmem:[%s1685 + $0x16d] sm:$0xff]
      %v2217 = vld [vmem:[%s1685 + $0x175] sm:$0xff]
      %v2218 = vlaneseq
      %v2219 = vshrl.u32 %v2218, 7
      %v2220 = vsub.s32 5, %v2219
      %v2221 = vrot.slane %v213, %v2220
      %v2222 = vmul.f32 %v2186, %v2221
      %v2223 = vmul.f32 %v2187, %v2221
      %v2224 = vmul.f32 %v2188, %v2221
      %v2225 = vmul.f32 %v2189, %v2221
      %v2226 = vmul.f32 %v2190, %v2221
      %v2227 = vmul.f32 %v2191, %v2221
      %v2228 = vmul.f32 %v2192, %v2221
      %v2229 = vmul.f32 %v2193, %v2221
      %v2230 = vmul.f32 %v2194, %v2221
      %v2231 = vmul.f32 %v2195, %v2221
      %v2232 = vmul.f32 %v2196, %v2221
      %v2233 = vmul.f32 %v2197, %v2221
      %v2234 = vmul.f32 %v2198, %v2221
      %v2235 = vmul.f32 %v2199, %v2221
      %v2236 = vmul.f32 %v2200, %v2221
      %v2237 = vmul.f32 %v2201, %v2221
      %v2238 = vmul.f32 %v2202, %v2221
      %v2239 = vmul.f32 %v2203, %v2221
      %v2240 = vmul.f32 %v2204, %v2221
      %v2241 = vmul.f32 %v2205, %v2221
      %v2242 = vmul.f32 %v2206, %v2221
      %v2243 = vmul.f32 %v2207, %v2221
      %v2244 = vmul.f32 %v2208, %v2221
      %v2245 = vmul.f32 %v2209, %v2221
      %v2246 = vmul.f32 %v2210, %v2221
      %v2247 = vmul.f32 %v2211, %v2221
      %v2248 = vmul.f32 %v2212, %v2221
      %v2249 = vmul.f32 %v2213, %v2221
      %v2250 = vmul.f32 %v2214, %v2221
      %v2251 = vmul.f32 %v2215, %v2221
      %v2252 = vmul.f32 %v2216, %v2221
      %v2253 = vmul.f32 %v2217, %v2221
      %v2254 = vadd.f32 %v2154, %v2222
      %v2255 = vadd.f32 %v2155, %v2223
      %v2256 = vadd.f32 %v2156, %v2224
      %v2257 = vadd.f32 %v2157, %v2225
      %v2258 = vadd.f32 %v2158, %v2226
      %v2259 = vadd.f32 %v2159, %v2227
      %v2260 = vadd.f32 %v2160, %v2228
      %v2261 = vadd.f32 %v2161, %v2229
      %v2262 = vadd.f32 %v2162, %v2230
      %v2263 = vadd.f32 %v2163, %v2231
      %v2264 = vadd.f32 %v2164, %v2232
      %v2265 = vadd.f32 %v2165, %v2233
      %v2266 = vadd.f32 %v2166, %v2234
      %v2267 = vadd.f32 %v2167, %v2235
      %v2268 = vadd.f32 %v2168, %v2236
      %v2269 = vadd.f32 %v2169, %v2237
      %v2270 = vadd.f32 %v2170, %v2238
      %v2271 = vadd.f32 %v2171, %v2239
      %v2272 = vadd.f32 %v2172, %v2240
      %v2273 = vadd.f32 %v2173, %v2241
      %v2274 = vadd.f32 %v2174, %v2242
      %v2275 = vadd.f32 %v2175, %v2243
      %v2276 = vadd.f32 %v2176, %v2244
      %v2277 = vadd.f32 %v2177, %v2245
      %v2278 = vadd.f32 %v2178, %v2246
      %v2279 = vadd.f32 %v2179, %v2247
      %v2280 = vadd.f32 %v2180, %v2248
      %v2281 = vadd.f32 %v2181, %v2249
      %v2282 = vadd.f32 %v2182, %v2250
      %v2283 = vadd.f32 %v2183, %v2251
      %v2284 = vadd.f32 %v2184, %v2252
      %v2285 = vadd.f32 %v2185, %v2253
      %v2286 = vld [vmem:[%s1685 + $0x6] sm:$0xff]
      %v2287 = vld [vmem:[%s1685 + $0xe] sm:$0xff]
      %v2288 = vld [vmem:[%s1685 + $0x1e] sm:$0xff]
      %v2289 = vld [vmem:[%s1685 + $0x26] sm:$0xff]
      %v2290 = vld [vmem:[%s1685 + $0x36] sm:$0xff]
      %v2291 = vld [vmem:[%s1685 + $0x3e] sm:$0xff]
      %v2292 = vld [vmem:[%s1685 + $0x4e] sm:$0xff]
      %v2293 = vld [vmem:[%s1685 + $0x56] sm:$0xff]
      %v2294 = vld [vmem:[%s1685 + $0x66] sm:$0xff]
      %v2295 = vld [vmem:[%s1685 + $0x6e] sm:$0xff]
      %v2296 = vld [vmem:[%s1685 + $0x7e] sm:$0xff]
      %v2297 = vld [vmem:[%s1685 + $0x86] sm:$0xff]
      %v2298 = vld [vmem:[%s1685 + $0x96] sm:$0xff]
      %v2299 = vld [vmem:[%s1685 + $0x9e] sm:$0xff]
      %v2300 = vld [vmem:[%s1685 + $0xae] sm:$0xff]
      %v2301 = vld [vmem:[%s1685 + $0xb6] sm:$0xff]
      %v2302 = vld [vmem:[%s1685 + $0xc6] sm:$0xff]
      %v2303 = vld [vmem:[%s1685 + $0xce] sm:$0xff]
      %v2304 = vld [vmem:[%s1685 + $0xde] sm:$0xff]
      %v2305 = vld [vmem:[%s1685 + $0xe6] sm:$0xff]
      %v2306 = vld [vmem:[%s1685 + $0xf6] sm:$0xff]
      %v2307 = vld [vmem:[%s1685 + $0xfe] sm:$0xff]
      %v2308 = vld [vmem:[%s1685 + $0x10e] sm:$0xff]
      %v2309 = vld [vmem:[%s1685 + $0x116] sm:$0xff]
      %v2310 = vld [vmem:[%s1685 + $0x126] sm:$0xff]
      %v2311 = vld [vmem:[%s1685 + $0x12e] sm:$0xff]
      %v2312 = vld [vmem:[%s1685 + $0x13e] sm:$0xff]
      %v2313 = vld [vmem:[%s1685 + $0x146] sm:$0xff]
      %v2314 = vld [vmem:[%s1685 + $0x156] sm:$0xff]
      %v2315 = vld [vmem:[%s1685 + $0x15e] sm:$0xff]
      %v2316 = vld [vmem:[%s1685 + $0x16e] sm:$0xff]
      %v2317 = vld [vmem:[%s1685 + $0x176] sm:$0xff]
      %v2318 = vlaneseq
      %v2319 = vshrl.u32 %v2318, 7
      %v2320 = vsub.s32 6, %v2319
      %v2321 = vrot.slane %v213, %v2320
      %v2322 = vmul.f32 %v2286, %v2321
      %v2323 = vmul.f32 %v2287, %v2321
      %v2324 = vmul.f32 %v2288, %v2321
      %v2325 = vmul.f32 %v2289, %v2321
      %v2326 = vmul.f32 %v2290, %v2321
      %v2327 = vmul.f32 %v2291, %v2321
      %v2328 = vmul.f32 %v2292, %v2321
      %v2329 = vmul.f32 %v2293, %v2321
      %v2330 = vmul.f32 %v2294, %v2321
      %v2331 = vmul.f32 %v2295, %v2321
      %v2332 = vmul.f32 %v2296, %v2321
      %v2333 = vmul.f32 %v2297, %v2321
      %v2334 = vmul.f32 %v2298, %v2321
      %v2335 = vmul.f32 %v2299, %v2321
      %v2336 = vmul.f32 %v2300, %v2321
      %v2337 = vmul.f32 %v2301, %v2321
      %v2338 = vmul.f32 %v2302, %v2321
      %v2339 = vmul.f32 %v2303, %v2321
      %v2340 = vmul.f32 %v2304, %v2321
      %v2341 = vmul.f32 %v2305, %v2321
      %v2342 = vmul.f32 %v2306, %v2321
      %v2343 = vmul.f32 %v2307, %v2321
      %v2344 = vmul.f32 %v2308, %v2321
      %v2345 = vmul.f32 %v2309, %v2321
      %v2346 = vmul.f32 %v2310, %v2321
      %v2347 = vmul.f32 %v2311, %v2321
      %v2348 = vmul.f32 %v2312, %v2321
      %v2349 = vmul.f32 %v2313, %v2321
      %v2350 = vmul.f32 %v2314, %v2321
      %v2351 = vmul.f32 %v2315, %v2321
      %v2352 = vmul.f32 %v2316, %v2321
      %v2353 = vmul.f32 %v2317, %v2321
      %v2354 = vadd.f32 %v2254, %v2322
      %v2355 = vadd.f32 %v2255, %v2323
      %v2356 = vadd.f32 %v2256, %v2324
      %v2357 = vadd.f32 %v2257, %v2325
      %v2358 = vadd.f32 %v2258, %v2326
      %v2359 = vadd.f32 %v2259, %v2327
      %v2360 = vadd.f32 %v2260, %v2328
      %v2361 = vadd.f32 %v2261, %v2329
      %v2362 = vadd.f32 %v2262, %v2330
      %v2363 = vadd.f32 %v2263, %v2331
      %v2364 = vadd.f32 %v2264, %v2332
      %v2365 = vadd.f32 %v2265, %v2333
      %v2366 = vadd.f32 %v2266, %v2334
      %v2367 = vadd.f32 %v2267, %v2335
      %v2368 = vadd.f32 %v2268, %v2336
      %v2369 = vadd.f32 %v2269, %v2337
      %v2370 = vadd.f32 %v2270, %v2338
      %v2371 = vadd.f32 %v2271, %v2339
      %v2372 = vadd.f32 %v2272, %v2340
      %v2373 = vadd.f32 %v2273, %v2341
      %v2374 = vadd.f32 %v2274, %v2342
      %v2375 = vadd.f32 %v2275, %v2343
      %v2376 = vadd.f32 %v2276, %v2344
      %v2377 = vadd.f32 %v2277, %v2345
      %v2378 = vadd.f32 %v2278, %v2346
      %v2379 = vadd.f32 %v2279, %v2347
      %v2380 = vadd.f32 %v2280, %v2348
      %v2381 = vadd.f32 %v2281, %v2349
      %v2382 = vadd.f32 %v2282, %v2350
      %v2383 = vadd.f32 %v2283, %v2351
      %v2384 = vadd.f32 %v2284, %v2352
      %v2385 = vadd.f32 %v2285, %v2353
      %v2386 = vld [vmem:[%s218] sm:$0xff]
      %v2387 = vld [vmem:[%s218 + $0x8] sm:$0xff]
      %v2388 = vld [vmem:[%s218 + $0x18] sm:$0xff]
      %v2389 = vld [vmem:[%s218 + $0x20] sm:$0xff]
      %v2390 = vld [vmem:[%s218 + $0x30] sm:$0xff]
      %v2391 = vld [vmem:[%s218 + $0x38] sm:$0xff]
      %v2392 = vld [vmem:[%s218 + $0x48] sm:$0xff]
      %v2393 = vld [vmem:[%s218 + $0x50] sm:$0xff]
      %v2394 = vld [vmem:[%s218 + $0x60] sm:$0xff]
      %v2395 = vld [vmem:[%s218 + $0x68] sm:$0xff]
      %v2396 = vld [vmem:[%s218 + $0x78] sm:$0xff]
      %v2397 = vld [vmem:[%s218 + $0x80] sm:$0xff]
      %v2398 = vld [vmem:[%s218 + $0x90] sm:$0xff]
      %v2399 = vld [vmem:[%s218 + $0x98] sm:$0xff]
      %v2400 = vld [vmem:[%s218 + $0xa8] sm:$0xff]
      %v2401 = vld [vmem:[%s218 + $0xb0] sm:$0xff]
      %v2402 = vld [vmem:[%s218 + $0xc0] sm:$0xff]
      %v2403 = vld [vmem:[%s218 + $0xc8] sm:$0xff]
      %v2404 = vld [vmem:[%s218 + $0xd8] sm:$0xff]
      %v2405 = vld [vmem:[%s218 + $0xe0] sm:$0xff]
      %v2406 = vld [vmem:[%s218 + $0xf0] sm:$0xff]
      %v2407 = vld [vmem:[%s218 + $0xf8] sm:$0xff]
      %v2408 = vld [vmem:[%s218 + $0x108] sm:$0xff]
      %v2409 = vld [vmem:[%s218 + $0x110] sm:$0xff]
      %v2410 = vld [vmem:[%s218 + $0x120] sm:$0xff]
      %v2411 = vld [vmem:[%s218 + $0x128] sm:$0xff]
      %v2412 = vld [vmem:[%s218 + $0x138] sm:$0xff]
      %v2413 = vld [vmem:[%s218 + $0x140] sm:$0xff]
      %v2414 = vld [vmem:[%s218 + $0x150] sm:$0xff]
      %v2415 = vld [vmem:[%s218 + $0x158] sm:$0xff]
      %v2416 = vld [vmem:[%s218 + $0x168] sm:$0xff]
      %v2417 = vld [vmem:[%s218 + $0x170] sm:$0xff]
      %v2418 = vlaneseq
      %v2419 = vshrl.u32 %v2418, 7
      %v2420 = vsub.s32 0, %v2419
      %v2421 = vrot.slane %v214, %v2420
      %v2422 = vmul.f32 %v2386, %v2421
      %v2423 = vmul.f32 %v2387, %v2421
      %v2424 = vmul.f32 %v2388, %v2421
      %v2425 = vmul.f32 %v2389, %v2421
      %v2426 = vmul.f32 %v2390, %v2421
      %v2427 = vmul.f32 %v2391, %v2421
      %v2428 = vmul.f32 %v2392, %v2421
      %v2429 = vmul.f32 %v2393, %v2421
      %v2430 = vmul.f32 %v2394, %v2421
      %v2431 = vmul.f32 %v2395, %v2421
      %v2432 = vmul.f32 %v2396, %v2421
      %v2433 = vmul.f32 %v2397, %v2421
      %v2434 = vmul.f32 %v2398, %v2421
      %v2435 = vmul.f32 %v2399, %v2421
      %v2436 = vmul.f32 %v2400, %v2421
      %v2437 = vmul.f32 %v2401, %v2421
      %v2438 = vmul.f32 %v2402, %v2421
      %v2439 = vmul.f32 %v2403, %v2421
      %v2440 = vmul.f32 %v2404, %v2421
      %v2441 = vmul.f32 %v2405, %v2421
      %v2442 = vmul.f32 %v2406, %v2421
      %v2443 = vmul.f32 %v2407, %v2421
      %v2444 = vmul.f32 %v2408, %v2421
      %v2445 = vmul.f32 %v2409, %v2421
      %v2446 = vmul.f32 %v2410, %v2421
      %v2447 = vmul.f32 %v2411, %v2421
      %v2448 = vmul.f32 %v2412, %v2421
      %v2449 = vmul.f32 %v2413, %v2421
      %v2450 = vmul.f32 %v2414, %v2421
      %v2451 = vmul.f32 %v2415, %v2421
      %v2452 = vmul.f32 %v2416, %v2421
      %v2453 = vmul.f32 %v2417, %v2421
      %v2454 = vadd.f32 %v2354, %v2422
      %v2455 = vadd.f32 %v2355, %v2423
      %v2456 = vadd.f32 %v2356, %v2424
      %v2457 = vadd.f32 %v2357, %v2425
      %v2458 = vadd.f32 %v2358, %v2426
      %v2459 = vadd.f32 %v2359, %v2427
      %v2460 = vadd.f32 %v2360, %v2428
      %v2461 = vadd.f32 %v2361, %v2429
      %v2462 = vadd.f32 %v2362, %v2430
      %v2463 = vadd.f32 %v2363, %v2431
      %v2464 = vadd.f32 %v2364, %v2432
      %v2465 = vadd.f32 %v2365, %v2433
      %v2466 = vadd.f32 %v2366, %v2434
      %v2467 = vadd.f32 %v2367, %v2435
      %v2468 = vadd.f32 %v2368, %v2436
      %v2469 = vadd.f32 %v2369, %v2437
      %v2470 = vadd.f32 %v2370, %v2438
      %v2471 = vadd.f32 %v2371, %v2439
      %v2472 = vadd.f32 %v2372, %v2440
      %v2473 = vadd.f32 %v2373, %v2441
      %v2474 = vadd.f32 %v2374, %v2442
      %v2475 = vadd.f32 %v2375, %v2443
      %v2476 = vadd.f32 %v2376, %v2444
      %v2477 = vadd.f32 %v2377, %v2445
      %v2478 = vadd.f32 %v2378, %v2446
      %v2479 = vadd.f32 %v2379, %v2447
      %v2480 = vadd.f32 %v2380, %v2448
      %v2481 = vadd.f32 %v2381, %v2449
      %v2482 = vadd.f32 %v2382, %v2450
      %v2483 = vadd.f32 %v2383, %v2451
      %v2484 = vadd.f32 %v2384, %v2452
      %v2485 = vadd.f32 %v2385, %v2453
      %v2486 = vld [vmem:[%s218 + $0x1] sm:$0xff]
      %v2487 = vld [vmem:[%s218 + $0x9] sm:$0xff]
      %v2488 = vld [vmem:[%s218 + $0x19] sm:$0xff]
      %v2489 = vld [vmem:[%s218 + $0x21] sm:$0xff]
      %v2490 = vld [vmem:[%s218 + $0x31] sm:$0xff]
      %v2491 = vld [vmem:[%s218 + $0x39] sm:$0xff]
      %v2492 = vld [vmem:[%s218 + $0x49] sm:$0xff]
      %v2493 = vld [vmem:[%s218 + $0x51] sm:$0xff]
      %v2494 = vld [vmem:[%s218 + $0x61] sm:$0xff]
      %v2495 = vld [vmem:[%s218 + $0x69] sm:$0xff]
      %v2496 = vld [vmem:[%s218 + $0x79] sm:$0xff]
      %v2497 = vld [vmem:[%s218 + $0x81] sm:$0xff]
      %v2498 = vld [vmem:[%s218 + $0x91] sm:$0xff]
      %v2499 = vld [vmem:[%s218 + $0x99] sm:$0xff]
      %v2500 = vld [vmem:[%s218 + $0xa9] sm:$0xff]
      %v2501 = vld [vmem:[%s218 + $0xb1] sm:$0xff]
      %v2502 = vld [vmem:[%s218 + $0xc1] sm:$0xff]
      %v2503 = vld [vmem:[%s218 + $0xc9] sm:$0xff]
      %v2504 = vld [vmem:[%s218 + $0xd9] sm:$0xff]
      %v2505 = vld [vmem:[%s218 + $0xe1] sm:$0xff]
      %v2506 = vld [vmem:[%s218 + $0xf1] sm:$0xff]
      %v2507 = vld [vmem:[%s218 + $0xf9] sm:$0xff]
      %v2508 = vld [vmem:[%s218 + $0x109] sm:$0xff]
      %v2509 = vld [vmem:[%s218 + $0x111] sm:$0xff]
      %v2510 = vld [vmem:[%s218 + $0x121] sm:$0xff]
      %v2511 = vld [vmem:[%s218 + $0x129] sm:$0xff]
      %v2512 = vld [vmem:[%s218 + $0x139] sm:$0xff]
      %v2513 = vld [vmem:[%s218 + $0x141] sm:$0xff]
      %v2514 = vld [vmem:[%s218 + $0x151] sm:$0xff]
      %v2515 = vld [vmem:[%s218 + $0x159] sm:$0xff]
      %v2516 = vld [vmem:[%s218 + $0x169] sm:$0xff]
      %v2517 = vld [vmem:[%s218 + $0x171] sm:$0xff]
      %v2518 = vlaneseq
      %v2519 = vshrl.u32 %v2518, 7
      %v2520 = vsub.s32 1, %v2519
      %v2521 = vrot.slane %v214, %v2520
      %v2522 = vmul.f32 %v2486, %v2521
      %v2523 = vmul.f32 %v2487, %v2521
      %v2524 = vmul.f32 %v2488, %v2521
      %v2525 = vmul.f32 %v2489, %v2521
      %v2526 = vmul.f32 %v2490, %v2521
      %v2527 = vmul.f32 %v2491, %v2521
      %v2528 = vmul.f32 %v2492, %v2521
      %v2529 = vmul.f32 %v2493, %v2521
      %v2530 = vmul.f32 %v2494, %v2521
      %v2531 = vmul.f32 %v2495, %v2521
      %v2532 = vmul.f32 %v2496, %v2521
      %v2533 = vmul.f32 %v2497, %v2521
      %v2534 = vmul.f32 %v2498, %v2521
      %v2535 = vmul.f32 %v2499, %v2521
      %v2536 = vmul.f32 %v2500, %v2521
      %v2537 = vmul.f32 %v2501, %v2521
      %v2538 = vmul.f32 %v2502, %v2521
      %v2539 = vmul.f32 %v2503, %v2521
      %v2540 = vmul.f32 %v2504, %v2521
      %v2541 = vmul.f32 %v2505, %v2521
      %v2542 = vmul.f32 %v2506, %v2521
      %v2543 = vmul.f32 %v2507, %v2521
      %v2544 = vmul.f32 %v2508, %v2521
      %v2545 = vmul.f32 %v2509, %v2521
      %v2546 = vmul.f32 %v2510, %v2521
      %v2547 = vmul.f32 %v2511, %v2521
      %v2548 = vmul.f32 %v2512, %v2521
      %v2549 = vmul.f32 %v2513, %v2521
      %v2550 = vmul.f32 %v2514, %v2521
      %v2551 = vmul.f32 %v2515, %v2521
      %v2552 = vmul.f32 %v2516, %v2521
      %v2553 = vmul.f32 %v2517, %v2521
      %v2554 = vadd.f32 %v2454, %v2522
      %v2555 = vadd.f32 %v2455, %v2523
      %v2556 = vadd.f32 %v2456, %v2524
      %v2557 = vadd.f32 %v2457, %v2525
      %v2558 = vadd.f32 %v2458, %v2526
      %v2559 = vadd.f32 %v2459, %v2527
      %v2560 = vadd.f32 %v2460, %v2528
      %v2561 = vadd.f32 %v2461, %v2529
      %v2562 = vadd.f32 %v2462, %v2530
      %v2563 = vadd.f32 %v2463, %v2531
      %v2564 = vadd.f32 %v2464, %v2532
      %v2565 = vadd.f32 %v2465, %v2533
      %v2566 = vadd.f32 %v2466, %v2534
      %v2567 = vadd.f32 %v2467, %v2535
      %v2568 = vadd.f32 %v2468, %v2536
      %v2569 = vadd.f32 %v2469, %v2537
      %v2570 = vadd.f32 %v2470, %v2538
      %v2571 = vadd.f32 %v2471, %v2539
      %v2572 = vadd.f32 %v2472, %v2540
      %v2573 = vadd.f32 %v2473, %v2541
      %v2574 = vadd.f32 %v2474, %v2542
      %v2575 = vadd.f32 %v2475, %v2543
      %v2576 = vadd.f32 %v2476, %v2544
      %v2577 = vadd.f32 %v2477, %v2545
      %v2578 = vadd.f32 %v2478, %v2546
      %v2579 = vadd.f32 %v2479, %v2547
      %v2580 = vadd.f32 %v2480, %v2548
      %v2581 = vadd.f32 %v2481, %v2549
      %v2582 = vadd.f32 %v2482, %v2550
      %v2583 = vadd.f32 %v2483, %v2551
      %v2584 = vadd.f32 %v2484, %v2552
      %v2585 = vadd.f32 %v2485, %v2553
      %v2586 = vld [vmem:[%s218 + $0x2] sm:$0xff]
      %v2587 = vld [vmem:[%s218 + $0xa] sm:$0xff]
      %v2588 = vld [vmem:[%s218 + $0x1a] sm:$0xff]
      %v2589 = vld [vmem:[%s218 + $0x22] sm:$0xff]
      %v2590 = vld [vmem:[%s218 + $0x32] sm:$0xff]
      %v2591 = vld [vmem:[%s218 + $0x3a] sm:$0xff]
      %v2592 = vld [vmem:[%s218 + $0x4a] sm:$0xff]
      %v2593 = vld [vmem:[%s218 + $0x52] sm:$0xff]
      %v2594 = vld [vmem:[%s218 + $0x62] sm:$0xff]
      %v2595 = vld [vmem:[%s218 + $0x6a] sm:$0xff]
      %v2596 = vld [vmem:[%s218 + $0x7a] sm:$0xff]
      %v2597 = vld [vmem:[%s218 + $0x82] sm:$0xff]
      %v2598 = vld [vmem:[%s218 + $0x92] sm:$0xff]
      %v2599 = vld [vmem:[%s218 + $0x9a] sm:$0xff]
      %v2600 = vld [vmem:[%s218 + $0xaa] sm:$0xff]
      %v2601 = vld [vmem:[%s218 + $0xb2] sm:$0xff]
      %v2602 = vld [vmem:[%s218 + $0xc2] sm:$0xff]
      %v2603 = vld [vmem:[%s218 + $0xca] sm:$0xff]
      %v2604 = vld [vmem:[%s218 + $0xda] sm:$0xff]
      %v2605 = vld [vmem:[%s218 + $0xe2] sm:$0xff]
      %v2606 = vld [vmem:[%s218 + $0xf2] sm:$0xff]
      %v2607 = vld [vmem:[%s218 + $0xfa] sm:$0xff]
      %v2608 = vld [vmem:[%s218 + $0x10a] sm:$0xff]
      %v2609 = vld [vmem:[%s218 + $0x112] sm:$0xff]
      %v2610 = vld [vmem:[%s218 + $0x122] sm:$0xff]
      %v2611 = vld [vmem:[%s218 + $0x12a] sm:$0xff]
      %v2612 = vld [vmem:[%s218 + $0x13a] sm:$0xff]
      %v2613 = vld [vmem:[%s218 + $0x142] sm:$0xff]
      %v2614 = vld [vmem:[%s218 + $0x152] sm:$0xff]
      %v2615 = vld [vmem:[%s218 + $0x15a] sm:$0xff]
      %v2616 = vld [vmem:[%s218 + $0x16a] sm:$0xff]
      %v2617 = vld [vmem:[%s218 + $0x172] sm:$0xff]
      %v2618 = vlaneseq
      %v2619 = vshrl.u32 %v2618, 7
      %v2620 = vsub.s32 2, %v2619
      %v2621 = vrot.slane %v214, %v2620
      %v2622 = vmul.f32 %v2586, %v2621
      %v2623 = vmul.f32 %v2587, %v2621
      %v2624 = vmul.f32 %v2588, %v2621
      %v2625 = vmul.f32 %v2589, %v2621
      %v2626 = vmul.f32 %v2590, %v2621
      %v2627 = vmul.f32 %v2591, %v2621
      %v2628 = vmul.f32 %v2592, %v2621
      %v2629 = vmul.f32 %v2593, %v2621
      %v2630 = vmul.f32 %v2594, %v2621
      %v2631 = vmul.f32 %v2595, %v2621
      %v2632 = vmul.f32 %v2596, %v2621
      %v2633 = vmul.f32 %v2597, %v2621
      %v2634 = vmul.f32 %v2598, %v2621
      %v2635 = vmul.f32 %v2599, %v2621
      %v2636 = vmul.f32 %v2600, %v2621
      %v2637 = vmul.f32 %v2601, %v2621
      %v2638 = vmul.f32 %v2602, %v2621
      %v2639 = vmul.f32 %v2603, %v2621
      %v2640 = vmul.f32 %v2604, %v2621
      %v2641 = vmul.f32 %v2605, %v2621
      %v2642 = vmul.f32 %v2606, %v2621
      %v2643 = vmul.f32 %v2607, %v2621
      %v2644 = vmul.f32 %v2608, %v2621
      %v2645 = vmul.f32 %v2609, %v2621
      %v2646 = vmul.f32 %v2610, %v2621
      %v2647 = vmul.f32 %v2611, %v2621
      %v2648 = vmul.f32 %v2612, %v2621
      %v2649 = vmul.f32 %v2613, %v2621
      %v2650 = vmul.f32 %v2614, %v2621
      %v2651 = vmul.f32 %v2615, %v2621
      %v2652 = vmul.f32 %v2616, %v2621
      %v2653 = vmul.f32 %v2617, %v2621
      %v2654 = vadd.f32 %v2554, %v2622
      %v2655 = vadd.f32 %v2555, %v2623
      %v2656 = vadd.f32 %v2556, %v2624
      %v2657 = vadd.f32 %v2557, %v2625
      %v2658 = vadd.f32 %v2558, %v2626
      %v2659 = vadd.f32 %v2559, %v2627
      %v2660 = vadd.f32 %v2560, %v2628
      %v2661 = vadd.f32 %v2561, %v2629
      %v2662 = vadd.f32 %v2562, %v2630
      %v2663 = vadd.f32 %v2563, %v2631
      %v2664 = vadd.f32 %v2564, %v2632
      %v2665 = vadd.f32 %v2565, %v2633
      %v2666 = vadd.f32 %v2566, %v2634
      %v2667 = vadd.f32 %v2567, %v2635
      %v2668 = vadd.f32 %v2568, %v2636
      %v2669 = vadd.f32 %v2569, %v2637
      %v2670 = vadd.f32 %v2570, %v2638
      %v2671 = vadd.f32 %v2571, %v2639
      %v2672 = vadd.f32 %v2572, %v2640
      %v2673 = vadd.f32 %v2573, %v2641
      %v2674 = vadd.f32 %v2574, %v2642
      %v2675 = vadd.f32 %v2575, %v2643
      %v2676 = vadd.f32 %v2576, %v2644
      %v2677 = vadd.f32 %v2577, %v2645
      %v2678 = vadd.f32 %v2578, %v2646
      %v2679 = vadd.f32 %v2579, %v2647
      %v2680 = vadd.f32 %v2580, %v2648
      %v2681 = vadd.f32 %v2581, %v2649
      %v2682 = vadd.f32 %v2582, %v2650
      %v2683 = vadd.f32 %v2583, %v2651
      %v2684 = vadd.f32 %v2584, %v2652
      %v2685 = vadd.f32 %v2585, %v2653
      %v2686 = vld [vmem:[%s218 + $0x3] sm:$0xff]
      %v2687 = vld [vmem:[%s218 + $0xb] sm:$0xff]
      %v2688 = vld [vmem:[%s218 + $0x1b] sm:$0xff]
      %v2689 = vld [vmem:[%s218 + $0x23] sm:$0xff]
      %v2690 = vld [vmem:[%s218 + $0x33] sm:$0xff]
      %v2691 = vld [vmem:[%s218 + $0x3b] sm:$0xff]
      %v2692 = vld [vmem:[%s218 + $0x4b] sm:$0xff]
      %v2693 = vld [vmem:[%s218 + $0x53] sm:$0xff]
      %v2694 = vld [vmem:[%s218 + $0x63] sm:$0xff]
      %v2695 = vld [vmem:[%s218 + $0x6b] sm:$0xff]
      %v2696 = vld [vmem:[%s218 + $0x7b] sm:$0xff]
      %v2697 = vld [vmem:[%s218 + $0x83] sm:$0xff]
      %v2698 = vld [vmem:[%s218 + $0x93] sm:$0xff]
      %v2699 = vld [vmem:[%s218 + $0x9b] sm:$0xff]
      %v2700 = vld [vmem:[%s218 + $0xab] sm:$0xff]
      %v2701 = vld [vmem:[%s218 + $0xb3] sm:$0xff]
      %v2702 = vld [vmem:[%s218 + $0xc3] sm:$0xff]
      %v2703 = vld [vmem:[%s218 + $0xcb] sm:$0xff]
      %v2704 = vld [vmem:[%s218 + $0xdb] sm:$0xff]
      %v2705 = vld [vmem:[%s218 + $0xe3] sm:$0xff]
      %v2706 = vld [vmem:[%s218 + $0xf3] sm:$0xff]
      %v2707 = vld [vmem:[%s218 + $0xfb] sm:$0xff]
      %v2708 = vld [vmem:[%s218 + $0x10b] sm:$0xff]
      %v2709 = vld [vmem:[%s218 + $0x113] sm:$0xff]
      %v2710 = vld [vmem:[%s218 + $0x123] sm:$0xff]
      %v2711 = vld [vmem:[%s218 + $0x12b] sm:$0xff]
      %v2712 = vld [vmem:[%s218 + $0x13b] sm:$0xff]
      %v2713 = vld [vmem:[%s218 + $0x143] sm:$0xff]
      %v2714 = vld [vmem:[%s218 + $0x153] sm:$0xff]
      %v2715 = vld [vmem:[%s218 + $0x15b] sm:$0xff]
      %v2716 = vld [vmem:[%s218 + $0x16b] sm:$0xff]
      %v2717 = vld [vmem:[%s218 + $0x173] sm:$0xff]
      %v2718 = vlaneseq
      %v2719 = vshrl.u32 %v2718, 7
      %v2720 = vsub.s32 3, %v2719
      %v2721 = vrot.slane %v214, %v2720
      %v2722 = vmul.f32 %v2686, %v2721
      %v2723 = vmul.f32 %v2687, %v2721
      %v2724 = vmul.f32 %v2688, %v2721
      %v2725 = vmul.f32 %v2689, %v2721
      %v2726 = vmul.f32 %v2690, %v2721
      %v2727 = vmul.f32 %v2691, %v2721
      %v2728 = vmul.f32 %v2692, %v2721
      %v2729 = vmul.f32 %v2693, %v2721
      %v2730 = vmul.f32 %v2694, %v2721
      %v2731 = vmul.f32 %v2695, %v2721
      %v2732 = vmul.f32 %v2696, %v2721
      %v2733 = vmul.f32 %v2697, %v2721
      %v2734 = vmul.f32 %v2698, %v2721
      %v2735 = vmul.f32 %v2699, %v2721
      %v2736 = vmul.f32 %v2700, %v2721
      %v2737 = vmul.f32 %v2701, %v2721
      %v2738 = vmul.f32 %v2702, %v2721
      %v2739 = vmul.f32 %v2703, %v2721
      %v2740 = vmul.f32 %v2704, %v2721
      %v2741 = vmul.f32 %v2705, %v2721
      %v2742 = vmul.f32 %v2706, %v2721
      %v2743 = vmul.f32 %v2707, %v2721
      %v2744 = vmul.f32 %v2708, %v2721
      %v2745 = vmul.f32 %v2709, %v2721
      %v2746 = vmul.f32 %v2710, %v2721
      %v2747 = vmul.f32 %v2711, %v2721
      %v2748 = vmul.f32 %v2712, %v2721
      %v2749 = vmul.f32 %v2713, %v2721
      %v2750 = vmul.f32 %v2714, %v2721
      %v2751 = vmul.f32 %v2715, %v2721
      %v2752 = vmul.f32 %v2716, %v2721
      %v2753 = vmul.f32 %v2717, %v2721
      %v2754 = vadd.f32 %v2654, %v2722
      %v2755 = vadd.f32 %v2655, %v2723
      %v2756 = vadd.f32 %v2656, %v2724
      %v2757 = vadd.f32 %v2657, %v2725
      %v2758 = vadd.f32 %v2658, %v2726
      %v2759 = vadd.f32 %v2659, %v2727
      %v2760 = vadd.f32 %v2660, %v2728
      %v2761 = vadd.f32 %v2661, %v2729
      %v2762 = vadd.f32 %v2662, %v2730
      %v2763 = vadd.f32 %v2663, %v2731
      %v2764 = vadd.f32 %v2664, %v2732
      %v2765 = vadd.f32 %v2665, %v2733
      %v2766 = vadd.f32 %v2666, %v2734
      %v2767 = vadd.f32 %v2667, %v2735
      %v2768 = vadd.f32 %v2668, %v2736
      %v2769 = vadd.f32 %v2669, %v2737
      %v2770 = vadd.f32 %v2670, %v2738
      %v2771 = vadd.f32 %v2671, %v2739
      %v2772 = vadd.f32 %v2672, %v2740
      %v2773 = vadd.f32 %v2673, %v2741
      %v2774 = vadd.f32 %v2674, %v2742
      %v2775 = vadd.f32 %v2675, %v2743
      %v2776 = vadd.f32 %v2676, %v2744
      %v2777 = vadd.f32 %v2677, %v2745
      %v2778 = vadd.f32 %v2678, %v2746
      %v2779 = vadd.f32 %v2679, %v2747
      %v2780 = vadd.f32 %v2680, %v2748
      %v2781 = vadd.f32 %v2681, %v2749
      %v2782 = vadd.f32 %v2682, %v2750
      %v2783 = vadd.f32 %v2683, %v2751
      %v2784 = vadd.f32 %v2684, %v2752
      %v2785 = vadd.f32 %v2685, %v2753
      %v2786 = vld [vmem:[%s218 + $0x4] sm:$0xff]
      %v2787 = vld [vmem:[%s218 + $0xc] sm:$0xff]
      %v2788 = vld [vmem:[%s218 + $0x1c] sm:$0xff]
      %v2789 = vld [vmem:[%s218 + $0x24] sm:$0xff]
      %v2790 = vld [vmem:[%s218 + $0x34] sm:$0xff]
      %v2791 = vld [vmem:[%s218 + $0x3c] sm:$0xff]
      %v2792 = vld [vmem:[%s218 + $0x4c] sm:$0xff]
      %v2793 = vld [vmem:[%s218 + $0x54] sm:$0xff]
      %v2794 = vld [vmem:[%s218 + $0x64] sm:$0xff]
      %v2795 = vld [vmem:[%s218 + $0x6c] sm:$0xff]
      %v2796 = vld [vmem:[%s218 + $0x7c] sm:$0xff]
      %v2797 = vld [vmem:[%s218 + $0x84] sm:$0xff]
      %v2798 = vld [vmem:[%s218 + $0x94] sm:$0xff]
      %v2799 = vld [vmem:[%s218 + $0x9c] sm:$0xff]
      %v2800 = vld [vmem:[%s218 + $0xac] sm:$0xff]
      %v2801 = vld [vmem:[%s218 + $0xb4] sm:$0xff]
      %v2802 = vld [vmem:[%s218 + $0xc4] sm:$0xff]
      %v2803 = vld [vmem:[%s218 + $0xcc] sm:$0xff]
      %v2804 = vld [vmem:[%s218 + $0xdc] sm:$0xff]
      %v2805 = vld [vmem:[%s218 + $0xe4] sm:$0xff]
      %v2806 = vld [vmem:[%s218 + $0xf4] sm:$0xff]
      %v2807 = vld [vmem:[%s218 + $0xfc] sm:$0xff]
      %v2808 = vld [vmem:[%s218 + $0x10c] sm:$0xff]
      %v2809 = vld [vmem:[%s218 + $0x114] sm:$0xff]
      %v2810 = vld [vmem:[%s218 + $0x124] sm:$0xff]
      %v2811 = vld [vmem:[%s218 + $0x12c] sm:$0xff]
      %v2812 = vld [vmem:[%s218 + $0x13c] sm:$0xff]
      %v2813 = vld [vmem:[%s218 + $0x144] sm:$0xff]
      %v2814 = vld [vmem:[%s218 + $0x154] sm:$0xff]
      %v2815 = vld [vmem:[%s218 + $0x15c] sm:$0xff]
      %v2816 = vld [vmem:[%s218 + $0x16c] sm:$0xff]
      %v2817 = vld [vmem:[%s218 + $0x174] sm:$0xff]
      %v2818 = vlaneseq
      %v2819 = vshrl.u32 %v2818, 7
      %v2820 = vsub.s32 4, %v2819
      %v2821 = vrot.slane %v214, %v2820
      %v2822 = vmul.f32 %v2786, %v2821
      %v2823 = vmul.f32 %v2787, %v2821
      %v2824 = vmul.f32 %v2788, %v2821
      %v2825 = vmul.f32 %v2789, %v2821
      %v2826 = vmul.f32 %v2790, %v2821
      %v2827 = vmul.f32 %v2791, %v2821
      %v2828 = vmul.f32 %v2792, %v2821
      %v2829 = vmul.f32 %v2793, %v2821
      %v2830 = vmul.f32 %v2794, %v2821
      %v2831 = vmul.f32 %v2795, %v2821
      %v2832 = vmul.f32 %v2796, %v2821
      %v2833 = vmul.f32 %v2797, %v2821
      %v2834 = vmul.f32 %v2798, %v2821
      %v2835 = vmul.f32 %v2799, %v2821
      %v2836 = vmul.f32 %v2800, %v2821
      %v2837 = vmul.f32 %v2801, %v2821
      %v2838 = vmul.f32 %v2802, %v2821
      %v2839 = vmul.f32 %v2803, %v2821
      %v2840 = vmul.f32 %v2804, %v2821
      %v2841 = vmul.f32 %v2805, %v2821
      %v2842 = vmul.f32 %v2806, %v2821
      %v2843 = vmul.f32 %v2807, %v2821
      %v2844 = vmul.f32 %v2808, %v2821
      %v2845 = vmul.f32 %v2809, %v2821
      %v2846 = vmul.f32 %v2810, %v2821
      %v2847 = vmul.f32 %v2811, %v2821
      %v2848 = vmul.f32 %v2812, %v2821
      %v2849 = vmul.f32 %v2813, %v2821
      %v2850 = vmul.f32 %v2814, %v2821
      %v2851 = vmul.f32 %v2815, %v2821
      %v2852 = vmul.f32 %v2816, %v2821
      %v2853 = vmul.f32 %v2817, %v2821
      %v2854 = vadd.f32 %v2754, %v2822
      %v2855 = vadd.f32 %v2755, %v2823
      %v2856 = vadd.f32 %v2756, %v2824
      %v2857 = vadd.f32 %v2757, %v2825
      %v2858 = vadd.f32 %v2758, %v2826
      %v2859 = vadd.f32 %v2759, %v2827
      %v2860 = vadd.f32 %v2760, %v2828
      %v2861 = vadd.f32 %v2761, %v2829
      %v2862 = vadd.f32 %v2762, %v2830
      %v2863 = vadd.f32 %v2763, %v2831
      %v2864 = vadd.f32 %v2764, %v2832
      %v2865 = vadd.f32 %v2765, %v2833
      %v2866 = vadd.f32 %v2766, %v2834
      %v2867 = vadd.f32 %v2767, %v2835
      %v2868 = vadd.f32 %v2768, %v2836
      %v2869 = vadd.f32 %v2769, %v2837
      %v2870 = vadd.f32 %v2770, %v2838
      %v2871 = vadd.f32 %v2771, %v2839
      %v2872 = vadd.f32 %v2772, %v2840
      %v2873 = vadd.f32 %v2773, %v2841
      %v2874 = vadd.f32 %v2774, %v2842
      %v2875 = vadd.f32 %v2775, %v2843
      %v2876 = vadd.f32 %v2776, %v2844
      %v2877 = vadd.f32 %v2777, %v2845
      %v2878 = vadd.f32 %v2778, %v2846
      %v2879 = vadd.f32 %v2779, %v2847
      %v2880 = vadd.f32 %v2780, %v2848
      %v2881 = vadd.f32 %v2781, %v2849
      %v2882 = vadd.f32 %v2782, %v2850
      %v2883 = vadd.f32 %v2783, %v2851
      %v2884 = vadd.f32 %v2784, %v2852
      %v2885 = vadd.f32 %v2785, %v2853
      %v2886 = vld [vmem:[%s218 + $0x5] sm:$0xff]
      %v2887 = vld [vmem:[%s218 + $0xd] sm:$0xff]
      %v2888 = vld [vmem:[%s218 + $0x1d] sm:$0xff]
      %v2889 = vld [vmem:[%s218 + $0x25] sm:$0xff]
      %v2890 = vld [vmem:[%s218 + $0x35] sm:$0xff]
      %v2891 = vld [vmem:[%s218 + $0x3d] sm:$0xff]
      %v2892 = vld [vmem:[%s218 + $0x4d] sm:$0xff]
      %v2893 = vld [vmem:[%s218 + $0x55] sm:$0xff]
      %v2894 = vld [vmem:[%s218 + $0x65] sm:$0xff]
      %v2895 = vld [vmem:[%s218 + $0x6d] sm:$0xff]
      %v2896 = vld [vmem:[%s218 + $0x7d] sm:$0xff]
      %v2897 = vld [vmem:[%s218 + $0x85] sm:$0xff]
      %v2898 = vld [vmem:[%s218 + $0x95] sm:$0xff]
      %v2899 = vld [vmem:[%s218 + $0x9d] sm:$0xff]
      %v2900 = vld [vmem:[%s218 + $0xad] sm:$0xff]
      %v2901 = vld [vmem:[%s218 + $0xb5] sm:$0xff]
      %v2902 = vld [vmem:[%s218 + $0xc5] sm:$0xff]
      %v2903 = vld [vmem:[%s218 + $0xcd] sm:$0xff]
      %v2904 = vld [vmem:[%s218 + $0xdd] sm:$0xff]
      %v2905 = vld [vmem:[%s218 + $0xe5] sm:$0xff]
      %v2906 = vld [vmem:[%s218 + $0xf5] sm:$0xff]
      %v2907 = vld [vmem:[%s218 + $0xfd] sm:$0xff]
      %v2908 = vld [vmem:[%s218 + $0x10d] sm:$0xff]
      %v2909 = vld [vmem:[%s218 + $0x115] sm:$0xff]
      %v2910 = vld [vmem:[%s218 + $0x125] sm:$0xff]
      %v2911 = vld [vmem:[%s218 + $0x12d] sm:$0xff]
      %v2912 = vld [vmem:[%s218 + $0x13d] sm:$0xff]
      %v2913 = vld [vmem:[%s218 + $0x145] sm:$0xff]
      %v2914 = vld [vmem:[%s218 + $0x155] sm:$0xff]
      %v2915 = vld [vmem:[%s218 + $0x15d] sm:$0xff]
      %v2916 = vld [vmem:[%s218 + $0x16d] sm:$0xff]
      %v2917 = vld [vmem:[%s218 + $0x175] sm:$0xff]
      %v2918 = vlaneseq
      %v2919 = vshrl.u32 %v2918, 7
      %v2920 = vsub.s32 5, %v2919
      %v2921 = vrot.slane %v214, %v2920
      %v2922 = vmul.f32 %v2886, %v2921
      %v2923 = vmul.f32 %v2887, %v2921
      %v2924 = vmul.f32 %v2888, %v2921
      %v2925 = vmul.f32 %v2889, %v2921
      %v2926 = vmul.f32 %v2890, %v2921
      %v2927 = vmul.f32 %v2891, %v2921
      %v2928 = vmul.f32 %v2892, %v2921
      %v2929 = vmul.f32 %v2893, %v2921
      %v2930 = vmul.f32 %v2894, %v2921
      %v2931 = vmul.f32 %v2895, %v2921
      %v2932 = vmul.f32 %v2896, %v2921
      %v2933 = vmul.f32 %v2897, %v2921
      %v2934 = vmul.f32 %v2898, %v2921
      %v2935 = vmul.f32 %v2899, %v2921
      %v2936 = vmul.f32 %v2900, %v2921
      %v2937 = vmul.f32 %v2901, %v2921
      %v2938 = vmul.f32 %v2902, %v2921
      %v2939 = vmul.f32 %v2903, %v2921
      %v2940 = vmul.f32 %v2904, %v2921
      %v2941 = vmul.f32 %v2905, %v2921
      %v2942 = vmul.f32 %v2906, %v2921
      %v2943 = vmul.f32 %v2907, %v2921
      %v2944 = vmul.f32 %v2908, %v2921
      %v2945 = vmul.f32 %v2909, %v2921
      %v2946 = vmul.f32 %v2910, %v2921
      %v2947 = vmul.f32 %v2911, %v2921
      %v2948 = vmul.f32 %v2912, %v2921
      %v2949 = vmul.f32 %v2913, %v2921
      %v2950 = vmul.f32 %v2914, %v2921
      %v2951 = vmul.f32 %v2915, %v2921
      %v2952 = vmul.f32 %v2916, %v2921
      %v2953 = vmul.f32 %v2917, %v2921
      %v2954 = vadd.f32 %v2854, %v2922
      %v2955 = vadd.f32 %v2855, %v2923
      %v2956 = vadd.f32 %v2856, %v2924
      %v2957 = vadd.f32 %v2857, %v2925
      %v2958 = vadd.f32 %v2858, %v2926
      %v2959 = vadd.f32 %v2859, %v2927
      %v2960 = vadd.f32 %v2860, %v2928
      %v2961 = vadd.f32 %v2861, %v2929
      %v2962 = vadd.f32 %v2862, %v2930
      %v2963 = vadd.f32 %v2863, %v2931
      %v2964 = vadd.f32 %v2864, %v2932
      %v2965 = vadd.f32 %v2865, %v2933
      %v2966 = vadd.f32 %v2866, %v2934
      %v2967 = vadd.f32 %v2867, %v2935
      %v2968 = vadd.f32 %v2868, %v2936
      %v2969 = vadd.f32 %v2869, %v2937
      %v2970 = vadd.f32 %v2870, %v2938
      %v2971 = vadd.f32 %v2871, %v2939
      %v2972 = vadd.f32 %v2872, %v2940
      %v2973 = vadd.f32 %v2873, %v2941
      %v2974 = vadd.f32 %v2874, %v2942
      %v2975 = vadd.f32 %v2875, %v2943
      %v2976 = vadd.f32 %v2876, %v2944
      %v2977 = vadd.f32 %v2877, %v2945
      %v2978 = vadd.f32 %v2878, %v2946
      %v2979 = vadd.f32 %v2879, %v2947
      %v2980 = vadd.f32 %v2880, %v2948
      %v2981 = vadd.f32 %v2881, %v2949
      %v2982 = vadd.f32 %v2882, %v2950
      %v2983 = vadd.f32 %v2883, %v2951
      %v2984 = vadd.f32 %v2884, %v2952
      %v2985 = vadd.f32 %v2885, %v2953
      %v2986 = vld [vmem:[%s218 + $0x6] sm:$0xff]
      %v2987 = vld [vmem:[%s218 + $0xe] sm:$0xff]
      %v2988 = vld [vmem:[%s218 + $0x1e] sm:$0xff]
      %v2989 = vld [vmem:[%s218 + $0x26] sm:$0xff]
      %v2990 = vld [vmem:[%s218 + $0x36] sm:$0xff]
      %v2991 = vld [vmem:[%s218 + $0x3e] sm:$0xff]
      %v2992 = vld [vmem:[%s218 + $0x4e] sm:$0xff]
      %v2993 = vld [vmem:[%s218 + $0x56] sm:$0xff]
      %v2994 = vld [vmem:[%s218 + $0x66] sm:$0xff]
      %v2995 = vld [vmem:[%s218 + $0x6e] sm:$0xff]
      %v2996 = vld [vmem:[%s218 + $0x7e] sm:$0xff]
      %v2997 = vld [vmem:[%s218 + $0x86] sm:$0xff]
      %v2998 = vld [vmem:[%s218 + $0x96] sm:$0xff]
      %v2999 = vld [vmem:[%s218 + $0x9e] sm:$0xff]
      %v3000 = vld [vmem:[%s218 + $0xae] sm:$0xff]
      %v3001 = vld [vmem:[%s218 + $0xb6] sm:$0xff]
      %v3002 = vld [vmem:[%s218 + $0xc6] sm:$0xff]
      %v3003 = vld [vmem:[%s218 + $0xce] sm:$0xff]
      %v3004 = vld [vmem:[%s218 + $0xde] sm:$0xff]
      %v3005 = vld [vmem:[%s218 + $0xe6] sm:$0xff]
      %v3006 = vld [vmem:[%s218 + $0xf6] sm:$0xff]
      %v3007 = vld [vmem:[%s218 + $0xfe] sm:$0xff]
      %v3008 = vld [vmem:[%s218 + $0x10e] sm:$0xff]
      %v3009 = vld [vmem:[%s218 + $0x116] sm:$0xff]
      %v3010 = vld [vmem:[%s218 + $0x126] sm:$0xff]
      %v3011 = vld [vmem:[%s218 + $0x12e] sm:$0xff]
      %v3012 = vld [vmem:[%s218 + $0x13e] sm:$0xff]
      %v3013 = vld [vmem:[%s218 + $0x146] sm:$0xff]
      %v3014 = vld [vmem:[%s218 + $0x156] sm:$0xff]
      %v3015 = vld [vmem:[%s218 + $0x15e] sm:$0xff]
      %v3016 = vld [vmem:[%s218 + $0x16e] sm:$0xff]
      %v3017 = vld [vmem:[%s218 + $0x176] sm:$0xff]
      %v3018 = vlaneseq
      %v3019 = vshrl.u32 %v3018, 7
      %v3020 = vsub.s32 6, %v3019
      %v3021 = vrot.slane %v214, %v3020
      %v3022 = vmul.f32 %v2986, %v3021
      %v3023 = vmul.f32 %v2987, %v3021
      %v3024 = vmul.f32 %v2988, %v3021
      %v3025 = vmul.f32 %v2989, %v3021
      %v3026 = vmul.f32 %v2990, %v3021
      %v3027 = vmul.f32 %v2991, %v3021
      %v3028 = vmul.f32 %v2992, %v3021
      %v3029 = vmul.f32 %v2993, %v3021
      %v3030 = vmul.f32 %v2994, %v3021
      %v3031 = vmul.f32 %v2995, %v3021
      %v3032 = vmul.f32 %v2996, %v3021
      %v3033 = vmul.f32 %v2997, %v3021
      %v3034 = vmul.f32 %v2998, %v3021
      %v3035 = vmul.f32 %v2999, %v3021
      %v3036 = vmul.f32 %v3000, %v3021
      %v3037 = vmul.f32 %v3001, %v3021
      %v3038 = vmul.f32 %v3002, %v3021
      %v3039 = vmul.f32 %v3003, %v3021
      %v3040 = vmul.f32 %v3004, %v3021
      %v3041 = vmul.f32 %v3005, %v3021
      %v3042 = vmul.f32 %v3006, %v3021
      %v3043 = vmul.f32 %v3007, %v3021
      %v3044 = vmul.f32 %v3008, %v3021
      %v3045 = vmul.f32 %v3009, %v3021
      %v3046 = vmul.f32 %v3010, %v3021
      %v3047 = vmul.f32 %v3011, %v3021
      %v3048 = vmul.f32 %v3012, %v3021
      %v3049 = vmul.f32 %v3013, %v3021
      %v3050 = vmul.f32 %v3014, %v3021
      %v3051 = vmul.f32 %v3015, %v3021
      %v3052 = vmul.f32 %v3016, %v3021
      %v3053 = vmul.f32 %v3017, %v3021
      %v3054 = vadd.f32 %v2954, %v3022
      %v3055 = vadd.f32 %v2955, %v3023
      %v3056 = vadd.f32 %v2956, %v3024
      %v3057 = vadd.f32 %v2957, %v3025
      %v3058 = vadd.f32 %v2958, %v3026
      %v3059 = vadd.f32 %v2959, %v3027
      %v3060 = vadd.f32 %v2960, %v3028
      %v3061 = vadd.f32 %v2961, %v3029
      %v3062 = vadd.f32 %v2962, %v3030
      %v3063 = vadd.f32 %v2963, %v3031
      %v3064 = vadd.f32 %v2964, %v3032
      %v3065 = vadd.f32 %v2965, %v3033
      %v3066 = vadd.f32 %v2966, %v3034
      %v3067 = vadd.f32 %v2967, %v3035
      %v3068 = vadd.f32 %v2968, %v3036
      %v3069 = vadd.f32 %v2969, %v3037
      %v3070 = vadd.f32 %v2970, %v3038
      %v3071 = vadd.f32 %v2971, %v3039
      %v3072 = vadd.f32 %v2972, %v3040
      %v3073 = vadd.f32 %v2973, %v3041
      %v3074 = vadd.f32 %v2974, %v3042
      %v3075 = vadd.f32 %v2975, %v3043
      %v3076 = vadd.f32 %v2976, %v3044
      %v3077 = vadd.f32 %v2977, %v3045
      %v3078 = vadd.f32 %v2978, %v3046
      %v3079 = vadd.f32 %v2979, %v3047
      %v3080 = vadd.f32 %v2980, %v3048
      %v3081 = vadd.f32 %v2981, %v3049
      %v3082 = vadd.f32 %v2982, %v3050
      %v3083 = vadd.f32 %v2983, %v3051
      %v3084 = vadd.f32 %v2984, %v3052
      %v3085 = vadd.f32 %v2985, %v3053
      %s3086 = scalar_lea.vmem %s200, 96
      %v3087 = vld [vmem:[%s3086] sm:$0xff]
      %v3088 = vld [vmem:[%s3086 + $0x8] sm:$0xff]
      %v3089 = vld [vmem:[%s3086 + $0x18] sm:$0xff]
      %v3090 = vld [vmem:[%s3086 + $0x20] sm:$0xff]
      %v3091 = vld [vmem:[%s3086 + $0x30] sm:$0xff]
      %v3092 = vld [vmem:[%s3086 + $0x38] sm:$0xff]
      %v3093 = vld [vmem:[%s3086 + $0x48] sm:$0xff]
      %v3094 = vld [vmem:[%s3086 + $0x50] sm:$0xff]
      %v3095 = vld [vmem:[%s3086 + $0x60] sm:$0xff]
      %v3096 = vld [vmem:[%s3086 + $0x68] sm:$0xff]
      %v3097 = vld [vmem:[%s3086 + $0x78] sm:$0xff]
      %v3098 = vld [vmem:[%s3086 + $0x80] sm:$0xff]
      %v3099 = vld [vmem:[%s3086 + $0x90] sm:$0xff]
      %v3100 = vld [vmem:[%s3086 + $0x98] sm:$0xff]
      %v3101 = vld [vmem:[%s3086 + $0xa8] sm:$0xff]
      %v3102 = vld [vmem:[%s3086 + $0xb0] sm:$0xff]
      %v3103 = vld [vmem:[%s3086 + $0xc0] sm:$0xff]
      %v3104 = vld [vmem:[%s3086 + $0xc8] sm:$0xff]
      %v3105 = vld [vmem:[%s3086 + $0xd8] sm:$0xff]
      %v3106 = vld [vmem:[%s3086 + $0xe0] sm:$0xff]
      %v3107 = vld [vmem:[%s3086 + $0xf0] sm:$0xff]
      %v3108 = vld [vmem:[%s3086 + $0xf8] sm:$0xff]
      %v3109 = vld [vmem:[%s3086 + $0x108] sm:$0xff]
      %v3110 = vld [vmem:[%s3086 + $0x110] sm:$0xff]
      %v3111 = vld [vmem:[%s3086 + $0x120] sm:$0xff]
      %v3112 = vld [vmem:[%s3086 + $0x128] sm:$0xff]
      %v3113 = vld [vmem:[%s3086 + $0x138] sm:$0xff]
      %v3114 = vld [vmem:[%s3086 + $0x140] sm:$0xff]
      %v3115 = vld [vmem:[%s3086 + $0x150] sm:$0xff]
      %v3116 = vld [vmem:[%s3086 + $0x158] sm:$0xff]
      %v3117 = vld [vmem:[%s3086 + $0x168] sm:$0xff]
      %v3118 = vld [vmem:[%s3086 + $0x170] sm:$0xff]
      %v3119 = vlaneseq
      %v3120 = vshrl.u32 %v3119, 7
      %v3121 = vsub.s32 0, %v3120
      %v3122 = vrot.slane %v215, %v3121
      %v3123 = vmul.f32 %v3087, %v3122
      %v3124 = vmul.f32 %v3088, %v3122
      %v3125 = vmul.f32 %v3089, %v3122
      %v3126 = vmul.f32 %v3090, %v3122
      %v3127 = vmul.f32 %v3091, %v3122
      %v3128 = vmul.f32 %v3092, %v3122
      %v3129 = vmul.f32 %v3093, %v3122
      %v3130 = vmul.f32 %v3094, %v3122
      %v3131 = vmul.f32 %v3095, %v3122
      %v3132 = vmul.f32 %v3096, %v3122
      %v3133 = vmul.f32 %v3097, %v3122
      %v3134 = vmul.f32 %v3098, %v3122
      %v3135 = vmul.f32 %v3099, %v3122
      %v3136 = vmul.f32 %v3100, %v3122
      %v3137 = vmul.f32 %v3101, %v3122
      %v3138 = vmul.f32 %v3102, %v3122
      %v3139 = vmul.f32 %v3103, %v3122
      %v3140 = vmul.f32 %v3104, %v3122
      %v3141 = vmul.f32 %v3105, %v3122
      %v3142 = vmul.f32 %v3106, %v3122
      %v3143 = vmul.f32 %v3107, %v3122
      %v3144 = vmul.f32 %v3108, %v3122
      %v3145 = vmul.f32 %v3109, %v3122
      %v3146 = vmul.f32 %v3110, %v3122
      %v3147 = vmul.f32 %v3111, %v3122
      %v3148 = vmul.f32 %v3112, %v3122
      %v3149 = vmul.f32 %v3113, %v3122
      %v3150 = vmul.f32 %v3114, %v3122
      %v3151 = vmul.f32 %v3115, %v3122
      %v3152 = vmul.f32 %v3116, %v3122
      %v3153 = vmul.f32 %v3117, %v3122
      %v3154 = vmul.f32 %v3118, %v3122
      %v3155 = vadd.f32 %v3054, %v3123
      %v3156 = vadd.f32 %v3055, %v3124
      %v3157 = vadd.f32 %v3056, %v3125
      %v3158 = vadd.f32 %v3057, %v3126
      %v3159 = vadd.f32 %v3058, %v3127
      %v3160 = vadd.f32 %v3059, %v3128
      %v3161 = vadd.f32 %v3060, %v3129
      %v3162 = vadd.f32 %v3061, %v3130
      %v3163 = vadd.f32 %v3062, %v3131
      %v3164 = vadd.f32 %v3063, %v3132
      %v3165 = vadd.f32 %v3064, %v3133
      %v3166 = vadd.f32 %v3065, %v3134
      %v3167 = vadd.f32 %v3066, %v3135
      %v3168 = vadd.f32 %v3067, %v3136
      %v3169 = vadd.f32 %v3068, %v3137
      %v3170 = vadd.f32 %v3069, %v3138
      %v3171 = vadd.f32 %v3070, %v3139
      %v3172 = vadd.f32 %v3071, %v3140
      %v3173 = vadd.f32 %v3072, %v3141
      %v3174 = vadd.f32 %v3073, %v3142
      %v3175 = vadd.f32 %v3074, %v3143
      %v3176 = vadd.f32 %v3075, %v3144
      %v3177 = vadd.f32 %v3076, %v3145
      %v3178 = vadd.f32 %v3077, %v3146
      %v3179 = vadd.f32 %v3078, %v3147
      %v3180 = vadd.f32 %v3079, %v3148
      %v3181 = vadd.f32 %v3080, %v3149
      %v3182 = vadd.f32 %v3081, %v3150
      %v3183 = vadd.f32 %v3082, %v3151
      %v3184 = vadd.f32 %v3083, %v3152
      %v3185 = vadd.f32 %v3084, %v3153
      %v3186 = vadd.f32 %v3085, %v3154
      %v3187 = vld [vmem:[%s3086 + $0x1] sm:$0xff]
      %v3188 = vld [vmem:[%s3086 + $0x9] sm:$0xff]
      %v3189 = vld [vmem:[%s3086 + $0x19] sm:$0xff]
      %v3190 = vld [vmem:[%s3086 + $0x21] sm:$0xff]
      %v3191 = vld [vmem:[%s3086 + $0x31] sm:$0xff]
      %v3192 = vld [vmem:[%s3086 + $0x39] sm:$0xff]
      %v3193 = vld [vmem:[%s3086 + $0x49] sm:$0xff]
      %v3194 = vld [vmem:[%s3086 + $0x51] sm:$0xff]
      %v3195 = vld [vmem:[%s3086 + $0x61] sm:$0xff]
      %v3196 = vld [vmem:[%s3086 + $0x69] sm:$0xff]
      %v3197 = vld [vmem:[%s3086 + $0x79] sm:$0xff]
      %v3198 = vld [vmem:[%s3086 + $0x81] sm:$0xff]
      %v3199 = vld [vmem:[%s3086 + $0x91] sm:$0xff]
      %v3200 = vld [vmem:[%s3086 + $0x99] sm:$0xff]
      %v3201 = vld [vmem:[%s3086 + $0xa9] sm:$0xff]
      %v3202 = vld [vmem:[%s3086 + $0xb1] sm:$0xff]
      %v3203 = vld [vmem:[%s3086 + $0xc1] sm:$0xff]
      %v3204 = vld [vmem:[%s3086 + $0xc9] sm:$0xff]
      %v3205 = vld [vmem:[%s3086 + $0xd9] sm:$0xff]
      %v3206 = vld [vmem:[%s3086 + $0xe1] sm:$0xff]
      %v3207 = vld [vmem:[%s3086 + $0xf1] sm:$0xff]
      %v3208 = vld [vmem:[%s3086 + $0xf9] sm:$0xff]
      %v3209 = vld [vmem:[%s3086 + $0x109] sm:$0xff]
      %v3210 = vld [vmem:[%s3086 + $0x111] sm:$0xff]
      %v3211 = vld [vmem:[%s3086 + $0x121] sm:$0xff]
      %v3212 = vld [vmem:[%s3086 + $0x129] sm:$0xff]
      %v3213 = vld [vmem:[%s3086 + $0x139] sm:$0xff]
      %v3214 = vld [vmem:[%s3086 + $0x141] sm:$0xff]
      %v3215 = vld [vmem:[%s3086 + $0x151] sm:$0xff]
      %v3216 = vld [vmem:[%s3086 + $0x159] sm:$0xff]
      %v3217 = vld [vmem:[%s3086 + $0x169] sm:$0xff]
      %v3218 = vld [vmem:[%s3086 + $0x171] sm:$0xff]
      %v3219 = vlaneseq
      %v3220 = vshrl.u32 %v3219, 7
      %v3221 = vsub.s32 1, %v3220
      %v3222 = vrot.slane %v215, %v3221
      %v3223 = vmul.f32 %v3187, %v3222
      %v3224 = vmul.f32 %v3188, %v3222
      %v3225 = vmul.f32 %v3189, %v3222
      %v3226 = vmul.f32 %v3190, %v3222
      %v3227 = vmul.f32 %v3191, %v3222
      %v3228 = vmul.f32 %v3192, %v3222
      %v3229 = vmul.f32 %v3193, %v3222
      %v3230 = vmul.f32 %v3194, %v3222
      %v3231 = vmul.f32 %v3195, %v3222
      %v3232 = vmul.f32 %v3196, %v3222
      %v3233 = vmul.f32 %v3197, %v3222
      %v3234 = vmul.f32 %v3198, %v3222
      %v3235 = vmul.f32 %v3199, %v3222
      %v3236 = vmul.f32 %v3200, %v3222
      %v3237 = vmul.f32 %v3201, %v3222
      %v3238 = vmul.f32 %v3202, %v3222
      %v3239 = vmul.f32 %v3203, %v3222
      %v3240 = vmul.f32 %v3204, %v3222
      %v3241 = vmul.f32 %v3205, %v3222
      %v3242 = vmul.f32 %v3206, %v3222
      %v3243 = vmul.f32 %v3207, %v3222
      %v3244 = vmul.f32 %v3208, %v3222
      %v3245 = vmul.f32 %v3209, %v3222
      %v3246 = vmul.f32 %v3210, %v3222
      %v3247 = vmul.f32 %v3211, %v3222
      %v3248 = vmul.f32 %v3212, %v3222
      %v3249 = vmul.f32 %v3213, %v3222
      %v3250 = vmul.f32 %v3214, %v3222
      %v3251 = vmul.f32 %v3215, %v3222
      %v3252 = vmul.f32 %v3216, %v3222
      %v3253 = vmul.f32 %v3217, %v3222
      %v3254 = vmul.f32 %v3218, %v3222
      %v3255 = vadd.f32 %v3155, %v3223
      %v3256 = vadd.f32 %v3156, %v3224
      %v3257 = vadd.f32 %v3157, %v3225
      %v3258 = vadd.f32 %v3158, %v3226
      %v3259 = vadd.f32 %v3159, %v3227
      %v3260 = vadd.f32 %v3160, %v3228
      %v3261 = vadd.f32 %v3161, %v3229
      %v3262 = vadd.f32 %v3162, %v3230
      %v3263 = vadd.f32 %v3163, %v3231
      %v3264 = vadd.f32 %v3164, %v3232
      %v3265 = vadd.f32 %v3165, %v3233
      %v3266 = vadd.f32 %v3166, %v3234
      %v3267 = vadd.f32 %v3167, %v3235
      %v3268 = vadd.f32 %v3168, %v3236
      %v3269 = vadd.f32 %v3169, %v3237
      %v3270 = vadd.f32 %v3170, %v3238
      %v3271 = vadd.f32 %v3171, %v3239
      %v3272 = vadd.f32 %v3172, %v3240
      %v3273 = vadd.f32 %v3173, %v3241
      %v3274 = vadd.f32 %v3174, %v3242
      %v3275 = vadd.f32 %v3175, %v3243
      %v3276 = vadd.f32 %v3176, %v3244
      %v3277 = vadd.f32 %v3177, %v3245
      %v3278 = vadd.f32 %v3178, %v3246
      %v3279 = vadd.f32 %v3179, %v3247
      %v3280 = vadd.f32 %v3180, %v3248
      %v3281 = vadd.f32 %v3181, %v3249
      %v3282 = vadd.f32 %v3182, %v3250
      %v3283 = vadd.f32 %v3183, %v3251
      %v3284 = vadd.f32 %v3184, %v3252
      %v3285 = vadd.f32 %v3185, %v3253
      %v3286 = vadd.f32 %v3186, %v3254
      %v3287 = vld [vmem:[%s3086 + $0x2] sm:$0xff]
      %v3288 = vld [vmem:[%s3086 + $0xa] sm:$0xff]
      %v3289 = vld [vmem:[%s3086 + $0x1a] sm:$0xff]
      %v3290 = vld [vmem:[%s3086 + $0x22] sm:$0xff]
      %v3291 = vld [vmem:[%s3086 + $0x32] sm:$0xff]
      %v3292 = vld [vmem:[%s3086 + $0x3a] sm:$0xff]
      %v3293 = vld [vmem:[%s3086 + $0x4a] sm:$0xff]
      %v3294 = vld [vmem:[%s3086 + $0x52] sm:$0xff]
      %v3295 = vld [vmem:[%s3086 + $0x62] sm:$0xff]
      %v3296 = vld [vmem:[%s3086 + $0x6a] sm:$0xff]
      %v3297 = vld [vmem:[%s3086 + $0x7a] sm:$0xff]
      %v3298 = vld [vmem:[%s3086 + $0x82] sm:$0xff]
      %v3299 = vld [vmem:[%s3086 + $0x92] sm:$0xff]
      %v3300 = vld [vmem:[%s3086 + $0x9a] sm:$0xff]
      %v3301 = vld [vmem:[%s3086 + $0xaa] sm:$0xff]
      %v3302 = vld [vmem:[%s3086 + $0xb2] sm:$0xff]
      %v3303 = vld [vmem:[%s3086 + $0xc2] sm:$0xff]
      %v3304 = vld [vmem:[%s3086 + $0xca] sm:$0xff]
      %v3305 = vld [vmem:[%s3086 + $0xda] sm:$0xff]
      %v3306 = vld [vmem:[%s3086 + $0xe2] sm:$0xff]
      %v3307 = vld [vmem:[%s3086 + $0xf2] sm:$0xff]
      %v3308 = vld [vmem:[%s3086 + $0xfa] sm:$0xff]
      %v3309 = vld [vmem:[%s3086 + $0x10a] sm:$0xff]
      %v3310 = vld [vmem:[%s3086 + $0x112] sm:$0xff]
      %v3311 = vld [vmem:[%s3086 + $0x122] sm:$0xff]
      %v3312 = vld [vmem:[%s3086 + $0x12a] sm:$0xff]
      %v3313 = vld [vmem:[%s3086 + $0x13a] sm:$0xff]
      %v3314 = vld [vmem:[%s3086 + $0x142] sm:$0xff]
      %v3315 = vld [vmem:[%s3086 + $0x152] sm:$0xff]
      %v3316 = vld [vmem:[%s3086 + $0x15a] sm:$0xff]
      %v3317 = vld [vmem:[%s3086 + $0x16a] sm:$0xff]
      %v3318 = vld [vmem:[%s3086 + $0x172] sm:$0xff]
      %v3319 = vlaneseq
      %v3320 = vshrl.u32 %v3319, 7
      %v3321 = vsub.s32 2, %v3320
      %v3322 = vrot.slane %v215, %v3321
      %v3323 = vmul.f32 %v3287, %v3322
      %v3324 = vmul.f32 %v3288, %v3322
      %v3325 = vmul.f32 %v3289, %v3322
      %v3326 = vmul.f32 %v3290, %v3322
      %v3327 = vmul.f32 %v3291, %v3322
      %v3328 = vmul.f32 %v3292, %v3322
      %v3329 = vmul.f32 %v3293, %v3322
      %v3330 = vmul.f32 %v3294, %v3322
      %v3331 = vmul.f32 %v3295, %v3322
      %v3332 = vmul.f32 %v3296, %v3322
      %v3333 = vmul.f32 %v3297, %v3322
      %v3334 = vmul.f32 %v3298, %v3322
      %v3335 = vmul.f32 %v3299, %v3322
      %v3336 = vmul.f32 %v3300, %v3322
      %v3337 = vmul.f32 %v3301, %v3322
      %v3338 = vmul.f32 %v3302, %v3322
      %v3339 = vmul.f32 %v3303, %v3322
      %v3340 = vmul.f32 %v3304, %v3322
      %v3341 = vmul.f32 %v3305, %v3322
      %v3342 = vmul.f32 %v3306, %v3322
      %v3343 = vmul.f32 %v3307, %v3322
      %v3344 = vmul.f32 %v3308, %v3322
      %v3345 = vmul.f32 %v3309, %v3322
      %v3346 = vmul.f32 %v3310, %v3322
      %v3347 = vmul.f32 %v3311, %v3322
      %v3348 = vmul.f32 %v3312, %v3322
      %v3349 = vmul.f32 %v3313, %v3322
      %v3350 = vmul.f32 %v3314, %v3322
      %v3351 = vmul.f32 %v3315, %v3322
      %v3352 = vmul.f32 %v3316, %v3322
      %v3353 = vmul.f32 %v3317, %v3322
      %v3354 = vmul.f32 %v3318, %v3322
      %v3355 = vadd.f32 %v3255, %v3323
      %v3356 = vadd.f32 %v3256, %v3324
      %v3357 = vadd.f32 %v3257, %v3325
      %v3358 = vadd.f32 %v3258, %v3326
      %v3359 = vadd.f32 %v3259, %v3327
      %v3360 = vadd.f32 %v3260, %v3328
      %v3361 = vadd.f32 %v3261, %v3329
      %v3362 = vadd.f32 %v3262, %v3330
      %v3363 = vadd.f32 %v3263, %v3331
      %v3364 = vadd.f32 %v3264, %v3332
      %v3365 = vadd.f32 %v3265, %v3333
      %v3366 = vadd.f32 %v3266, %v3334
      %v3367 = vadd.f32 %v3267, %v3335
      %v3368 = vadd.f32 %v3268, %v3336
      %v3369 = vadd.f32 %v3269, %v3337
      %v3370 = vadd.f32 %v3270, %v3338
      %v3371 = vadd.f32 %v3271, %v3339
      %v3372 = vadd.f32 %v3272, %v3340
      %v3373 = vadd.f32 %v3273, %v3341
      %v3374 = vadd.f32 %v3274, %v3342
      %v3375 = vadd.f32 %v3275, %v3343
      %v3376 = vadd.f32 %v3276, %v3344
      %v3377 = vadd.f32 %v3277, %v3345
      %v3378 = vadd.f32 %v3278, %v3346
      %v3379 = vadd.f32 %v3279, %v3347
      %v3380 = vadd.f32 %v3280, %v3348
      %v3381 = vadd.f32 %v3281, %v3349
      %v3382 = vadd.f32 %v3282, %v3350
      %v3383 = vadd.f32 %v3283, %v3351
      %v3384 = vadd.f32 %v3284, %v3352
      %v3385 = vadd.f32 %v3285, %v3353
      %v3386 = vadd.f32 %v3286, %v3354
      %v3387 = vld [vmem:[%s3086 + $0x3] sm:$0xff]
      %v3388 = vld [vmem:[%s3086 + $0xb] sm:$0xff]
      %v3389 = vld [vmem:[%s3086 + $0x1b] sm:$0xff]
      %v3390 = vld [vmem:[%s3086 + $0x23] sm:$0xff]
      %v3391 = vld [vmem:[%s3086 + $0x33] sm:$0xff]
      %v3392 = vld [vmem:[%s3086 + $0x3b] sm:$0xff]
      %v3393 = vld [vmem:[%s3086 + $0x4b] sm:$0xff]
      %v3394 = vld [vmem:[%s3086 + $0x53] sm:$0xff]
      %v3395 = vld [vmem:[%s3086 + $0x63] sm:$0xff]
      %v3396 = vld [vmem:[%s3086 + $0x6b] sm:$0xff]
      %v3397 = vld [vmem:[%s3086 + $0x7b] sm:$0xff]
      %v3398 = vld [vmem:[%s3086 + $0x83] sm:$0xff]
      %v3399 = vld [vmem:[%s3086 + $0x93] sm:$0xff]
      %v3400 = vld [vmem:[%s3086 + $0x9b] sm:$0xff]
      %v3401 = vld [vmem:[%s3086 + $0xab] sm:$0xff]
      %v3402 = vld [vmem:[%s3086 + $0xb3] sm:$0xff]
      %v3403 = vld [vmem:[%s3086 + $0xc3] sm:$0xff]
      %v3404 = vld [vmem:[%s3086 + $0xcb] sm:$0xff]
      %v3405 = vld [vmem:[%s3086 + $0xdb] sm:$0xff]
      %v3406 = vld [vmem:[%s3086 + $0xe3] sm:$0xff]
      %v3407 = vld [vmem:[%s3086 + $0xf3] sm:$0xff]
      %v3408 = vld [vmem:[%s3086 + $0xfb] sm:$0xff]
      %v3409 = vld [vmem:[%s3086 + $0x10b] sm:$0xff]
      %v3410 = vld [vmem:[%s3086 + $0x113] sm:$0xff]
      %v3411 = vld [vmem:[%s3086 + $0x123] sm:$0xff]
      %v3412 = vld [vmem:[%s3086 + $0x12b] sm:$0xff]
      %v3413 = vld [vmem:[%s3086 + $0x13b] sm:$0xff]
      %v3414 = vld [vmem:[%s3086 + $0x143] sm:$0xff]
      %v3415 = vld [vmem:[%s3086 + $0x153] sm:$0xff]
      %v3416 = vld [vmem:[%s3086 + $0x15b] sm:$0xff]
      %v3417 = vld [vmem:[%s3086 + $0x16b] sm:$0xff]
      %v3418 = vld [vmem:[%s3086 + $0x173] sm:$0xff]
      %v3419 = vlaneseq
      %v3420 = vshrl.u32 %v3419, 7
      %v3421 = vsub.s32 3, %v3420
      %v3422 = vrot.slane %v215, %v3421
      %v3423 = vmul.f32 %v3387, %v3422
      %v3424 = vmul.f32 %v3388, %v3422
      %v3425 = vmul.f32 %v3389, %v3422
      %v3426 = vmul.f32 %v3390, %v3422
      %v3427 = vmul.f32 %v3391, %v3422
      %v3428 = vmul.f32 %v3392, %v3422
      %v3429 = vmul.f32 %v3393, %v3422
      %v3430 = vmul.f32 %v3394, %v3422
      %v3431 = vmul.f32 %v3395, %v3422
      %v3432 = vmul.f32 %v3396, %v3422
      %v3433 = vmul.f32 %v3397, %v3422
      %v3434 = vmul.f32 %v3398, %v3422
      %v3435 = vmul.f32 %v3399, %v3422
      %v3436 = vmul.f32 %v3400, %v3422
      %v3437 = vmul.f32 %v3401, %v3422
      %v3438 = vmul.f32 %v3402, %v3422
      %v3439 = vmul.f32 %v3403, %v3422
      %v3440 = vmul.f32 %v3404, %v3422
      %v3441 = vmul.f32 %v3405, %v3422
      %v3442 = vmul.f32 %v3406, %v3422
      %v3443 = vmul.f32 %v3407, %v3422
      %v3444 = vmul.f32 %v3408, %v3422
      %v3445 = vmul.f32 %v3409, %v3422
      %v3446 = vmul.f32 %v3410, %v3422
      %v3447 = vmul.f32 %v3411, %v3422
      %v3448 = vmul.f32 %v3412, %v3422
      %v3449 = vmul.f32 %v3413, %v3422
      %v3450 = vmul.f32 %v3414, %v3422
      %v3451 = vmul.f32 %v3415, %v3422
      %v3452 = vmul.f32 %v3416, %v3422
      %v3453 = vmul.f32 %v3417, %v3422
      %v3454 = vmul.f32 %v3418, %v3422
      %v3455 = vadd.f32 %v3355, %v3423
      %v3456 = vadd.f32 %v3356, %v3424
      %v3457 = vadd.f32 %v3357, %v3425
      %v3458 = vadd.f32 %v3358, %v3426
      %v3459 = vadd.f32 %v3359, %v3427
      %v3460 = vadd.f32 %v3360, %v3428
      %v3461 = vadd.f32 %v3361, %v3429
      %v3462 = vadd.f32 %v3362, %v3430
      %v3463 = vadd.f32 %v3363, %v3431
      %v3464 = vadd.f32 %v3364, %v3432
      %v3465 = vadd.f32 %v3365, %v3433
      %v3466 = vadd.f32 %v3366, %v3434
      %v3467 = vadd.f32 %v3367, %v3435
      %v3468 = vadd.f32 %v3368, %v3436
      %v3469 = vadd.f32 %v3369, %v3437
      %v3470 = vadd.f32 %v3370, %v3438
      %v3471 = vadd.f32 %v3371, %v3439
      %v3472 = vadd.f32 %v3372, %v3440
      %v3473 = vadd.f32 %v3373, %v3441
      %v3474 = vadd.f32 %v3374, %v3442
      %v3475 = vadd.f32 %v3375, %v3443
      %v3476 = vadd.f32 %v3376, %v3444
      %v3477 = vadd.f32 %v3377, %v3445
      %v3478 = vadd.f32 %v3378, %v3446
      %v3479 = vadd.f32 %v3379, %v3447
      %v3480 = vadd.f32 %v3380, %v3448
      %v3481 = vadd.f32 %v3381, %v3449
      %v3482 = vadd.f32 %v3382, %v3450
      %v3483 = vadd.f32 %v3383, %v3451
      %v3484 = vadd.f32 %v3384, %v3452
      %v3485 = vadd.f32 %v3385, %v3453
      %v3486 = vadd.f32 %v3386, %v3454
      %v3487 = vld [vmem:[%s3086 + $0x4] sm:$0xff]
      %v3488 = vld [vmem:[%s3086 + $0xc] sm:$0xff]
      %v3489 = vld [vmem:[%s3086 + $0x1c] sm:$0xff]
      %v3490 = vld [vmem:[%s3086 + $0x24] sm:$0xff]
      %v3491 = vld [vmem:[%s3086 + $0x34] sm:$0xff]
      %v3492 = vld [vmem:[%s3086 + $0x3c] sm:$0xff]
      %v3493 = vld [vmem:[%s3086 + $0x4c] sm:$0xff]
      %v3494 = vld [vmem:[%s3086 + $0x54] sm:$0xff]
      %v3495 = vld [vmem:[%s3086 + $0x64] sm:$0xff]
      %v3496 = vld [vmem:[%s3086 + $0x6c] sm:$0xff]
      %v3497 = vld [vmem:[%s3086 + $0x7c] sm:$0xff]
      %v3498 = vld [vmem:[%s3086 + $0x84] sm:$0xff]
      %v3499 = vld [vmem:[%s3086 + $0x94] sm:$0xff]
      %v3500 = vld [vmem:[%s3086 + $0x9c] sm:$0xff]
      %v3501 = vld [vmem:[%s3086 + $0xac] sm:$0xff]
      %v3502 = vld [vmem:[%s3086 + $0xb4] sm:$0xff]
      %v3503 = vld [vmem:[%s3086 + $0xc4] sm:$0xff]
      %v3504 = vld [vmem:[%s3086 + $0xcc] sm:$0xff]
      %v3505 = vld [vmem:[%s3086 + $0xdc] sm:$0xff]
      %v3506 = vld [vmem:[%s3086 + $0xe4] sm:$0xff]
      %v3507 = vld [vmem:[%s3086 + $0xf4] sm:$0xff]
      %v3508 = vld [vmem:[%s3086 + $0xfc] sm:$0xff]
      %v3509 = vld [vmem:[%s3086 + $0x10c] sm:$0xff]
      %v3510 = vld [vmem:[%s3086 + $0x114] sm:$0xff]
      %v3511 = vld [vmem:[%s3086 + $0x124] sm:$0xff]
      %v3512 = vld [vmem:[%s3086 + $0x12c] sm:$0xff]
      %v3513 = vld [vmem:[%s3086 + $0x13c] sm:$0xff]
      %v3514 = vld [vmem:[%s3086 + $0x144] sm:$0xff]
      %v3515 = vld [vmem:[%s3086 + $0x154] sm:$0xff]
      %v3516 = vld [vmem:[%s3086 + $0x15c] sm:$0xff]
      %v3517 = vld [vmem:[%s3086 + $0x16c] sm:$0xff]
      %v3518 = vld [vmem:[%s3086 + $0x174] sm:$0xff]
      %v3519 = vlaneseq
      %v3520 = vshrl.u32 %v3519, 7
      %v3521 = vsub.s32 4, %v3520
      %v3522 = vrot.slane %v215, %v3521
      %v3523 = vmul.f32 %v3487, %v3522
      %v3524 = vmul.f32 %v3488, %v3522
      %v3525 = vmul.f32 %v3489, %v3522
      %v3526 = vmul.f32 %v3490, %v3522
      %v3527 = vmul.f32 %v3491, %v3522
      %v3528 = vmul.f32 %v3492, %v3522
      %v3529 = vmul.f32 %v3493, %v3522
      %v3530 = vmul.f32 %v3494, %v3522
      %v3531 = vmul.f32 %v3495, %v3522
      %v3532 = vmul.f32 %v3496, %v3522
      %v3533 = vmul.f32 %v3497, %v3522
      %v3534 = vmul.f32 %v3498, %v3522
      %v3535 = vmul.f32 %v3499, %v3522
      %v3536 = vmul.f32 %v3500, %v3522
      %v3537 = vmul.f32 %v3501, %v3522
      %v3538 = vmul.f32 %v3502, %v3522
      %v3539 = vmul.f32 %v3503, %v3522
      %v3540 = vmul.f32 %v3504, %v3522
      %v3541 = vmul.f32 %v3505, %v3522
      %v3542 = vmul.f32 %v3506, %v3522
      %v3543 = vmul.f32 %v3507, %v3522
      %v3544 = vmul.f32 %v3508, %v3522
      %v3545 = vmul.f32 %v3509, %v3522
      %v3546 = vmul.f32 %v3510, %v3522
      %v3547 = vmul.f32 %v3511, %v3522
      %v3548 = vmul.f32 %v3512, %v3522
      %v3549 = vmul.f32 %v3513, %v3522
      %v3550 = vmul.f32 %v3514, %v3522
      %v3551 = vmul.f32 %v3515, %v3522
      %v3552 = vmul.f32 %v3516, %v3522
      %v3553 = vmul.f32 %v3517, %v3522
      %v3554 = vmul.f32 %v3518, %v3522
      %v3555 = vadd.f32 %v3455, %v3523
      %v3556 = vadd.f32 %v3456, %v3524
      %v3557 = vadd.f32 %v3457, %v3525
      %v3558 = vadd.f32 %v3458, %v3526
      %v3559 = vadd.f32 %v3459, %v3527
      %v3560 = vadd.f32 %v3460, %v3528
      %v3561 = vadd.f32 %v3461, %v3529
      %v3562 = vadd.f32 %v3462, %v3530
      %v3563 = vadd.f32 %v3463, %v3531
      %v3564 = vadd.f32 %v3464, %v3532
      %v3565 = vadd.f32 %v3465, %v3533
      %v3566 = vadd.f32 %v3466, %v3534
      %v3567 = vadd.f32 %v3467, %v3535
      %v3568 = vadd.f32 %v3468, %v3536
      %v3569 = vadd.f32 %v3469, %v3537
      %v3570 = vadd.f32 %v3470, %v3538
      %v3571 = vadd.f32 %v3471, %v3539
      %v3572 = vadd.f32 %v3472, %v3540
      %v3573 = vadd.f32 %v3473, %v3541
      %v3574 = vadd.f32 %v3474, %v3542
      %v3575 = vadd.f32 %v3475, %v3543
      %v3576 = vadd.f32 %v3476, %v3544
      %v3577 = vadd.f32 %v3477, %v3545
      %v3578 = vadd.f32 %v3478, %v3546
      %v3579 = vadd.f32 %v3479, %v3547
      %v3580 = vadd.f32 %v3480, %v3548
      %v3581 = vadd.f32 %v3481, %v3549
      %v3582 = vadd.f32 %v3482, %v3550
      %v3583 = vadd.f32 %v3483, %v3551
      %v3584 = vadd.f32 %v3484, %v3552
      %v3585 = vadd.f32 %v3485, %v3553
      %v3586 = vadd.f32 %v3486, %v3554
      %v3587 = vld [vmem:[%s3086 + $0x5] sm:$0xff]
      %v3588 = vld [vmem:[%s3086 + $0xd] sm:$0xff]
      %v3589 = vld [vmem:[%s3086 + $0x1d] sm:$0xff]
      %v3590 = vld [vmem:[%s3086 + $0x25] sm:$0xff]
      %v3591 = vld [vmem:[%s3086 + $0x35] sm:$0xff]
      %v3592 = vld [vmem:[%s3086 + $0x3d] sm:$0xff]
      %v3593 = vld [vmem:[%s3086 + $0x4d] sm:$0xff]
      %v3594 = vld [vmem:[%s3086 + $0x55] sm:$0xff]
      %v3595 = vld [vmem:[%s3086 + $0x65] sm:$0xff]
      %v3596 = vld [vmem:[%s3086 + $0x6d] sm:$0xff]
      %v3597 = vld [vmem:[%s3086 + $0x7d] sm:$0xff]
      %v3598 = vld [vmem:[%s3086 + $0x85] sm:$0xff]
      %v3599 = vld [vmem:[%s3086 + $0x95] sm:$0xff]
      %v3600 = vld [vmem:[%s3086 + $0x9d] sm:$0xff]
      %v3601 = vld [vmem:[%s3086 + $0xad] sm:$0xff]
      %v3602 = vld [vmem:[%s3086 + $0xb5] sm:$0xff]
      %v3603 = vld [vmem:[%s3086 + $0xc5] sm:$0xff]
      %v3604 = vld [vmem:[%s3086 + $0xcd] sm:$0xff]
      %v3605 = vld [vmem:[%s3086 + $0xdd] sm:$0xff]
      %v3606 = vld [vmem:[%s3086 + $0xe5] sm:$0xff]
      %v3607 = vld [vmem:[%s3086 + $0xf5] sm:$0xff]
      %v3608 = vld [vmem:[%s3086 + $0xfd] sm:$0xff]
      %v3609 = vld [vmem:[%s3086 + $0x10d] sm:$0xff]
      %v3610 = vld [vmem:[%s3086 + $0x115] sm:$0xff]
      %v3611 = vld [vmem:[%s3086 + $0x125] sm:$0xff]
      %v3612 = vld [vmem:[%s3086 + $0x12d] sm:$0xff]
      %v3613 = vld [vmem:[%s3086 + $0x13d] sm:$0xff]
      %v3614 = vld [vmem:[%s3086 + $0x145] sm:$0xff]
      %v3615 = vld [vmem:[%s3086 + $0x155] sm:$0xff]
      %v3616 = vld [vmem:[%s3086 + $0x15d] sm:$0xff]
      %v3617 = vld [vmem:[%s3086 + $0x16d] sm:$0xff]
      %v3618 = vld [vmem:[%s3086 + $0x175] sm:$0xff]
      %v3619 = vlaneseq
      %v3620 = vshrl.u32 %v3619, 7
      %v3621 = vsub.s32 5, %v3620
      %v3622 = vrot.slane %v215, %v3621
      %v3623 = vmul.f32 %v3587, %v3622
      %v3624 = vmul.f32 %v3588, %v3622
      %v3625 = vmul.f32 %v3589, %v3622
      %v3626 = vmul.f32 %v3590, %v3622
      %v3627 = vmul.f32 %v3591, %v3622
      %v3628 = vmul.f32 %v3592, %v3622
      %v3629 = vmul.f32 %v3593, %v3622
      %v3630 = vmul.f32 %v3594, %v3622
      %v3631 = vmul.f32 %v3595, %v3622
      %v3632 = vmul.f32 %v3596, %v3622
      %v3633 = vmul.f32 %v3597, %v3622
      %v3634 = vmul.f32 %v3598, %v3622
      %v3635 = vmul.f32 %v3599, %v3622
      %v3636 = vmul.f32 %v3600, %v3622
      %v3637 = vmul.f32 %v3601, %v3622
      %v3638 = vmul.f32 %v3602, %v3622
      %v3639 = vmul.f32 %v3603, %v3622
      %v3640 = vmul.f32 %v3604, %v3622
      %v3641 = vmul.f32 %v3605, %v3622
      %v3642 = vmul.f32 %v3606, %v3622
      %v3643 = vmul.f32 %v3607, %v3622
      %v3644 = vmul.f32 %v3608, %v3622
      %v3645 = vmul.f32 %v3609, %v3622
      %v3646 = vmul.f32 %v3610, %v3622
      %v3647 = vmul.f32 %v3611, %v3622
      %v3648 = vmul.f32 %v3612, %v3622
      %v3649 = vmul.f32 %v3613, %v3622
      %v3650 = vmul.f32 %v3614, %v3622
      %v3651 = vmul.f32 %v3615, %v3622
      %v3652 = vmul.f32 %v3616, %v3622
      %v3653 = vmul.f32 %v3617, %v3622
      %v3654 = vmul.f32 %v3618, %v3622
      %v3655 = vadd.f32 %v3555, %v3623
      %v3656 = vadd.f32 %v3556, %v3624
      %v3657 = vadd.f32 %v3557, %v3625
      %v3658 = vadd.f32 %v3558, %v3626
      %v3659 = vadd.f32 %v3559, %v3627
      %v3660 = vadd.f32 %v3560, %v3628
      %v3661 = vadd.f32 %v3561, %v3629
      %v3662 = vadd.f32 %v3562, %v3630
      %v3663 = vadd.f32 %v3563, %v3631
      %v3664 = vadd.f32 %v3564, %v3632
      %v3665 = vadd.f32 %v3565, %v3633
      %v3666 = vadd.f32 %v3566, %v3634
      %v3667 = vadd.f32 %v3567, %v3635
      %v3668 = vadd.f32 %v3568, %v3636
      %v3669 = vadd.f32 %v3569, %v3637
      %v3670 = vadd.f32 %v3570, %v3638
      %v3671 = vadd.f32 %v3571, %v3639
      %v3672 = vadd.f32 %v3572, %v3640
      %v3673 = vadd.f32 %v3573, %v3641
      %v3674 = vadd.f32 %v3574, %v3642
      %v3675 = vadd.f32 %v3575, %v3643
      %v3676 = vadd.f32 %v3576, %v3644
      %v3677 = vadd.f32 %v3577, %v3645
      %v3678 = vadd.f32 %v3578, %v3646
      %v3679 = vadd.f32 %v3579, %v3647
      %v3680 = vadd.f32 %v3580, %v3648
      %v3681 = vadd.f32 %v3581, %v3649
      %v3682 = vadd.f32 %v3582, %v3650
      %v3683 = vadd.f32 %v3583, %v3651
      %v3684 = vadd.f32 %v3584, %v3652
      %v3685 = vadd.f32 %v3585, %v3653
      %v3686 = vadd.f32 %v3586, %v3654
      %v3687 = vld [vmem:[%s3086 + $0x6] sm:$0xff]
      %v3688 = vld [vmem:[%s3086 + $0xe] sm:$0xff]
      %v3689 = vld [vmem:[%s3086 + $0x1e] sm:$0xff]
      %v3690 = vld [vmem:[%s3086 + $0x26] sm:$0xff]
      %v3691 = vld [vmem:[%s3086 + $0x36] sm:$0xff]
      %v3692 = vld [vmem:[%s3086 + $0x3e] sm:$0xff]
      %v3693 = vld [vmem:[%s3086 + $0x4e] sm:$0xff]
      %v3694 = vld [vmem:[%s3086 + $0x56] sm:$0xff]
      %v3695 = vld [vmem:[%s3086 + $0x66] sm:$0xff]
      %v3696 = vld [vmem:[%s3086 + $0x6e] sm:$0xff]
      %v3697 = vld [vmem:[%s3086 + $0x7e] sm:$0xff]
      %v3698 = vld [vmem:[%s3086 + $0x86] sm:$0xff]
      %v3699 = vld [vmem:[%s3086 + $0x96] sm:$0xff]
      %v3700 = vld [vmem:[%s3086 + $0x9e] sm:$0xff]
      %v3701 = vld [vmem:[%s3086 + $0xae] sm:$0xff]
      %v3702 = vld [vmem:[%s3086 + $0xb6] sm:$0xff]
      %v3703 = vld [vmem:[%s3086 + $0xc6] sm:$0xff]
      %v3704 = vld [vmem:[%s3086 + $0xce] sm:$0xff]
      %v3705 = vld [vmem:[%s3086 + $0xde] sm:$0xff]
      %v3706 = vld [vmem:[%s3086 + $0xe6] sm:$0xff]
      %v3707 = vld [vmem:[%s3086 + $0xf6] sm:$0xff]
      %v3708 = vld [vmem:[%s3086 + $0xfe] sm:$0xff]
      %v3709 = vld [vmem:[%s3086 + $0x10e] sm:$0xff]
      %v3710 = vld [vmem:[%s3086 + $0x116] sm:$0xff]
      %v3711 = vld [vmem:[%s3086 + $0x126] sm:$0xff]
      %v3712 = vld [vmem:[%s3086 + $0x12e] sm:$0xff]
      %v3713 = vld [vmem:[%s3086 + $0x13e] sm:$0xff]
      %v3714 = vld [vmem:[%s3086 + $0x146] sm:$0xff]
      %v3715 = vld [vmem:[%s3086 + $0x156] sm:$0xff]
      %v3716 = vld [vmem:[%s3086 + $0x15e] sm:$0xff]
      %v3717 = vld [vmem:[%s3086 + $0x16e] sm:$0xff]
      %v3718 = vld [vmem:[%s3086 + $0x176] sm:$0xff]
      %v3719 = vlaneseq
      %v3720 = vshrl.u32 %v3719, 7
      %v3721 = vsub.s32 6, %v3720
      %v3722 = vrot.slane %v215, %v3721
      %v3723 = vmul.f32 %v3687, %v3722
      %v3724 = vmul.f32 %v3688, %v3722
      %v3725 = vmul.f32 %v3689, %v3722
      %v3726 = vmul.f32 %v3690, %v3722
      %v3727 = vmul.f32 %v3691, %v3722
      %v3728 = vmul.f32 %v3692, %v3722
      %v3729 = vmul.f32 %v3693, %v3722
      %v3730 = vmul.f32 %v3694, %v3722
      %v3731 = vmul.f32 %v3695, %v3722
      %v3732 = vmul.f32 %v3696, %v3722
      %v3733 = vmul.f32 %v3697, %v3722
      %v3734 = vmul.f32 %v3698, %v3722
      %v3735 = vmul.f32 %v3699, %v3722
      %v3736 = vmul.f32 %v3700, %v3722
      %v3737 = vmul.f32 %v3701, %v3722
      %v3738 = vmul.f32 %v3702, %v3722
      %v3739 = vmul.f32 %v3703, %v3722
      %v3740 = vmul.f32 %v3704, %v3722
      %v3741 = vmul.f32 %v3705, %v3722
      %v3742 = vmul.f32 %v3706, %v3722
      %v3743 = vmul.f32 %v3707, %v3722
      %v3744 = vmul.f32 %v3708, %v3722
      %v3745 = vmul.f32 %v3709, %v3722
      %v3746 = vmul.f32 %v3710, %v3722
      %v3747 = vmul.f32 %v3711, %v3722
      %v3748 = vmul.f32 %v3712, %v3722
      %v3749 = vmul.f32 %v3713, %v3722
      %v3750 = vmul.f32 %v3714, %v3722
      %v3751 = vmul.f32 %v3715, %v3722
      %v3752 = vmul.f32 %v3716, %v3722
      %v3753 = vmul.f32 %v3717, %v3722
      %v3754 = vmul.f32 %v3718, %v3722
      %v3755 = vadd.f32 %v3655, %v3723
      %v3756 = vadd.f32 %v3656, %v3724
      %v3757 = vadd.f32 %v3657, %v3725
      %v3758 = vadd.f32 %v3658, %v3726
      %v3759 = vadd.f32 %v3659, %v3727
      %v3760 = vadd.f32 %v3660, %v3728
      %v3761 = vadd.f32 %v3661, %v3729
      %v3762 = vadd.f32 %v3662, %v3730
      %v3763 = vadd.f32 %v3663, %v3731
      %v3764 = vadd.f32 %v3664, %v3732
      %v3765 = vadd.f32 %v3665, %v3733
      %v3766 = vadd.f32 %v3666, %v3734
      %v3767 = vadd.f32 %v3667, %v3735
      %v3768 = vadd.f32 %v3668, %v3736
      %v3769 = vadd.f32 %v3669, %v3737
      %v3770 = vadd.f32 %v3670, %v3738
      %v3771 = vadd.f32 %v3671, %v3739
      %v3772 = vadd.f32 %v3672, %v3740
      %v3773 = vadd.f32 %v3673, %v3741
      %v3774 = vadd.f32 %v3674, %v3742
      %v3775 = vadd.f32 %v3675, %v3743
      %v3776 = vadd.f32 %v3676, %v3744
      %v3777 = vadd.f32 %v3677, %v3745
      %v3778 = vadd.f32 %v3678, %v3746
      %v3779 = vadd.f32 %v3679, %v3747
      %v3780 = vadd.f32 %v3680, %v3748
      %v3781 = vadd.f32 %v3681, %v3749
      %v3782 = vadd.f32 %v3682, %v3750
      %v3783 = vadd.f32 %v3683, %v3751
      %v3784 = vadd.f32 %v3684, %v3752
      %v3785 = vadd.f32 %v3685, %v3753
      %v3786 = vadd.f32 %v3686, %v3754
      %s3787 = scalar_lea.vmem %s200, 120
      %v3788 = vld [vmem:[%s3787] sm:$0xff]
      %v3789 = vld [vmem:[%s3787 + $0x8] sm:$0xff]
      %v3790 = vld [vmem:[%s3787 + $0x18] sm:$0xff]
      %v3791 = vld [vmem:[%s3787 + $0x20] sm:$0xff]
      %v3792 = vld [vmem:[%s3787 + $0x30] sm:$0xff]
      %v3793 = vld [vmem:[%s3787 + $0x38] sm:$0xff]
      %v3794 = vld [vmem:[%s3787 + $0x48] sm:$0xff]
      %v3795 = vld [vmem:[%s3787 + $0x50] sm:$0xff]
      %v3796 = vld [vmem:[%s3787 + $0x60] sm:$0xff]
      %v3797 = vld [vmem:[%s3787 + $0x68] sm:$0xff]
      %v3798 = vld [vmem:[%s3787 + $0x78] sm:$0xff]
      %v3799 = vld [vmem:[%s3787 + $0x80] sm:$0xff]
      %v3800 = vld [vmem:[%s3787 + $0x90] sm:$0xff]
      %v3801 = vld [vmem:[%s3787 + $0x98] sm:$0xff]
      %v3802 = vld [vmem:[%s3787 + $0xa8] sm:$0xff]
      %v3803 = vld [vmem:[%s3787 + $0xb0] sm:$0xff]
      %v3804 = vld [vmem:[%s3787 + $0xc0] sm:$0xff]
      %v3805 = vld [vmem:[%s3787 + $0xc8] sm:$0xff]
      %v3806 = vld [vmem:[%s3787 + $0xd8] sm:$0xff]
      %v3807 = vld [vmem:[%s3787 + $0xe0] sm:$0xff]
      %v3808 = vld [vmem:[%s3787 + $0xf0] sm:$0xff]
      %v3809 = vld [vmem:[%s3787 + $0xf8] sm:$0xff]
      %v3810 = vld [vmem:[%s3787 + $0x108] sm:$0xff]
      %v3811 = vld [vmem:[%s3787 + $0x110] sm:$0xff]
      %v3812 = vld [vmem:[%s3787 + $0x120] sm:$0xff]
      %v3813 = vld [vmem:[%s3787 + $0x128] sm:$0xff]
      %v3814 = vld [vmem:[%s3787 + $0x138] sm:$0xff]
      %v3815 = vld [vmem:[%s3787 + $0x140] sm:$0xff]
      %v3816 = vld [vmem:[%s3787 + $0x150] sm:$0xff]
      %v3817 = vld [vmem:[%s3787 + $0x158] sm:$0xff]
      %v3818 = vld [vmem:[%s3787 + $0x168] sm:$0xff]
      %v3819 = vld [vmem:[%s3787 + $0x170] sm:$0xff]
      %v3820 = vlaneseq
      %v3821 = vshrl.u32 %v3820, 7
      %v3822 = vsub.s32 0, %v3821
      %v3823 = vrot.slane %v216, %v3822
      %v3824 = vmul.f32 %v3788, %v3823
      %v3825 = vmul.f32 %v3789, %v3823
      %v3826 = vmul.f32 %v3790, %v3823
      %v3827 = vmul.f32 %v3791, %v3823
      %v3828 = vmul.f32 %v3792, %v3823
      %v3829 = vmul.f32 %v3793, %v3823
      %v3830 = vmul.f32 %v3794, %v3823
      %v3831 = vmul.f32 %v3795, %v3823
      %v3832 = vmul.f32 %v3796, %v3823
      %v3833 = vmul.f32 %v3797, %v3823
      %v3834 = vmul.f32 %v3798, %v3823
      %v3835 = vmul.f32 %v3799, %v3823
      %v3836 = vmul.f32 %v3800, %v3823
      %v3837 = vmul.f32 %v3801, %v3823
      %v3838 = vmul.f32 %v3802, %v3823
      %v3839 = vmul.f32 %v3803, %v3823
      %v3840 = vmul.f32 %v3804, %v3823
      %v3841 = vmul.f32 %v3805, %v3823
      %v3842 = vmul.f32 %v3806, %v3823
      %v3843 = vmul.f32 %v3807, %v3823
      %v3844 = vmul.f32 %v3808, %v3823
      %v3845 = vmul.f32 %v3809, %v3823
      %v3846 = vmul.f32 %v3810, %v3823
      %v3847 = vmul.f32 %v3811, %v3823
      %v3848 = vmul.f32 %v3812, %v3823
      %v3849 = vmul.f32 %v3813, %v3823
      %v3850 = vmul.f32 %v3814, %v3823
      %v3851 = vmul.f32 %v3815, %v3823
      %v3852 = vmul.f32 %v3816, %v3823
      %v3853 = vmul.f32 %v3817, %v3823
      %v3854 = vmul.f32 %v3818, %v3823
      %v3855 = vmul.f32 %v3819, %v3823
      %v3856 = vadd.f32 %v3755, %v3824
      %v3857 = vadd.f32 %v3756, %v3825
      %v3858 = vadd.f32 %v3757, %v3826
      %v3859 = vadd.f32 %v3758, %v3827
      %v3860 = vadd.f32 %v3759, %v3828
      %v3861 = vadd.f32 %v3760, %v3829
      %v3862 = vadd.f32 %v3761, %v3830
      %v3863 = vadd.f32 %v3762, %v3831
      %v3864 = vadd.f32 %v3763, %v3832
      %v3865 = vadd.f32 %v3764, %v3833
      %v3866 = vadd.f32 %v3765, %v3834
      %v3867 = vadd.f32 %v3766, %v3835
      %v3868 = vadd.f32 %v3767, %v3836
      %v3869 = vadd.f32 %v3768, %v3837
      %v3870 = vadd.f32 %v3769, %v3838
      %v3871 = vadd.f32 %v3770, %v3839
      %v3872 = vadd.f32 %v3771, %v3840
      %v3873 = vadd.f32 %v3772, %v3841
      %v3874 = vadd.f32 %v3773, %v3842
      %v3875 = vadd.f32 %v3774, %v3843
      %v3876 = vadd.f32 %v3775, %v3844
      %v3877 = vadd.f32 %v3776, %v3845
      %v3878 = vadd.f32 %v3777, %v3846
      %v3879 = vadd.f32 %v3778, %v3847
      %v3880 = vadd.f32 %v3779, %v3848
      %v3881 = vadd.f32 %v3780, %v3849
      %v3882 = vadd.f32 %v3781, %v3850
      %v3883 = vadd.f32 %v3782, %v3851
      %v3884 = vadd.f32 %v3783, %v3852
      %v3885 = vadd.f32 %v3784, %v3853
      %v3886 = vadd.f32 %v3785, %v3854
      %v3887 = vadd.f32 %v3786, %v3855
      %v3888 = vld [vmem:[%s3787 + $0x1] sm:$0xff]
      %v3889 = vld [vmem:[%s3787 + $0x9] sm:$0xff]
      %v3890 = vld [vmem:[%s3787 + $0x19] sm:$0xff]
      %v3891 = vld [vmem:[%s3787 + $0x21] sm:$0xff]
      %v3892 = vld [vmem:[%s3787 + $0x31] sm:$0xff]
      %v3893 = vld [vmem:[%s3787 + $0x39] sm:$0xff]
      %v3894 = vld [vmem:[%s3787 + $0x49] sm:$0xff]
      %v3895 = vld [vmem:[%s3787 + $0x51] sm:$0xff]
      %v3896 = vld [vmem:[%s3787 + $0x61] sm:$0xff]
      %v3897 = vld [vmem:[%s3787 + $0x69] sm:$0xff]
      %v3898 = vld [vmem:[%s3787 + $0x79] sm:$0xff]
      %v3899 = vld [vmem:[%s3787 + $0x81] sm:$0xff]
      %v3900 = vld [vmem:[%s3787 + $0x91] sm:$0xff]
      %v3901 = vld [vmem:[%s3787 + $0x99] sm:$0xff]
      %v3902 = vld [vmem:[%s3787 + $0xa9] sm:$0xff]
      %v3903 = vld [vmem:[%s3787 + $0xb1] sm:$0xff]
      %v3904 = vld [vmem:[%s3787 + $0xc1] sm:$0xff]
      %v3905 = vld [vmem:[%s3787 + $0xc9] sm:$0xff]
      %v3906 = vld [vmem:[%s3787 + $0xd9] sm:$0xff]
      %v3907 = vld [vmem:[%s3787 + $0xe1] sm:$0xff]
      %v3908 = vld [vmem:[%s3787 + $0xf1] sm:$0xff]
      %v3909 = vld [vmem:[%s3787 + $0xf9] sm:$0xff]
      %v3910 = vld [vmem:[%s3787 + $0x109] sm:$0xff]
      %v3911 = vld [vmem:[%s3787 + $0x111] sm:$0xff]
      %v3912 = vld [vmem:[%s3787 + $0x121] sm:$0xff]
      %v3913 = vld [vmem:[%s3787 + $0x129] sm:$0xff]
      %v3914 = vld [vmem:[%s3787 + $0x139] sm:$0xff]
      %v3915 = vld [vmem:[%s3787 + $0x141] sm:$0xff]
      %v3916 = vld [vmem:[%s3787 + $0x151] sm:$0xff]
      %v3917 = vld [vmem:[%s3787 + $0x159] sm:$0xff]
      %v3918 = vld [vmem:[%s3787 + $0x169] sm:$0xff]
      %v3919 = vld [vmem:[%s3787 + $0x171] sm:$0xff]
      %v3920 = vlaneseq
      %v3921 = vshrl.u32 %v3920, 7
      %v3922 = vsub.s32 1, %v3921
      %v3923 = vrot.slane %v216, %v3922
      %v3924 = vmul.f32 %v3888, %v3923
      %v3925 = vmul.f32 %v3889, %v3923
      %v3926 = vmul.f32 %v3890, %v3923
      %v3927 = vmul.f32 %v3891, %v3923
      %v3928 = vmul.f32 %v3892, %v3923
      %v3929 = vmul.f32 %v3893, %v3923
      %v3930 = vmul.f32 %v3894, %v3923
      %v3931 = vmul.f32 %v3895, %v3923
      %v3932 = vmul.f32 %v3896, %v3923
      %v3933 = vmul.f32 %v3897, %v3923
      %v3934 = vmul.f32 %v3898, %v3923
      %v3935 = vmul.f32 %v3899, %v3923
      %v3936 = vmul.f32 %v3900, %v3923
      %v3937 = vmul.f32 %v3901, %v3923
      %v3938 = vmul.f32 %v3902, %v3923
      %v3939 = vmul.f32 %v3903, %v3923
      %v3940 = vmul.f32 %v3904, %v3923
      %v3941 = vmul.f32 %v3905, %v3923
      %v3942 = vmul.f32 %v3906, %v3923
      %v3943 = vmul.f32 %v3907, %v3923
      %v3944 = vmul.f32 %v3908, %v3923
      %v3945 = vmul.f32 %v3909, %v3923
      %v3946 = vmul.f32 %v3910, %v3923
      %v3947 = vmul.f32 %v3911, %v3923
      %v3948 = vmul.f32 %v3912, %v3923
      %v3949 = vmul.f32 %v3913, %v3923
      %v3950 = vmul.f32 %v3914, %v3923
      %v3951 = vmul.f32 %v3915, %v3923
      %v3952 = vmul.f32 %v3916, %v3923
      %v3953 = vmul.f32 %v3917, %v3923
      %v3954 = vmul.f32 %v3918, %v3923
      %v3955 = vmul.f32 %v3919, %v3923
      %v3956 = vadd.f32 %v3856, %v3924
      %v3957 = vadd.f32 %v3857, %v3925
      %v3958 = vadd.f32 %v3858, %v3926
      %v3959 = vadd.f32 %v3859, %v3927
      %v3960 = vadd.f32 %v3860, %v3928
      %v3961 = vadd.f32 %v3861, %v3929
      %v3962 = vadd.f32 %v3862, %v3930
      %v3963 = vadd.f32 %v3863, %v3931
      %v3964 = vadd.f32 %v3864, %v3932
      %v3965 = vadd.f32 %v3865, %v3933
      %v3966 = vadd.f32 %v3866, %v3934
      %v3967 = vadd.f32 %v3867, %v3935
      %v3968 = vadd.f32 %v3868, %v3936
      %v3969 = vadd.f32 %v3869, %v3937
      %v3970 = vadd.f32 %v3870, %v3938
      %v3971 = vadd.f32 %v3871, %v3939
      %v3972 = vadd.f32 %v3872, %v3940
      %v3973 = vadd.f32 %v3873, %v3941
      %v3974 = vadd.f32 %v3874, %v3942
      %v3975 = vadd.f32 %v3875, %v3943
      %v3976 = vadd.f32 %v3876, %v3944
      %v3977 = vadd.f32 %v3877, %v3945
      %v3978 = vadd.f32 %v3878, %v3946
      %v3979 = vadd.f32 %v3879, %v3947
      %v3980 = vadd.f32 %v3880, %v3948
      %v3981 = vadd.f32 %v3881, %v3949
      %v3982 = vadd.f32 %v3882, %v3950
      %v3983 = vadd.f32 %v3883, %v3951
      %v3984 = vadd.f32 %v3884, %v3952
      %v3985 = vadd.f32 %v3885, %v3953
      %v3986 = vadd.f32 %v3886, %v3954
      %v3987 = vadd.f32 %v3887, %v3955
      %v3988 = vld [vmem:[%s3787 + $0x2] sm:$0xff]
      %v3989 = vld [vmem:[%s3787 + $0xa] sm:$0xff]
      %v3990 = vld [vmem:[%s3787 + $0x1a] sm:$0xff]
      %v3991 = vld [vmem:[%s3787 + $0x22] sm:$0xff]
      %v3992 = vld [vmem:[%s3787 + $0x32] sm:$0xff]
      %v3993 = vld [vmem:[%s3787 + $0x3a] sm:$0xff]
      %v3994 = vld [vmem:[%s3787 + $0x4a] sm:$0xff]
      %v3995 = vld [vmem:[%s3787 + $0x52] sm:$0xff]
      %v3996 = vld [vmem:[%s3787 + $0x62] sm:$0xff]
      %v3997 = vld [vmem:[%s3787 + $0x6a] sm:$0xff]
      %v3998 = vld [vmem:[%s3787 + $0x7a] sm:$0xff]
      %v3999 = vld [vmem:[%s3787 + $0x82] sm:$0xff]
      %v4000 = vld [vmem:[%s3787 + $0x92] sm:$0xff]
      %v4001 = vld [vmem:[%s3787 + $0x9a] sm:$0xff]
      %v4002 = vld [vmem:[%s3787 + $0xaa] sm:$0xff]
      %v4003 = vld [vmem:[%s3787 + $0xb2] sm:$0xff]
      %v4004 = vld [vmem:[%s3787 + $0xc2] sm:$0xff]
      %v4005 = vld [vmem:[%s3787 + $0xca] sm:$0xff]
      %v4006 = vld [vmem:[%s3787 + $0xda] sm:$0xff]
      %v4007 = vld [vmem:[%s3787 + $0xe2] sm:$0xff]
      %v4008 = vld [vmem:[%s3787 + $0xf2] sm:$0xff]
      %v4009 = vld [vmem:[%s3787 + $0xfa] sm:$0xff]
      %v4010 = vld [vmem:[%s3787 + $0x10a] sm:$0xff]
      %v4011 = vld [vmem:[%s3787 + $0x112] sm:$0xff]
      %v4012 = vld [vmem:[%s3787 + $0x122] sm:$0xff]
      %v4013 = vld [vmem:[%s3787 + $0x12a] sm:$0xff]
      %v4014 = vld [vmem:[%s3787 + $0x13a] sm:$0xff]
      %v4015 = vld [vmem:[%s3787 + $0x142] sm:$0xff]
      %v4016 = vld [vmem:[%s3787 + $0x152] sm:$0xff]
      %v4017 = vld [vmem:[%s3787 + $0x15a] sm:$0xff]
      %v4018 = vld [vmem:[%s3787 + $0x16a] sm:$0xff]
      %v4019 = vld [vmem:[%s3787 + $0x172] sm:$0xff]
      %v4020 = vlaneseq
      %v4021 = vshrl.u32 %v4020, 7
      %v4022 = vsub.s32 2, %v4021
      %v4023 = vrot.slane %v216, %v4022
      %v4024 = vmul.f32 %v3988, %v4023
      %v4025 = vmul.f32 %v3989, %v4023
      %v4026 = vmul.f32 %v3990, %v4023
      %v4027 = vmul.f32 %v3991, %v4023
      %v4028 = vmul.f32 %v3992, %v4023
      %v4029 = vmul.f32 %v3993, %v4023
      %v4030 = vmul.f32 %v3994, %v4023
      %v4031 = vmul.f32 %v3995, %v4023
      %v4032 = vmul.f32 %v3996, %v4023
      %v4033 = vmul.f32 %v3997, %v4023
      %v4034 = vmul.f32 %v3998, %v4023
      %v4035 = vmul.f32 %v3999, %v4023
      %v4036 = vmul.f32 %v4000, %v4023
      %v4037 = vmul.f32 %v4001, %v4023
      %v4038 = vmul.f32 %v4002, %v4023
      %v4039 = vmul.f32 %v4003, %v4023
      %v4040 = vmul.f32 %v4004, %v4023
      %v4041 = vmul.f32 %v4005, %v4023
      %v4042 = vmul.f32 %v4006, %v4023
      %v4043 = vmul.f32 %v4007, %v4023
      %v4044 = vmul.f32 %v4008, %v4023
      %v4045 = vmul.f32 %v4009, %v4023
      %v4046 = vmul.f32 %v4010, %v4023
      %v4047 = vmul.f32 %v4011, %v4023
      %v4048 = vmul.f32 %v4012, %v4023
      %v4049 = vmul.f32 %v4013, %v4023
      %v4050 = vmul.f32 %v4014, %v4023
      %v4051 = vmul.f32 %v4015, %v4023
      %v4052 = vmul.f32 %v4016, %v4023
      %v4053 = vmul.f32 %v4017, %v4023
      %v4054 = vmul.f32 %v4018, %v4023
      %v4055 = vmul.f32 %v4019, %v4023
      %v4056 = vadd.f32 %v3956, %v4024
      %v4057 = vadd.f32 %v3957, %v4025
      %v4058 = vadd.f32 %v3958, %v4026
      %v4059 = vadd.f32 %v3959, %v4027
      %v4060 = vadd.f32 %v3960, %v4028
      %v4061 = vadd.f32 %v3961, %v4029
      %v4062 = vadd.f32 %v3962, %v4030
      %v4063 = vadd.f32 %v3963, %v4031
      %v4064 = vadd.f32 %v3964, %v4032
      %v4065 = vadd.f32 %v3965, %v4033
      %v4066 = vadd.f32 %v3966, %v4034
      %v4067 = vadd.f32 %v3967, %v4035
      %v4068 = vadd.f32 %v3968, %v4036
      %v4069 = vadd.f32 %v3969, %v4037
      %v4070 = vadd.f32 %v3970, %v4038
      %v4071 = vadd.f32 %v3971, %v4039
      %v4072 = vadd.f32 %v3972, %v4040
      %v4073 = vadd.f32 %v3973, %v4041
      %v4074 = vadd.f32 %v3974, %v4042
      %v4075 = vadd.f32 %v3975, %v4043
      %v4076 = vadd.f32 %v3976, %v4044
      %v4077 = vadd.f32 %v3977, %v4045
      %v4078 = vadd.f32 %v3978, %v4046
      %v4079 = vadd.f32 %v3979, %v4047
      %v4080 = vadd.f32 %v3980, %v4048
      %v4081 = vadd.f32 %v3981, %v4049
      %v4082 = vadd.f32 %v3982, %v4050
      %v4083 = vadd.f32 %v3983, %v4051
      %v4084 = vadd.f32 %v3984, %v4052
      %v4085 = vadd.f32 %v3985, %v4053
      %v4086 = vadd.f32 %v3986, %v4054
      %v4087 = vadd.f32 %v3987, %v4055
      %v4088 = vld [vmem:[%s3787 + $0x3] sm:$0xff]
      %v4089 = vld [vmem:[%s3787 + $0xb] sm:$0xff]
      %v4090 = vld [vmem:[%s3787 + $0x1b] sm:$0xff]
      %v4091 = vld [vmem:[%s3787 + $0x23] sm:$0xff]
      %v4092 = vld [vmem:[%s3787 + $0x33] sm:$0xff]
      %v4093 = vld [vmem:[%s3787 + $0x3b] sm:$0xff]
      %v4094 = vld [vmem:[%s3787 + $0x4b] sm:$0xff]
      %v4095 = vld [vmem:[%s3787 + $0x53] sm:$0xff]
      %v4096 = vld [vmem:[%s3787 + $0x63] sm:$0xff]
      %v4097 = vld [vmem:[%s3787 + $0x6b] sm:$0xff]
      %v4098 = vld [vmem:[%s3787 + $0x7b] sm:$0xff]
      %v4099 = vld [vmem:[%s3787 + $0x83] sm:$0xff]
      %v4100 = vld [vmem:[%s3787 + $0x93] sm:$0xff]
      %v4101 = vld [vmem:[%s3787 + $0x9b] sm:$0xff]
      %v4102 = vld [vmem:[%s3787 + $0xab] sm:$0xff]
      %v4103 = vld [vmem:[%s3787 + $0xb3] sm:$0xff]
      %v4104 = vld [vmem:[%s3787 + $0xc3] sm:$0xff]
      %v4105 = vld [vmem:[%s3787 + $0xcb] sm:$0xff]
      %v4106 = vld [vmem:[%s3787 + $0xdb] sm:$0xff]
      %v4107 = vld [vmem:[%s3787 + $0xe3] sm:$0xff]
      %v4108 = vld [vmem:[%s3787 + $0xf3] sm:$0xff]
      %v4109 = vld [vmem:[%s3787 + $0xfb] sm:$0xff]
      %v4110 = vld [vmem:[%s3787 + $0x10b] sm:$0xff]
      %v4111 = vld [vmem:[%s3787 + $0x113] sm:$0xff]
      %v4112 = vld [vmem:[%s3787 + $0x123] sm:$0xff]
      %v4113 = vld [vmem:[%s3787 + $0x12b] sm:$0xff]
      %v4114 = vld [vmem:[%s3787 + $0x13b] sm:$0xff]
      %v4115 = vld [vmem:[%s3787 + $0x143] sm:$0xff]
      %v4116 = vld [vmem:[%s3787 + $0x153] sm:$0xff]
      %v4117 = vld [vmem:[%s3787 + $0x15b] sm:$0xff]
      %v4118 = vld [vmem:[%s3787 + $0x16b] sm:$0xff]
      %v4119 = vld [vmem:[%s3787 + $0x173] sm:$0xff]
      %v4120 = vlaneseq
      %v4121 = vshrl.u32 %v4120, 7
      %v4122 = vsub.s32 3, %v4121
      %v4123 = vrot.slane %v216, %v4122
      %v4124 = vmul.f32 %v4088, %v4123
      %v4125 = vmul.f32 %v4089, %v4123
      %v4126 = vmul.f32 %v4090, %v4123
      %v4127 = vmul.f32 %v4091, %v4123
      %v4128 = vmul.f32 %v4092, %v4123
      %v4129 = vmul.f32 %v4093, %v4123
      %v4130 = vmul.f32 %v4094, %v4123
      %v4131 = vmul.f32 %v4095, %v4123
      %v4132 = vmul.f32 %v4096, %v4123
      %v4133 = vmul.f32 %v4097, %v4123
      %v4134 = vmul.f32 %v4098, %v4123
      %v4135 = vmul.f32 %v4099, %v4123
      %v4136 = vmul.f32 %v4100, %v4123
      %v4137 = vmul.f32 %v4101, %v4123
      %v4138 = vmul.f32 %v4102, %v4123
      %v4139 = vmul.f32 %v4103, %v4123
      %v4140 = vmul.f32 %v4104, %v4123
      %v4141 = vmul.f32 %v4105, %v4123
      %v4142 = vmul.f32 %v4106, %v4123
      %v4143 = vmul.f32 %v4107, %v4123
      %v4144 = vmul.f32 %v4108, %v4123
      %v4145 = vmul.f32 %v4109, %v4123
      %v4146 = vmul.f32 %v4110, %v4123
      %v4147 = vmul.f32 %v4111, %v4123
      %v4148 = vmul.f32 %v4112, %v4123
      %v4149 = vmul.f32 %v4113, %v4123
      %v4150 = vmul.f32 %v4114, %v4123
      %v4151 = vmul.f32 %v4115, %v4123
      %v4152 = vmul.f32 %v4116, %v4123
      %v4153 = vmul.f32 %v4117, %v4123
      %v4154 = vmul.f32 %v4118, %v4123
      %v4155 = vmul.f32 %v4119, %v4123
      %v4156 = vadd.f32 %v4056, %v4124
      %v4157 = vadd.f32 %v4057, %v4125
      %v4158 = vadd.f32 %v4058, %v4126
      %v4159 = vadd.f32 %v4059, %v4127
      %v4160 = vadd.f32 %v4060, %v4128
      %v4161 = vadd.f32 %v4061, %v4129
      %v4162 = vadd.f32 %v4062, %v4130
      %v4163 = vadd.f32 %v4063, %v4131
      %v4164 = vadd.f32 %v4064, %v4132
      %v4165 = vadd.f32 %v4065, %v4133
      %v4166 = vadd.f32 %v4066, %v4134
      %v4167 = vadd.f32 %v4067, %v4135
      %v4168 = vadd.f32 %v4068, %v4136
      %v4169 = vadd.f32 %v4069, %v4137
      %v4170 = vadd.f32 %v4070, %v4138
      %v4171 = vadd.f32 %v4071, %v4139
      %v4172 = vadd.f32 %v4072, %v4140
      %v4173 = vadd.f32 %v4073, %v4141
      %v4174 = vadd.f32 %v4074, %v4142
      %v4175 = vadd.f32 %v4075, %v4143
      %v4176 = vadd.f32 %v4076, %v4144
      %v4177 = vadd.f32 %v4077, %v4145
      %v4178 = vadd.f32 %v4078, %v4146
      %v4179 = vadd.f32 %v4079, %v4147
      %v4180 = vadd.f32 %v4080, %v4148
      %v4181 = vadd.f32 %v4081, %v4149
      %v4182 = vadd.f32 %v4082, %v4150
      %v4183 = vadd.f32 %v4083, %v4151
      %v4184 = vadd.f32 %v4084, %v4152
      %v4185 = vadd.f32 %v4085, %v4153
      %v4186 = vadd.f32 %v4086, %v4154
      %v4187 = vadd.f32 %v4087, %v4155
      %v4188 = vld [vmem:[%s3787 + $0x4] sm:$0xff]
      %v4189 = vld [vmem:[%s3787 + $0xc] sm:$0xff]
      %v4190 = vld [vmem:[%s3787 + $0x1c] sm:$0xff]
      %v4191 = vld [vmem:[%s3787 + $0x24] sm:$0xff]
      %v4192 = vld [vmem:[%s3787 + $0x34] sm:$0xff]
      %v4193 = vld [vmem:[%s3787 + $0x3c] sm:$0xff]
      %v4194 = vld [vmem:[%s3787 + $0x4c] sm:$0xff]
      %v4195 = vld [vmem:[%s3787 + $0x54] sm:$0xff]
      %v4196 = vld [vmem:[%s3787 + $0x64] sm:$0xff]
      %v4197 = vld [vmem:[%s3787 + $0x6c] sm:$0xff]
      %v4198 = vld [vmem:[%s3787 + $0x7c] sm:$0xff]
      %v4199 = vld [vmem:[%s3787 + $0x84] sm:$0xff]
      %v4200 = vld [vmem:[%s3787 + $0x94] sm:$0xff]
      %v4201 = vld [vmem:[%s3787 + $0x9c] sm:$0xff]
      %v4202 = vld [vmem:[%s3787 + $0xac] sm:$0xff]
      %v4203 = vld [vmem:[%s3787 + $0xb4] sm:$0xff]
      %v4204 = vld [vmem:[%s3787 + $0xc4] sm:$0xff]
      %v4205 = vld [vmem:[%s3787 + $0xcc] sm:$0xff]
      %v4206 = vld [vmem:[%s3787 + $0xdc] sm:$0xff]
      %v4207 = vld [vmem:[%s3787 + $0xe4] sm:$0xff]
      %v4208 = vld [vmem:[%s3787 + $0xf4] sm:$0xff]
      %v4209 = vld [vmem:[%s3787 + $0xfc] sm:$0xff]
      %v4210 = vld [vmem:[%s3787 + $0x10c] sm:$0xff]
      %v4211 = vld [vmem:[%s3787 + $0x114] sm:$0xff]
      %v4212 = vld [vmem:[%s3787 + $0x124] sm:$0xff]
      %v4213 = vld [vmem:[%s3787 + $0x12c] sm:$0xff]
      %v4214 = vld [vmem:[%s3787 + $0x13c] sm:$0xff]
      %v4215 = vld [vmem:[%s3787 + $0x144] sm:$0xff]
      %v4216 = vld [vmem:[%s3787 + $0x154] sm:$0xff]
      %v4217 = vld [vmem:[%s3787 + $0x15c] sm:$0xff]
      %v4218 = vld [vmem:[%s3787 + $0x16c] sm:$0xff]
      %v4219 = vld [vmem:[%s3787 + $0x174] sm:$0xff]
      %v4220 = vlaneseq
      %v4221 = vshrl.u32 %v4220, 7
      %v4222 = vsub.s32 4, %v4221
      %v4223 = vrot.slane %v216, %v4222
      %v4224 = vmul.f32 %v4188, %v4223
      %v4225 = vmul.f32 %v4189, %v4223
      %v4226 = vmul.f32 %v4190, %v4223
      %v4227 = vmul.f32 %v4191, %v4223
      %v4228 = vmul.f32 %v4192, %v4223
      %v4229 = vmul.f32 %v4193, %v4223
      %v4230 = vmul.f32 %v4194, %v4223
      %v4231 = vmul.f32 %v4195, %v4223
      %v4232 = vmul.f32 %v4196, %v4223
      %v4233 = vmul.f32 %v4197, %v4223
      %v4234 = vmul.f32 %v4198, %v4223
      %v4235 = vmul.f32 %v4199, %v4223
      %v4236 = vmul.f32 %v4200, %v4223
      %v4237 = vmul.f32 %v4201, %v4223
      %v4238 = vmul.f32 %v4202, %v4223
      %v4239 = vmul.f32 %v4203, %v4223
      %v4240 = vmul.f32 %v4204, %v4223
      %v4241 = vmul.f32 %v4205, %v4223
      %v4242 = vmul.f32 %v4206, %v4223
      %v4243 = vmul.f32 %v4207, %v4223
      %v4244 = vmul.f32 %v4208, %v4223
      %v4245 = vmul.f32 %v4209, %v4223
      %v4246 = vmul.f32 %v4210, %v4223
      %v4247 = vmul.f32 %v4211, %v4223
      %v4248 = vmul.f32 %v4212, %v4223
      %v4249 = vmul.f32 %v4213, %v4223
      %v4250 = vmul.f32 %v4214, %v4223
      %v4251 = vmul.f32 %v4215, %v4223
      %v4252 = vmul.f32 %v4216, %v4223
      %v4253 = vmul.f32 %v4217, %v4223
      %v4254 = vmul.f32 %v4218, %v4223
      %v4255 = vmul.f32 %v4219, %v4223
      %v4256 = vadd.f32 %v4156, %v4224
      %v4257 = vadd.f32 %v4157, %v4225
      %v4258 = vadd.f32 %v4158, %v4226
      %v4259 = vadd.f32 %v4159, %v4227
      %v4260 = vadd.f32 %v4160, %v4228
      %v4261 = vadd.f32 %v4161, %v4229
      %v4262 = vadd.f32 %v4162, %v4230
      %v4263 = vadd.f32 %v4163, %v4231
      %v4264 = vadd.f32 %v4164, %v4232
      %v4265 = vadd.f32 %v4165, %v4233
      %v4266 = vadd.f32 %v4166, %v4234
      %v4267 = vadd.f32 %v4167, %v4235
      %v4268 = vadd.f32 %v4168, %v4236
      %v4269 = vadd.f32 %v4169, %v4237
      %v4270 = vadd.f32 %v4170, %v4238
      %v4271 = vadd.f32 %v4171, %v4239
      %v4272 = vadd.f32 %v4172, %v4240
      %v4273 = vadd.f32 %v4173, %v4241
      %v4274 = vadd.f32 %v4174, %v4242
      %v4275 = vadd.f32 %v4175, %v4243
      %v4276 = vadd.f32 %v4176, %v4244
      %v4277 = vadd.f32 %v4177, %v4245
      %v4278 = vadd.f32 %v4178, %v4246
      %v4279 = vadd.f32 %v4179, %v4247
      %v4280 = vadd.f32 %v4180, %v4248
      %v4281 = vadd.f32 %v4181, %v4249
      %v4282 = vadd.f32 %v4182, %v4250
      %v4283 = vadd.f32 %v4183, %v4251
      %v4284 = vadd.f32 %v4184, %v4252
      %v4285 = vadd.f32 %v4185, %v4253
      %v4286 = vadd.f32 %v4186, %v4254
      %v4287 = vadd.f32 %v4187, %v4255
      %v4288 = vld [vmem:[%s3787 + $0x5] sm:$0xff]
      %v4289 = vld [vmem:[%s3787 + $0xd] sm:$0xff]
      %v4290 = vld [vmem:[%s3787 + $0x1d] sm:$0xff]
      %v4291 = vld [vmem:[%s3787 + $0x25] sm:$0xff]
      %v4292 = vld [vmem:[%s3787 + $0x35] sm:$0xff]
      %v4293 = vld [vmem:[%s3787 + $0x3d] sm:$0xff]
      %v4294 = vld [vmem:[%s3787 + $0x4d] sm:$0xff]
      %v4295 = vld [vmem:[%s3787 + $0x55] sm:$0xff]
      %v4296 = vld [vmem:[%s3787 + $0x65] sm:$0xff]
      %v4297 = vld [vmem:[%s3787 + $0x6d] sm:$0xff]
      %v4298 = vld [vmem:[%s3787 + $0x7d] sm:$0xff]
      %v4299 = vld [vmem:[%s3787 + $0x85] sm:$0xff]
      %v4300 = vld [vmem:[%s3787 + $0x95] sm:$0xff]
      %v4301 = vld [vmem:[%s3787 + $0x9d] sm:$0xff]
      %v4302 = vld [vmem:[%s3787 + $0xad] sm:$0xff]
      %v4303 = vld [vmem:[%s3787 + $0xb5] sm:$0xff]
      %v4304 = vld [vmem:[%s3787 + $0xc5] sm:$0xff]
      %v4305 = vld [vmem:[%s3787 + $0xcd] sm:$0xff]
      %v4306 = vld [vmem:[%s3787 + $0xdd] sm:$0xff]
      %v4307 = vld [vmem:[%s3787 + $0xe5] sm:$0xff]
      %v4308 = vld [vmem:[%s3787 + $0xf5] sm:$0xff]
      %v4309 = vld [vmem:[%s3787 + $0xfd] sm:$0xff]
      %v4310 = vld [vmem:[%s3787 + $0x10d] sm:$0xff]
      %v4311 = vld [vmem:[%s3787 + $0x115] sm:$0xff]
      %v4312 = vld [vmem:[%s3787 + $0x125] sm:$0xff]
      %v4313 = vld [vmem:[%s3787 + $0x12d] sm:$0xff]
      %v4314 = vld [vmem:[%s3787 + $0x13d] sm:$0xff]
      %v4315 = vld [vmem:[%s3787 + $0x145] sm:$0xff]
      %v4316 = vld [vmem:[%s3787 + $0x155] sm:$0xff]
      %v4317 = vld [vmem:[%s3787 + $0x15d] sm:$0xff]
      %v4318 = vld [vmem:[%s3787 + $0x16d] sm:$0xff]
      %v4319 = vld [vmem:[%s3787 + $0x175] sm:$0xff]
      %v4320 = vlaneseq
      %v4321 = vshrl.u32 %v4320, 7
      %v4322 = vsub.s32 5, %v4321
      %v4323 = vrot.slane %v216, %v4322
      %v4324 = vmul.f32 %v4288, %v4323
      %v4325 = vmul.f32 %v4289, %v4323
      %v4326 = vmul.f32 %v4290, %v4323
      %v4327 = vmul.f32 %v4291, %v4323
      %v4328 = vmul.f32 %v4292, %v4323
      %v4329 = vmul.f32 %v4293, %v4323
      %v4330 = vmul.f32 %v4294, %v4323
      %v4331 = vmul.f32 %v4295, %v4323
      %v4332 = vmul.f32 %v4296, %v4323
      %v4333 = vmul.f32 %v4297, %v4323
      %v4334 = vmul.f32 %v4298, %v4323
      %v4335 = vmul.f32 %v4299, %v4323
      %v4336 = vmul.f32 %v4300, %v4323
      %v4337 = vmul.f32 %v4301, %v4323
      %v4338 = vmul.f32 %v4302, %v4323
      %v4339 = vmul.f32 %v4303, %v4323
      %v4340 = vmul.f32 %v4304, %v4323
      %v4341 = vmul.f32 %v4305, %v4323
      %v4342 = vmul.f32 %v4306, %v4323
      %v4343 = vmul.f32 %v4307, %v4323
      %v4344 = vmul.f32 %v4308, %v4323
      %v4345 = vmul.f32 %v4309, %v4323
      %v4346 = vmul.f32 %v4310, %v4323
      %v4347 = vmul.f32 %v4311, %v4323
      %v4348 = vmul.f32 %v4312, %v4323
      %v4349 = vmul.f32 %v4313, %v4323
      %v4350 = vmul.f32 %v4314, %v4323
      %v4351 = vmul.f32 %v4315, %v4323
      %v4352 = vmul.f32 %v4316, %v4323
      %v4353 = vmul.f32 %v4317, %v4323
      %v4354 = vmul.f32 %v4318, %v4323
      %v4355 = vmul.f32 %v4319, %v4323
      %v4356 = vadd.f32 %v4256, %v4324
      %v4357 = vadd.f32 %v4257, %v4325
      %v4358 = vadd.f32 %v4258, %v4326
      %v4359 = vadd.f32 %v4259, %v4327
      %v4360 = vadd.f32 %v4260, %v4328
      %v4361 = vadd.f32 %v4261, %v4329
      %v4362 = vadd.f32 %v4262, %v4330
      %v4363 = vadd.f32 %v4263, %v4331
      %v4364 = vadd.f32 %v4264, %v4332
      %v4365 = vadd.f32 %v4265, %v4333
      %v4366 = vadd.f32 %v4266, %v4334
      %v4367 = vadd.f32 %v4267, %v4335
      %v4368 = vadd.f32 %v4268, %v4336
      %v4369 = vadd.f32 %v4269, %v4337
      %v4370 = vadd.f32 %v4270, %v4338
      %v4371 = vadd.f32 %v4271, %v4339
      %v4372 = vadd.f32 %v4272, %v4340
      %v4373 = vadd.f32 %v4273, %v4341
      %v4374 = vadd.f32 %v4274, %v4342
      %v4375 = vadd.f32 %v4275, %v4343
      %v4376 = vadd.f32 %v4276, %v4344
      %v4377 = vadd.f32 %v4277, %v4345
      %v4378 = vadd.f32 %v4278, %v4346
      %v4379 = vadd.f32 %v4279, %v4347
      %v4380 = vadd.f32 %v4280, %v4348
      %v4381 = vadd.f32 %v4281, %v4349
      %v4382 = vadd.f32 %v4282, %v4350
      %v4383 = vadd.f32 %v4283, %v4351
      %v4384 = vadd.f32 %v4284, %v4352
      %v4385 = vadd.f32 %v4285, %v4353
      %v4386 = vadd.f32 %v4286, %v4354
      %v4387 = vadd.f32 %v4287, %v4355
      %v4388 = vld [vmem:[%s3787 + $0x6] sm:$0xff]
      %v4389 = vld [vmem:[%s3787 + $0xe] sm:$0xff]
      %v4390 = vld [vmem:[%s3787 + $0x1e] sm:$0xff]
      %v4391 = vld [vmem:[%s3787 + $0x26] sm:$0xff]
      %v4392 = vld [vmem:[%s3787 + $0x36] sm:$0xff]
      %v4393 = vld [vmem:[%s3787 + $0x3e] sm:$0xff]
      %v4394 = vld [vmem:[%s3787 + $0x4e] sm:$0xff]
      %v4395 = vld [vmem:[%s3787 + $0x56] sm:$0xff]
      %v4396 = vld [vmem:[%s3787 + $0x66] sm:$0xff]
      %v4397 = vld [vmem:[%s3787 + $0x6e] sm:$0xff]
      %v4398 = vld [vmem:[%s3787 + $0x7e] sm:$0xff]
      %v4399 = vld [vmem:[%s3787 + $0x86] sm:$0xff]
      %v4400 = vld [vmem:[%s3787 + $0x96] sm:$0xff]
      %v4401 = vld [vmem:[%s3787 + $0x9e] sm:$0xff]
      %v4402 = vld [vmem:[%s3787 + $0xae] sm:$0xff]
      %v4403 = vld [vmem:[%s3787 + $0xb6] sm:$0xff]
      %v4404 = vld [vmem:[%s3787 + $0xc6] sm:$0xff]
      %v4405 = vld [vmem:[%s3787 + $0xce] sm:$0xff]
      %v4406 = vld [vmem:[%s3787 + $0xde] sm:$0xff]
      %v4407 = vld [vmem:[%s3787 + $0xe6] sm:$0xff]
      %v4408 = vld [vmem:[%s3787 + $0xf6] sm:$0xff]
      %v4409 = vld [vmem:[%s3787 + $0xfe] sm:$0xff]
      %v4410 = vld [vmem:[%s3787 + $0x10e] sm:$0xff]
      %v4411 = vld [vmem:[%s3787 + $0x116] sm:$0xff]
      %v4412 = vld [vmem:[%s3787 + $0x126] sm:$0xff]
      %v4413 = vld [vmem:[%s3787 + $0x12e] sm:$0xff]
      %v4414 = vld [vmem:[%s3787 + $0x13e] sm:$0xff]
      %v4415 = vld [vmem:[%s3787 + $0x146] sm:$0xff]
      %v4416 = vld [vmem:[%s3787 + $0x156] sm:$0xff]
      %v4417 = vld [vmem:[%s3787 + $0x15e] sm:$0xff]
      %v4418 = vld [vmem:[%s3787 + $0x16e] sm:$0xff]
      %v4419 = vld [vmem:[%s3787 + $0x176] sm:$0xff]
      %v4420 = vlaneseq
      %v4421 = vshrl.u32 %v4420, 7
      %v4422 = vsub.s32 6, %v4421
      %v4423 = vrot.slane %v216, %v4422
      %v4424 = vmul.f32 %v4388, %v4423
      %v4425 = vmul.f32 %v4389, %v4423
      %v4426 = vmul.f32 %v4390, %v4423
      %v4427 = vmul.f32 %v4391, %v4423
      %v4428 = vmul.f32 %v4392, %v4423
      %v4429 = vmul.f32 %v4393, %v4423
      %v4430 = vmul.f32 %v4394, %v4423
      %v4431 = vmul.f32 %v4395, %v4423
      %v4432 = vmul.f32 %v4396, %v4423
      %v4433 = vmul.f32 %v4397, %v4423
      %v4434 = vmul.f32 %v4398, %v4423
      %v4435 = vmul.f32 %v4399, %v4423
      %v4436 = vmul.f32 %v4400, %v4423
      %v4437 = vmul.f32 %v4401, %v4423
      %v4438 = vmul.f32 %v4402, %v4423
      %v4439 = vmul.f32 %v4403, %v4423
      %v4440 = vmul.f32 %v4404, %v4423
      %v4441 = vmul.f32 %v4405, %v4423
      %v4442 = vmul.f32 %v4406, %v4423
      %v4443 = vmul.f32 %v4407, %v4423
      %v4444 = vmul.f32 %v4408, %v4423
      %v4445 = vmul.f32 %v4409, %v4423
      %v4446 = vmul.f32 %v4410, %v4423
      %v4447 = vmul.f32 %v4411, %v4423
      %v4448 = vmul.f32 %v4412, %v4423
      %v4449 = vmul.f32 %v4413, %v4423
      %v4450 = vmul.f32 %v4414, %v4423
      %v4451 = vmul.f32 %v4415, %v4423
      %v4452 = vmul.f32 %v4416, %v4423
      %v4453 = vmul.f32 %v4417, %v4423
      %v4454 = vmul.f32 %v4418, %v4423
      %v4455 = vmul.f32 %v4419, %v4423
      %v4456 = vadd.f32 %v4356, %v4424
      %v4457 = vadd.f32 %v4357, %v4425
      %v4458 = vadd.f32 %v4358, %v4426
      %v4459 = vadd.f32 %v4359, %v4427
      %v4460 = vadd.f32 %v4360, %v4428
      %v4461 = vadd.f32 %v4361, %v4429
      %v4462 = vadd.f32 %v4362, %v4430
      %v4463 = vadd.f32 %v4363, %v4431
      %v4464 = vadd.f32 %v4364, %v4432
      %v4465 = vadd.f32 %v4365, %v4433
      %v4466 = vadd.f32 %v4366, %v4434
      %v4467 = vadd.f32 %v4367, %v4435
      %v4468 = vadd.f32 %v4368, %v4436
      %v4469 = vadd.f32 %v4369, %v4437
      %v4470 = vadd.f32 %v4370, %v4438
      %v4471 = vadd.f32 %v4371, %v4439
      %v4472 = vadd.f32 %v4372, %v4440
      %v4473 = vadd.f32 %v4373, %v4441
      %v4474 = vadd.f32 %v4374, %v4442
      %v4475 = vadd.f32 %v4375, %v4443
      %v4476 = vadd.f32 %v4376, %v4444
      %v4477 = vadd.f32 %v4377, %v4445
      %v4478 = vadd.f32 %v4378, %v4446
      %v4479 = vadd.f32 %v4379, %v4447
      %v4480 = vadd.f32 %v4380, %v4448
      %v4481 = vadd.f32 %v4381, %v4449
      %v4482 = vadd.f32 %v4382, %v4450
      %v4483 = vadd.f32 %v4383, %v4451
      %v4484 = vadd.f32 %v4384, %v4452
      %v4485 = vadd.f32 %v4385, %v4453
      %v4486 = vadd.f32 %v4386, %v4454
      %v4487 = vadd.f32 %v4387, %v4455
      %s4488 = scalar_lea.vmem %s200, 144
      %v4489 = vld [vmem:[%s4488] sm:$0xff]
      %v4490 = vld [vmem:[%s4488 + $0x8] sm:$0xff]
      %v4491 = vld [vmem:[%s4488 + $0x18] sm:$0xff]
      %v4492 = vld [vmem:[%s4488 + $0x20] sm:$0xff]
      %v4493 = vld [vmem:[%s4488 + $0x30] sm:$0xff]
      %v4494 = vld [vmem:[%s4488 + $0x38] sm:$0xff]
      %v4495 = vld [vmem:[%s4488 + $0x48] sm:$0xff]
      %v4496 = vld [vmem:[%s4488 + $0x50] sm:$0xff]
      %v4497 = vld [vmem:[%s4488 + $0x60] sm:$0xff]
      %v4498 = vld [vmem:[%s4488 + $0x68] sm:$0xff]
      %v4499 = vld [vmem:[%s4488 + $0x78] sm:$0xff]
      %v4500 = vld [vmem:[%s4488 + $0x80] sm:$0xff]
      %v4501 = vld [vmem:[%s4488 + $0x90] sm:$0xff]
      %v4502 = vld [vmem:[%s4488 + $0x98] sm:$0xff]
      %v4503 = vld [vmem:[%s4488 + $0xa8] sm:$0xff]
      %v4504 = vld [vmem:[%s4488 + $0xb0] sm:$0xff]
      %v4505 = vld [vmem:[%s4488 + $0xc0] sm:$0xff]
      %v4506 = vld [vmem:[%s4488 + $0xc8] sm:$0xff]
      %v4507 = vld [vmem:[%s4488 + $0xd8] sm:$0xff]
      %v4508 = vld [vmem:[%s4488 + $0xe0] sm:$0xff]
      %v4509 = vld [vmem:[%s4488 + $0xf0] sm:$0xff]
      %v4510 = vld [vmem:[%s4488 + $0xf8] sm:$0xff]
      %v4511 = vld [vmem:[%s4488 + $0x108] sm:$0xff]
      %v4512 = vld [vmem:[%s4488 + $0x110] sm:$0xff]
      %v4513 = vld [vmem:[%s4488 + $0x120] sm:$0xff]
      %v4514 = vld [vmem:[%s4488 + $0x128] sm:$0xff]
      %v4515 = vld [vmem:[%s4488 + $0x138] sm:$0xff]
      %v4516 = vld [vmem:[%s4488 + $0x140] sm:$0xff]
      %v4517 = vld [vmem:[%s4488 + $0x150] sm:$0xff]
      %v4518 = vld [vmem:[%s4488 + $0x158] sm:$0xff]
      %v4519 = vld [vmem:[%s4488 + $0x168] sm:$0xff]
      %v4520 = vld [vmem:[%s4488 + $0x170] sm:$0xff]
      %v4521 = vlaneseq
      %v4522 = vshrl.u32 %v4521, 7
      %v4523 = vsub.s32 0, %v4522
      %v4524 = vrot.slane %v217, %v4523
      %v4525 = vmul.f32 %v4489, %v4524
      %v4526 = vmul.f32 %v4490, %v4524
      %v4527 = vmul.f32 %v4491, %v4524
      %v4528 = vmul.f32 %v4492, %v4524
      %v4529 = vmul.f32 %v4493, %v4524
      %v4530 = vmul.f32 %v4494, %v4524
      %v4531 = vmul.f32 %v4495, %v4524
      %v4532 = vmul.f32 %v4496, %v4524
      %v4533 = vmul.f32 %v4497, %v4524
      %v4534 = vmul.f32 %v4498, %v4524
      %v4535 = vmul.f32 %v4499, %v4524
      %v4536 = vmul.f32 %v4500, %v4524
      %v4537 = vmul.f32 %v4501, %v4524
      %v4538 = vmul.f32 %v4502, %v4524
      %v4539 = vmul.f32 %v4503, %v4524
      %v4540 = vmul.f32 %v4504, %v4524
      %v4541 = vmul.f32 %v4505, %v4524
      %v4542 = vmul.f32 %v4506, %v4524
      %v4543 = vmul.f32 %v4507, %v4524
      %v4544 = vmul.f32 %v4508, %v4524
      %v4545 = vmul.f32 %v4509, %v4524
      %v4546 = vmul.f32 %v4510, %v4524
      %v4547 = vmul.f32 %v4511, %v4524
      %v4548 = vmul.f32 %v4512, %v4524
      %v4549 = vmul.f32 %v4513, %v4524
      %v4550 = vmul.f32 %v4514, %v4524
      %v4551 = vmul.f32 %v4515, %v4524
      %v4552 = vmul.f32 %v4516, %v4524
      %v4553 = vmul.f32 %v4517, %v4524
      %v4554 = vmul.f32 %v4518, %v4524
      %v4555 = vmul.f32 %v4519, %v4524
      %v4556 = vmul.f32 %v4520, %v4524
      %v4557 = vadd.f32 %v4456, %v4525
      %v4558 = vadd.f32 %v4457, %v4526
      %v4559 = vadd.f32 %v4458, %v4527
      %v4560 = vadd.f32 %v4459, %v4528
      %v4561 = vadd.f32 %v4460, %v4529
      %v4562 = vadd.f32 %v4461, %v4530
      %v4563 = vadd.f32 %v4462, %v4531
      %v4564 = vadd.f32 %v4463, %v4532
      %v4565 = vadd.f32 %v4464, %v4533
      %v4566 = vadd.f32 %v4465, %v4534
      %v4567 = vadd.f32 %v4466, %v4535
      %v4568 = vadd.f32 %v4467, %v4536
      %v4569 = vadd.f32 %v4468, %v4537
      %v4570 = vadd.f32 %v4469, %v4538
      %v4571 = vadd.f32 %v4470, %v4539
      %v4572 = vadd.f32 %v4471, %v4540
      %v4573 = vadd.f32 %v4472, %v4541
      %v4574 = vadd.f32 %v4473, %v4542
      %v4575 = vadd.f32 %v4474, %v4543
      %v4576 = vadd.f32 %v4475, %v4544
      %v4577 = vadd.f32 %v4476, %v4545
      %v4578 = vadd.f32 %v4477, %v4546
      %v4579 = vadd.f32 %v4478, %v4547
      %v4580 = vadd.f32 %v4479, %v4548
      %v4581 = vadd.f32 %v4480, %v4549
      %v4582 = vadd.f32 %v4481, %v4550
      %v4583 = vadd.f32 %v4482, %v4551
      %v4584 = vadd.f32 %v4483, %v4552
      %v4585 = vadd.f32 %v4484, %v4553
      %v4586 = vadd.f32 %v4485, %v4554
      %v4587 = vadd.f32 %v4486, %v4555
      %v4588 = vadd.f32 %v4487, %v4556
      %v4589 = vld [vmem:[%s4488 + $0x1] sm:$0xff]
      %v4590 = vld [vmem:[%s4488 + $0x9] sm:$0xff]
      %v4591 = vld [vmem:[%s4488 + $0x19] sm:$0xff]
      %v4592 = vld [vmem:[%s4488 + $0x21] sm:$0xff]
      %v4593 = vld [vmem:[%s4488 + $0x31] sm:$0xff]
      %v4594 = vld [vmem:[%s4488 + $0x39] sm:$0xff]
      %v4595 = vld [vmem:[%s4488 + $0x49] sm:$0xff]
      %v4596 = vld [vmem:[%s4488 + $0x51] sm:$0xff]
      %v4597 = vld [vmem:[%s4488 + $0x61] sm:$0xff]
      %v4598 = vld [vmem:[%s4488 + $0x69] sm:$0xff]
      %v4599 = vld [vmem:[%s4488 + $0x79] sm:$0xff]
      %v4600 = vld [vmem:[%s4488 + $0x81] sm:$0xff]
      %v4601 = vld [vmem:[%s4488 + $0x91] sm:$0xff]
      %v4602 = vld [vmem:[%s4488 + $0x99] sm:$0xff]
      %v4603 = vld [vmem:[%s4488 + $0xa9] sm:$0xff]
      %v4604 = vld [vmem:[%s4488 + $0xb1] sm:$0xff]
      %v4605 = vld [vmem:[%s4488 + $0xc1] sm:$0xff]
      %v4606 = vld [vmem:[%s4488 + $0xc9] sm:$0xff]
      %v4607 = vld [vmem:[%s4488 + $0xd9] sm:$0xff]
      %v4608 = vld [vmem:[%s4488 + $0xe1] sm:$0xff]
      %v4609 = vld [vmem:[%s4488 + $0xf1] sm:$0xff]
      %v4610 = vld [vmem:[%s4488 + $0xf9] sm:$0xff]
      %v4611 = vld [vmem:[%s4488 + $0x109] sm:$0xff]
      %v4612 = vld [vmem:[%s4488 + $0x111] sm:$0xff]
      %v4613 = vld [vmem:[%s4488 + $0x121] sm:$0xff]
      %v4614 = vld [vmem:[%s4488 + $0x129] sm:$0xff]
      %v4615 = vld [vmem:[%s4488 + $0x139] sm:$0xff]
      %v4616 = vld [vmem:[%s4488 + $0x141] sm:$0xff]
      %v4617 = vld [vmem:[%s4488 + $0x151] sm:$0xff]
      %v4618 = vld [vmem:[%s4488 + $0x159] sm:$0xff]
      %v4619 = vld [vmem:[%s4488 + $0x169] sm:$0xff]
      %v4620 = vld [vmem:[%s4488 + $0x171] sm:$0xff]
      %v4621 = vlaneseq
      %v4622 = vshrl.u32 %v4621, 7
      %v4623 = vsub.s32 1, %v4622
      %v4624 = vrot.slane %v217, %v4623
      %v4625 = vmul.f32 %v4589, %v4624
      %v4626 = vmul.f32 %v4590, %v4624
      %v4627 = vmul.f32 %v4591, %v4624
      %v4628 = vmul.f32 %v4592, %v4624
      %v4629 = vmul.f32 %v4593, %v4624
      %v4630 = vmul.f32 %v4594, %v4624
      %v4631 = vmul.f32 %v4595, %v4624
      %v4632 = vmul.f32 %v4596, %v4624
      %v4633 = vmul.f32 %v4597, %v4624
      %v4634 = vmul.f32 %v4598, %v4624
      %v4635 = vmul.f32 %v4599, %v4624
      %v4636 = vmul.f32 %v4600, %v4624
      %v4637 = vmul.f32 %v4601, %v4624
      %v4638 = vmul.f32 %v4602, %v4624
      %v4639 = vmul.f32 %v4603, %v4624
      %v4640 = vmul.f32 %v4604, %v4624
      %v4641 = vmul.f32 %v4605, %v4624
      %v4642 = vmul.f32 %v4606, %v4624
      %v4643 = vmul.f32 %v4607, %v4624
      %v4644 = vmul.f32 %v4608, %v4624
      %v4645 = vmul.f32 %v4609, %v4624
      %v4646 = vmul.f32 %v4610, %v4624
      %v4647 = vmul.f32 %v4611, %v4624
      %v4648 = vmul.f32 %v4612, %v4624
      %v4649 = vmul.f32 %v4613, %v4624
      %v4650 = vmul.f32 %v4614, %v4624
      %v4651 = vmul.f32 %v4615, %v4624
      %v4652 = vmul.f32 %v4616, %v4624
      %v4653 = vmul.f32 %v4617, %v4624
      %v4654 = vmul.f32 %v4618, %v4624
      %v4655 = vmul.f32 %v4619, %v4624
      %v4656 = vmul.f32 %v4620, %v4624
      %v4657 = vadd.f32 %v4557, %v4625
      %v4658 = vadd.f32 %v4558, %v4626
      %v4659 = vadd.f32 %v4559, %v4627
      %v4660 = vadd.f32 %v4560, %v4628
      %v4661 = vadd.f32 %v4561, %v4629
      %v4662 = vadd.f32 %v4562, %v4630
      %v4663 = vadd.f32 %v4563, %v4631
      %v4664 = vadd.f32 %v4564, %v4632
      %v4665 = vadd.f32 %v4565, %v4633
      %v4666 = vadd.f32 %v4566, %v4634
      %v4667 = vadd.f32 %v4567, %v4635
      %v4668 = vadd.f32 %v4568, %v4636
      %v4669 = vadd.f32 %v4569, %v4637
      %v4670 = vadd.f32 %v4570, %v4638
      %v4671 = vadd.f32 %v4571, %v4639
      %v4672 = vadd.f32 %v4572, %v4640
      %v4673 = vadd.f32 %v4573, %v4641
      %v4674 = vadd.f32 %v4574, %v4642
      %v4675 = vadd.f32 %v4575, %v4643
      %v4676 = vadd.f32 %v4576, %v4644
      %v4677 = vadd.f32 %v4577, %v4645
      %v4678 = vadd.f32 %v4578, %v4646
      %v4679 = vadd.f32 %v4579, %v4647
      %v4680 = vadd.f32 %v4580, %v4648
      %v4681 = vadd.f32 %v4581, %v4649
      %v4682 = vadd.f32 %v4582, %v4650
      %v4683 = vadd.f32 %v4583, %v4651
      %v4684 = vadd.f32 %v4584, %v4652
      %v4685 = vadd.f32 %v4585, %v4653
      %v4686 = vadd.f32 %v4586, %v4654
      %v4687 = vadd.f32 %v4587, %v4655
      %v4688 = vadd.f32 %v4588, %v4656
      %v4689 = vld [vmem:[%s4488 + $0x2] sm:$0xff]
      %v4690 = vld [vmem:[%s4488 + $0xa] sm:$0xff]
      %v4691 = vld [vmem:[%s4488 + $0x1a] sm:$0xff]
      %v4692 = vld [vmem:[%s4488 + $0x22] sm:$0xff]
      %v4693 = vld [vmem:[%s4488 + $0x32] sm:$0xff]
      %v4694 = vld [vmem:[%s4488 + $0x3a] sm:$0xff]
      %v4695 = vld [vmem:[%s4488 + $0x4a] sm:$0xff]
      %v4696 = vld [vmem:[%s4488 + $0x52] sm:$0xff]
      %v4697 = vld [vmem:[%s4488 + $0x62] sm:$0xff]
      %v4698 = vld [vmem:[%s4488 + $0x6a] sm:$0xff]
      %v4699 = vld [vmem:[%s4488 + $0x7a] sm:$0xff]
      %v4700 = vld [vmem:[%s4488 + $0x82] sm:$0xff]
      %v4701 = vld [vmem:[%s4488 + $0x92] sm:$0xff]
      %v4702 = vld [vmem:[%s4488 + $0x9a] sm:$0xff]
      %v4703 = vld [vmem:[%s4488 + $0xaa] sm:$0xff]
      %v4704 = vld [vmem:[%s4488 + $0xb2] sm:$0xff]
      %v4705 = vld [vmem:[%s4488 + $0xc2] sm:$0xff]
      %v4706 = vld [vmem:[%s4488 + $0xca] sm:$0xff]
      %v4707 = vld [vmem:[%s4488 + $0xda] sm:$0xff]
      %v4708 = vld [vmem:[%s4488 + $0xe2] sm:$0xff]
      %v4709 = vld [vmem:[%s4488 + $0xf2] sm:$0xff]
      %v4710 = vld [vmem:[%s4488 + $0xfa] sm:$0xff]
      %v4711 = vld [vmem:[%s4488 + $0x10a] sm:$0xff]
      %v4712 = vld [vmem:[%s4488 + $0x112] sm:$0xff]
      %v4713 = vld [vmem:[%s4488 + $0x122] sm:$0xff]
      %v4714 = vld [vmem:[%s4488 + $0x12a] sm:$0xff]
      %v4715 = vld [vmem:[%s4488 + $0x13a] sm:$0xff]
      %v4716 = vld [vmem:[%s4488 + $0x142] sm:$0xff]
      %v4717 = vld [vmem:[%s4488 + $0x152] sm:$0xff]
      %v4718 = vld [vmem:[%s4488 + $0x15a] sm:$0xff]
      %v4719 = vld [vmem:[%s4488 + $0x16a] sm:$0xff]
      %v4720 = vld [vmem:[%s4488 + $0x172] sm:$0xff]
      %v4721 = vlaneseq
      %v4722 = vshrl.u32 %v4721, 7
      %v4723 = vsub.s32 2, %v4722
      %v4724 = vrot.slane %v217, %v4723
      %v4725 = vmul.f32 %v4689, %v4724
      %v4726 = vmul.f32 %v4690, %v4724
      %v4727 = vmul.f32 %v4691, %v4724
      %v4728 = vmul.f32 %v4692, %v4724
      %v4729 = vmul.f32 %v4693, %v4724
      %v4730 = vmul.f32 %v4694, %v4724
      %v4731 = vmul.f32 %v4695, %v4724
      %v4732 = vmul.f32 %v4696, %v4724
      %v4733 = vmul.f32 %v4697, %v4724
      %v4734 = vmul.f32 %v4698, %v4724
      %v4735 = vmul.f32 %v4699, %v4724
      %v4736 = vmul.f32 %v4700, %v4724
      %v4737 = vmul.f32 %v4701, %v4724
      %v4738 = vmul.f32 %v4702, %v4724
      %v4739 = vmul.f32 %v4703, %v4724
      %v4740 = vmul.f32 %v4704, %v4724
      %v4741 = vmul.f32 %v4705, %v4724
      %v4742 = vmul.f32 %v4706, %v4724
      %v4743 = vmul.f32 %v4707, %v4724
      %v4744 = vmul.f32 %v4708, %v4724
      %v4745 = vmul.f32 %v4709, %v4724
      %v4746 = vmul.f32 %v4710, %v4724
      %v4747 = vmul.f32 %v4711, %v4724
      %v4748 = vmul.f32 %v4712, %v4724
      %v4749 = vmul.f32 %v4713, %v4724
      %v4750 = vmul.f32 %v4714, %v4724
      %v4751 = vmul.f32 %v4715, %v4724
      %v4752 = vmul.f32 %v4716, %v4724
      %v4753 = vmul.f32 %v4717, %v4724
      %v4754 = vmul.f32 %v4718, %v4724
      %v4755 = vmul.f32 %v4719, %v4724
      %v4756 = vmul.f32 %v4720, %v4724
      %v4757 = vadd.f32 %v4657, %v4725
      %v4758 = vadd.f32 %v4658, %v4726
      %v4759 = vadd.f32 %v4659, %v4727
      %v4760 = vadd.f32 %v4660, %v4728
      %v4761 = vadd.f32 %v4661, %v4729
      %v4762 = vadd.f32 %v4662, %v4730
      %v4763 = vadd.f32 %v4663, %v4731
      %v4764 = vadd.f32 %v4664, %v4732
      %v4765 = vadd.f32 %v4665, %v4733
      %v4766 = vadd.f32 %v4666, %v4734
      %v4767 = vadd.f32 %v4667, %v4735
      %v4768 = vadd.f32 %v4668, %v4736
      %v4769 = vadd.f32 %v4669, %v4737
      %v4770 = vadd.f32 %v4670, %v4738
      %v4771 = vadd.f32 %v4671, %v4739
      %v4772 = vadd.f32 %v4672, %v4740
      %v4773 = vadd.f32 %v4673, %v4741
      %v4774 = vadd.f32 %v4674, %v4742
      %v4775 = vadd.f32 %v4675, %v4743
      %v4776 = vadd.f32 %v4676, %v4744
      %v4777 = vadd.f32 %v4677, %v4745
      %v4778 = vadd.f32 %v4678, %v4746
      %v4779 = vadd.f32 %v4679, %v4747
      %v4780 = vadd.f32 %v4680, %v4748
      %v4781 = vadd.f32 %v4681, %v4749
      %v4782 = vadd.f32 %v4682, %v4750
      %v4783 = vadd.f32 %v4683, %v4751
      %v4784 = vadd.f32 %v4684, %v4752
      %v4785 = vadd.f32 %v4685, %v4753
      %v4786 = vadd.f32 %v4686, %v4754
      %v4787 = vadd.f32 %v4687, %v4755
      %v4788 = vadd.f32 %v4688, %v4756
      %v4789 = vld [vmem:[%s4488 + $0x3] sm:$0xff]
      %v4790 = vld [vmem:[%s4488 + $0xb] sm:$0xff]
      %v4791 = vld [vmem:[%s4488 + $0x1b] sm:$0xff]
      %v4792 = vld [vmem:[%s4488 + $0x23] sm:$0xff]
      %v4793 = vld [vmem:[%s4488 + $0x33] sm:$0xff]
      %v4794 = vld [vmem:[%s4488 + $0x3b] sm:$0xff]
      %v4795 = vld [vmem:[%s4488 + $0x4b] sm:$0xff]
      %v4796 = vld [vmem:[%s4488 + $0x53] sm:$0xff]
      %v4797 = vld [vmem:[%s4488 + $0x63] sm:$0xff]
      %v4798 = vld [vmem:[%s4488 + $0x6b] sm:$0xff]
      %v4799 = vld [vmem:[%s4488 + $0x7b] sm:$0xff]
      %v4800 = vld [vmem:[%s4488 + $0x83] sm:$0xff]
      %v4801 = vld [vmem:[%s4488 + $0x93] sm:$0xff]
      %v4802 = vld [vmem:[%s4488 + $0x9b] sm:$0xff]
      %v4803 = vld [vmem:[%s4488 + $0xab] sm:$0xff]
      %v4804 = vld [vmem:[%s4488 + $0xb3] sm:$0xff]
      %v4805 = vld [vmem:[%s4488 + $0xc3] sm:$0xff]
      %v4806 = vld [vmem:[%s4488 + $0xcb] sm:$0xff]
      %v4807 = vld [vmem:[%s4488 + $0xdb] sm:$0xff]
      %v4808 = vld [vmem:[%s4488 + $0xe3] sm:$0xff]
      %v4809 = vld [vmem:[%s4488 + $0xf3] sm:$0xff]
      %v4810 = vld [vmem:[%s4488 + $0xfb] sm:$0xff]
      %v4811 = vld [vmem:[%s4488 + $0x10b] sm:$0xff]
      %v4812 = vld [vmem:[%s4488 + $0x113] sm:$0xff]
      %v4813 = vld [vmem:[%s4488 + $0x123] sm:$0xff]
      %v4814 = vld [vmem:[%s4488 + $0x12b] sm:$0xff]
      %v4815 = vld [vmem:[%s4488 + $0x13b] sm:$0xff]
      %v4816 = vld [vmem:[%s4488 + $0x143] sm:$0xff]
      %v4817 = vld [vmem:[%s4488 + $0x153] sm:$0xff]
      %v4818 = vld [vmem:[%s4488 + $0x15b] sm:$0xff]
      %v4819 = vld [vmem:[%s4488 + $0x16b] sm:$0xff]
      %v4820 = vld [vmem:[%s4488 + $0x173] sm:$0xff]
      %v4821 = vlaneseq
      %v4822 = vshrl.u32 %v4821, 7
      %v4823 = vsub.s32 3, %v4822
      %v4824 = vrot.slane %v217, %v4823
      %v4825 = vmul.f32 %v4789, %v4824
      %v4826 = vmul.f32 %v4790, %v4824
      %v4827 = vmul.f32 %v4791, %v4824
      %v4828 = vmul.f32 %v4792, %v4824
      %v4829 = vmul.f32 %v4793, %v4824
      %v4830 = vmul.f32 %v4794, %v4824
      %v4831 = vmul.f32 %v4795, %v4824
      %v4832 = vmul.f32 %v4796, %v4824
      %v4833 = vmul.f32 %v4797, %v4824
      %v4834 = vmul.f32 %v4798, %v4824
      %v4835 = vmul.f32 %v4799, %v4824
      %v4836 = vmul.f32 %v4800, %v4824
      %v4837 = vmul.f32 %v4801, %v4824
      %v4838 = vmul.f32 %v4802, %v4824
      %v4839 = vmul.f32 %v4803, %v4824
      %v4840 = vmul.f32 %v4804, %v4824
      %v4841 = vmul.f32 %v4805, %v4824
      %v4842 = vmul.f32 %v4806, %v4824
      %v4843 = vmul.f32 %v4807, %v4824
      %v4844 = vmul.f32 %v4808, %v4824
      %v4845 = vmul.f32 %v4809, %v4824
      %v4846 = vmul.f32 %v4810, %v4824
      %v4847 = vmul.f32 %v4811, %v4824
      %v4848 = vmul.f32 %v4812, %v4824
      %v4849 = vmul.f32 %v4813, %v4824
      %v4850 = vmul.f32 %v4814, %v4824
      %v4851 = vmul.f32 %v4815, %v4824
      %v4852 = vmul.f32 %v4816, %v4824
      %v4853 = vmul.f32 %v4817, %v4824
      %v4854 = vmul.f32 %v4818, %v4824
      %v4855 = vmul.f32 %v4819, %v4824
      %v4856 = vmul.f32 %v4820, %v4824
      %v4857 = vadd.f32 %v4757, %v4825
      %v4858 = vadd.f32 %v4758, %v4826
      %v4859 = vadd.f32 %v4759, %v4827
      %v4860 = vadd.f32 %v4760, %v4828
      %v4861 = vadd.f32 %v4761, %v4829
      %v4862 = vadd.f32 %v4762, %v4830
      %v4863 = vadd.f32 %v4763, %v4831
      %v4864 = vadd.f32 %v4764, %v4832
      %v4865 = vadd.f32 %v4765, %v4833
      %v4866 = vadd.f32 %v4766, %v4834
      %v4867 = vadd.f32 %v4767, %v4835
      %v4868 = vadd.f32 %v4768, %v4836
      %v4869 = vadd.f32 %v4769, %v4837
      %v4870 = vadd.f32 %v4770, %v4838
      %v4871 = vadd.f32 %v4771, %v4839
      %v4872 = vadd.f32 %v4772, %v4840
      %v4873 = vadd.f32 %v4773, %v4841
      %v4874 = vadd.f32 %v4774, %v4842
      %v4875 = vadd.f32 %v4775, %v4843
      %v4876 = vadd.f32 %v4776, %v4844
      %v4877 = vadd.f32 %v4777, %v4845
      %v4878 = vadd.f32 %v4778, %v4846
      %v4879 = vadd.f32 %v4779, %v4847
      %v4880 = vadd.f32 %v4780, %v4848
      %v4881 = vadd.f32 %v4781, %v4849
      %v4882 = vadd.f32 %v4782, %v4850
      %v4883 = vadd.f32 %v4783, %v4851
      %v4884 = vadd.f32 %v4784, %v4852
      %v4885 = vadd.f32 %v4785, %v4853
      %v4886 = vadd.f32 %v4786, %v4854
      %v4887 = vadd.f32 %v4787, %v4855
      %v4888 = vadd.f32 %v4788, %v4856
      %v4889 = vld [vmem:[%s4488 + $0x4] sm:$0xff]
      %v4890 = vld [vmem:[%s4488 + $0xc] sm:$0xff]
      %v4891 = vld [vmem:[%s4488 + $0x1c] sm:$0xff]
      %v4892 = vld [vmem:[%s4488 + $0x24] sm:$0xff]
      %v4893 = vld [vmem:[%s4488 + $0x34] sm:$0xff]
      %v4894 = vld [vmem:[%s4488 + $0x3c] sm:$0xff]
      %v4895 = vld [vmem:[%s4488 + $0x4c] sm:$0xff]
      %v4896 = vld [vmem:[%s4488 + $0x54] sm:$0xff]
      %v4897 = vld [vmem:[%s4488 + $0x64] sm:$0xff]
      %v4898 = vld [vmem:[%s4488 + $0x6c] sm:$0xff]
      %v4899 = vld [vmem:[%s4488 + $0x7c] sm:$0xff]
      %v4900 = vld [vmem:[%s4488 + $0x84] sm:$0xff]
      %v4901 = vld [vmem:[%s4488 + $0x94] sm:$0xff]
      %v4902 = vld [vmem:[%s4488 + $0x9c] sm:$0xff]
      %v4903 = vld [vmem:[%s4488 + $0xac] sm:$0xff]
      %v4904 = vld [vmem:[%s4488 + $0xb4] sm:$0xff]
      %v4905 = vld [vmem:[%s4488 + $0xc4] sm:$0xff]
      %v4906 = vld [vmem:[%s4488 + $0xcc] sm:$0xff]
      %v4907 = vld [vmem:[%s4488 + $0xdc] sm:$0xff]
      %v4908 = vld [vmem:[%s4488 + $0xe4] sm:$0xff]
      %v4909 = vld [vmem:[%s4488 + $0xf4] sm:$0xff]
      %v4910 = vld [vmem:[%s4488 + $0xfc] sm:$0xff]
      %v4911 = vld [vmem:[%s4488 + $0x10c] sm:$0xff]
      %v4912 = vld [vmem:[%s4488 + $0x114] sm:$0xff]
      %v4913 = vld [vmem:[%s4488 + $0x124] sm:$0xff]
      %v4914 = vld [vmem:[%s4488 + $0x12c] sm:$0xff]
      %v4915 = vld [vmem:[%s4488 + $0x13c] sm:$0xff]
      %v4916 = vld [vmem:[%s4488 + $0x144] sm:$0xff]
      %v4917 = vld [vmem:[%s4488 + $0x154] sm:$0xff]
      %v4918 = vld [vmem:[%s4488 + $0x15c] sm:$0xff]
      %v4919 = vld [vmem:[%s4488 + $0x16c] sm:$0xff]
      %v4920 = vld [vmem:[%s4488 + $0x174] sm:$0xff]
      %v4921 = vlaneseq
      %v4922 = vshrl.u32 %v4921, 7
      %v4923 = vsub.s32 4, %v4922
      %v4924 = vrot.slane %v217, %v4923
      %v4925 = vmul.f32 %v4889, %v4924
      %v4926 = vmul.f32 %v4890, %v4924
      %v4927 = vmul.f32 %v4891, %v4924
      %v4928 = vmul.f32 %v4892, %v4924
      %v4929 = vmul.f32 %v4893, %v4924
      %v4930 = vmul.f32 %v4894, %v4924
      %v4931 = vmul.f32 %v4895, %v4924
      %v4932 = vmul.f32 %v4896, %v4924
      %v4933 = vmul.f32 %v4897, %v4924
      %v4934 = vmul.f32 %v4898, %v4924
      %v4935 = vmul.f32 %v4899, %v4924
      %v4936 = vmul.f32 %v4900, %v4924
      %v4937 = vmul.f32 %v4901, %v4924
      %v4938 = vmul.f32 %v4902, %v4924
      %v4939 = vmul.f32 %v4903, %v4924
      %v4940 = vmul.f32 %v4904, %v4924
      %v4941 = vmul.f32 %v4905, %v4924
      %v4942 = vmul.f32 %v4906, %v4924
      %v4943 = vmul.f32 %v4907, %v4924
      %v4944 = vmul.f32 %v4908, %v4924
      %v4945 = vmul.f32 %v4909, %v4924
      %v4946 = vmul.f32 %v4910, %v4924
      %v4947 = vmul.f32 %v4911, %v4924
      %v4948 = vmul.f32 %v4912, %v4924
      %v4949 = vmul.f32 %v4913, %v4924
      %v4950 = vmul.f32 %v4914, %v4924
      %v4951 = vmul.f32 %v4915, %v4924
      %v4952 = vmul.f32 %v4916, %v4924
      %v4953 = vmul.f32 %v4917, %v4924
      %v4954 = vmul.f32 %v4918, %v4924
      %v4955 = vmul.f32 %v4919, %v4924
      %v4956 = vmul.f32 %v4920, %v4924
      %v4957 = vadd.f32 %v4857, %v4925
      %v4958 = vadd.f32 %v4858, %v4926
      %v4959 = vadd.f32 %v4859, %v4927
      %v4960 = vadd.f32 %v4860, %v4928
      %v4961 = vadd.f32 %v4861, %v4929
      %v4962 = vadd.f32 %v4862, %v4930
      %v4963 = vadd.f32 %v4863, %v4931
      %v4964 = vadd.f32 %v4864, %v4932
      %v4965 = vadd.f32 %v4865, %v4933
      %v4966 = vadd.f32 %v4866, %v4934
      %v4967 = vadd.f32 %v4867, %v4935
      %v4968 = vadd.f32 %v4868, %v4936
      %v4969 = vadd.f32 %v4869, %v4937
      %v4970 = vadd.f32 %v4870, %v4938
      %v4971 = vadd.f32 %v4871, %v4939
      %v4972 = vadd.f32 %v4872, %v4940
      %v4973 = vadd.f32 %v4873, %v4941
      %v4974 = vadd.f32 %v4874, %v4942
      %v4975 = vadd.f32 %v4875, %v4943
      %v4976 = vadd.f32 %v4876, %v4944
      %v4977 = vadd.f32 %v4877, %v4945
      %v4978 = vadd.f32 %v4878, %v4946
      %v4979 = vadd.f32 %v4879, %v4947
      %v4980 = vadd.f32 %v4880, %v4948
      %v4981 = vadd.f32 %v4881, %v4949
      %v4982 = vadd.f32 %v4882, %v4950
      %v4983 = vadd.f32 %v4883, %v4951
      %v4984 = vadd.f32 %v4884, %v4952
      %v4985 = vadd.f32 %v4885, %v4953
      %v4986 = vadd.f32 %v4886, %v4954
      %v4987 = vadd.f32 %v4887, %v4955
      %v4988 = vadd.f32 %v4888, %v4956
      %v4989 = vld [vmem:[%s4488 + $0x5] sm:$0xff]
      %v4990 = vld [vmem:[%s4488 + $0xd] sm:$0xff]
      %v4991 = vld [vmem:[%s4488 + $0x1d] sm:$0xff]
      %v4992 = vld [vmem:[%s4488 + $0x25] sm:$0xff]
      %v4993 = vld [vmem:[%s4488 + $0x35] sm:$0xff]
      %v4994 = vld [vmem:[%s4488 + $0x3d] sm:$0xff]
      %v4995 = vld [vmem:[%s4488 + $0x4d] sm:$0xff]
      %v4996 = vld [vmem:[%s4488 + $0x55] sm:$0xff]
      %v4997 = vld [vmem:[%s4488 + $0x65] sm:$0xff]
      %v4998 = vld [vmem:[%s4488 + $0x6d] sm:$0xff]
      %v4999 = vld [vmem:[%s4488 + $0x7d] sm:$0xff]
      %v5000 = vld [vmem:[%s4488 + $0x85] sm:$0xff]
      %v5001 = vld [vmem:[%s4488 + $0x95] sm:$0xff]
      %v5002 = vld [vmem:[%s4488 + $0x9d] sm:$0xff]
      %v5003 = vld [vmem:[%s4488 + $0xad] sm:$0xff]
      %v5004 = vld [vmem:[%s4488 + $0xb5] sm:$0xff]
      %v5005 = vld [vmem:[%s4488 + $0xc5] sm:$0xff]
      %v5006 = vld [vmem:[%s4488 + $0xcd] sm:$0xff]
      %v5007 = vld [vmem:[%s4488 + $0xdd] sm:$0xff]
      %v5008 = vld [vmem:[%s4488 + $0xe5] sm:$0xff]
      %v5009 = vld [vmem:[%s4488 + $0xf5] sm:$0xff]
      %v5010 = vld [vmem:[%s4488 + $0xfd] sm:$0xff]
      %v5011 = vld [vmem:[%s4488 + $0x10d] sm:$0xff]
      %v5012 = vld [vmem:[%s4488 + $0x115] sm:$0xff]
      %v5013 = vld [vmem:[%s4488 + $0x125] sm:$0xff]
      %v5014 = vld [vmem:[%s4488 + $0x12d] sm:$0xff]
      %v5015 = vld [vmem:[%s4488 + $0x13d] sm:$0xff]
      %v5016 = vld [vmem:[%s4488 + $0x145] sm:$0xff]
      %v5017 = vld [vmem:[%s4488 + $0x155] sm:$0xff]
      %v5018 = vld [vmem:[%s4488 + $0x15d] sm:$0xff]
      %v5019 = vld [vmem:[%s4488 + $0x16d] sm:$0xff]
      %v5020 = vld [vmem:[%s4488 + $0x175] sm:$0xff]
      %v5021 = vlaneseq
      %v5022 = vshrl.u32 %v5021, 7
      %v5023 = vsub.s32 5, %v5022
      %v5024 = vrot.slane %v217, %v5023
      %v5025 = vmul.f32 %v4989, %v5024
      %v5026 = vmul.f32 %v4990, %v5024
      %v5027 = vmul.f32 %v4991, %v5024
      %v5028 = vmul.f32 %v4992, %v5024
      %v5029 = vmul.f32 %v4993, %v5024
      %v5030 = vmul.f32 %v4994, %v5024
      %v5031 = vmul.f32 %v4995, %v5024
      %v5032 = vmul.f32 %v4996, %v5024
      %v5033 = vmul.f32 %v4997, %v5024
      %v5034 = vmul.f32 %v4998, %v5024
      %v5035 = vmul.f32 %v4999, %v5024
      %v5036 = vmul.f32 %v5000, %v5024
      %v5037 = vmul.f32 %v5001, %v5024
      %v5038 = vmul.f32 %v5002, %v5024
      %v5039 = vmul.f32 %v5003, %v5024
      %v5040 = vmul.f32 %v5004, %v5024
      %v5041 = vmul.f32 %v5005, %v5024
      %v5042 = vmul.f32 %v5006, %v5024
      %v5043 = vmul.f32 %v5007, %v5024
      %v5044 = vmul.f32 %v5008, %v5024
      %v5045 = vmul.f32 %v5009, %v5024
      %v5046 = vmul.f32 %v5010, %v5024
      %v5047 = vmul.f32 %v5011, %v5024
      %v5048 = vmul.f32 %v5012, %v5024
      %v5049 = vmul.f32 %v5013, %v5024
      %v5050 = vmul.f32 %v5014, %v5024
      %v5051 = vmul.f32 %v5015, %v5024
      %v5052 = vmul.f32 %v5016, %v5024
      %v5053 = vmul.f32 %v5017, %v5024
      %v5054 = vmul.f32 %v5018, %v5024
      %v5055 = vmul.f32 %v5019, %v5024
      %v5056 = vmul.f32 %v5020, %v5024
      %v5057 = vadd.f32 %v4957, %v5025
      %v5058 = vadd.f32 %v4958, %v5026
      %v5059 = vadd.f32 %v4959, %v5027
      %v5060 = vadd.f32 %v4960, %v5028
      %v5061 = vadd.f32 %v4961, %v5029
      %v5062 = vadd.f32 %v4962, %v5030
      %v5063 = vadd.f32 %v4963, %v5031
      %v5064 = vadd.f32 %v4964, %v5032
      %v5065 = vadd.f32 %v4965, %v5033
      %v5066 = vadd.f32 %v4966, %v5034
      %v5067 = vadd.f32 %v4967, %v5035
      %v5068 = vadd.f32 %v4968, %v5036
      %v5069 = vadd.f32 %v4969, %v5037
      %v5070 = vadd.f32 %v4970, %v5038
      %v5071 = vadd.f32 %v4971, %v5039
      %v5072 = vadd.f32 %v4972, %v5040
      %v5073 = vadd.f32 %v4973, %v5041
      %v5074 = vadd.f32 %v4974, %v5042
      %v5075 = vadd.f32 %v4975, %v5043
      %v5076 = vadd.f32 %v4976, %v5044
      %v5077 = vadd.f32 %v4977, %v5045
      %v5078 = vadd.f32 %v4978, %v5046
      %v5079 = vadd.f32 %v4979, %v5047
      %v5080 = vadd.f32 %v4980, %v5048
      %v5081 = vadd.f32 %v4981, %v5049
      %v5082 = vadd.f32 %v4982, %v5050
      %v5083 = vadd.f32 %v4983, %v5051
      %v5084 = vadd.f32 %v4984, %v5052
      %v5085 = vadd.f32 %v4985, %v5053
      %v5086 = vadd.f32 %v4986, %v5054
      %v5087 = vadd.f32 %v4987, %v5055
      %v5088 = vadd.f32 %v4988, %v5056
      %v5089 = vld [vmem:[%s4488 + $0x6] sm:$0xff]
      %v5090 = vld [vmem:[%s4488 + $0xe] sm:$0xff]
      %v5091 = vld [vmem:[%s4488 + $0x1e] sm:$0xff]
      %v5092 = vld [vmem:[%s4488 + $0x26] sm:$0xff]
      %v5093 = vld [vmem:[%s4488 + $0x36] sm:$0xff]
      %v5094 = vld [vmem:[%s4488 + $0x3e] sm:$0xff]
      %v5095 = vld [vmem:[%s4488 + $0x4e] sm:$0xff]
      %v5096 = vld [vmem:[%s4488 + $0x56] sm:$0xff]
      %v5097 = vld [vmem:[%s4488 + $0x66] sm:$0xff]
      %v5098 = vld [vmem:[%s4488 + $0x6e] sm:$0xff]
      %v5099 = vld [vmem:[%s4488 + $0x7e] sm:$0xff]
      %v5100 = vld [vmem:[%s4488 + $0x86] sm:$0xff]
      %v5101 = vld [vmem:[%s4488 + $0x96] sm:$0xff]
      %v5102 = vld [vmem:[%s4488 + $0x9e] sm:$0xff]
      %v5103 = vld [vmem:[%s4488 + $0xae] sm:$0xff]
      %v5104 = vld [vmem:[%s4488 + $0xb6] sm:$0xff]
      %v5105 = vld [vmem:[%s4488 + $0xc6] sm:$0xff]
      %v5106 = vld [vmem:[%s4488 + $0xce] sm:$0xff]
      %v5107 = vld [vmem:[%s4488 + $0xde] sm:$0xff]
      %v5108 = vld [vmem:[%s4488 + $0xe6] sm:$0xff]
      %v5109 = vld [vmem:[%s4488 + $0xf6] sm:$0xff]
      %v5110 = vld [vmem:[%s4488 + $0xfe] sm:$0xff]
      %v5111 = vld [vmem:[%s4488 + $0x10e] sm:$0xff]
      %v5112 = vld [vmem:[%s4488 + $0x116] sm:$0xff]
      %v5113 = vld [vmem:[%s4488 + $0x126] sm:$0xff]
      %v5114 = vld [vmem:[%s4488 + $0x12e] sm:$0xff]
      %v5115 = vld [vmem:[%s4488 + $0x13e] sm:$0xff]
      %v5116 = vld [vmem:[%s4488 + $0x146] sm:$0xff]
      %v5117 = vld [vmem:[%s4488 + $0x156] sm:$0xff]
      %v5118 = vld [vmem:[%s4488 + $0x15e] sm:$0xff]
      %v5119 = vld [vmem:[%s4488 + $0x16e] sm:$0xff]
      %v5120 = vld [vmem:[%s4488 + $0x176] sm:$0xff]
      %v5121 = vlaneseq
      %v5122 = vshrl.u32 %v5121, 7
      %v5123 = vsub.s32 6, %v5122
      %v5124 = vrot.slane %v217, %v5123
      %v5125 = vmul.f32 %v5089, %v5124
      %v5126 = vmul.f32 %v5090, %v5124
      %v5127 = vmul.f32 %v5091, %v5124
      %v5128 = vmul.f32 %v5092, %v5124
      %v5129 = vmul.f32 %v5093, %v5124
      %v5130 = vmul.f32 %v5094, %v5124
      %v5131 = vmul.f32 %v5095, %v5124
      %v5132 = vmul.f32 %v5096, %v5124
      %v5133 = vmul.f32 %v5097, %v5124
      %v5134 = vmul.f32 %v5098, %v5124
      %v5135 = vmul.f32 %v5099, %v5124
      %v5136 = vmul.f32 %v5100, %v5124
      %v5137 = vmul.f32 %v5101, %v5124
      %v5138 = vmul.f32 %v5102, %v5124
      %v5139 = vmul.f32 %v5103, %v5124
      %v5140 = vmul.f32 %v5104, %v5124
      %v5141 = vmul.f32 %v5105, %v5124
      %v5142 = vmul.f32 %v5106, %v5124
      %v5143 = vmul.f32 %v5107, %v5124
      %v5144 = vmul.f32 %v5108, %v5124
      %v5145 = vmul.f32 %v5109, %v5124
      %v5146 = vmul.f32 %v5110, %v5124
      %v5147 = vmul.f32 %v5111, %v5124
      %v5148 = vmul.f32 %v5112, %v5124
      %v5149 = vmul.f32 %v5113, %v5124
      %v5150 = vmul.f32 %v5114, %v5124
      %v5151 = vmul.f32 %v5115, %v5124
      %v5152 = vmul.f32 %v5116, %v5124
      %v5153 = vmul.f32 %v5117, %v5124
      %v5154 = vmul.f32 %v5118, %v5124
      %v5155 = vmul.f32 %v5119, %v5124
      %v5156 = vmul.f32 %v5120, %v5124
      %v5157 = vadd.f32 %v5057, %v5125
      %v5158 = vadd.f32 %v5058, %v5126
      %v5159 = vadd.f32 %v5059, %v5127
      %v5160 = vadd.f32 %v5060, %v5128
      %v5161 = vadd.f32 %v5061, %v5129
      %v5162 = vadd.f32 %v5062, %v5130
      %v5163 = vadd.f32 %v5063, %v5131
      %v5164 = vadd.f32 %v5064, %v5132
      %v5165 = vadd.f32 %v5065, %v5133
      %v5166 = vadd.f32 %v5066, %v5134
      %v5167 = vadd.f32 %v5067, %v5135
      %v5168 = vadd.f32 %v5068, %v5136
      %v5169 = vadd.f32 %v5069, %v5137
      %v5170 = vadd.f32 %v5070, %v5138
      %v5171 = vadd.f32 %v5071, %v5139
      %v5172 = vadd.f32 %v5072, %v5140
      %v5173 = vadd.f32 %v5073, %v5141
      %v5174 = vadd.f32 %v5074, %v5142
      %v5175 = vadd.f32 %v5075, %v5143
      %v5176 = vadd.f32 %v5076, %v5144
      %v5177 = vadd.f32 %v5077, %v5145
      %v5178 = vadd.f32 %v5078, %v5146
      %v5179 = vadd.f32 %v5079, %v5147
      %v5180 = vadd.f32 %v5080, %v5148
      %v5181 = vadd.f32 %v5081, %v5149
      %v5182 = vadd.f32 %v5082, %v5150
      %v5183 = vadd.f32 %v5083, %v5151
      %v5184 = vadd.f32 %v5084, %v5152
      %v5185 = vadd.f32 %v5085, %v5153
      %v5186 = vadd.f32 %v5086, %v5154
      %v5187 = vadd.f32 %v5087, %v5155
      %v5188 = vadd.f32 %v5088, %v5156
      %v5189 = vld [vmem:[%s2] sm:$0x1]
      %v5191 = vlaneseq
      %v5192 = vshrl.u32 %v5191, 7
      %v5193 = vsub.s32 0, %v5192
      %v5194 = vrot.slane %v5189, %v5193
      %v5196 = vadd.f32 %v5157, %v5194
      %v5197 = vadd.f32 %v5158, %v5194
      %v5198 = vadd.f32 %v5159, %v5194
      %v5199 = vadd.f32 %v5160, %v5194
      %v5200 = vadd.f32 %v5161, %v5194
      %v5201 = vadd.f32 %v5162, %v5194
      %v5202 = vadd.f32 %v5163, %v5194
      %v5203 = vadd.f32 %v5164, %v5194
      %v5204 = vadd.f32 %v5165, %v5194
      %v5205 = vadd.f32 %v5166, %v5194
      %v5206 = vadd.f32 %v5167, %v5194
      %v5207 = vadd.f32 %v5168, %v5194
      %v5208 = vadd.f32 %v5169, %v5194
      %v5209 = vadd.f32 %v5170, %v5194
      %v5210 = vadd.f32 %v5171, %v5194
      %v5211 = vadd.f32 %v5172, %v5194
      %v5212 = vadd.f32 %v5173, %v5194
      %v5213 = vadd.f32 %v5174, %v5194
      %v5214 = vadd.f32 %v5175, %v5194
      %v5215 = vadd.f32 %v5176, %v5194
      %v5216 = vadd.f32 %v5177, %v5194
      %v5217 = vadd.f32 %v5178, %v5194
      %v5218 = vadd.f32 %v5179, %v5194
      %v5219 = vadd.f32 %v5180, %v5194
      %v5220 = vadd.f32 %v5181, %v5194
      %v5221 = vadd.f32 %v5182, %v5194
      %v5222 = vadd.f32 %v5183, %v5194
      %v5223 = vadd.f32 %v5184, %v5194
      %v5224 = vadd.f32 %v5185, %v5194
      %v5225 = vadd.f32 %v5186, %v5194
      %v5226 = vadd.f32 %v5187, %v5194
      %v5227 = vadd.f32 %v5188, %v5194
      %v5228 = vsel %vm251, %v5196, 0.0
      %v5229 = vsel %vm251, %v5197, 0.0
      %v5230 = vadd.f32 %v5228, %v5229
      %v5231 = vsel %vm251, %v5198, 0.0
      %v5232 = vadd.f32 %v5230, %v5231
      %v5233 = vsel %vm251, %v5199, 0.0
      %v5234 = vadd.f32 %v5232, %v5233
      %v5235 = vsel %vm251, %v5200, 0.0
      %v5236 = vadd.f32 %v5234, %v5235
      %v5237 = vsel %vm251, %v5201, 0.0
      %v5238 = vadd.f32 %v5236, %v5237
      %v5239 = vsel %vm251, %v5202, 0.0
      %v5240 = vadd.f32 %v5238, %v5239
      %v5241 = vsel %vm251, %v5203, 0.0
      %v5242 = vadd.f32 %v5240, %v5241
      %v5243 = vsel %vm251, %v5204, 0.0
      %v5244 = vadd.f32 %v5242, %v5243
      %v5245 = vsel %vm251, %v5205, 0.0
      %v5246 = vadd.f32 %v5244, %v5245
      %v5247 = vsel %vm251, %v5206, 0.0
      %v5248 = vadd.f32 %v5246, %v5247
      %v5249 = vsel %vm251, %v5207, 0.0
      %v5250 = vadd.f32 %v5248, %v5249
      %v5251 = vsel %vm251, %v5208, 0.0
      %v5252 = vadd.f32 %v5250, %v5251
      %v5253 = vsel %vm251, %v5209, 0.0
      %v5254 = vadd.f32 %v5252, %v5253
      %v5255 = vsel %vm251, %v5210, 0.0
      %v5256 = vadd.f32 %v5254, %v5255
      %v5257 = vsel %vm251, %v5211, 0.0
      %v5258 = vadd.f32 %v5256, %v5257
      %v5259 = vsel %vm251, %v5212, 0.0
      %v5260 = vadd.f32 %v5258, %v5259
      %v5261 = vsel %vm251, %v5213, 0.0
      %v5262 = vadd.f32 %v5260, %v5261
      %v5263 = vsel %vm251, %v5214, 0.0
      %v5264 = vadd.f32 %v5262, %v5263
      %v5265 = vsel %vm251, %v5215, 0.0
      %v5266 = vadd.f32 %v5264, %v5265
      %v5267 = vsel %vm251, %v5216, 0.0
      %v5268 = vadd.f32 %v5266, %v5267
      %v5269 = vsel %vm251, %v5217, 0.0
      %v5270 = vadd.f32 %v5268, %v5269
      %v5271 = vsel %vm251, %v5218, 0.0
      %v5272 = vadd.f32 %v5270, %v5271
      %v5273 = vsel %vm251, %v5219, 0.0
      %v5274 = vadd.f32 %v5272, %v5273
      %v5275 = vsel %vm251, %v5220, 0.0
      %v5276 = vadd.f32 %v5274, %v5275
      %v5277 = vsel %vm251, %v5221, 0.0
      %v5278 = vadd.f32 %v5276, %v5277
      %v5279 = vsel %vm251, %v5222, 0.0
      %v5280 = vadd.f32 %v5278, %v5279
      %v5281 = vsel %vm251, %v5223, 0.0
      %v5282 = vadd.f32 %v5280, %v5281
      %v5283 = vsel %vm251, %v5224, 0.0
      %v5284 = vadd.f32 %v5282, %v5283
      %v5285 = vsel %vm251, %v5225, 0.0
      %v5286 = vadd.f32 %v5284, %v5285
      %v5287 = vsel %vm251, %v5226, 0.0
      %v5288 = vadd.f32 %v5286, %v5287
      %v5289 = vsel %vm251, %v5227, 0.0
      %v5290 = vadd.f32 %v5288, %v5289
      %5291 = vadd.xlane.f32.xlu0 %v5290
      %v5292 = vpop.xlane.xlu0 %5291
      %v5293 = vrot.slane %v5292, 4
      %v5294 = vadd.f32 %v5292, %v5293
      %v5295 = vrot.slane %v5294, 2
      %v5296 = vadd.f32 %v5294, %v5295
      %v5297 = vrot.slane %v5296, 1
      %v5298 = vadd.f32 %v5296, %v5297
      %s5299 = vtos %v5298
      %s5300 = smul.f32 %s5299, 0.0009765625
      %v5301 = vstv %s5300
      %v5302 = vsub.f32 %v5196, %v5301
      %v5303 = vsub.f32 %v5197, %v5301
      %v5304 = vsub.f32 %v5198, %v5301
      %v5305 = vsub.f32 %v5199, %v5301
      %v5306 = vsub.f32 %v5200, %v5301
      %v5307 = vsub.f32 %v5201, %v5301
      %v5308 = vsub.f32 %v5202, %v5301
      %v5309 = vsub.f32 %v5203, %v5301
      %v5310 = vsub.f32 %v5204, %v5301
      %v5311 = vsub.f32 %v5205, %v5301
      %v5312 = vsub.f32 %v5206, %v5301
      %v5313 = vsub.f32 %v5207, %v5301
      %v5314 = vsub.f32 %v5208, %v5301
      %v5315 = vsub.f32 %v5209, %v5301
      %v5316 = vsub.f32 %v5210, %v5301
      %v5317 = vsub.f32 %v5211, %v5301
      %v5318 = vsub.f32 %v5212, %v5301
      %v5319 = vsub.f32 %v5213, %v5301
      %v5320 = vsub.f32 %v5214, %v5301
      %v5321 = vsub.f32 %v5215, %v5301
      %v5322 = vsub.f32 %v5216, %v5301
      %v5323 = vsub.f32 %v5217, %v5301
      %v5324 = vsub.f32 %v5218, %v5301
      %v5325 = vsub.f32 %v5219, %v5301
      %v5326 = vsub.f32 %v5220, %v5301
      %v5327 = vsub.f32 %v5221, %v5301
      %v5328 = vsub.f32 %v5222, %v5301
      %v5329 = vsub.f32 %v5223, %v5301
      %v5330 = vsub.f32 %v5224, %v5301
      %v5331 = vsub.f32 %v5225, %v5301
      %v5332 = vsub.f32 %v5226, %v5301
      %v5333 = vsub.f32 %v5227, %v5301
      %v5334 = vmul.f32 %v5302, %v5302
      %v5335 = vmul.f32 %v5303, %v5303
      %v5336 = vmul.f32 %v5304, %v5304
      %v5337 = vmul.f32 %v5305, %v5305
      %v5338 = vmul.f32 %v5306, %v5306
      %v5339 = vmul.f32 %v5307, %v5307
      %v5340 = vmul.f32 %v5308, %v5308
      %v5341 = vmul.f32 %v5309, %v5309
      %v5342 = vmul.f32 %v5310, %v5310
      %v5343 = vmul.f32 %v5311, %v5311
      %v5344 = vmul.f32 %v5312, %v5312
      %v5345 = vmul.f32 %v5313, %v5313
      %v5346 = vmul.f32 %v5314, %v5314
      %v5347 = vmul.f32 %v5315, %v5315
      %v5348 = vmul.f32 %v5316, %v5316
      %v5349 = vmul.f32 %v5317, %v5317
      %v5350 = vmul.f32 %v5318, %v5318
      %v5351 = vmul.f32 %v5319, %v5319
      %v5352 = vmul.f32 %v5320, %v5320
      %v5353 = vmul.f32 %v5321, %v5321
      %v5354 = vmul.f32 %v5322, %v5322
      %v5355 = vmul.f32 %v5323, %v5323
      %v5356 = vmul.f32 %v5324, %v5324
      %v5357 = vmul.f32 %v5325, %v5325
      %v5358 = vmul.f32 %v5326, %v5326
      %v5359 = vmul.f32 %v5327, %v5327
      %v5360 = vmul.f32 %v5328, %v5328
      %v5361 = vmul.f32 %v5329, %v5329
      %v5362 = vmul.f32 %v5330, %v5330
      %v5363 = vmul.f32 %v5331, %v5331
      %v5364 = vmul.f32 %v5332, %v5332
      %v5365 = vmul.f32 %v5333, %v5333
      %v5366 = vsel %vm251, %v5334, 0.0
      %v5367 = vsel %vm251, %v5335, 0.0
      %v5368 = vadd.f32 %v5366, %v5367
      %v5369 = vsel %vm251, %v5336, 0.0
      %v5370 = vadd.f32 %v5368, %v5369
      %v5371 = vsel %vm251, %v5337, 0.0
      %v5372 = vadd.f32 %v5370, %v5371
      %v5373 = vsel %vm251, %v5338, 0.0
      %v5374 = vadd.f32 %v5372, %v5373
      %v5375 = vsel %vm251, %v5339, 0.0
      %v5376 = vadd.f32 %v5374, %v5375
      %v5377 = vsel %vm251, %v5340, 0.0
      %v5378 = vadd.f32 %v5376, %v5377
      %v5379 = vsel %vm251, %v5341, 0.0
      %v5380 = vadd.f32 %v5378, %v5379
      %v5381 = vsel %vm251, %v5342, 0.0
      %v5382 = vadd.f32 %v5380, %v5381
      %v5383 = vsel %vm251, %v5343, 0.0
      %v5384 = vadd.f32 %v5382, %v5383
      %v5385 = vsel %vm251, %v5344, 0.0
      %v5386 = vadd.f32 %v5384, %v5385
      %v5387 = vsel %vm251, %v5345, 0.0
      %v5388 = vadd.f32 %v5386, %v5387
      %v5389 = vsel %vm251, %v5346, 0.0
      %v5390 = vadd.f32 %v5388, %v5389
      %v5391 = vsel %vm251, %v5347, 0.0
      %v5392 = vadd.f32 %v5390, %v5391
      %v5393 = vsel %vm251, %v5348, 0.0
      %v5394 = vadd.f32 %v5392, %v5393
      %v5395 = vsel %vm251, %v5349, 0.0
      %v5396 = vadd.f32 %v5394, %v5395
      %v5397 = vsel %vm251, %v5350, 0.0
      %v5398 = vadd.f32 %v5396, %v5397
      %v5399 = vsel %vm251, %v5351, 0.0
      %v5400 = vadd.f32 %v5398, %v5399
      %v5401 = vsel %vm251, %v5352, 0.0
      %v5402 = vadd.f32 %v5400, %v5401
      %v5403 = vsel %vm251, %v5353, 0.0
      %v5404 = vadd.f32 %v5402, %v5403
      %v5405 = vsel %vm251, %v5354, 0.0
      %v5406 = vadd.f32 %v5404, %v5405
      %v5407 = vsel %vm251, %v5355, 0.0
      %v5408 = vadd.f32 %v5406, %v5407
      %v5409 = vsel %vm251, %v5356, 0.0
      %v5410 = vadd.f32 %v5408, %v5409
      %v5411 = vsel %vm251, %v5357, 0.0
      %v5412 = vadd.f32 %v5410, %v5411
      %v5413 = vsel %vm251, %v5358, 0.0
      %v5414 = vadd.f32 %v5412, %v5413
      %v5415 = vsel %vm251, %v5359, 0.0
      %v5416 = vadd.f32 %v5414, %v5415
      %v5417 = vsel %vm251, %v5360, 0.0
      %v5418 = vadd.f32 %v5416, %v5417
      %v5419 = vsel %vm251, %v5361, 0.0
      %v5420 = vadd.f32 %v5418, %v5419
      %v5421 = vsel %vm251, %v5362, 0.0
      %v5422 = vadd.f32 %v5420, %v5421
      %v5423 = vsel %vm251, %v5363, 0.0
      %v5424 = vadd.f32 %v5422, %v5423
      %v5425 = vsel %vm251, %v5364, 0.0
      %v5426 = vadd.f32 %v5424, %v5425
      %v5427 = vsel %vm251, %v5365, 0.0
      %v5428 = vadd.f32 %v5426, %v5427
      %5429 = vadd.xlane.f32.xlu0 %v5428
      %v5430 = vpop.xlane.xlu0 %5429
      %v5431 = vrot.slane %v5430, 4
      %v5432 = vadd.f32 %v5430, %v5431
      %v5433 = vrot.slane %v5432, 2
      %v5434 = vadd.f32 %v5432, %v5433
      %v5435 = vrot.slane %v5434, 1
      %v5436 = vadd.f32 %v5434, %v5435
      %s5437 = vtos %v5436
      %s5438 = smul.f32 %s5437, 0.0009765625
      %s5439 = sadd.f32 %s5438, 1e-05
      %v5440 = vstv %s5439
      %v5441 = vrsqrt.pop %v5440
      %s5442 = vtos %v5441
      %v5443 = vstv %s5442
      %v5444 = vmul.f32 %v5302, %v5443
      %v5445 = vmul.f32 %v5303, %v5443
      %v5446 = vmul.f32 %v5304, %v5443
      %v5447 = vmul.f32 %v5305, %v5443
      %v5448 = vmul.f32 %v5306, %v5443
      %v5449 = vmul.f32 %v5307, %v5443
      %v5450 = vmul.f32 %v5308, %v5443
      %v5451 = vmul.f32 %v5309, %v5443
      %v5452 = vmul.f32 %v5310, %v5443
      %v5453 = vmul.f32 %v5311, %v5443
      %v5454 = vmul.f32 %v5312, %v5443
      %v5455 = vmul.f32 %v5313, %v5443
      %v5456 = vmul.f32 %v5314, %v5443
      %v5457 = vmul.f32 %v5315, %v5443
      %v5458 = vmul.f32 %v5316, %v5443
      %v5459 = vmul.f32 %v5317, %v5443
      %v5460 = vmul.f32 %v5318, %v5443
      %v5461 = vmul.f32 %v5319, %v5443
      %v5462 = vmul.f32 %v5320, %v5443
      %v5463 = vmul.f32 %v5321, %v5443
      %v5464 = vmul.f32 %v5322, %v5443
      %v5465 = vmul.f32 %v5323, %v5443
      %v5466 = vmul.f32 %v5324, %v5443
      %v5467 = vmul.f32 %v5325, %v5443
      %v5468 = vmul.f32 %v5326, %v5443
      %v5469 = vmul.f32 %v5327, %v5443
      %v5470 = vmul.f32 %v5328, %v5443
      %v5471 = vmul.f32 %v5329, %v5443
      %v5472 = vmul.f32 %v5330, %v5443
      %v5473 = vmul.f32 %v5331, %v5443
      %v5474 = vmul.f32 %v5332, %v5443
      %v5475 = vmul.f32 %v5333, %v5443
      %5476 = vst.msk [vmem:[%s205] sm:$0xff] %vm251, %v5444
      %5477 = vst.msk [vmem:[%s205 + $0x8] sm:$0xff] %vm251, %v5445
      %5478 = vst.msk [vmem:[%s205 + $0x10] sm:$0xff] %vm251, %v5446
      %5479 = vst.msk [vmem:[%s205 + $0x18] sm:$0xff] %vm251, %v5447
      %5480 = vst.msk [vmem:[%s205 + $0x20] sm:$0xff] %vm251, %v5448
      %5481 = vst.msk [vmem:[%s205 + $0x28] sm:$0xff] %vm251, %v5449
      %5482 = vst.msk [vmem:[%s205 + $0x30] sm:$0xff] %vm251, %v5450
      %5483 = vst.msk [vmem:[%s205 + $0x38] sm:$0xff] %vm251, %v5451
      %5484 = vst.msk [vmem:[%s205 + $0x40] sm:$0xff] %vm251, %v5452
      %5485 = vst.msk [vmem:[%s205 + $0x48] sm:$0xff] %vm251, %v5453
      %5486 = vst.msk [vmem:[%s205 + $0x50] sm:$0xff] %vm251, %v5454
      %5487 = vst.msk [vmem:[%s205 + $0x58] sm:$0xff] %vm251, %v5455
      %5488 = vst.msk [vmem:[%s205 + $0x60] sm:$0xff] %vm251, %v5456
      %5489 = vst.msk [vmem:[%s205 + $0x68] sm:$0xff] %vm251, %v5457
      %5490 = vst.msk [vmem:[%s205 + $0x70] sm:$0xff] %vm251, %v5458
      %5491 = vst.msk [vmem:[%s205 + $0x78] sm:$0xff] %vm251, %v5459
      %5492 = vst.msk [vmem:[%s205 + $0x80] sm:$0xff] %vm251, %v5460
      %5493 = vst.msk [vmem:[%s205 + $0x88] sm:$0xff] %vm251, %v5461
      %5494 = vst.msk [vmem:[%s205 + $0x90] sm:$0xff] %vm251, %v5462
      %5495 = vst.msk [vmem:[%s205 + $0x98] sm:$0xff] %vm251, %v5463
      %5496 = vst.msk [vmem:[%s205 + $0xa0] sm:$0xff] %vm251, %v5464
      %5497 = vst.msk [vmem:[%s205 + $0xa8] sm:$0xff] %vm251, %v5465
      %5498 = vst.msk [vmem:[%s205 + $0xb0] sm:$0xff] %vm251, %v5466
      %5499 = vst.msk [vmem:[%s205 + $0xb8] sm:$0xff] %vm251, %v5467
      %5500 = vst.msk [vmem:[%s205 + $0xc0] sm:$0xff] %vm251, %v5468
      %5501 = vst.msk [vmem:[%s205 + $0xc8] sm:$0xff] %vm251, %v5469
      %5502 = vst.msk [vmem:[%s205 + $0xd0] sm:$0xff] %vm251, %v5470
      %5503 = vst.msk [vmem:[%s205 + $0xd8] sm:$0xff] %vm251, %v5471
      %5504 = vst.msk [vmem:[%s205 + $0xe0] sm:$0xff] %vm251, %v5472
      %5505 = vst.msk [vmem:[%s205 + $0xe8] sm:$0xff] %vm251, %v5473
      %5506 = vst.msk [vmem:[%s205 + $0xf0] sm:$0xff] %vm251, %v5474
      %5507 = vst.msk [vmem:[%s205 + $0xf8] sm:$0xff] %vm251, %v5475
      %p5508 = scmp.lt.s32.totalorder %s16, 1
      %s5509 = scalar_select %p5508, %s16, 1
      %s5510 = smul.addr %s5509, 32
      %s5511 = smul.addr %s5510, 8
      %s5512 = scalar_lea.vmem %s3, %s5511
      %p5513 = scmp.lt.s32.totalorder %s16, 1
      %s5514 = scalar_select %p5513, %s16, 1
      %s5515 = smul.addr %s5514, 32
      %s5516 = smul.addr %s5515, 8
      %s5517 = scalar_lea.vmem %s4, %s5516
      // Predicated region
      $region33: #{convnext_block.2} parent=31 // pred_check
        %p5518 = pneg %p102
      $region34: #{convnext_block.2} parent=31 // pred_check_branch
        %5520 = sbr.rel (%p5518) target = $region36
      $region35: #{convnext_block.2} parent=31 // pred_region
        _
      $region36: #{convnext_block.2} parent=31 // pred_fallthru
        _
      // Predicated region
      $region37: #{convnext_block.2} parent=31 // pred_check
        %p5521 = pneg %p128
      $region38: #{convnext_block.2} parent=31 // pred_check_branch
        %5523 = sbr.rel (%p5521) target = $region40
      $region39: #{convnext_block.2} parent=31 // pred_region
        _
      $region40: #{convnext_block.2} parent=31 // pred_fallthru
        _
    $region32: #{convnext_block.2} parent=5 // pred_fallthru
      _
    %p5524 = scmp.le.s32.totalorder 2, %s11
    // Predicated region
    $region41: #{convnext_block.2} parent=5 // pred_check
      %p5525 = pneg %p5524
    $region42: #{convnext_block.2} parent=5 // pred_check_branch
      %5527 = sbr.rel (%p5525) target = $region44
    $region43: #{convnext_block.2} parent=5 // pred_region
      %s5528 = ssub.s32 %s11, 2
      // Predicated region
      $region45: #{convnext_block.2} parent=43 // pred_check
        %p5529 = pneg %p108
      $region46: #{convnext_block.2} parent=43 // pred_check_branch
        %5531 = sbr.rel (%p5529) target = $region48
      $region47: #{convnext_block.2} parent=43 // pred_region
        %p5532 = scmp.lt.s32.totalorder %s17, 1
        %s5533 = scalar_select %p5532, %s17, 1
        %s5534 = smul.addr %s5533, 32
        %s5535 = smul.addr %s5534, 8
        %s5536 = scalar_lea.vmem %s3, %s5535
      $region48: #{convnext_block.2} parent=43 // pred_fallthru
        _
      // Predicated region
      $region49: #{convnext_block.2} parent=43 // pred_check
        %p5537 = pneg %p134
      $region50: #{convnext_block.2} parent=43 // pred_check_branch
        %5539 = sbr.rel (%p5537) target = $region52
      $region51: #{convnext_block.2} parent=43 // pred_region
        %p5540 = scmp.lt.s32.totalorder %s17, 1
        %s5541 = scalar_select %p5540, %s17, 1
        %s5542 = smul.addr %s5541, 32
        %s5543 = smul.addr %s5542, 8
        %s5544 = scalar_lea.vmem %s4, %s5543
      $region52: #{convnext_block.2} parent=43 // pred_fallthru
        _
    $region44: #{convnext_block.2} parent=5 // pred_fallthru
      _
  $region6: #{convnext_block.2} parent=0 // loop_footer
    %s15 = sadd.s32 1, %s11
  $region7: #{convnext_block.2} parent=0 // loop_footer_branch
    %10 = sbr.rel target = $region3
  $region8: #{convnext_block.2} parent=0 // loop_exit
    _

</llo_original>
